<compile_context>
chip_gen: v6e
topology: v6e:2x2x1
jax: 0.10.0
libtpu: 0.0.40
codegen_flags: <defaults>
</compile_context>

<pallas_src>
import functools

import jax
import jax.numpy as jnp
import numpy as np
from jax import lax
from jax.experimental import pallas as pl
from jax.experimental.pallas import tpu as pltpu


# -----------------------------------------------------------------------------
# Fused kernel: 2-layer ConvLSTM recurrence + avg-pool + FC head, grid=(B,)
# -----------------------------------------------------------------------------
def _convlstm_head_kernel(x_ref, w1_ref, b1_ref, w2_ref, b2_ref,
                          wfc_ref, bfc_ref, woa_ref, boa_ref,        # inputs
                          oa_ref, feat_ref,                          # outputs
                          comb1_ref, comb2_ref, patch1_ref, patch2_ref,
                          h1_ref, c1_ref, h2_ref, c2_ref, pooled_ref,  # scratch
                          *, H, W, C, Hd, S, lstm_mem):
    N = H * W

    # ---- per-batch-row init --------------------------------------------------
    # Zero the padded conv-input buffers once: their spatial halo provides the
    # 'same' zero padding for every step and is never written again.
    comb1_ref[...] = jnp.zeros_like(comb1_ref)
    comb2_ref[...] = jnp.zeros_like(comb2_ref)
    h1_ref[...] = jnp.zeros_like(h1_ref)     # lstm_init_h (zeros)
    c1_ref[...] = jnp.zeros_like(c1_ref)     # lstm_init_c (zeros)
    h2_ref[...] = jnp.zeros_like(h2_ref)
    c2_ref[...] = jnp.zeros_like(c2_ref)

    def cell(comb_ref, patch_ref, w_ref, b_ref, h_ref, c_ref, x_val, cin):
        """One ConvLSTM cell step; returns y_step == h_next (skip=False)."""
        ct = cin + Hd
        # In-kernel cat([x, h]) + zero padding: write the interior of the
        # padded VMEM buffer (halo stays zero).  State never leaves VMEM.
        comb_ref[1:H + 1, 1:W + 1, 0:cin] = x_val
        comb_ref[1:H + 1, 1:W + 1, cin:ct] = h_ref[...].reshape(H, W, Hd)

        # Gather the 9 shifted taps into one lane-concatenated im2col patch so
        # the whole 3x3 conv becomes a single (N, 9*Ct) x (9*Ct, 4*Hd) MXU
        # matmul instead of 9 small-K matmuls (far fewer MXU row passes).
        for t in range(9):
            ky, kx = t // 3, t % 3
            patch_ref[:, :, t * ct:(t + 1) * ct] = \
                comb_ref[ky:ky + H, kx:kx + W, :]

        z = jnp.dot(patch_ref[...].reshape(N, 9 * ct), w_ref[...],
                    preferred_element_type=jnp.float32) + b_ref[...]

        # Gates, split order (i, f, o, g).  Sigmoid is applied on the full
        # lane-dense (N, 4*Hd) block once, then sliced.
        sig = jax.nn.sigmoid(z)
        i = sig[:, 0 * Hd:1 * Hd]
        f = sig[:, 1 * Hd:2 * Hd]
        o = sig[:, 2 * Hd:3 * Hd]
        g = jnp.tanh(z[:, 3 * Hd:4 * Hd])

        c_next = f * c_ref[...] + i * g
        h_next = o * jnp.tanh(c_next)
        if lstm_mem:
            c_ref[...] = c_next
            h_ref[...] = h_next
        else:
            # y_step is still h_next; only the carried state is reset.
            c_ref[...] = jnp.zeros_like(c_ref)
            h_ref[...] = jnp.zeros_like(h_ref)
        return h_next                                    # (N, Hd)

    # ---- recurrence over the sequence (inside the kernel: no per-step grid
    # overhead, state stays in VMEM) -------------------------------------------
    def step(s, carry):
        x_t = x_ref[s]                                   # (H, W, C)
        y1 = cell(comb1_ref, patch1_ref, w1_ref, b1_ref, h1_ref, c1_ref,
                  x_t, C)
        y2 = cell(comb2_ref, patch2_ref, w2_ref, b2_ref, h2_ref, c2_ref,
                  y1.reshape(H, W, Hd), Hd)
        # Fused AdaptiveAvgPool2d((1, 1)) over H, W for this step.
        pooled_ref[pl.ds(s, 1), :] = (
            jnp.sum(y2, axis=0, keepdims=True) * (1.0 / N))
        return carry

    lax.fori_loop(0, S, step, 0)

    # ---- fused FC head: fc -> relu -> merged fc_o/fc_a -----------------------
    feat = jnp.dot(pooled_ref[...], wfc_ref[...],
                   preferred_element_type=jnp.float32) + bfc_ref[...]
    feat = jnp.maximum(feat, 0.0)                        # relu
    oa = jnp.dot(feat, woa_ref[...],
                 preferred_element_type=jnp.float32) + boa_ref[...]
    feat_ref[...] = feat                                 # (S, C)
    oa_ref[...] = oa                                     # (S, 2)


def convlstm_head_pallas(x_nhwc, params, hidden_dim, lstm_mem=True):
    B, S, H, W, C = x_nhwc.shape
    Hd = hidden_dim
    N = H * W
    ct1 = C + Hd
    ct2 = Hd + Hd

    kernel = functools.partial(_convlstm_head_kernel, H=H, W=W, C=C, Hd=Hd,
                               S=S, lstm_mem=lstm_mem)

    flops = int(2 * B * S * N * 9 * 4 * Hd * (ct1 + ct2)
                + 2 * B * S * (Hd * C + C * 2))
    transcendentals = int(B * S * 2 * (N * 4 * Hd + 2 * N * Hd))
    bytes_accessed = int(4 * (x_nhwc.size
                              + params["w1"].size + params["b1"].size
                              + params["w2"].size + params["b2"].size
                              + params["wfc"].size + params["bfc"].size
                              + params["woa"].size + params["boa"].size
                              + B * S * (2 + C)))

    oa, feat = pl.pallas_call(
        kernel,
        out_shape=(jax.ShapeDtypeStruct((B, S, 2), jnp.float32),
                   jax.ShapeDtypeStruct((B, S, C), jnp.float32)),
        grid_spec=pltpu.PrefetchScalarGridSpec(
            num_scalar_prefetch=0,
            grid=(B,),
            in_specs=[
                pl.BlockSpec((None, S, H, W, C), lambda b: (b, 0, 0, 0, 0)),
                pl.BlockSpec((9 * ct1, 4 * Hd), lambda b: (0, 0)),
                pl.BlockSpec((1, 4 * Hd), lambda b: (0, 0)),
                pl.BlockSpec((9 * ct2, 4 * Hd), lambda b: (0, 0)),
                pl.BlockSpec((1, 4 * Hd), lambda b: (0, 0)),
                pl.BlockSpec((Hd, C), lambda b: (0, 0)),
                pl.BlockSpec((1, C), lambda b: (0, 0)),
                pl.BlockSpec((C, 2), lambda b: (0, 0)),
                pl.BlockSpec((1, 2), lambda b: (0, 0)),
            ],
            out_specs=(
                pl.BlockSpec((None, S, 2), lambda b: (b, 0, 0)),
                pl.BlockSpec((None, S, C), lambda b: (b, 0, 0)),
            ),
            scratch_shapes=[
                pltpu.VMEM((H + 2, W + 2, ct1), jnp.float32),   # cat([x, h1])
                pltpu.VMEM((H + 2, W + 2, ct2), jnp.float32),   # cat([y1, h2])
                pltpu.VMEM((H, W, 9 * ct1), jnp.float32),       # im2col patch 1
                pltpu.VMEM((H, W, 9 * ct2), jnp.float32),       # im2col patch 2
                pltpu.VMEM((N, Hd), jnp.float32),               # h1
                pltpu.VMEM((N, Hd), jnp.float32),               # c1
                pltpu.VMEM((N, Hd), jnp.float32),               # h2
                pltpu.VMEM((N, Hd), jnp.float32),               # c2
                pltpu.VMEM((S, Hd), jnp.float32),               # pooled per step
            ],
        ),
        compiler_params=pltpu.CompilerParams(
            dimension_semantics=("parallel",)),
        cost_estimate=pl.CostEstimate(flops=flops,
                                      transcendentals=transcendentals,
                                      bytes_accessed=bytes_accessed),
    )(x_nhwc, params["w1"], params["b1"], params["w2"], params["b2"],
      params["wfc"], params["bfc"], params["woa"], params["boa"])
    return oa, feat


# -----------------------------------------------------------------------------
# Full ConvLSTMHead forward
# -----------------------------------------------------------------------------
def convlstm_head_forward(x, params, lstm_mem=True, get_features=False):
    # x: (B, S, C, H, W) float32, matching the PyTorch module's input layout.
    Hd = params["wfc"].shape[0]
    x_nhwc = jnp.transpose(x, (0, 1, 3, 4, 2))           # (B, S, H, W, C)

    oa, feat = convlstm_head_pallas(x_nhwc, params, Hd, lstm_mem=lstm_mem)
    offset = oa[..., 0:1]                                # (B, S, 1)
    angle = oa[..., 1:2]                                 # (B, S, 1)
    if get_features:
        return offset, angle, feat                       # feat: (B, S, C)
    return offset, angle


# -----------------------------------------------------------------------------
# Deterministic parameter initialization (shapes per the module's __init__)
# -----------------------------------------------------------------------------
def init_params(key, input_dim, hidden_dim):
    Hd = hidden_dim
    params = {}
    in_dim = input_dim
    for idx in (1, 2):                               # depth = 2
        key, kw, kb = jax.random.split(key, 3)
        ct = in_dim + Hd
        bound = 1.0 / np.sqrt(ct * 3 * 3)
        # PyTorch Conv2d weight (4*Hd, Ct, 3, 3) -> tap-major rows (9*Ct, 4*Hd)
        w_pt = jax.random.uniform(kw, (4 * Hd, ct, 3, 3), jnp.float32,
                                  -bound, bound)
        params[f"w{idx}"] = jnp.transpose(w_pt, (2, 3, 1, 0)).reshape(
            9 * ct, 4 * Hd)
        params[f"b{idx}"] = jax.random.uniform(kb, (1, 4 * Hd), jnp.float32,
                                               -bound, bound)
        in_dim = Hd                    # output_dim == hidden_dim (skip=False)

    key, k1, k2, k3, k4, k5, k6 = jax.random.split(key, 7)
    bound = 1.0 / np.sqrt(Hd)
    params["wfc"] = jax.random.uniform(k1, (Hd, input_dim), jnp.float32,
                                       -bound, bound)
    params["bfc"] = jax.random.uniform(k2, (1, input_dim), jnp.float32,
                                       -bound, bound)
    bound = 1.0 / np.sqrt(input_dim)
    wo = jax.random.uniform(k3, (input_dim, 1), jnp.float32, -bound, bound)
    bo = jax.random.uniform(k4, (1, 1), jnp.float32, -bound, bound)
    wa = jax.random.uniform(k5, (input_dim, 1), jnp.float32, -bound, bound)
    ba = jax.random.uniform(k6, (1, 1), jnp.float32, -bound, bound)
    # fc_o / fc_a fused into one lane-wider (C, 2) matmul.
    params["woa"] = jnp.concatenate([wo, wa], axis=1)
    params["boa"] = jnp.concatenate([bo, ba], axis=1)
    return params


if __name__ == "__main__":
    B, S, C, H, W = 2, 8, 4, 16, 16
    hidden_dim = 32

    key = jax.random.PRNGKey(0)
    key, kx, kp = jax.random.split(key, 3)
    x = jax.random.normal(kx, (B, S, C, H, W), jnp.float32)
    params = init_params(kp, C, hidden_dim)

    fwd = jax.jit(functools.partial(convlstm_head_forward, lstm_mem=True))
    offset, angle = fwd(x, params)
    offset = jax.block_until_ready(offset)
    angle = jax.block_until_ready(angle)

    assert offset.shape == (B, S, 1) and angle.shape == (B, S, 1)
    assert bool(jnp.all(jnp.isfinite(offset)))
    assert bool(jnp.all(jnp.isfinite(angle)))
    print("KERNEL_OK")
</pallas_src>

<mosaic_0001>
module attributes {stable_mosaic.version = 11 : i64} {
  func.func @_convlstm_head_kernel(%arg0: i32, %arg1: memref<1x8x16x16x4xf32, #tpu.memory_space<vmem>>, %arg2: memref<324x128xf32, #tpu.memory_space<vmem>>, %arg3: memref<1x128xf32, #tpu.memory_space<vmem>>, %arg4: memref<576x128xf32, #tpu.memory_space<vmem>>, %arg5: memref<1x128xf32, #tpu.memory_space<vmem>>, %arg6: memref<32x4xf32, #tpu.memory_space<vmem>>, %arg7: memref<1x4xf32, #tpu.memory_space<vmem>>, %arg8: memref<4x2xf32, #tpu.memory_space<vmem>>, %arg9: memref<1x2xf32, #tpu.memory_space<vmem>>, %arg10: memref<1x8x2xf32, #tpu.memory_space<vmem>>, %arg11: memref<1x8x4xf32, #tpu.memory_space<vmem>>, %arg12: memref<18x18x36xf32, #tpu.memory_space<vmem>>, %arg13: memref<18x18x64xf32, #tpu.memory_space<vmem>>, %arg14: memref<16x16x324xf32, #tpu.memory_space<vmem>>, %arg15: memref<16x16x576xf32, #tpu.memory_space<vmem>>, %arg16: memref<256x32xf32, #tpu.memory_space<vmem>>, %arg17: memref<256x32xf32, #tpu.memory_space<vmem>>, %arg18: memref<256x32xf32, #tpu.memory_space<vmem>>, %arg19: memref<256x32xf32, #tpu.memory_space<vmem>>, %arg20: memref<8x32xf32, #tpu.memory_space<vmem>>) attributes {dimension_semantics = [#tpu.dimension_semantics<parallel>], iteration_bounds = array<i64: 2>, scalar_prefetch = 0 : i64, scratch_operands = 9 : i64, tpu.core_type = #tpu.core_type<tc>, window_params = [{transform_indices = @transform_0, window_bounds = array<i64: 1, 8, 16, 16, 4>}, {pipeline_mode = #tpu.pipeline_mode<synchronous>, transform_indices = @transform_1, window_bounds = array<i64: 324, 128>}, {pipeline_mode = #tpu.pipeline_mode<synchronous>, transform_indices = @transform_2, window_bounds = array<i64: 1, 128>}, {pipeline_mode = #tpu.pipeline_mode<synchronous>, transform_indices = @transform_3, window_bounds = array<i64: 576, 128>}, {pipeline_mode = #tpu.pipeline_mode<synchronous>, transform_indices = @transform_4, window_bounds = array<i64: 1, 128>}, {pipeline_mode = #tpu.pipeline_mode<synchronous>, transform_indices = @transform_5, window_bounds = array<i64: 32, 4>}, {pipeline_mode = #tpu.pipeline_mode<synchronous>, transform_indices = @transform_6, window_bounds = array<i64: 1, 4>}, {pipeline_mode = #tpu.pipeline_mode<synchronous>, transform_indices = @transform_7, window_bounds = array<i64: 4, 2>}, {pipeline_mode = #tpu.pipeline_mode<synchronous>, transform_indices = @transform_8, window_bounds = array<i64: 1, 2>}, {transform_indices = @transform_9, window_bounds = array<i64: 1, 8, 2>}, {transform_indices = @transform_10, window_bounds = array<i64: 1, 8, 4>}]} {
    %cst = arith.constant 0.000000e+00 : f32
    %0 = vector.broadcast %cst : f32 to vector<18x18x36xf32>
    %c0 = arith.constant 0 : index
    %c0_0 = arith.constant 0 : index
    %c0_1 = arith.constant 0 : index
    %1 = vector.load %arg12[%c0, %c0_0, %c0_1] : memref<18x18x36xf32, #tpu.memory_space<vmem>>, vector<18x18x36xf32>
    tpu.vector_store %arg12[%c0, %c0_0, %c0_1], %0 {strides = array<i32>} : memref<18x18x36xf32, #tpu.memory_space<vmem>>, vector<18x18x36xf32>,
    %cst_2 = arith.constant 0.000000e+00 : f32
    %2 = vector.broadcast %cst_2 : f32 to vector<18x18x64xf32>
    %c0_3 = arith.constant 0 : index
    %c0_4 = arith.constant 0 : index
    %c0_5 = arith.constant 0 : index
    %3 = vector.load %arg13[%c0_3, %c0_4, %c0_5] : memref<18x18x64xf32, #tpu.memory_space<vmem>>, vector<18x18x64xf32>
    tpu.vector_store %arg13[%c0_3, %c0_4, %c0_5], %2 {strides = array<i32>} : memref<18x18x64xf32, #tpu.memory_space<vmem>>, vector<18x18x64xf32>,
    %cst_6 = arith.constant 0.000000e+00 : f32
    %4 = vector.broadcast %cst_6 : f32 to vector<256x32xf32>
    %c0_7 = arith.constant 0 : index
    %c0_8 = arith.constant 0 : index
    %5 = vector.load %arg16[%c0_7, %c0_8] : memref<256x32xf32, #tpu.memory_space<vmem>>, vector<256x32xf32>
    tpu.vector_store %arg16[%c0_7, %c0_8], %4 {strides = array<i32>} : memref<256x32xf32, #tpu.memory_space<vmem>>, vector<256x32xf32>,
    %cst_9 = arith.constant 0.000000e+00 : f32
    %6 = vector.broadcast %cst_9 : f32 to vector<256x32xf32>
    %c0_10 = arith.constant 0 : index
    %c0_11 = arith.constant 0 : index
    %7 = vector.load %arg17[%c0_10, %c0_11] : memref<256x32xf32, #tpu.memory_space<vmem>>, vector<256x32xf32>
    tpu.vector_store %arg17[%c0_10, %c0_11], %6 {strides = array<i32>} : memref<256x32xf32, #tpu.memory_space<vmem>>, vector<256x32xf32>,
    %cst_12 = arith.constant 0.000000e+00 : f32
    %8 = vector.broadcast %cst_12 : f32 to vector<256x32xf32>
    %c0_13 = arith.constant 0 : index
    %c0_14 = arith.constant 0 : index
    %9 = vector.load %arg18[%c0_13, %c0_14] : memref<256x32xf32, #tpu.memory_space<vmem>>, vector<256x32xf32>
    tpu.vector_store %arg18[%c0_13, %c0_14], %8 {strides = array<i32>} : memref<256x32xf32, #tpu.memory_space<vmem>>, vector<256x32xf32>,
    %cst_15 = arith.constant 0.000000e+00 : f32
    %10 = vector.broadcast %cst_15 : f32 to vector<256x32xf32>
    %c0_16 = arith.constant 0 : index
    %c0_17 = arith.constant 0 : index
    %11 = vector.load %arg19[%c0_16, %c0_17] : memref<256x32xf32, #tpu.memory_space<vmem>>, vector<256x32xf32>
    tpu.vector_store %arg19[%c0_16, %c0_17], %10 {strides = array<i32>} : memref<256x32xf32, #tpu.memory_space<vmem>>, vector<256x32xf32>,
    %c0_i32 = arith.constant 0 : i32
    %c8_i32 = arith.constant 8 : i32
    %12 = arith.addi %c0_i32, %c8_i32 : i32
    %c1_i32 = arith.constant 1 : i32
    scf.for %arg21 = %c0_i32 to %12 step %c1_i32  : i32 {
      %c0_38 = arith.constant 0 : index
      %32 = arith.index_cast %arg21 : i32 to index
      %c0_39 = arith.constant 0 : index
      %c0_40 = arith.constant 0 : index
      %c0_41 = arith.constant 0 : index
      %33 = vector.load %arg1[%c0_38, %32, %c0_39, %c0_40, %c0_41] : memref<1x8x16x16x4xf32, #tpu.memory_space<vmem>>, vector<1x1x16x16x4xf32>
      %34 = vector.shape_cast %33 : vector<1x1x16x16x4xf32> to vector<16x16x4xf32>
      %c1 = arith.constant 1 : index
      %c1_42 = arith.constant 1 : index
      %c0_43 = arith.constant 0 : index
      %35 = vector.load %arg12[%c1, %c1_42, %c0_43] : memref<18x18x36xf32, #tpu.memory_space<vmem>>, vector<16x16x4xf32>
      tpu.vector_store %arg12[%c1, %c1_42, %c0_43], %34 {strides = array<i32>} : memref<18x18x36xf32, #tpu.memory_space<vmem>>, vector<16x16x4xf32>,
      %c0_44 = arith.constant 0 : index
      %c0_45 = arith.constant 0 : index
      %36 = vector.load %arg16[%c0_44, %c0_45] : memref<256x32xf32, #tpu.memory_space<vmem>>, vector<256x32xf32>
      %37 = vector.shape_cast %36 : vector<256x32xf32> to vector<16x16x32xf32>
      %c1_46 = arith.constant 1 : index
      %c1_47 = arith.constant 1 : index
      %c4 = arith.constant 4 : index
      %38 = vector.load %arg12[%c1_46, %c1_47, %c4] : memref<18x18x36xf32, #tpu.memory_space<vmem>>, vector<16x16x32xf32>
      tpu.vector_store %arg12[%c1_46, %c1_47, %c4], %37 {strides = array<i32>} : memref<18x18x36xf32, #tpu.memory_space<vmem>>, vector<16x16x32xf32>,
      %c0_48 = arith.constant 0 : index
      %c0_49 = arith.constant 0 : index
      %c0_50 = arith.constant 0 : index
      %39 = vector.load %arg12[%c0_48, %c0_49, %c0_50] : memref<18x18x36xf32, #tpu.memory_space<vmem>>, vector<16x16x36xf32>
      %c0_51 = arith.constant 0 : index
      %c0_52 = arith.constant 0 : index
      %c0_53 = arith.constant 0 : index
      %40 = vector.load %arg14[%c0_51, %c0_52, %c0_53] : memref<16x16x324xf32, #tpu.memory_space<vmem>>, vector<16x16x36xf32>
      tpu.vector_store %arg14[%c0_51, %c0_52, %c0_53], %39 {strides = array<i32>} : memref<16x16x324xf32, #tpu.memory_space<vmem>>, vector<16x16x36xf32>,
      %c0_54 = arith.constant 0 : index
      %c1_55 = arith.constant 1 : index
      %c0_56 = arith.constant 0 : index
      %41 = vector.load %arg12[%c0_54, %c1_55, %c0_56] : memref<18x18x36xf32, #tpu.memory_space<vmem>>, vector<16x16x36xf32>
      %c0_57 = arith.constant 0 : index
      %c0_58 = arith.constant 0 : index
      %c36 = arith.constant 36 : index
      %42 = vector.load %arg14[%c0_57, %c0_58, %c36] : memref<16x16x324xf32, #tpu.memory_space<vmem>>, vector<16x16x36xf32>
      tpu.vector_store %arg14[%c0_57, %c0_58, %c36], %41 {strides = array<i32>} : memref<16x16x324xf32, #tpu.memory_space<vmem>>, vector<16x16x36xf32>,
      %c0_59 = arith.constant 0 : index
      %c2 = arith.constant 2 : index
      %c0_60 = arith.constant 0 : index
      %43 = vector.load %arg12[%c0_59, %c2, %c0_60] : memref<18x18x36xf32, #tpu.memory_space<vmem>>, vector<16x16x36xf32>
      %c0_61 = arith.constant 0 : index
      %c0_62 = arith.constant 0 : index
      %c72 = arith.constant 72 : index
      %44 = vector.load %arg14[%c0_61, %c0_62, %c72] : memref<16x16x324xf32, #tpu.memory_space<vmem>>, vector<16x16x36xf32>
      tpu.vector_store %arg14[%c0_61, %c0_62, %c72], %43 {strides = array<i32>} : memref<16x16x324xf32, #tpu.memory_space<vmem>>, vector<16x16x36xf32>,
      %c1_63 = arith.constant 1 : index
      %c0_64 = arith.constant 0 : index
      %c0_65 = arith.constant 0 : index
      %45 = vector.load %arg12[%c1_63, %c0_64, %c0_65] : memref<18x18x36xf32, #tpu.memory_space<vmem>>, vector<16x16x36xf32>
      %c0_66 = arith.constant 0 : index
      %c0_67 = arith.constant 0 : index
      %c108 = arith.constant 108 : index
      %46 = vector.load %arg14[%c0_66, %c0_67, %c108] : memref<16x16x324xf32, #tpu.memory_space<vmem>>, vector<16x16x36xf32>
      tpu.vector_store %arg14[%c0_66, %c0_67, %c108], %45 {strides = array<i32>} : memref<16x16x324xf32, #tpu.memory_space<vmem>>, vector<16x16x36xf32>,
      %c1_68 = arith.constant 1 : index
      %c1_69 = arith.constant 1 : index
      %c0_70 = arith.constant 0 : index
      %47 = vector.load %arg12[%c1_68, %c1_69, %c0_70] : memref<18x18x36xf32, #tpu.memory_space<vmem>>, vector<16x16x36xf32>
      %c0_71 = arith.constant 0 : index
      %c0_72 = arith.constant 0 : index
      %c144 = arith.constant 144 : index
      %48 = vector.load %arg14[%c0_71, %c0_72, %c144] : memref<16x16x324xf32, #tpu.memory_space<vmem>>, vector<16x16x36xf32>
      tpu.vector_store %arg14[%c0_71, %c0_72, %c144], %47 {strides = array<i32>} : memref<16x16x324xf32, #tpu.memory_space<vmem>>, vector<16x16x36xf32>,
      %c1_73 = arith.constant 1 : index
      %c2_74 = arith.constant 2 : index
      %c0_75 = arith.constant 0 : index
      %49 = vector.load %arg12[%c1_73, %c2_74, %c0_75] : memref<18x18x36xf32, #tpu.memory_space<vmem>>, vector<16x16x36xf32>
      %c0_76 = arith.constant 0 : index
      %c0_77 = arith.constant 0 : index
      %c180 = arith.constant 180 : index
      %50 = vector.load %arg14[%c0_76, %c0_77, %c180] : memref<16x16x324xf32, #tpu.memory_space<vmem>>, vector<16x16x36xf32>
      tpu.vector_store %arg14[%c0_76, %c0_77, %c180], %49 {strides = array<i32>} : memref<16x16x324xf32, #tpu.memory_space<vmem>>, vector<16x16x36xf32>,
      %c2_78 = arith.constant 2 : index
      %c0_79 = arith.constant 0 : index
      %c0_80 = arith.constant 0 : index
      %51 = vector.load %arg12[%c2_78, %c0_79, %c0_80] : memref<18x18x36xf32, #tpu.memory_space<vmem>>, vector<16x16x36xf32>
      %c0_81 = arith.constant 0 : index
      %c0_82 = arith.constant 0 : index
      %c216 = arith.constant 216 : index
      %52 = vector.load %arg14[%c0_81, %c0_82, %c216] : memref<16x16x324xf32, #tpu.memory_space<vmem>>, vector<16x16x36xf32>
      tpu.vector_store %arg14[%c0_81, %c0_82, %c216], %51 {strides = array<i32>} : memref<16x16x324xf32, #tpu.memory_space<vmem>>, vector<16x16x36xf32>,
      %c2_83 = arith.constant 2 : index
      %c1_84 = arith.constant 1 : index
      %c0_85 = arith.constant 0 : index
      %53 = vector.load %arg12[%c2_83, %c1_84, %c0_85] : memref<18x18x36xf32, #tpu.memory_space<vmem>>, vector<16x16x36xf32>
      %c0_86 = arith.constant 0 : index
      %c0_87 = arith.constant 0 : index
      %c252 = arith.constant 252 : index
      %54 = vector.load %arg14[%c0_86, %c0_87, %c252] : memref<16x16x324xf32, #tpu.memory_space<vmem>>, vector<16x16x36xf32>
      tpu.vector_store %arg14[%c0_86, %c0_87, %c252], %53 {strides = array<i32>} : memref<16x16x324xf32, #tpu.memory_space<vmem>>, vector<16x16x36xf32>,
      %c2_88 = arith.constant 2 : index
      %c2_89 = arith.constant 2 : index
      %c0_90 = arith.constant 0 : index
      %55 = vector.load %arg12[%c2_88, %c2_89, %c0_90] : memref<18x18x36xf32, #tpu.memory_space<vmem>>, vector<16x16x36xf32>
      %c0_91 = arith.constant 0 : index
      %c0_92 = arith.constant 0 : index
      %c288 = arith.constant 288 : index
      %56 = vector.load %arg14[%c0_91, %c0_92, %c288] : memref<16x16x324xf32, #tpu.memory_space<vmem>>, vector<16x16x36xf32>
      tpu.vector_store %arg14[%c0_91, %c0_92, %c288], %55 {strides = array<i32>} : memref<16x16x324xf32, #tpu.memory_space<vmem>>, vector<16x16x36xf32>,
      %c0_93 = arith.constant 0 : index
      %c0_94 = arith.constant 0 : index
      %c0_95 = arith.constant 0 : index
      %57 = vector.load %arg14[%c0_93, %c0_94, %c0_95] : memref<16x16x324xf32, #tpu.memory_space<vmem>>, vector<16x16x324xf32>
      %58 = vector.shape_cast %57 : vector<16x16x324xf32> to vector<256x324xf32>
      %c0_96 = arith.constant 0 : index
      %c0_97 = arith.constant 0 : index
      %59 = vector.load %arg2[%c0_96, %c0_97] : memref<324x128xf32, #tpu.memory_space<vmem>>, vector<324x128xf32>
      %cst_98 = arith.constant dense<0.000000e+00> : vector<256x128xf32>
      %60 = tpu.matmul %58, %59, %cst_98 {dimension_numbers = #tpu.dot_dimension_numbers<[1], [0], [0], [1], [0, 0, 1, 1], [], []>} : vector<256x324xf32>, vector<324x128xf32>, vector<256x128xf32> -> vector<256x128xf32>
      %c0_99 = arith.constant 0 : index
      %c0_100 = arith.constant 0 : index
      %61 = vector.load %arg3[%c0_99, %c0_100] : memref<1x128xf32, #tpu.memory_space<vmem>>, vector<1x128xf32>
      %62 = vector.broadcast %61 : vector<1x128xf32> to vector<256x128xf32>
      %63 = arith.addf %60, %62 : vector<256x128xf32>
      %64 = arith.negf %63 : vector<256x128xf32>
      %65 = math.exp %64 : vector<256x128xf32>
      %cst_101 = arith.constant 1.000000e+00 : f32
      %66 = vector.broadcast %cst_101 : f32 to vector<256x128xf32>
      %67 = arith.addf %66, %65 : vector<256x128xf32>
      %68 = arith.divf %66, %67 : vector<256x128xf32>
      %69 = vector.extract_strided_slice %68 {offsets = [0, 0], sizes = [256, 32], strides = [1, 1]} : vector<256x128xf32> to vector<256x32xf32>
      %70 = vector.extract_strided_slice %68 {offsets = [0, 32], sizes = [256, 32], strides = [1, 1]} : vector<256x128xf32> to vector<256x32xf32>
      %71 = vector.extract_strided_slice %68 {offsets = [0, 64], sizes = [256, 32], strides = [1, 1]} : vector<256x128xf32> to vector<256x32xf32>
      %72 = vector.extract_strided_slice %63 {offsets = [0, 96], sizes = [256, 32], strides = [1, 1]} : vector<256x128xf32> to vector<256x32xf32>
      %73 = math.tanh %72 : vector<256x32xf32>
      %c0_102 = arith.constant 0 : index
      %c0_103 = arith.constant 0 : index
      %74 = vector.load %arg17[%c0_102, %c0_103] : memref<256x32xf32, #tpu.memory_space<vmem>>, vector<256x32xf32>
      %75 = arith.mulf %70, %74 : vector<256x32xf32>
      %76 = arith.mulf %69, %73 : vector<256x32xf32>
      %77 = arith.addf %75, %76 : vector<256x32xf32>
      %78 = math.tanh %77 : vector<256x32xf32>
      %79 = arith.mulf %71, %78 : vector<256x32xf32>
      %c0_104 = arith.constant 0 : index
      %c0_105 = arith.constant 0 : index
      %80 = vector.load %arg17[%c0_104, %c0_105] : memref<256x32xf32, #tpu.memory_space<vmem>>, vector<256x32xf32>
      tpu.vector_store %arg17[%c0_104, %c0_105], %77 {strides = array<i32>} : memref<256x32xf32, #tpu.memory_space<vmem>>, vector<256x32xf32>,
      %c0_106 = arith.constant 0 : index
      %c0_107 = arith.constant 0 : index
      %81 = vector.load %arg16[%c0_106, %c0_107] : memref<256x32xf32, #tpu.memory_space<vmem>>, vector<256x32xf32>
      tpu.vector_store %arg16[%c0_106, %c0_107], %79 {strides = array<i32>} : memref<256x32xf32, #tpu.memory_space<vmem>>, vector<256x32xf32>,
      %82 = vector.shape_cast %79 : vector<256x32xf32> to vector<16x16x32xf32>
      %c1_108 = arith.constant 1 : index
      %c1_109 = arith.constant 1 : index
      %c0_110 = arith.constant 0 : index
      %83 = vector.load %arg13[%c1_108, %c1_109, %c0_110] : memref<18x18x64xf32, #tpu.memory_space<vmem>>, vector<16x16x32xf32>
      tpu.vector_store %arg13[%c1_108, %c1_109, %c0_110], %82 {strides = array<i32>} : memref<18x18x64xf32, #tpu.memory_space<vmem>>, vector<16x16x32xf32>,
      %c0_111 = arith.constant 0 : index
      %c0_112 = arith.constant 0 : index
      %84 = vector.load %arg18[%c0_111, %c0_112] : memref<256x32xf32, #tpu.memory_space<vmem>>, vector<256x32xf32>
      %85 = vector.shape_cast %84 : vector<256x32xf32> to vector<16x16x32xf32>
      %c1_113 = arith.constant 1 : index
      %c1_114 = arith.constant 1 : index
      %c32 = arith.constant 32 : index
      %86 = vector.load %arg13[%c1_113, %c1_114, %c32] : memref<18x18x64xf32, #tpu.memory_space<vmem>>, vector<16x16x32xf32>
      tpu.vector_store %arg13[%c1_113, %c1_114, %c32], %85 {strides = array<i32>} : memref<18x18x64xf32, #tpu.memory_space<vmem>>, vector<16x16x32xf32>,
      %c0_115 = arith.constant 0 : index
      %c0_116 = arith.constant 0 : index
      %c0_117 = arith.constant 0 : index
      %87 = vector.load %arg13[%c0_115, %c0_116, %c0_117] : memref<18x18x64xf32, #tpu.memory_space<vmem>>, vector<16x16x64xf32>
      %c0_118 = arith.constant 0 : index
      %c0_119 = arith.constant 0 : index
      %c0_120 = arith.constant 0 : index
      %88 = vector.load %arg15[%c0_118, %c0_119, %c0_120] : memref<16x16x576xf32, #tpu.memory_space<vmem>>, vector<16x16x64xf32>
      tpu.vector_store %arg15[%c0_118, %c0_119, %c0_120], %87 {strides = array<i32>} : memref<16x16x576xf32, #tpu.memory_space<vmem>>, vector<16x16x64xf32>,
      %c0_121 = arith.constant 0 : index
      %c1_122 = arith.constant 1 : index
      %c0_123 = arith.constant 0 : index
      %89 = vector.load %arg13[%c0_121, %c1_122, %c0_123] : memref<18x18x64xf32, #tpu.memory_space<vmem>>, vector<16x16x64xf32>
      %c0_124 = arith.constant 0 : index
      %c0_125 = arith.constant 0 : index
      %c64 = arith.constant 64 : index
      %90 = vector.load %arg15[%c0_124, %c0_125, %c64] : memref<16x16x576xf32, #tpu.memory_space<vmem>>, vector<16x16x64xf32>
      tpu.vector_store %arg15[%c0_124, %c0_125, %c64], %89 {strides = array<i32>} : memref<16x16x576xf32, #tpu.memory_space<vmem>>, vector<16x16x64xf32>,
      %c0_126 = arith.constant 0 : index
      %c2_127 = arith.constant 2 : index
      %c0_128 = arith.constant 0 : index
      %91 = vector.load %arg13[%c0_126, %c2_127, %c0_128] : memref<18x18x64xf32, #tpu.memory_space<vmem>>, vector<16x16x64xf32>
      %c0_129 = arith.constant 0 : index
      %c0_130 = arith.constant 0 : index
      %c128 = arith.constant 128 : index
      %92 = vector.load %arg15[%c0_129, %c0_130, %c128] : memref<16x16x576xf32, #tpu.memory_space<vmem>>, vector<16x16x64xf32>
      tpu.vector_store %arg15[%c0_129, %c0_130, %c128], %91 {strides = array<i32>} : memref<16x16x576xf32, #tpu.memory_space<vmem>>, vector<16x16x64xf32>,
      %c1_131 = arith.constant 1 : index
      %c0_132 = arith.constant 0 : index
      %c0_133 = arith.constant 0 : index
      %93 = vector.load %arg13[%c1_131, %c0_132, %c0_133] : memref<18x18x64xf32, #tpu.memory_space<vmem>>, vector<16x16x64xf32>
      %c0_134 = arith.constant 0 : index
      %c0_135 = arith.constant 0 : index
      %c192 = arith.constant 192 : index
      %94 = vector.load %arg15[%c0_134, %c0_135, %c192] : memref<16x16x576xf32, #tpu.memory_space<vmem>>, vector<16x16x64xf32>
      tpu.vector_store %arg15[%c0_134, %c0_135, %c192], %93 {strides = array<i32>} : memref<16x16x576xf32, #tpu.memory_space<vmem>>, vector<16x16x64xf32>,
      %c1_136 = arith.constant 1 : index
      %c1_137 = arith.constant 1 : index
      %c0_138 = arith.constant 0 : index
      %95 = vector.load %arg13[%c1_136, %c1_137, %c0_138] : memref<18x18x64xf32, #tpu.memory_space<vmem>>, vector<16x16x64xf32>
      %c0_139 = arith.constant 0 : index
      %c0_140 = arith.constant 0 : index
      %c256 = arith.constant 256 : index
      %96 = vector.load %arg15[%c0_139, %c0_140, %c256] : memref<16x16x576xf32, #tpu.memory_space<vmem>>, vector<16x16x64xf32>
      tpu.vector_store %arg15[%c0_139, %c0_140, %c256], %95 {strides = array<i32>} : memref<16x16x576xf32, #tpu.memory_space<vmem>>, vector<16x16x64xf32>,
      %c1_141 = arith.constant 1 : index
      %c2_142 = arith.constant 2 : index
      %c0_143 = arith.constant 0 : index
      %97 = vector.load %arg13[%c1_141, %c2_142, %c0_143] : memref<18x18x64xf32, #tpu.memory_space<vmem>>, vector<16x16x64xf32>
      %c0_144 = arith.constant 0 : index
      %c0_145 = arith.constant 0 : index
      %c320 = arith.constant 320 : index
      %98 = vector.load %arg15[%c0_144, %c0_145, %c320] : memref<16x16x576xf32, #tpu.memory_space<vmem>>, vector<16x16x64xf32>
      tpu.vector_store %arg15[%c0_144, %c0_145, %c320], %97 {strides = array<i32>} : memref<16x16x576xf32, #tpu.memory_space<vmem>>, vector<16x16x64xf32>,
      %c2_146 = arith.constant 2 : index
      %c0_147 = arith.constant 0 : index
      %c0_148 = arith.constant 0 : index
      %99 = vector.load %arg13[%c2_146, %c0_147, %c0_148] : memref<18x18x64xf32, #tpu.memory_space<vmem>>, vector<16x16x64xf32>
      %c0_149 = arith.constant 0 : index
      %c0_150 = arith.constant 0 : index
      %c384 = arith.constant 384 : index
      %100 = vector.load %arg15[%c0_149, %c0_150, %c384] : memref<16x16x576xf32, #tpu.memory_space<vmem>>, vector<16x16x64xf32>
      tpu.vector_store %arg15[%c0_149, %c0_150, %c384], %99 {strides = array<i32>} : memref<16x16x576xf32, #tpu.memory_space<vmem>>, vector<16x16x64xf32>,
      %c2_151 = arith.constant 2 : index
      %c1_152 = arith.constant 1 : index
      %c0_153 = arith.constant 0 : index
      %101 = vector.load %arg13[%c2_151, %c1_152, %c0_153] : memref<18x18x64xf32, #tpu.memory_space<vmem>>, vector<16x16x64xf32>
      %c0_154 = arith.constant 0 : index
      %c0_155 = arith.constant 0 : index
      %c448 = arith.constant 448 : index
      %102 = vector.load %arg15[%c0_154, %c0_155, %c448] : memref<16x16x576xf32, #tpu.memory_space<vmem>>, vector<16x16x64xf32>
      tpu.vector_store %arg15[%c0_154, %c0_155, %c448], %101 {strides = array<i32>} : memref<16x16x576xf32, #tpu.memory_space<vmem>>, vector<16x16x64xf32>,
      %c2_156 = arith.constant 2 : index
      %c2_157 = arith.constant 2 : index
      %c0_158 = arith.constant 0 : index
      %103 = vector.load %arg13[%c2_156, %c2_157, %c0_158] : memref<18x18x64xf32, #tpu.memory_space<vmem>>, vector<16x16x64xf32>
      %c0_159 = arith.constant 0 : index
      %c0_160 = arith.constant 0 : index
      %c512 = arith.constant 512 : index
      %104 = vector.load %arg15[%c0_159, %c0_160, %c512] : memref<16x16x576xf32, #tpu.memory_space<vmem>>, vector<16x16x64xf32>
      tpu.vector_store %arg15[%c0_159, %c0_160, %c512], %103 {strides = array<i32>} : memref<16x16x576xf32, #tpu.memory_space<vmem>>, vector<16x16x64xf32>,
      %c0_161 = arith.constant 0 : index
      %c0_162 = arith.constant 0 : index
      %c0_163 = arith.constant 0 : index
      %105 = vector.load %arg15[%c0_161, %c0_162, %c0_163] : memref<16x16x576xf32, #tpu.memory_space<vmem>>, vector<16x16x576xf32>
      %106 = vector.shape_cast %105 : vector<16x16x576xf32> to vector<256x576xf32>
      %c0_164 = arith.constant 0 : index
      %c0_165 = arith.constant 0 : index
      %107 = vector.load %arg4[%c0_164, %c0_165] : memref<576x128xf32, #tpu.memory_space<vmem>>, vector<576x128xf32>
      %cst_166 = arith.constant dense<0.000000e+00> : vector<256x128xf32>
      %108 = tpu.matmul %106, %107, %cst_166 {dimension_numbers = #tpu.dot_dimension_numbers<[1], [0], [0], [1], [0, 0, 1, 1], [], []>} : vector<256x576xf32>, vector<576x128xf32>, vector<256x128xf32> -> vector<256x128xf32>
      %c0_167 = arith.constant 0 : index
      %c0_168 = arith.constant 0 : index
      %109 = vector.load %arg5[%c0_167, %c0_168] : memref<1x128xf32, #tpu.memory_space<vmem>>, vector<1x128xf32>
      %110 = vector.broadcast %109 : vector<1x128xf32> to vector<256x128xf32>
      %111 = arith.addf %108, %110 : vector<256x128xf32>
      %112 = arith.negf %111 : vector<256x128xf32>
      %113 = math.exp %112 : vector<256x128xf32>
      %cst_169 = arith.constant 1.000000e+00 : f32
      %114 = vector.broadcast %cst_169 : f32 to vector<256x128xf32>
      %115 = arith.addf %114, %113 : vector<256x128xf32>
      %116 = arith.divf %114, %115 : vector<256x128xf32>
      %117 = vector.extract_strided_slice %116 {offsets = [0, 0], sizes = [256, 32], strides = [1, 1]} : vector<256x128xf32> to vector<256x32xf32>
      %118 = vector.extract_strided_slice %116 {offsets = [0, 32], sizes = [256, 32], strides = [1, 1]} : vector<256x128xf32> to vector<256x32xf32>
      %119 = vector.extract_strided_slice %116 {offsets = [0, 64], sizes = [256, 32], strides = [1, 1]} : vector<256x128xf32> to vector<256x32xf32>
      %120 = vector.extract_strided_slice %111 {offsets = [0, 96], sizes = [256, 32], strides = [1, 1]} : vector<256x128xf32> to vector<256x32xf32>
      %121 = math.tanh %120 : vector<256x32xf32>
      %c0_170 = arith.constant 0 : index
      %c0_171 = arith.constant 0 : index
      %122 = vector.load %arg19[%c0_170, %c0_171] : memref<256x32xf32, #tpu.memory_space<vmem>>, vector<256x32xf32>
      %123 = arith.mulf %118, %122 : vector<256x32xf32>
      %124 = arith.mulf %117, %121 : vector<256x32xf32>
      %125 = arith.addf %123, %124 : vector<256x32xf32>
      %126 = math.tanh %125 : vector<256x32xf32>
      %127 = arith.mulf %119, %126 : vector<256x32xf32>
      %c0_172 = arith.constant 0 : index
      %c0_173 = arith.constant 0 : index
      %128 = vector.load %arg19[%c0_172, %c0_173] : memref<256x32xf32, #tpu.memory_space<vmem>>, vector<256x32xf32>
      tpu.vector_store %arg19[%c0_172, %c0_173], %125 {strides = array<i32>} : memref<256x32xf32, #tpu.memory_space<vmem>>, vector<256x32xf32>,
      %c0_174 = arith.constant 0 : index
      %c0_175 = arith.constant 0 : index
      %129 = vector.load %arg18[%c0_174, %c0_175] : memref<256x32xf32, #tpu.memory_space<vmem>>, vector<256x32xf32>
      tpu.vector_store %arg18[%c0_174, %c0_175], %127 {strides = array<i32>} : memref<256x32xf32, #tpu.memory_space<vmem>>, vector<256x32xf32>,
      %cst_176 = arith.constant dense<0.000000e+00> : vector<32xf32>
      %130 = vector.multi_reduction <add>, %127, %cst_176 [0] : vector<256x32xf32> to vector<32xf32>
      %131 = vector.shape_cast %130 : vector<32xf32> to vector<1x32xf32>
      %cst_177 = arith.constant 3.906250e-03 : f32
      %132 = vector.broadcast %cst_177 : f32 to vector<1x32xf32>
      %133 = arith.mulf %131, %132 : vector<1x32xf32>
      %134 = arith.index_cast %arg21 : i32 to index
      %c0_178 = arith.constant 0 : index
      %135 = vector.load %arg20[%134, %c0_178] : memref<8x32xf32, #tpu.memory_space<vmem>>, vector<1x32xf32>
      tpu.vector_store %arg20[%134, %c0_178], %133 {strides = array<i32>} : memref<8x32xf32, #tpu.memory_space<vmem>>, vector<1x32xf32>,
    }
    %c8_i32_18 = arith.constant 8 : i32
    %c0_19 = arith.constant 0 : index
    %c0_20 = arith.constant 0 : index
    %13 = vector.load %arg20[%c0_19, %c0_20] : memref<8x32xf32, #tpu.memory_space<vmem>>, vector<8x32xf32>
    %c0_21 = arith.constant 0 : index
    %c0_22 = arith.constant 0 : index
    %14 = vector.load %arg6[%c0_21, %c0_22] : memref<32x4xf32, #tpu.memory_space<vmem>>, vector<32x4xf32>
    %cst_23 = arith.constant dense<0.000000e+00> : vector<8x4xf32>
    %15 = tpu.matmul %13, %14, %cst_23 {dimension_numbers = #tpu.dot_dimension_numbers<[1], [0], [0], [1], [0, 0, 1, 1], [], []>} : vector<8x32xf32>, vector<32x4xf32>, vector<8x4xf32> -> vector<8x4xf32>
    %c0_24 = arith.constant 0 : index
    %c0_25 = arith.constant 0 : index
    %16 = vector.load %arg7[%c0_24, %c0_25] : memref<1x4xf32, #tpu.memory_space<vmem>>, vector<1x4xf32>
    %17 = vector.broadcast %16 : vector<1x4xf32> to vector<8x4xf32>
    %18 = arith.addf %15, %17 : vector<8x4xf32>
    %cst_26 = arith.constant 0.000000e+00 : f32
    %19 = vector.broadcast %cst_26 : f32 to vector<8x4xf32>
    %20 = arith.maximumf %18, %19 : vector<8x4xf32>
    %c0_27 = arith.constant 0 : index
    %c0_28 = arith.constant 0 : index
    %21 = vector.load %arg8[%c0_27, %c0_28] : memref<4x2xf32, #tpu.memory_space<vmem>>, vector<4x2xf32>
    %cst_29 = arith.constant dense<0.000000e+00> : vector<8x2xf32>
    %22 = tpu.matmul %20, %21, %cst_29 {dimension_numbers = #tpu.dot_dimension_numbers<[1], [0], [0], [1], [0, 0, 1, 1], [], []>} : vector<8x4xf32>, vector<4x2xf32>, vector<8x2xf32> -> vector<8x2xf32>
    %c0_30 = arith.constant 0 : index
    %c0_31 = arith.constant 0 : index
    %23 = vector.load %arg9[%c0_30, %c0_31] : memref<1x2xf32, #tpu.memory_space<vmem>>, vector<1x2xf32>
    %24 = vector.broadcast %23 : vector<1x2xf32> to vector<8x2xf32>
    %25 = arith.addf %22, %24 : vector<8x2xf32>
    %c0_32 = arith.constant 0 : index
    %c0_33 = arith.constant 0 : index
    %c0_34 = arith.constant 0 : index
    %26 = vector.load %arg11[%c0_32, %c0_33, %c0_34] : memref<1x8x4xf32, #tpu.memory_space<vmem>>, vector<1x8x4xf32>
    %27 = vector.shape_cast %26 : vector<1x8x4xf32> to vector<8x4xf32>
    %28 = vector.shape_cast %20 : vector<8x4xf32> to vector<1x8x4xf32>
    tpu.vector_store %arg11[%c0_32, %c0_33, %c0_34], %28 {strides = array<i32>} : memref<1x8x4xf32, #tpu.memory_space<vmem>>, vector<1x8x4xf32>,
    %c0_35 = arith.constant 0 : index
    %c0_36 = arith.constant 0 : index
    %c0_37 = arith.constant 0 : index
    %29 = vector.load %arg10[%c0_35, %c0_36, %c0_37] : memref<1x8x2xf32, #tpu.memory_space<vmem>>, vector<1x8x2xf32>
    %30 = vector.shape_cast %29 : vector<1x8x2xf32> to vector<8x2xf32>
    %31 = vector.shape_cast %25 : vector<8x2xf32> to vector<1x8x2xf32>
    tpu.vector_store %arg10[%c0_35, %c0_36, %c0_37], %31 {strides = array<i32>} : memref<1x8x2xf32, #tpu.memory_space<vmem>>, vector<1x8x2xf32>,
    return
  }
  func.func @transform_0(%arg0: i32) -> (i32, i32, i32, i32, i32) {
    %c0_i32 = arith.constant 0 : i32
    %c0_i32_0 = arith.constant 0 : i32
    %c0_i32_1 = arith.constant 0 : i32
    %c0_i32_2 = arith.constant 0 : i32
    %c0_i32_3 = arith.constant 0 : i32
    return %arg0, %c0_i32, %c0_i32_0, %c0_i32_1, %c0_i32_2 : i32, i32, i32, i32, i32
  }
  func.func @transform_1(%arg0: i32) -> (i32, i32) {
    %c0_i32 = arith.constant 0 : i32
    %c0_i32_0 = arith.constant 0 : i32
    %c0_i32_1 = arith.constant 0 : i32
    return %c0_i32, %c0_i32_0 : i32, i32
  }
  func.func @transform_2(%arg0: i32) -> (i32, i32) {
    %c0_i32 = arith.constant 0 : i32
    %c0_i32_0 = arith.constant 0 : i32
    %c0_i32_1 = arith.constant 0 : i32
    return %c0_i32, %c0_i32_0 : i32, i32
  }
  func.func @transform_3(%arg0: i32) -> (i32, i32) {
    %c0_i32 = arith.constant 0 : i32
    %c0_i32_0 = arith.constant 0 : i32
    %c0_i32_1 = arith.constant 0 : i32
    return %c0_i32, %c0_i32_0 : i32, i32
  }
  func.func @transform_4(%arg0: i32) -> (i32, i32) {
    %c0_i32 = arith.constant 0 : i32
    %c0_i32_0 = arith.constant 0 : i32
    %c0_i32_1 = arith.constant 0 : i32
    return %c0_i32, %c0_i32_0 : i32, i32
  }
  func.func @transform_5(%arg0: i32) -> (i32, i32) {
    %c0_i32 = arith.constant 0 : i32
    %c0_i32_0 = arith.constant 0 : i32
    %c0_i32_1 = arith.constant 0 : i32
    return %c0_i32, %c0_i32_0 : i32, i32
  }
  func.func @transform_6(%arg0: i32) -> (i32, i32) {
    %c0_i32 = arith.constant 0 : i32
    %c0_i32_0 = arith.constant 0 : i32
    %c0_i32_1 = arith.constant 0 : i32
    return %c0_i32, %c0_i32_0 : i32, i32
  }
  func.func @transform_7(%arg0: i32) -> (i32, i32) {
    %c0_i32 = arith.constant 0 : i32
    %c0_i32_0 = arith.constant 0 : i32
    %c0_i32_1 = arith.constant 0 : i32
    return %c0_i32, %c0_i32_0 : i32, i32
  }
  func.func @transform_8(%arg0: i32) -> (i32, i32) {
    %c0_i32 = arith.constant 0 : i32
    %c0_i32_0 = arith.constant 0 : i32
    %c0_i32_1 = arith.constant 0 : i32
    return %c0_i32, %c0_i32_0 : i32, i32
  }
  func.func @transform_9(%arg0: i32) -> (i32, i32, i32) {
    %c0_i32 = arith.constant 0 : i32
    %c0_i32_0 = arith.constant 0 : i32
    %c0_i32_1 = arith.constant 0 : i32
    return %arg0, %c0_i32, %c0_i32_0 : i32, i32, i32
  }
  func.func @transform_10(%arg0: i32) -> (i32, i32, i32) {
    %c0_i32 = arith.constant 0 : i32
    %c0_i32_0 = arith.constant 0 : i32
    %c0_i32_1 = arith.constant 0 : i32
    return %arg0, %c0_i32, %c0_i32_0 : i32, i32, i32
  }
}

</mosaic_0001>

<llo_original>
// kernel: convlstm_head_forward.1
$region0: #{convlstm_head_forward.1}
  #allocation0 [shape = 'u32[]', space=smem, size = 0x4, offset = 0x4, fixed_abs, tag = 'smem constant byte address 0x4 - core index']
  #allocation1 [shape = 'u32[144,128]{1,0:T(1,128)}', space=vmem, size = 0x12000, scoped, tag = 'internal scratch']
  #allocation2 [shape = 'f32[18,18,36]{2,1,0:T(8,128)}', space=vmem, size = 0x36000, scoped, tag = 'scratch operand']
  #allocation3 [shape = 'f32[18,18,64]{2,1,0:T(8,128)}', space=vmem, size = 0x36000, scoped, tag = 'scratch operand']
  #allocation4 [shape = 'f32[16,16,324]{2,1,0:T(8,128)}', space=vmem, size = 0x60000, scoped, tag = 'scratch operand']
  #allocation5 [shape = 'f32[16,16,576]{2,1,0:T(8,128)}', space=vmem, size = 0xa0000, scoped, tag = 'scratch operand']
  #allocation6 [shape = 'f32[256,32]{1,0:T(8,128)}', space=vmem, size = 0x20000, scoped, tag = 'scratch operand']
  #allocation7 [shape = 'f32[256,32]{1,0:T(8,128)}', space=vmem, size = 0x20000, scoped, tag = 'scratch operand']
  #allocation8 [shape = 'f32[256,32]{1,0:T(8,128)}', space=vmem, size = 0x20000, scoped, tag = 'scratch operand']
  #allocation9 [shape = 'f32[256,32]{1,0:T(8,128)}', space=vmem, size = 0x20000, scoped, tag = 'scratch operand']
  #allocation10 [shape = 'f32[8,32]{1,0:T(8,128)}', space=vmem, size = 0x1000, scoped, tag = 'scratch operand']
  %s0 = inlined_call_operand.vmem [shape: f32[2,8,16,16,4], index: 0, kind: input, shape index: {}]
  %s1 = inlined_call_operand.vmem [shape: f32[324,128], index: 1, kind: input, shape index: {}]
  %s2 = inlined_call_operand.vmem [shape: f32[1,128], index: 2, kind: input, shape index: {}]
  %s3 = inlined_call_operand.vmem [shape: f32[576,128], index: 3, kind: input, shape index: {}]
  %s4 = inlined_call_operand.vmem [shape: f32[1,128], index: 4, kind: input, shape index: {}]
  %s5 = inlined_call_operand.vmem [shape: f32[32,4], index: 5, kind: input, shape index: {}]
  %s6 = inlined_call_operand.vmem [shape: f32[1,4], index: 6, kind: input, shape index: {}]
  %s7 = inlined_call_operand.vmem [shape: f32[4,2], index: 7, kind: input, shape index: {}]
  %s8 = inlined_call_operand.vmem [shape: f32[1,2], index: 8, kind: input, shape index: {}]
  %s9 = inlined_call_operand.vmem [shape: f32[2,8,2], index: 9, kind: output, shape index: {0}]
  %s10 = inlined_call_operand.hbm [shape: f32[2,8,4], index: 10, kind: output, shape index: {1}]
  %11 = xla_tuple %s9, %s10
  %s12 = sld [smem:[#allocation0]]
  $region84: #{convlstm_head_forward.1} parent=0
    _
  %s14 = ssub.s32 1, %s12
  %s15 = scalar_select 0, %s14, %s12
  $region1: #{convlstm_head_forward.1} parent=0
    #allocation11 [shape = 'u8[8192]{0}', space=vmem, size = 0x2000, scoped, tag = 'output window, operand 1']
    #allocation12 [shape = 's32[2]{0}', space=sflag, size = 0x8, scoped, tag = 'scoped memory for convlstm_head_forward.1']
    %16 = vsyncpa [#allocation12], 0
    %s17 = scalar_lea.sflag [#allocation12], 1
    %18 = vsyncpa %s17, 0
    loop: start=0, step=1, limit=4
    $region2: #{convlstm_head_forward.1} parent=1 // loop_pre_header
      _
    $region3: #{convlstm_head_forward.1} parent=1 // loop_header
      %s20 = sphi 0, %s24
      %p21 = scmp.ge.s32.totalorder %s20, 4
      %s30 = sphi 0, %s32
      %s33 = sphi 0, %s30
      %s34 = sphi 0, %s33
      %s50 = sphi 0, %s34
      %s54 = sphi 0, %s54
      %s56 = sphi 0, %s54
      %s57 = sphi 0, %s56
      %s71 = sphi 0, %s57
      %s75 = sphi 0, %s75
      %s77 = sphi 0, %s75
      %s78 = sphi 0, %s77
      %s92 = sphi 0, %s78
      %s96 = sphi 0, %s96
      %s98 = sphi 0, %s96
      %s99 = sphi 0, %s98
      %s113 = sphi 0, %s99
      %s117 = sphi 0, %s117
      %s119 = sphi 0, %s117
      %s120 = sphi 0, %s119
      %s134 = sphi 0, %s120
      %s138 = sphi 0, %s138
      %s140 = sphi 0, %s138
      %s141 = sphi 0, %s140
      %s155 = sphi 0, %s141
      %s159 = sphi 0, %s159
      %s161 = sphi 0, %s159
      %s162 = sphi 0, %s161
      %s176 = sphi 0, %s162
      %s180 = sphi 0, %s180
      %s182 = sphi 0, %s180
      %s183 = sphi 0, %s182
      %s197 = sphi 0, %s183
      %s201 = sphi 0, %s201
      %s203 = sphi 0, %s201
      %s204 = sphi 0, %s203
      %s218 = sphi 0, %s204
      %s224 = sphi 0, %s226
      %s227 = sphi 0, %s224
      %s228 = sphi 0, %s227
      %s244 = sphi 0, %s228
      %s250 = sphi 0, %s252
      %s253 = sphi 0, %s250
      %s254 = sphi 0, %s253
      %s270 = sphi 0, %s254
    $region4: #{convlstm_head_forward.1} parent=1 // loop_header_branch
      %23 = sbr.rel (%p21) target = $region8
    $region5: #{convlstm_head_forward.1} parent=1 // loop_body
      %s25 = ssub.s32 %s20, 1
      %s26 = ssub.s32 %s20, 2
      %s27 = sadd.s32 %s20, 1
      %s28 = ssub.s32 %s20, %s27
      %p29 = scmp.eq.s32.totalorder %s28, 0
      %s31 = sadd.s32 %s30, 1
      %s32 = scalar_select %p29, %s30, %s31
      %p35 = pneg %p29
      %p36 = scmp.eq.s32.totalorder %s20, 1
      %p37 = por %p35, %p36
      %p38 = scmp.ne.s32.totalorder %s30, %s33
      %p39 = scmp.eq.s32.totalorder %s20, 0
      %p40 = por %p38, %p39
      %p41 = scmp.ne.s32.totalorder %s30, %s33
      %p42 = scmp.eq.s32.totalorder %s25, 1
      %p43 = por %p41, %p42
      %p44 = scmp.ne.s32.totalorder %s33, %s34
      %p45 = scmp.eq.s32.totalorder %s25, 0
      %p46 = por %p44, %p45
      %p47 = scmp.ne.s32.totalorder %s33, %s34
      %p48 = scmp.eq.s32.totalorder %s26, 1
      %p49 = por %p47, %p48
      %p51 = scmp.ne.s32.totalorder %s34, %s50
      %p52 = scmp.eq.s32.totalorder %s26, 0
      %p53 = por %p51, %p52
      %s55 = sadd.s32 %s54, 1
      %p58 = scmp.eq.s32.totalorder %s20, 1
      %p59 = scmp.ne.s32.totalorder %s54, %s56
      %p60 = scmp.eq.s32.totalorder %s20, 0
      %p61 = por %p59, %p60
      %p62 = scmp.ne.s32.totalorder %s54, %s56
      %p63 = scmp.eq.s32.totalorder %s25, 1
      %p64 = por %p62, %p63
      %p65 = scmp.ne.s32.totalorder %s56, %s57
      %p66 = scmp.eq.s32.totalorder %s25, 0
      %p67 = por %p65, %p66
      %p68 = scmp.ne.s32.totalorder %s56, %s57
      %p69 = scmp.eq.s32.totalorder %s26, 1
      %p70 = por %p68, %p69
      %p72 = scmp.ne.s32.totalorder %s57, %s71
      %p73 = scmp.eq.s32.totalorder %s26, 0
      %p74 = por %p72, %p73
      %s76 = sadd.s32 %s75, 1
      %p79 = scmp.eq.s32.totalorder %s20, 1
      %p80 = scmp.ne.s32.totalorder %s75, %s77
      %p81 = scmp.eq.s32.totalorder %s20, 0
      %p82 = por %p80, %p81
      %p83 = scmp.ne.s32.totalorder %s75, %s77
      %p84 = scmp.eq.s32.totalorder %s25, 1
      %p85 = por %p83, %p84
      %p86 = scmp.ne.s32.totalorder %s77, %s78
      %p87 = scmp.eq.s32.totalorder %s25, 0
      %p88 = por %p86, %p87
      %p89 = scmp.ne.s32.totalorder %s77, %s78
      %p90 = scmp.eq.s32.totalorder %s26, 1
      %p91 = por %p89, %p90
      %p93 = scmp.ne.s32.totalorder %s78, %s92
      %p94 = scmp.eq.s32.totalorder %s26, 0
      %p95 = por %p93, %p94
      %s97 = sadd.s32 %s96, 1
      %p100 = scmp.eq.s32.totalorder %s20, 1
      %p101 = scmp.ne.s32.totalorder %s96, %s98
      %p102 = scmp.eq.s32.totalorder %s20, 0
      %p103 = por %p101, %p102
      %p104 = scmp.ne.s32.totalorder %s96, %s98
      %p105 = scmp.eq.s32.totalorder %s25, 1
      %p106 = por %p104, %p105
      %p107 = scmp.ne.s32.totalorder %s98, %s99
      %p108 = scmp.eq.s32.totalorder %s25, 0
      %p109 = por %p107, %p108
      %p110 = scmp.ne.s32.totalorder %s98, %s99
      %p111 = scmp.eq.s32.totalorder %s26, 1
      %p112 = por %p110, %p111
      %p114 = scmp.ne.s32.totalorder %s99, %s113
      %p115 = scmp.eq.s32.totalorder %s26, 0
      %p116 = por %p114, %p115
      %s118 = sadd.s32 %s117, 1
      %p121 = scmp.eq.s32.totalorder %s20, 1
      %p122 = scmp.ne.s32.totalorder %s117, %s119
      %p123 = scmp.eq.s32.totalorder %s20, 0
      %p124 = por %p122, %p123
      %p125 = scmp.ne.s32.totalorder %s117, %s119
      %p126 = scmp.eq.s32.totalorder %s25, 1
      %p127 = por %p125, %p126
      %p128 = scmp.ne.s32.totalorder %s119, %s120
      %p129 = scmp.eq.s32.totalorder %s25, 0
      %p130 = por %p128, %p129
      %p131 = scmp.ne.s32.totalorder %s119, %s120
      %p132 = scmp.eq.s32.totalorder %s26, 1
      %p133 = por %p131, %p132
      %p135 = scmp.ne.s32.totalorder %s120, %s134
      %p136 = scmp.eq.s32.totalorder %s26, 0
      %p137 = por %p135, %p136
      %s139 = sadd.s32 %s138, 1
      %p142 = scmp.eq.s32.totalorder %s20, 1
      %p143 = scmp.ne.s32.totalorder %s138, %s140
      %p144 = scmp.eq.s32.totalorder %s20, 0
      %p145 = por %p143, %p144
      %p146 = scmp.ne.s32.totalorder %s138, %s140
      %p147 = scmp.eq.s32.totalorder %s25, 1
      %p148 = por %p146, %p147
      %p149 = scmp.ne.s32.totalorder %s140, %s141
      %p150 = scmp.eq.s32.totalorder %s25, 0
      %p151 = por %p149, %p150
      %p152 = scmp.ne.s32.totalorder %s140, %s141
      %p153 = scmp.eq.s32.totalorder %s26, 1
      %p154 = por %p152, %p153
      %p156 = scmp.ne.s32.totalorder %s141, %s155
      %p157 = scmp.eq.s32.totalorder %s26, 0
      %p158 = por %p156, %p157
      %s160 = sadd.s32 %s159, 1
      %p163 = scmp.eq.s32.totalorder %s20, 1
      %p164 = scmp.ne.s32.totalorder %s159, %s161
      %p165 = scmp.eq.s32.totalorder %s20, 0
      %p166 = por %p164, %p165
      %p167 = scmp.ne.s32.totalorder %s159, %s161
      %p168 = scmp.eq.s32.totalorder %s25, 1
      %p169 = por %p167, %p168
      %p170 = scmp.ne.s32.totalorder %s161, %s162
      %p171 = scmp.eq.s32.totalorder %s25, 0
      %p172 = por %p170, %p171
      %p173 = scmp.ne.s32.totalorder %s161, %s162
      %p174 = scmp.eq.s32.totalorder %s26, 1
      %p175 = por %p173, %p174
      %p177 = scmp.ne.s32.totalorder %s162, %s176
      %p178 = scmp.eq.s32.totalorder %s26, 0
      %p179 = por %p177, %p178
      %s181 = sadd.s32 %s180, 1
      %p184 = scmp.eq.s32.totalorder %s20, 1
      %p185 = scmp.ne.s32.totalorder %s180, %s182
      %p186 = scmp.eq.s32.totalorder %s20, 0
      %p187 = por %p185, %p186
      %p188 = scmp.ne.s32.totalorder %s180, %s182
      %p189 = scmp.eq.s32.totalorder %s25, 1
      %p190 = por %p188, %p189
      %p191 = scmp.ne.s32.totalorder %s182, %s183
      %p192 = scmp.eq.s32.totalorder %s25, 0
      %p193 = por %p191, %p192
      %p194 = scmp.ne.s32.totalorder %s182, %s183
      %p195 = scmp.eq.s32.totalorder %s26, 1
      %p196 = por %p194, %p195
      %p198 = scmp.ne.s32.totalorder %s183, %s197
      %p199 = scmp.eq.s32.totalorder %s26, 0
      %p200 = por %p198, %p199
      %s202 = sadd.s32 %s201, 1
      %p205 = scmp.eq.s32.totalorder %s20, 1
      %p206 = scmp.ne.s32.totalorder %s201, %s203
      %p207 = scmp.eq.s32.totalorder %s20, 0
      %p208 = por %p206, %p207
      %p209 = scmp.ne.s32.totalorder %s201, %s203
      %p210 = scmp.eq.s32.totalorder %s25, 1
      %p211 = por %p209, %p210
      %p212 = scmp.ne.s32.totalorder %s203, %s204
      %p213 = scmp.eq.s32.totalorder %s25, 0
      %p214 = por %p212, %p213
      %p215 = scmp.ne.s32.totalorder %s203, %s204
      %p216 = scmp.eq.s32.totalorder %s26, 1
      %p217 = por %p215, %p216
      %p219 = scmp.ne.s32.totalorder %s204, %s218
      %p220 = scmp.eq.s32.totalorder %s26, 0
      %p221 = por %p219, %p220
      %s222 = ssub.s32 %s20, %s27
      %p223 = scmp.eq.s32.totalorder %s222, 0
      %s225 = sadd.s32 %s224, 1
      %s226 = scalar_select %p223, %s224, %s225
      %p229 = pneg %p223
      %p230 = scmp.eq.s32.totalorder %s20, 1
      %p231 = por %p229, %p230
      %p232 = scmp.ne.s32.totalorder %s224, %s227
      %p233 = scmp.eq.s32.totalorder %s20, 0
      %p234 = por %p232, %p233
      %p235 = scmp.ne.s32.totalorder %s224, %s227
      %p236 = scmp.eq.s32.totalorder %s25, 1
      %p237 = por %p235, %p236
      %p238 = scmp.ne.s32.totalorder %s227, %s228
      %p239 = scmp.eq.s32.totalorder %s25, 0
      %p240 = por %p238, %p239
      %p241 = scmp.ne.s32.totalorder %s227, %s228
      %p242 = scmp.eq.s32.totalorder %s26, 1
      %p243 = por %p241, %p242
      %p245 = scmp.ne.s32.totalorder %s228, %s244
      %p246 = scmp.eq.s32.totalorder %s26, 0
      %p247 = por %p245, %p246
      %s248 = ssub.s32 %s20, %s27
      %p249 = scmp.eq.s32.totalorder %s248, 0
      %s251 = sadd.s32 %s250, 1
      %s252 = scalar_select %p249, %s250, %s251
      %p255 = pneg %p249
      %p256 = scmp.eq.s32.totalorder %s20, 1
      %p257 = por %p255, %p256
      %p258 = scmp.ne.s32.totalorder %s250, %s253
      %p259 = scmp.eq.s32.totalorder %s20, 0
      %p260 = por %p258, %p259
      %p261 = scmp.ne.s32.totalorder %s250, %s253
      %p262 = scmp.eq.s32.totalorder %s25, 1
      %p263 = por %p261, %p262
      %p264 = scmp.ne.s32.totalorder %s253, %s254
      %p265 = scmp.eq.s32.totalorder %s25, 0
      %p266 = por %p264, %p265
      %p267 = scmp.ne.s32.totalorder %s253, %s254
      %p268 = scmp.eq.s32.totalorder %s26, 1
      %p269 = por %p267, %p268
      %p271 = scmp.ne.s32.totalorder %s254, %s270
      %p272 = scmp.eq.s32.totalorder %s26, 0
      %p273 = por %p271, %p272
      %p274 = scmp.le.s32.totalorder 1, %s20
      %p275 = scmp.lt.s32.totalorder %s20, 3
      %p276 = pnand %p274, %p275
      %p277 = pneg %p276
      // Predicated region
      $region9: #{convlstm_head_forward.1} parent=5 // pred_check
        _
      $region10: #{convlstm_head_forward.1} parent=5 // pred_check_branch
        %279 = sbr.rel (%p276) target = $region12
      $region11: #{convlstm_head_forward.1} parent=5 // pred_region
        %s280 = ssub.s32 %s20, 1
        // Predicated region
        $region13: #{convlstm_head_forward.1} parent=11 // pred_check
          %p281 = pneg %p67
        $region14: #{convlstm_head_forward.1} parent=11 // pred_check_branch
          %283 = sbr.rel (%p281) target = $region16
        $region15: #{convlstm_head_forward.1} parent=11 // pred_region
          _
        $region16: #{convlstm_head_forward.1} parent=11 // pred_fallthru
          _
        // Predicated region
        $region17: #{convlstm_head_forward.1} parent=11 // pred_check
          %p284 = pneg %p88
        $region18: #{convlstm_head_forward.1} parent=11 // pred_check_branch
          %286 = sbr.rel (%p284) target = $region20
        $region19: #{convlstm_head_forward.1} parent=11 // pred_region
          _
        $region20: #{convlstm_head_forward.1} parent=11 // pred_fallthru
          _
        // Predicated region
        $region21: #{convlstm_head_forward.1} parent=11 // pred_check
          %p287 = pneg %p109
        $region22: #{convlstm_head_forward.1} parent=11 // pred_check_branch
          %289 = sbr.rel (%p287) target = $region24
        $region23: #{convlstm_head_forward.1} parent=11 // pred_region
          _
        $region24: #{convlstm_head_forward.1} parent=11 // pred_fallthru
          _
        // Predicated region
        $region25: #{convlstm_head_forward.1} parent=11 // pred_check
          %p290 = pneg %p130
        $region26: #{convlstm_head_forward.1} parent=11 // pred_check_branch
          %292 = sbr.rel (%p290) target = $region28
        $region27: #{convlstm_head_forward.1} parent=11 // pred_region
          _
        $region28: #{convlstm_head_forward.1} parent=11 // pred_fallthru
          _
        // Predicated region
        $region29: #{convlstm_head_forward.1} parent=11 // pred_check
          %p293 = pneg %p151
        $region30: #{convlstm_head_forward.1} parent=11 // pred_check_branch
          %295 = sbr.rel (%p293) target = $region32
        $region31: #{convlstm_head_forward.1} parent=11 // pred_region
          _
        $region32: #{convlstm_head_forward.1} parent=11 // pred_fallthru
          _
        // Predicated region
        $region33: #{convlstm_head_forward.1} parent=11 // pred_check
          %p296 = pneg %p172
        $region34: #{convlstm_head_forward.1} parent=11 // pred_check_branch
          %298 = sbr.rel (%p296) target = $region36
        $region35: #{convlstm_head_forward.1} parent=11 // pred_region
          _
        $region36: #{convlstm_head_forward.1} parent=11 // pred_fallthru
          _
        // Predicated region
        $region37: #{convlstm_head_forward.1} parent=11 // pred_check
          %p299 = pneg %p193
        $region38: #{convlstm_head_forward.1} parent=11 // pred_check_branch
          %301 = sbr.rel (%p299) target = $region40
        $region39: #{convlstm_head_forward.1} parent=11 // pred_region
          _
        $region40: #{convlstm_head_forward.1} parent=11 // pred_fallthru
          _
        // Predicated region
        $region41: #{convlstm_head_forward.1} parent=11 // pred_check
          %p302 = pneg %p214
        $region42: #{convlstm_head_forward.1} parent=11 // pred_check_branch
          %304 = sbr.rel (%p302) target = $region44
        $region43: #{convlstm_head_forward.1} parent=11 // pred_region
          _
        $region44: #{convlstm_head_forward.1} parent=11 // pred_fallthru
          _
      $region12: #{convlstm_head_forward.1} parent=5 // pred_fallthru
        _
      %p305 = scmp.lt.s32.totalorder %s20, 2
      // Predicated region
      $region45: #{convlstm_head_forward.1} parent=5 // pred_check
        %p306 = pneg %p305
      $region46: #{convlstm_head_forward.1} parent=5 // pred_check_branch
        %308 = sbr.rel (%p306) target = $region48
      $region47: #{convlstm_head_forward.1} parent=5 // pred_region
        // Predicated region
        $region49: #{convlstm_head_forward.1} parent=47 // pred_check
          %p309 = pneg %p40
        $region50: #{convlstm_head_forward.1} parent=47 // pred_check_branch
          %311 = sbr.rel (%p309) target = $region52
        $region51: #{convlstm_head_forward.1} parent=47 // pred_region
          %p312 = scmp.lt.s32.totalorder %s20, 1
          %s313 = scalar_select %p312, %s20, 1
          %s314 = smul.addr %s313, 256
          %s315 = smul.addr %s314, 8
          %s316 = scalar_lea.vmem %s0, %s315
        $region52: #{convlstm_head_forward.1} parent=47 // pred_fallthru
          _
      $region48: #{convlstm_head_forward.1} parent=5 // pred_fallthru
        _
      %p317 = scmp.le.s32.totalorder 1, %s20
      %p318 = scmp.lt.s32.totalorder %s20, 3
      %p319 = pnand %p317, %p318
      %p320 = pneg %p319
      // Predicated region
      $region53: #{convlstm_head_forward.1} parent=5 // pred_check
        _
      $region54: #{convlstm_head_forward.1} parent=5 // pred_check_branch
        %322 = sbr.rel (%p319) target = $region56
      $region55: #{convlstm_head_forward.1} parent=5 // pred_region
        %s323 = ssub.s32 %s20, 1
        %p324 = scmp.lt.s32.totalorder %s25, 1
        %s325 = scalar_select %p324, %s25, 1
        %s326 = smul.addr %s325, 256
        %s327 = smul.addr %s326, 8
        %s328 = scalar_lea.vmem %s0, %s327
        %p329 = pneg %p46
        %p330 = pneg %p43
        %p331 = pneg %p67
        %p332 = pneg %p64
        %p333 = pneg %p88
        %p334 = pneg %p85
        %p335 = pneg %p109
        %p336 = pneg %p106
        %p337 = pneg %p130
        %p338 = pneg %p127
        %p339 = pneg %p151
        %p340 = pneg %p148
        %p341 = pneg %p172
        %p342 = pneg %p169
        %p343 = pneg %p193
        %p344 = pneg %p190
        %p345 = pneg %p214
        %p346 = pneg %p211
        %p347 = pneg %p240
        %p348 = pneg %p237
        %p349 = scmp.lt.s32.totalorder %s25, 1
        %s350 = scalar_select %p349, %s25, 1
        %s351 = smul.addr %s350, 8
        %s352 = scalar_lea.vmem %s9, %s351
        %p353 = pneg %p266
        %p354 = pneg %p263
        %s355 = sand.u32 %s253, 1
        %s356 = scalar_lea.sflag [#allocation12], %s355
        %s357 = sand.u32 %s253, 1
        %s358 = smul.addr %s357, 8
        %s359 = scalar_lea.vmem [#allocation11], %s358
        %p360 = scmp.lt.s32.totalorder %s25, 1
        %s361 = scalar_select %p360, %s25, 1
        %s362 = smul.addr %s361, 256
        %s363 = smul.addr %s362, 8
        %s364 = scalar_lea.vmem %s0, %s363
        %p365 = scmp.lt.s32.totalorder %s25, 1
        %s366 = scalar_select %p365, %s25, 1
        %s367 = smul.addr %s366, 8
        %s368 = scalar_lea.vmem %s9, %s367
        %vm369 = vcmask 293888
        %370 = vst.msk [vmem:[#allocation2] sm:$0xff] %vm369, 0.0
        %371 = vst.msk [vmem:[#allocation2 + $0x8] sm:$0xff] %vm369, 0.0
        %vm372 = vcmask 287744
        %373 = vst.msk [vmem:[#allocation2 + $0x10] sm:$0x3] %vm372, 0.0
        %374 = vst.msk [vmem:[#allocation2 + $0x18] sm:$0xff] %vm369, 0.0
        %375 = vst.msk [vmem:[#allocation2 + $0x20] sm:$0xff] %vm369, 0.0
        %376 = vst.msk [vmem:[#allocation2 + $0x28] sm:$0x3] %vm372, 0.0
        %377 = vst.msk [vmem:[#allocation2 + $0x30] sm:$0xff] %vm369, 0.0
        %378 = vst.msk [vmem:[#allocation2 + $0x38] sm:$0xff] %vm369, 0.0
        %379 = vst.msk [vmem:[#allocation2 + $0x40] sm:$0x3] %vm372, 0.0
        %380 = vst.msk [vmem:[#allocation2 + $0x48] sm:$0xff] %vm369, 0.0
        %381 = vst.msk [vmem:[#allocation2 + $0x50] sm:$0xff] %vm369, 0.0
        %382 = vst.msk [vmem:[#allocation2 + $0x58] sm:$0x3] %vm372, 0.0
        %383 = vst.msk [vmem:[#allocation2 + $0x60] sm:$0xff] %vm369, 0.0
        %384 = vst.msk [vmem:[#allocation2 + $0x68] sm:$0xff] %vm369, 0.0
        %385 = vst.msk [vmem:[#allocation2 + $0x70] sm:$0x3] %vm372, 0.0
        %386 = vst.msk [vmem:[#allocation2 + $0x78] sm:$0xff] %vm369, 0.0
        %387 = vst.msk [vmem:[#allocation2 + $0x80] sm:$0xff] %vm369, 0.0
        %388 = vst.msk [vmem:[#allocation2 + $0x88] sm:$0x3] %vm372, 0.0
        %389 = vst.msk [vmem:[#allocation2 + $0x90] sm:$0xff] %vm369, 0.0
        %390 = vst.msk [vmem:[#allocation2 + $0x98] sm:$0xff] %vm369, 0.0
        %391 = vst.msk [vmem:[#allocation2 + $0xa0] sm:$0x3] %vm372, 0.0
        %392 = vst.msk [vmem:[#allocation2 + $0xa8] sm:$0xff] %vm369, 0.0
        %393 = vst.msk [vmem:[#allocation2 + $0xb0] sm:$0xff] %vm369, 0.0
        %394 = vst.msk [vmem:[#allocation2 + $0xb8] sm:$0x3] %vm372, 0.0
        %395 = vst.msk [vmem:[#allocation2 + $0xc0] sm:$0xff] %vm369, 0.0
        %396 = vst.msk [vmem:[#allocation2 + $0xc8] sm:$0xff] %vm369, 0.0
        %397 = vst.msk [vmem:[#allocation2 + $0xd0] sm:$0x3] %vm372, 0.0
        %398 = vst.msk [vmem:[#allocation2 + $0xd8] sm:$0xff] %vm369, 0.0
        %399 = vst.msk [vmem:[#allocation2 + $0xe0] sm:$0xff] %vm369, 0.0
        %400 = vst.msk [vmem:[#allocation2 + $0xe8] sm:$0x3] %vm372, 0.0
        %401 = vst.msk [vmem:[#allocation2 + $0xf0] sm:$0xff] %vm369, 0.0
        %402 = vst.msk [vmem:[#allocation2 + $0xf8] sm:$0xff] %vm369, 0.0
        %403 = vst.msk [vmem:[#allocation2 + $0x100] sm:$0x3] %vm372, 0.0
        %404 = vst.msk [vmem:[#allocation2 + $0x108] sm:$0xff] %vm369, 0.0
        %405 = vst.msk [vmem:[#allocation2 + $0x110] sm:$0xff] %vm369, 0.0
        %406 = vst.msk [vmem:[#allocation2 + $0x118] sm:$0x3] %vm372, 0.0
        %407 = vst.msk [vmem:[#allocation2 + $0x120] sm:$0xff] %vm369, 0.0
        %408 = vst.msk [vmem:[#allocation2 + $0x128] sm:$0xff] %vm369, 0.0
        %409 = vst.msk [vmem:[#allocation2 + $0x130] sm:$0x3] %vm372, 0.0
        %410 = vst.msk [vmem:[#allocation2 + $0x138] sm:$0xff] %vm369, 0.0
        %411 = vst.msk [vmem:[#allocation2 + $0x140] sm:$0xff] %vm369, 0.0
        %412 = vst.msk [vmem:[#allocation2 + $0x148] sm:$0x3] %vm372, 0.0
        %413 = vst.msk [vmem:[#allocation2 + $0x150] sm:$0xff] %vm369, 0.0
        %414 = vst.msk [vmem:[#allocation2 + $0x158] sm:$0xff] %vm369, 0.0
        %415 = vst.msk [vmem:[#allocation2 + $0x160] sm:$0x3] %vm372, 0.0
        %416 = vst.msk [vmem:[#allocation2 + $0x168] sm:$0xff] %vm369, 0.0
        %417 = vst.msk [vmem:[#allocation2 + $0x170] sm:$0xff] %vm369, 0.0
        %418 = vst.msk [vmem:[#allocation2 + $0x178] sm:$0x3] %vm372, 0.0
        %419 = vst.msk [vmem:[#allocation2 + $0x180] sm:$0xff] %vm369, 0.0
        %420 = vst.msk [vmem:[#allocation2 + $0x188] sm:$0xff] %vm369, 0.0
        %421 = vst.msk [vmem:[#allocation2 + $0x190] sm:$0x3] %vm372, 0.0
        %422 = vst.msk [vmem:[#allocation2 + $0x198] sm:$0xff] %vm369, 0.0
        %423 = vst.msk [vmem:[#allocation2 + $0x1a0] sm:$0xff] %vm369, 0.0
        %424 = vst.msk [vmem:[#allocation2 + $0x1a8] sm:$0x3] %vm372, 0.0
        %vm425 = vcmask 523264
        %426 = vst.msk [vmem:[#allocation3] sm:$0xff] %vm425, 0.0
        %427 = vst.msk [vmem:[#allocation3 + $0x8] sm:$0xff] %vm425, 0.0
        %vm428 = vcmask 517120
        %429 = vst.msk [vmem:[#allocation3 + $0x10] sm:$0x3] %vm428, 0.0
        %430 = vst.msk [vmem:[#allocation3 + $0x18] sm:$0xff] %vm425, 0.0
        %431 = vst.msk [vmem:[#allocation3 + $0x20] sm:$0xff] %vm425, 0.0
        %432 = vst.msk [vmem:[#allocation3 + $0x28] sm:$0x3] %vm428, 0.0
        %433 = vst.msk [vmem:[#allocation3 + $0x30] sm:$0xff] %vm425, 0.0
        %434 = vst.msk [vmem:[#allocation3 + $0x38] sm:$0xff] %vm425, 0.0
        %435 = vst.msk [vmem:[#allocation3 + $0x40] sm:$0x3] %vm428, 0.0
        %436 = vst.msk [vmem:[#allocation3 + $0x48] sm:$0xff] %vm425, 0.0
        %437 = vst.msk [vmem:[#allocation3 + $0x50] sm:$0xff] %vm425, 0.0
        %438 = vst.msk [vmem:[#allocation3 + $0x58] sm:$0x3] %vm428, 0.0
        %439 = vst.msk [vmem:[#allocation3 + $0x60] sm:$0xff] %vm425, 0.0
        %440 = vst.msk [vmem:[#allocation3 + $0x68] sm:$0xff] %vm425, 0.0
        %441 = vst.msk [vmem:[#allocation3 + $0x70] sm:$0x3] %vm428, 0.0
        %442 = vst.msk [vmem:[#allocation3 + $0x78] sm:$0xff] %vm425, 0.0
        %443 = vst.msk [vmem:[#allocation3 + $0x80] sm:$0xff] %vm425, 0.0
        %444 = vst.msk [vmem:[#allocation3 + $0x88] sm:$0x3] %vm428, 0.0
        %445 = vst.msk [vmem:[#allocation3 + $0x90] sm:$0xff] %vm425, 0.0
        %446 = vst.msk [vmem:[#allocation3 + $0x98] sm:$0xff] %vm425, 0.0
        %447 = vst.msk [vmem:[#allocation3 + $0xa0] sm:$0x3] %vm428, 0.0
        %448 = vst.msk [vmem:[#allocation3 + $0xa8] sm:$0xff] %vm425, 0.0
        %449 = vst.msk [vmem:[#allocation3 + $0xb0] sm:$0xff] %vm425, 0.0
        %450 = vst.msk [vmem:[#allocation3 + $0xb8] sm:$0x3] %vm428, 0.0
        %451 = vst.msk [vmem:[#allocation3 + $0xc0] sm:$0xff] %vm425, 0.0
        %452 = vst.msk [vmem:[#allocation3 + $0xc8] sm:$0xff] %vm425, 0.0
        %453 = vst.msk [vmem:[#allocation3 + $0xd0] sm:$0x3] %vm428, 0.0
        %454 = vst.msk [vmem:[#allocation3 + $0xd8] sm:$0xff] %vm425, 0.0
        %455 = vst.msk [vmem:[#allocation3 + $0xe0] sm:$0xff] %vm425, 0.0
        %456 = vst.msk [vmem:[#allocation3 + $0xe8] sm:$0x3] %vm428, 0.0
        %457 = vst.msk [vmem:[#allocation3 + $0xf0] sm:$0xff] %vm425, 0.0
        %458 = vst.msk [vmem:[#allocation3 + $0xf8] sm:$0xff] %vm425, 0.0
        %459 = vst.msk [vmem:[#allocation3 + $0x100] sm:$0x3] %vm428, 0.0
        %460 = vst.msk [vmem:[#allocation3 + $0x108] sm:$0xff] %vm425, 0.0
        %461 = vst.msk [vmem:[#allocation3 + $0x110] sm:$0xff] %vm425, 0.0
        %462 = vst.msk [vmem:[#allocation3 + $0x118] sm:$0x3] %vm428, 0.0
        %463 = vst.msk [vmem:[#allocation3 + $0x120] sm:$0xff] %vm425, 0.0
        %464 = vst.msk [vmem:[#allocation3 + $0x128] sm:$0xff] %vm425, 0.0
        %465 = vst.msk [vmem:[#allocation3 + $0x130] sm:$0x3] %vm428, 0.0
        %466 = vst.msk [vmem:[#allocation3 + $0x138] sm:$0xff] %vm425, 0.0
        %467 = vst.msk [vmem:[#allocation3 + $0x140] sm:$0xff] %vm425, 0.0
        %468 = vst.msk [vmem:[#allocation3 + $0x148] sm:$0x3] %vm428, 0.0
        %469 = vst.msk [vmem:[#allocation3 + $0x150] sm:$0xff] %vm425, 0.0
        %470 = vst.msk [vmem:[#allocation3 + $0x158] sm:$0xff] %vm425, 0.0
        %471 = vst.msk [vmem:[#allocation3 + $0x160] sm:$0x3] %vm428, 0.0
        %472 = vst.msk [vmem:[#allocation3 + $0x168] sm:$0xff] %vm425, 0.0
        %473 = vst.msk [vmem:[#allocation3 + $0x170] sm:$0xff] %vm425, 0.0
        %474 = vst.msk [vmem:[#allocation3 + $0x178] sm:$0x3] %vm428, 0.0
        %475 = vst.msk [vmem:[#allocation3 + $0x180] sm:$0xff] %vm425, 0.0
        %476 = vst.msk [vmem:[#allocation3 + $0x188] sm:$0xff] %vm425, 0.0
        %477 = vst.msk [vmem:[#allocation3 + $0x190] sm:$0x3] %vm428, 0.0
        %478 = vst.msk [vmem:[#allocation3 + $0x198] sm:$0xff] %vm425, 0.0
        %479 = vst.msk [vmem:[#allocation3 + $0x1a0] sm:$0xff] %vm425, 0.0
        %480 = vst.msk [vmem:[#allocation3 + $0x1a8] sm:$0x3] %vm428, 0.0
        %vm481 = vcmask 261120
        %482 = vst.msk [vmem:[#allocation6] sm:$0xff] %vm481, 0.0
        %483 = vst.msk [vmem:[#allocation6 + $0x8] sm:$0xff] %vm481, 0.0
        %484 = vst.msk [vmem:[#allocation6 + $0x10] sm:$0xff] %vm481, 0.0
        %485 = vst.msk [vmem:[#allocation6 + $0x18] sm:$0xff] %vm481, 0.0
        %486 = vst.msk [vmem:[#allocation6 + $0x20] sm:$0xff] %vm481, 0.0
        %487 = vst.msk [vmem:[#allocation6 + $0x28] sm:$0xff] %vm481, 0.0
        %488 = vst.msk [vmem:[#allocation6 + $0x30] sm:$0xff] %vm481, 0.0
        %489 = vst.msk [vmem:[#allocation6 + $0x38] sm:$0xff] %vm481, 0.0
        %490 = vst.msk [vmem:[#allocation6 + $0x40] sm:$0xff] %vm481, 0.0
        %491 = vst.msk [vmem:[#allocation6 + $0x48] sm:$0xff] %vm481, 0.0
        %492 = vst.msk [vmem:[#allocation6 + $0x50] sm:$0xff] %vm481, 0.0
        %493 = vst.msk [vmem:[#allocation6 + $0x58] sm:$0xff] %vm481, 0.0
        %494 = vst.msk [vmem:[#allocation6 + $0x60] sm:$0xff] %vm481, 0.0
        %495 = vst.msk [vmem:[#allocation6 + $0x68] sm:$0xff] %vm481, 0.0
        %496 = vst.msk [vmem:[#allocation6 + $0x70] sm:$0xff] %vm481, 0.0
        %497 = vst.msk [vmem:[#allocation6 + $0x78] sm:$0xff] %vm481, 0.0
        %498 = vst.msk [vmem:[#allocation6 + $0x80] sm:$0xff] %vm481, 0.0
        %499 = vst.msk [vmem:[#allocation6 + $0x88] sm:$0xff] %vm481, 0.0
        %500 = vst.msk [vmem:[#allocation6 + $0x90] sm:$0xff] %vm481, 0.0
        %501 = vst.msk [vmem:[#allocation6 + $0x98] sm:$0xff] %vm481, 0.0
        %502 = vst.msk [vmem:[#allocation6 + $0xa0] sm:$0xff] %vm481, 0.0
        %503 = vst.msk [vmem:[#allocation6 + $0xa8] sm:$0xff] %vm481, 0.0
        %504 = vst.msk [vmem:[#allocation6 + $0xb0] sm:$0xff] %vm481, 0.0
        %505 = vst.msk [vmem:[#allocation6 + $0xb8] sm:$0xff] %vm481, 0.0
        %506 = vst.msk [vmem:[#allocation6 + $0xc0] sm:$0xff] %vm481, 0.0
        %507 = vst.msk [vmem:[#allocation6 + $0xc8] sm:$0xff] %vm481, 0.0
        %508 = vst.msk [vmem:[#allocation6 + $0xd0] sm:$0xff] %vm481, 0.0
        %509 = vst.msk [vmem:[#allocation6 + $0xd8] sm:$0xff] %vm481, 0.0
        %510 = vst.msk [vmem:[#allocation6 + $0xe0] sm:$0xff] %vm481, 0.0
        %511 = vst.msk [vmem:[#allocation6 + $0xe8] sm:$0xff] %vm481, 0.0
        %512 = vst.msk [vmem:[#allocation6 + $0xf0] sm:$0xff] %vm481, 0.0
        %513 = vst.msk [vmem:[#allocation6 + $0xf8] sm:$0xff] %vm481, 0.0
        %514 = vst.msk [vmem:[#allocation7] sm:$0xff] %vm481, 0.0
        %515 = vst.msk [vmem:[#allocation7 + $0x8] sm:$0xff] %vm481, 0.0
        %516 = vst.msk [vmem:[#allocation7 + $0x10] sm:$0xff] %vm481, 0.0
        %517 = vst.msk [vmem:[#allocation7 + $0x18] sm:$0xff] %vm481, 0.0
        %518 = vst.msk [vmem:[#allocation7 + $0x20] sm:$0xff] %vm481, 0.0
        %519 = vst.msk [vmem:[#allocation7 + $0x28] sm:$0xff] %vm481, 0.0
        %520 = vst.msk [vmem:[#allocation7 + $0x30] sm:$0xff] %vm481, 0.0
        %521 = vst.msk [vmem:[#allocation7 + $0x38] sm:$0xff] %vm481, 0.0
        %522 = vst.msk [vmem:[#allocation7 + $0x40] sm:$0xff] %vm481, 0.0
        %523 = vst.msk [vmem:[#allocation7 + $0x48] sm:$0xff] %vm481, 0.0
        %524 = vst.msk [vmem:[#allocation7 + $0x50] sm:$0xff] %vm481, 0.0
        %525 = vst.msk [vmem:[#allocation7 + $0x58] sm:$0xff] %vm481, 0.0
        %526 = vst.msk [vmem:[#allocation7 + $0x60] sm:$0xff] %vm481, 0.0
        %527 = vst.msk [vmem:[#allocation7 + $0x68] sm:$0xff] %vm481, 0.0
        %528 = vst.msk [vmem:[#allocation7 + $0x70] sm:$0xff] %vm481, 0.0
        %529 = vst.msk [vmem:[#allocation7 + $0x78] sm:$0xff] %vm481, 0.0
        %530 = vst.msk [vmem:[#allocation7 + $0x80] sm:$0xff] %vm481, 0.0
        %531 = vst.msk [vmem:[#allocation7 + $0x88] sm:$0xff] %vm481, 0.0
        %532 = vst.msk [vmem:[#allocation7 + $0x90] sm:$0xff] %vm481, 0.0
        %533 = vst.msk [vmem:[#allocation7 + $0x98] sm:$0xff] %vm481, 0.0
        %534 = vst.msk [vmem:[#allocation7 + $0xa0] sm:$0xff] %vm481, 0.0
        %535 = vst.msk [vmem:[#allocation7 + $0xa8] sm:$0xff] %vm481, 0.0
        %536 = vst.msk [vmem:[#allocation7 + $0xb0] sm:$0xff] %vm481, 0.0
        %537 = vst.msk [vmem:[#allocation7 + $0xb8] sm:$0xff] %vm481, 0.0
        %538 = vst.msk [vmem:[#allocation7 + $0xc0] sm:$0xff] %vm481, 0.0
        %539 = vst.msk [vmem:[#allocation7 + $0xc8] sm:$0xff] %vm481, 0.0
        %540 = vst.msk [vmem:[#allocation7 + $0xd0] sm:$0xff] %vm481, 0.0
        %541 = vst.msk [vmem:[#allocation7 + $0xd8] sm:$0xff] %vm481, 0.0
        %542 = vst.msk [vmem:[#allocation7 + $0xe0] sm:$0xff] %vm481, 0.0
        %543 = vst.msk [vmem:[#allocation7 + $0xe8] sm:$0xff] %vm481, 0.0
        %544 = vst.msk [vmem:[#allocation7 + $0xf0] sm:$0xff] %vm481, 0.0
        %545 = vst.msk [vmem:[#allocation7 + $0xf8] sm:$0xff] %vm481, 0.0
        %546 = vst.msk [vmem:[#allocation8] sm:$0xff] %vm481, 0.0
        %547 = vst.msk [vmem:[#allocation8 + $0x8] sm:$0xff] %vm481, 0.0
        %548 = vst.msk [vmem:[#allocation8 + $0x10] sm:$0xff] %vm481, 0.0
        %549 = vst.msk [vmem:[#allocation8 + $0x18] sm:$0xff] %vm481, 0.0
        %550 = vst.msk [vmem:[#allocation8 + $0x20] sm:$0xff] %vm481, 0.0
        %551 = vst.msk [vmem:[#allocation8 + $0x28] sm:$0xff] %vm481, 0.0
        %552 = vst.msk [vmem:[#allocation8 + $0x30] sm:$0xff] %vm481, 0.0
        %553 = vst.msk [vmem:[#allocation8 + $0x38] sm:$0xff] %vm481, 0.0
        %554 = vst.msk [vmem:[#allocation8 + $0x40] sm:$0xff] %vm481, 0.0
        %555 = vst.msk [vmem:[#allocation8 + $0x48] sm:$0xff] %vm481, 0.0
        %556 = vst.msk [vmem:[#allocation8 + $0x50] sm:$0xff] %vm481, 0.0
        %557 = vst.msk [vmem:[#allocation8 + $0x58] sm:$0xff] %vm481, 0.0
        %558 = vst.msk [vmem:[#allocation8 + $0x60] sm:$0xff] %vm481, 0.0
        %559 = vst.msk [vmem:[#allocation8 + $0x68] sm:$0xff] %vm481, 0.0
        %560 = vst.msk [vmem:[#allocation8 + $0x70] sm:$0xff] %vm481, 0.0
        %561 = vst.msk [vmem:[#allocation8 + $0x78] sm:$0xff] %vm481, 0.0
        %562 = vst.msk [vmem:[#allocation8 + $0x80] sm:$0xff] %vm481, 0.0
        %563 = vst.msk [vmem:[#allocation8 + $0x88] sm:$0xff] %vm481, 0.0
        %564 = vst.msk [vmem:[#allocation8 + $0x90] sm:$0xff] %vm481, 0.0
        %565 = vst.msk [vmem:[#allocation8 + $0x98] sm:$0xff] %vm481, 0.0
        %566 = vst.msk [vmem:[#allocation8 + $0xa0] sm:$0xff] %vm481, 0.0
        %567 = vst.msk [vmem:[#allocation8 + $0xa8] sm:$0xff] %vm481, 0.0
        %568 = vst.msk [vmem:[#allocation8 + $0xb0] sm:$0xff] %vm481, 0.0
        %569 = vst.msk [vmem:[#allocation8 + $0xb8] sm:$0xff] %vm481, 0.0
        %570 = vst.msk [vmem:[#allocation8 + $0xc0] sm:$0xff] %vm481, 0.0
        %571 = vst.msk [vmem:[#allocation8 + $0xc8] sm:$0xff] %vm481, 0.0
        %572 = vst.msk [vmem:[#allocation8 + $0xd0] sm:$0xff] %vm481, 0.0
        %573 = vst.msk [vmem:[#allocation8 + $0xd8] sm:$0xff] %vm481, 0.0
        %574 = vst.msk [vmem:[#allocation8 + $0xe0] sm:$0xff] %vm481, 0.0
        %575 = vst.msk [vmem:[#allocation8 + $0xe8] sm:$0xff] %vm481, 0.0
        %576 = vst.msk [vmem:[#allocation8 + $0xf0] sm:$0xff] %vm481, 0.0
        %577 = vst.msk [vmem:[#allocation8 + $0xf8] sm:$0xff] %vm481, 0.0
        %578 = vst.msk [vmem:[#allocation9] sm:$0xff] %vm481, 0.0
        %579 = vst.msk [vmem:[#allocation9 + $0x8] sm:$0xff] %vm481, 0.0
        %580 = vst.msk [vmem:[#allocation9 + $0x10] sm:$0xff] %vm481, 0.0
        %581 = vst.msk [vmem:[#allocation9 + $0x18] sm:$0xff] %vm481, 0.0
        %582 = vst.msk [vmem:[#allocation9 + $0x20] sm:$0xff] %vm481, 0.0
        %583 = vst.msk [vmem:[#allocation9 + $0x28] sm:$0xff] %vm481, 0.0
        %584 = vst.msk [vmem:[#allocation9 + $0x30] sm:$0xff] %vm481, 0.0
        %585 = vst.msk [vmem:[#allocation9 + $0x38] sm:$0xff] %vm481, 0.0
        %586 = vst.msk [vmem:[#allocation9 + $0x40] sm:$0xff] %vm481, 0.0
        %587 = vst.msk [vmem:[#allocation9 + $0x48] sm:$0xff] %vm481, 0.0
        %588 = vst.msk [vmem:[#allocation9 + $0x50] sm:$0xff] %vm481, 0.0
        %589 = vst.msk [vmem:[#allocation9 + $0x58] sm:$0xff] %vm481, 0.0
        %590 = vst.msk [vmem:[#allocation9 + $0x60] sm:$0xff] %vm481, 0.0
        %591 = vst.msk [vmem:[#allocation9 + $0x68] sm:$0xff] %vm481, 0.0
        %592 = vst.msk [vmem:[#allocation9 + $0x70] sm:$0xff] %vm481, 0.0
        %593 = vst.msk [vmem:[#allocation9 + $0x78] sm:$0xff] %vm481, 0.0
        %594 = vst.msk [vmem:[#allocation9 + $0x80] sm:$0xff] %vm481, 0.0
        %595 = vst.msk [vmem:[#allocation9 + $0x88] sm:$0xff] %vm481, 0.0
        %596 = vst.msk [vmem:[#allocation9 + $0x90] sm:$0xff] %vm481, 0.0
        %597 = vst.msk [vmem:[#allocation9 + $0x98] sm:$0xff] %vm481, 0.0
        %598 = vst.msk [vmem:[#allocation9 + $0xa0] sm:$0xff] %vm481, 0.0
        %599 = vst.msk [vmem:[#allocation9 + $0xa8] sm:$0xff] %vm481, 0.0
        %600 = vst.msk [vmem:[#allocation9 + $0xb0] sm:$0xff] %vm481, 0.0
        %601 = vst.msk [vmem:[#allocation9 + $0xb8] sm:$0xff] %vm481, 0.0
        %602 = vst.msk [vmem:[#allocation9 + $0xc0] sm:$0xff] %vm481, 0.0
        %603 = vst.msk [vmem:[#allocation9 + $0xc8] sm:$0xff] %vm481, 0.0
        %604 = vst.msk [vmem:[#allocation9 + $0xd0] sm:$0xff] %vm481, 0.0
        %605 = vst.msk [vmem:[#allocation9 + $0xd8] sm:$0xff] %vm481, 0.0
        %606 = vst.msk [vmem:[#allocation9 + $0xe0] sm:$0xff] %vm481, 0.0
        %607 = vst.msk [vmem:[#allocation9 + $0xe8] sm:$0xff] %vm481, 0.0
        %608 = vst.msk [vmem:[#allocation9 + $0xf0] sm:$0xff] %vm481, 0.0
        %609 = vst.msk [vmem:[#allocation9 + $0xf8] sm:$0xff] %vm481, 0.0
        loop: start=0, step=1, limit=8
        $region57: #{convlstm_head_forward.1} parent=55 // loop_pre_header
          _
        $region58: #{convlstm_head_forward.1} parent=55 // loop_header
          %s611 = sphi 0, %s615
          %p612 = scmp.ge.s32.totalorder %s611, 8
        $region59: #{convlstm_head_forward.1} parent=55 // loop_header_branch
          %614 = sbr.rel (%p612) target = $region63
        $region60: #{convlstm_head_forward.1} parent=55 // loop_body
          %s616 = smul.u32 %s611, 256
          %s617 = scalar_lea.vmem %s364, %s616
          %v618 = vld [vmem:[%s617] sm:$0xff]
          %v619 = vld [vmem:[%s617 + $0x8] sm:$0xff]
          %v620 = vld [vmem:[%s617 + $0x10] sm:$0xff]
          %v621 = vld [vmem:[%s617 + $0x18] sm:$0xff]
          %v622 = vld [vmem:[%s617 + $0x20] sm:$0xff]
          %v623 = vld [vmem:[%s617 + $0x28] sm:$0xff]
          %v624 = vld [vmem:[%s617 + $0x30] sm:$0xff]
          %v625 = vld [vmem:[%s617 + $0x38] sm:$0xff]
          %v626 = vld [vmem:[%s617 + $0x40] sm:$0xff]
          %v627 = vld [vmem:[%s617 + $0x48] sm:$0xff]
          %v628 = vld [vmem:[%s617 + $0x50] sm:$0xff]
          %v629 = vld [vmem:[%s617 + $0x58] sm:$0xff]
          %v630 = vld [vmem:[%s617 + $0x60] sm:$0xff]
          %v631 = vld [vmem:[%s617 + $0x68] sm:$0xff]
          %v632 = vld [vmem:[%s617 + $0x70] sm:$0xff]
          %v633 = vld [vmem:[%s617 + $0x78] sm:$0xff]
          %v634 = vld [vmem:[%s617 + $0x80] sm:$0xff]
          %v635 = vld [vmem:[%s617 + $0x88] sm:$0xff]
          %v636 = vld [vmem:[%s617 + $0x90] sm:$0xff]
          %v637 = vld [vmem:[%s617 + $0x98] sm:$0xff]
          %v638 = vld [vmem:[%s617 + $0xa0] sm:$0xff]
          %v639 = vld [vmem:[%s617 + $0xa8] sm:$0xff]
          %v640 = vld [vmem:[%s617 + $0xb0] sm:$0xff]
          %v641 = vld [vmem:[%s617 + $0xb8] sm:$0xff]
          %v642 = vld [vmem:[%s617 + $0xc0] sm:$0xff]
          %v643 = vld [vmem:[%s617 + $0xc8] sm:$0xff]
          %v644 = vld [vmem:[%s617 + $0xd0] sm:$0xff]
          %v645 = vld [vmem:[%s617 + $0xd8] sm:$0xff]
          %v646 = vld [vmem:[%s617 + $0xe0] sm:$0xff]
          %v647 = vld [vmem:[%s617 + $0xe8] sm:$0xff]
          %v648 = vld [vmem:[%s617 + $0xf0] sm:$0xff]
          %v649 = vld [vmem:[%s617 + $0xf8] sm:$0xff]
          %s650 = scalar_lea.vmem [#allocation2], 24
          %vm651 = vcmask 31744
          %652 = vst.msk [vmem:[%s650 + $0x1] sm:$0xff] %vm651, %v618
          %653 = vst.msk [vmem:[%s650 + $0x9] sm:$0xff] %vm651, %v619
          %654 = vst.msk [vmem:[%s650 + $0x19] sm:$0xff] %vm651, %v620
          %655 = vst.msk [vmem:[%s650 + $0x21] sm:$0xff] %vm651, %v621
          %656 = vst.msk [vmem:[%s650 + $0x31] sm:$0xff] %vm651, %v622
          %657 = vst.msk [vmem:[%s650 + $0x39] sm:$0xff] %vm651, %v623
          %658 = vst.msk [vmem:[%s650 + $0x49] sm:$0xff] %vm651, %v624
          %659 = vst.msk [vmem:[%s650 + $0x51] sm:$0xff] %vm651, %v625
          %660 = vst.msk [vmem:[%s650 + $0x61] sm:$0xff] %vm651, %v626
          %661 = vst.msk [vmem:[%s650 + $0x69] sm:$0xff] %vm651, %v627
          %662 = vst.msk [vmem:[%s650 + $0x79] sm:$0xff] %vm651, %v628
          %663 = vst.msk [vmem:[%s650 + $0x81] sm:$0xff] %vm651, %v629
          %664 = vst.msk [vmem:[%s650 + $0x91] sm:$0xff] %vm651, %v630
          %665 = vst.msk [vmem:[%s650 + $0x99] sm:$0xff] %vm651, %v631
          %666 = vst.msk [vmem:[%s650 + $0xa9] sm:$0xff] %vm651, %v632
          %667 = vst.msk [vmem:[%s650 + $0xb1] sm:$0xff] %vm651, %v633
          %668 = vst.msk [vmem:[%s650 + $0xc1] sm:$0xff] %vm651, %v634
          %669 = vst.msk [vmem:[%s650 + $0xc9] sm:$0xff] %vm651, %v635
          %670 = vst.msk [vmem:[%s650 + $0xd9] sm:$0xff] %vm651, %v636
          %671 = vst.msk [vmem:[%s650 + $0xe1] sm:$0xff] %vm651, %v637
          %672 = vst.msk [vmem:[%s650 + $0xf1] sm:$0xff] %vm651, %v638
          %673 = vst.msk [vmem:[%s650 + $0xf9] sm:$0xff] %vm651, %v639
          %674 = vst.msk [vmem:[%s650 + $0x109] sm:$0xff] %vm651, %v640
          %675 = vst.msk [vmem:[%s650 + $0x111] sm:$0xff] %vm651, %v641
          %676 = vst.msk [vmem:[%s650 + $0x121] sm:$0xff] %vm651, %v642
          %677 = vst.msk [vmem:[%s650 + $0x129] sm:$0xff] %vm651, %v643
          %678 = vst.msk [vmem:[%s650 + $0x139] sm:$0xff] %vm651, %v644
          %679 = vst.msk [vmem:[%s650 + $0x141] sm:$0xff] %vm651, %v645
          %680 = vst.msk [vmem:[%s650 + $0x151] sm:$0xff] %vm651, %v646
          %681 = vst.msk [vmem:[%s650 + $0x159] sm:$0xff] %vm651, %v647
          %682 = vst.msk [vmem:[%s650 + $0x169] sm:$0xff] %vm651, %v648
          %683 = vst.msk [vmem:[%s650 + $0x171] sm:$0xff] %vm651, %v649
          %v684 = vld [vmem:[#allocation6] sm:$0xff]
          %v685 = vld [vmem:[#allocation6 + $0x8] sm:$0xff]
          %v686 = vld [vmem:[#allocation6 + $0x10] sm:$0xff]
          %v687 = vld [vmem:[#allocation6 + $0x18] sm:$0xff]
          %v688 = vld [vmem:[#allocation6 + $0x20] sm:$0xff]
          %v689 = vld [vmem:[#allocation6 + $0x28] sm:$0xff]
          %v690 = vld [vmem:[#allocation6 + $0x30] sm:$0xff]
          %v691 = vld [vmem:[#allocation6 + $0x38] sm:$0xff]
          %v692 = vld [vmem:[#allocation6 + $0x40] sm:$0xff]
          %v693 = vld [vmem:[#allocation6 + $0x48] sm:$0xff]
          %v694 = vld [vmem:[#allocation6 + $0x50] sm:$0xff]
          %v695 = vld [vmem:[#allocation6 + $0x58] sm:$0xff]
          %v696 = vld [vmem:[#allocation6 + $0x60] sm:$0xff]
          %v697 = vld [vmem:[#allocation6 + $0x68] sm:$0xff]
          %v698 = vld [vmem:[#allocation6 + $0x70] sm:$0xff]
          %v699 = vld [vmem:[#allocation6 + $0x78] sm:$0xff]
          %v700 = vld [vmem:[#allocation6 + $0x80] sm:$0xff]
          %v701 = vld [vmem:[#allocation6 + $0x88] sm:$0xff]
          %v702 = vld [vmem:[#allocation6 + $0x90] sm:$0xff]
          %v703 = vld [vmem:[#allocation6 + $0x98] sm:$0xff]
          %v704 = vld [vmem:[#allocation6 + $0xa0] sm:$0xff]
          %v705 = vld [vmem:[#allocation6 + $0xa8] sm:$0xff]
          %v706 = vld [vmem:[#allocation6 + $0xb0] sm:$0xff]
          %v707 = vld [vmem:[#allocation6 + $0xb8] sm:$0xff]
          %v708 = vld [vmem:[#allocation6 + $0xc0] sm:$0xff]
          %v709 = vld [vmem:[#allocation6 + $0xc8] sm:$0xff]
          %v710 = vld [vmem:[#allocation6 + $0xd0] sm:$0xff]
          %v711 = vld [vmem:[#allocation6 + $0xd8] sm:$0xff]
          %v712 = vld [vmem:[#allocation6 + $0xe0] sm:$0xff]
          %v713 = vld [vmem:[#allocation6 + $0xe8] sm:$0xff]
          %v714 = vld [vmem:[#allocation6 + $0xf0] sm:$0xff]
          %v715 = vld [vmem:[#allocation6 + $0xf8] sm:$0xff]
          %748 = vrot.lane.b32.xlu0 %v684, 4
          %v749 = vpop.permute.xlu0 %748
          %750 = vrot.lane.b32.xlu0 %v685, 4
          %v751 = vpop.permute.xlu0 %750
          %752 = vrot.lane.b32.xlu0 %v686, 4
          %v753 = vpop.permute.xlu0 %752
          %754 = vrot.lane.b32.xlu0 %v687, 4
          %v755 = vpop.permute.xlu0 %754
          %756 = vrot.lane.b32.xlu0 %v688, 4
          %v757 = vpop.permute.xlu0 %756
          %758 = vrot.lane.b32.xlu0 %v689, 4
          %v759 = vpop.permute.xlu0 %758
          %760 = vrot.lane.b32.xlu0 %v690, 4
          %v761 = vpop.permute.xlu0 %760
          %762 = vrot.lane.b32.xlu0 %v691, 4
          %v763 = vpop.permute.xlu0 %762
          %764 = vrot.lane.b32.xlu0 %v692, 4
          %v765 = vpop.permute.xlu0 %764
          %766 = vrot.lane.b32.xlu0 %v693, 4
          %v767 = vpop.permute.xlu0 %766
          %768 = vrot.lane.b32.xlu0 %v694, 4
          %v769 = vpop.permute.xlu0 %768
          %770 = vrot.lane.b32.xlu0 %v695, 4
          %v771 = vpop.permute.xlu0 %770
          %772 = vrot.lane.b32.xlu0 %v696, 4
          %v773 = vpop.permute.xlu0 %772
          %774 = vrot.lane.b32.xlu0 %v697, 4
          %v775 = vpop.permute.xlu0 %774
          %776 = vrot.lane.b32.xlu0 %v698, 4
          %v777 = vpop.permute.xlu0 %776
          %778 = vrot.lane.b32.xlu0 %v699, 4
          %v779 = vpop.permute.xlu0 %778
          %780 = vrot.lane.b32.xlu0 %v700, 4
          %v781 = vpop.permute.xlu0 %780
          %782 = vrot.lane.b32.xlu0 %v701, 4
          %v783 = vpop.permute.xlu0 %782
          %784 = vrot.lane.b32.xlu0 %v702, 4
          %v785 = vpop.permute.xlu0 %784
          %786 = vrot.lane.b32.xlu0 %v703, 4
          %v787 = vpop.permute.xlu0 %786
          %788 = vrot.lane.b32.xlu0 %v704, 4
          %v789 = vpop.permute.xlu0 %788
          %790 = vrot.lane.b32.xlu0 %v705, 4
          %v791 = vpop.permute.xlu0 %790
          %792 = vrot.lane.b32.xlu0 %v706, 4
          %v793 = vpop.permute.xlu0 %792
          %794 = vrot.lane.b32.xlu0 %v707, 4
          %v795 = vpop.permute.xlu0 %794
          %796 = vrot.lane.b32.xlu0 %v708, 4
          %v797 = vpop.permute.xlu0 %796
          %798 = vrot.lane.b32.xlu0 %v709, 4
          %v799 = vpop.permute.xlu0 %798
          %800 = vrot.lane.b32.xlu0 %v710, 4
          %v801 = vpop.permute.xlu0 %800
          %802 = vrot.lane.b32.xlu0 %v711, 4
          %v803 = vpop.permute.xlu0 %802
          %804 = vrot.lane.b32.xlu0 %v712, 4
          %v805 = vpop.permute.xlu0 %804
          %806 = vrot.lane.b32.xlu0 %v713, 4
          %v807 = vpop.permute.xlu0 %806
          %808 = vrot.lane.b32.xlu0 %v714, 4
          %v809 = vpop.permute.xlu0 %808
          %810 = vrot.lane.b32.xlu0 %v715, 4
          %v811 = vpop.permute.xlu0 %810
          %vm844 = vcmask 293920
          %845 = vst.msk [vmem:[%s650 + $0x1] sm:$0xff] %vm844, %v749
          %846 = vst.msk [vmem:[%s650 + $0x9] sm:$0xff] %vm844, %v751
          %847 = vst.msk [vmem:[%s650 + $0x19] sm:$0xff] %vm844, %v753
          %848 = vst.msk [vmem:[%s650 + $0x21] sm:$0xff] %vm844, %v755
          %849 = vst.msk [vmem:[%s650 + $0x31] sm:$0xff] %vm844, %v757
          %850 = vst.msk [vmem:[%s650 + $0x39] sm:$0xff] %vm844, %v759
          %851 = vst.msk [vmem:[%s650 + $0x49] sm:$0xff] %vm844, %v761
          %852 = vst.msk [vmem:[%s650 + $0x51] sm:$0xff] %vm844, %v763
          %853 = vst.msk [vmem:[%s650 + $0x61] sm:$0xff] %vm844, %v765
          %854 = vst.msk [vmem:[%s650 + $0x69] sm:$0xff] %vm844, %v767
          %855 = vst.msk [vmem:[%s650 + $0x79] sm:$0xff] %vm844, %v769
          %856 = vst.msk [vmem:[%s650 + $0x81] sm:$0xff] %vm844, %v771
          %857 = vst.msk [vmem:[%s650 + $0x91] sm:$0xff] %vm844, %v773
          %858 = vst.msk [vmem:[%s650 + $0x99] sm:$0xff] %vm844, %v775
          %859 = vst.msk [vmem:[%s650 + $0xa9] sm:$0xff] %vm844, %v777
          %860 = vst.msk [vmem:[%s650 + $0xb1] sm:$0xff] %vm844, %v779
          %861 = vst.msk [vmem:[%s650 + $0xc1] sm:$0xff] %vm844, %v781
          %862 = vst.msk [vmem:[%s650 + $0xc9] sm:$0xff] %vm844, %v783
          %863 = vst.msk [vmem:[%s650 + $0xd9] sm:$0xff] %vm844, %v785
          %864 = vst.msk [vmem:[%s650 + $0xe1] sm:$0xff] %vm844, %v787
          %865 = vst.msk [vmem:[%s650 + $0xf1] sm:$0xff] %vm844, %v789
          %866 = vst.msk [vmem:[%s650 + $0xf9] sm:$0xff] %vm844, %v791
          %867 = vst.msk [vmem:[%s650 + $0x109] sm:$0xff] %vm844, %v793
          %868 = vst.msk [vmem:[%s650 + $0x111] sm:$0xff] %vm844, %v795
          %869 = vst.msk [vmem:[%s650 + $0x121] sm:$0xff] %vm844, %v797
          %870 = vst.msk [vmem:[%s650 + $0x129] sm:$0xff] %vm844, %v799
          %871 = vst.msk [vmem:[%s650 + $0x139] sm:$0xff] %vm844, %v801
          %872 = vst.msk [vmem:[%s650 + $0x141] sm:$0xff] %vm844, %v803
          %873 = vst.msk [vmem:[%s650 + $0x151] sm:$0xff] %vm844, %v805
          %874 = vst.msk [vmem:[%s650 + $0x159] sm:$0xff] %vm844, %v807
          %875 = vst.msk [vmem:[%s650 + $0x169] sm:$0xff] %vm844, %v809
          %876 = vst.msk [vmem:[%s650 + $0x171] sm:$0xff] %vm844, %v811
          %v877 = vld [vmem:[#allocation2] sm:$0xff]
          %v878 = vld [vmem:[#allocation2 + $0x8] sm:$0xff]
          %v879 = vld [vmem:[#allocation2 + $0x18] sm:$0xff]
          %v880 = vld [vmem:[#allocation2 + $0x20] sm:$0xff]
          %v881 = vld [vmem:[#allocation2 + $0x30] sm:$0xff]
          %v882 = vld [vmem:[#allocation2 + $0x38] sm:$0xff]
          %v883 = vld [vmem:[#allocation2 + $0x48] sm:$0xff]
          %v884 = vld [vmem:[#allocation2 + $0x50] sm:$0xff]
          %v885 = vld [vmem:[#allocation2 + $0x60] sm:$0xff]
          %v886 = vld [vmem:[#allocation2 + $0x68] sm:$0xff]
          %v887 = vld [vmem:[#allocation2 + $0x78] sm:$0xff]
          %v888 = vld [vmem:[#allocation2 + $0x80] sm:$0xff]
          %v889 = vld [vmem:[#allocation2 + $0x90] sm:$0xff]
          %v890 = vld [vmem:[#allocation2 + $0x98] sm:$0xff]
          %v891 = vld [vmem:[#allocation2 + $0xa8] sm:$0xff]
          %v892 = vld [vmem:[#allocation2 + $0xb0] sm:$0xff]
          %v893 = vld [vmem:[#allocation2 + $0xc0] sm:$0xff]
          %v894 = vld [vmem:[#allocation2 + $0xc8] sm:$0xff]
          %v895 = vld [vmem:[#allocation2 + $0xd8] sm:$0xff]
          %v896 = vld [vmem:[#allocation2 + $0xe0] sm:$0xff]
          %v897 = vld [vmem:[#allocation2 + $0xf0] sm:$0xff]
          %v898 = vld [vmem:[#allocation2 + $0xf8] sm:$0xff]
          %v899 = vld [vmem:[#allocation2 + $0x108] sm:$0xff]
          %v900 = vld [vmem:[#allocation2 + $0x110] sm:$0xff]
          %v901 = vld [vmem:[#allocation2 + $0x120] sm:$0xff]
          %v902 = vld [vmem:[#allocation2 + $0x128] sm:$0xff]
          %v903 = vld [vmem:[#allocation2 + $0x138] sm:$0xff]
          %v904 = vld [vmem:[#allocation2 + $0x140] sm:$0xff]
          %v905 = vld [vmem:[#allocation2 + $0x150] sm:$0xff]
          %v906 = vld [vmem:[#allocation2 + $0x158] sm:$0xff]
          %v907 = vld [vmem:[#allocation2 + $0x168] sm:$0xff]
          %v908 = vld [vmem:[#allocation2 + $0x170] sm:$0xff]
          %909 = vst.msk [vmem:[#allocation4] sm:$0xff] %vm369, %v877
          %910 = vst.msk [vmem:[#allocation4 + $0x18] sm:$0xff] %vm369, %v878
          %911 = vst.msk [vmem:[#allocation4 + $0x30] sm:$0xff] %vm369, %v879
          %912 = vst.msk [vmem:[#allocation4 + $0x48] sm:$0xff] %vm369, %v880
          %913 = vst.msk [vmem:[#allocation4 + $0x60] sm:$0xff] %vm369, %v881
          %914 = vst.msk [vmem:[#allocation4 + $0x78] sm:$0xff] %vm369, %v882
          %915 = vst.msk [vmem:[#allocation4 + $0x90] sm:$0xff] %vm369, %v883
          %916 = vst.msk [vmem:[#allocation4 + $0xa8] sm:$0xff] %vm369, %v884
          %917 = vst.msk [vmem:[#allocation4 + $0xc0] sm:$0xff] %vm369, %v885
          %918 = vst.msk [vmem:[#allocation4 + $0xd8] sm:$0xff] %vm369, %v886
          %919 = vst.msk [vmem:[#allocation4 + $0xf0] sm:$0xff] %vm369, %v887
          %920 = vst.msk [vmem:[#allocation4 + $0x108] sm:$0xff] %vm369, %v888
          %921 = vst.msk [vmem:[#allocation4 + $0x120] sm:$0xff] %vm369, %v889
          %922 = vst.msk [vmem:[#allocation4 + $0x138] sm:$0xff] %vm369, %v890
          %923 = vst.msk [vmem:[#allocation4 + $0x150] sm:$0xff] %vm369, %v891
          %924 = vst.msk [vmem:[#allocation4 + $0x168] sm:$0xff] %vm369, %v892
          %925 = vst.msk [vmem:[#allocation4 + $0x180] sm:$0xff] %vm369, %v893
          %926 = vst.msk [vmem:[#allocation4 + $0x198] sm:$0xff] %vm369, %v894
          %927 = vst.msk [vmem:[#allocation4 + $0x1b0] sm:$0xff] %vm369, %v895
          %928 = vst.msk [vmem:[#allocation4 + $0x1c8] sm:$0xff] %vm369, %v896
          %929 = vst.msk [vmem:[#allocation4 + $0x1e0] sm:$0xff] %vm369, %v897
          %930 = vst.msk [vmem:[#allocation4 + $0x1f8] sm:$0xff] %vm369, %v898
          %931 = vst.msk [vmem:[#allocation4 + $0x210] sm:$0xff] %vm369, %v899
          %932 = vst.msk [vmem:[#allocation4 + $0x228] sm:$0xff] %vm369, %v900
          %933 = vst.msk [vmem:[#allocation4 + $0x240] sm:$0xff] %vm369, %v901
          %934 = vst.msk [vmem:[#allocation4 + $0x258] sm:$0xff] %vm369, %v902
          %935 = vst.msk [vmem:[#allocation4 + $0x270] sm:$0xff] %vm369, %v903
          %936 = vst.msk [vmem:[#allocation4 + $0x288] sm:$0xff] %vm369, %v904
          %937 = vst.msk [vmem:[#allocation4 + $0x2a0] sm:$0xff] %vm369, %v905
          %938 = vst.msk [vmem:[#allocation4 + $0x2b8] sm:$0xff] %vm369, %v906
          %939 = vst.msk [vmem:[#allocation4 + $0x2d0] sm:$0xff] %vm369, %v907
          %940 = vst.msk [vmem:[#allocation4 + $0x2e8] sm:$0xff] %vm369, %v908
          %v941 = vld [vmem:[#allocation2 + $0x1] sm:$0xff]
          %v942 = vld [vmem:[#allocation2 + $0x9] sm:$0xff]
          %v943 = vld [vmem:[#allocation2 + $0x19] sm:$0xff]
          %v944 = vld [vmem:[#allocation2 + $0x21] sm:$0xff]
          %v945 = vld [vmem:[#allocation2 + $0x31] sm:$0xff]
          %v946 = vld [vmem:[#allocation2 + $0x39] sm:$0xff]
          %v947 = vld [vmem:[#allocation2 + $0x49] sm:$0xff]
          %v948 = vld [vmem:[#allocation2 + $0x51] sm:$0xff]
          %v949 = vld [vmem:[#allocation2 + $0x61] sm:$0xff]
          %v950 = vld [vmem:[#allocation2 + $0x69] sm:$0xff]
          %v951 = vld [vmem:[#allocation2 + $0x79] sm:$0xff]
          %v952 = vld [vmem:[#allocation2 + $0x81] sm:$0xff]
          %v953 = vld [vmem:[#allocation2 + $0x91] sm:$0xff]
          %v954 = vld [vmem:[#allocation2 + $0x99] sm:$0xff]
          %v955 = vld [vmem:[#allocation2 + $0xa9] sm:$0xff]
          %v956 = vld [vmem:[#allocation2 + $0xb1] sm:$0xff]
          %v957 = vld [vmem:[#allocation2 + $0xc1] sm:$0xff]
          %v958 = vld [vmem:[#allocation2 + $0xc9] sm:$0xff]
          %v959 = vld [vmem:[#allocation2 + $0xd9] sm:$0xff]
          %v960 = vld [vmem:[#allocation2 + $0xe1] sm:$0xff]
          %v961 = vld [vmem:[#allocation2 + $0xf1] sm:$0xff]
          %v962 = vld [vmem:[#allocation2 + $0xf9] sm:$0xff]
          %v963 = vld [vmem:[#allocation2 + $0x109] sm:$0xff]
          %v964 = vld [vmem:[#allocation2 + $0x111] sm:$0xff]
          %v965 = vld [vmem:[#allocation2 + $0x121] sm:$0xff]
          %v966 = vld [vmem:[#allocation2 + $0x129] sm:$0xff]
          %v967 = vld [vmem:[#allocation2 + $0x139] sm:$0xff]
          %v968 = vld [vmem:[#allocation2 + $0x141] sm:$0xff]
          %v969 = vld [vmem:[#allocation2 + $0x151] sm:$0xff]
          %v970 = vld [vmem:[#allocation2 + $0x159] sm:$0xff]
          %v971 = vld [vmem:[#allocation2 + $0x169] sm:$0xff]
          %v972 = vld [vmem:[#allocation2 + $0x171] sm:$0xff]
          %1005 = vrot.lane.b32.xlu0 %v941, 36
          %v1006 = vpop.permute.xlu0 %1005
          %1007 = vrot.lane.b32.xlu0 %v942, 36
          %v1008 = vpop.permute.xlu0 %1007
          %1009 = vrot.lane.b32.xlu0 %v943, 36
          %v1010 = vpop.permute.xlu0 %1009
          %1011 = vrot.lane.b32.xlu0 %v944, 36
          %v1012 = vpop.permute.xlu0 %1011
          %1013 = vrot.lane.b32.xlu0 %v945, 36
          %v1014 = vpop.permute.xlu0 %1013
          %1015 = vrot.lane.b32.xlu0 %v946, 36
          %v1016 = vpop.permute.xlu0 %1015
          %1017 = vrot.lane.b32.xlu0 %v947, 36
          %v1018 = vpop.permute.xlu0 %1017
          %1019 = vrot.lane.b32.xlu0 %v948, 36
          %v1020 = vpop.permute.xlu0 %1019
          %1021 = vrot.lane.b32.xlu0 %v949, 36
          %v1022 = vpop.permute.xlu0 %1021
          %1023 = vrot.lane.b32.xlu0 %v950, 36
          %v1024 = vpop.permute.xlu0 %1023
          %1025 = vrot.lane.b32.xlu0 %v951, 36
          %v1026 = vpop.permute.xlu0 %1025
          %1027 = vrot.lane.b32.xlu0 %v952, 36
          %v1028 = vpop.permute.xlu0 %1027
          %1029 = vrot.lane.b32.xlu0 %v953, 36
          %v1030 = vpop.permute.xlu0 %1029
          %1031 = vrot.lane.b32.xlu0 %v954, 36
          %v1032 = vpop.permute.xlu0 %1031
          %1033 = vrot.lane.b32.xlu0 %v955, 36
          %v1034 = vpop.permute.xlu0 %1033
          %1035 = vrot.lane.b32.xlu0 %v956, 36
          %v1036 = vpop.permute.xlu0 %1035
          %1037 = vrot.lane.b32.xlu0 %v957, 36
          %v1038 = vpop.permute.xlu0 %1037
          %1039 = vrot.lane.b32.xlu0 %v958, 36
          %v1040 = vpop.permute.xlu0 %1039
          %1041 = vrot.lane.b32.xlu0 %v959, 36
          %v1042 = vpop.permute.xlu0 %1041
          %1043 = vrot.lane.b32.xlu0 %v960, 36
          %v1044 = vpop.permute.xlu0 %1043
          %1045 = vrot.lane.b32.xlu0 %v961, 36
          %v1046 = vpop.permute.xlu0 %1045
          %1047 = vrot.lane.b32.xlu0 %v962, 36
          %v1048 = vpop.permute.xlu0 %1047
          %1049 = vrot.lane.b32.xlu0 %v963, 36
          %v1050 = vpop.permute.xlu0 %1049
          %1051 = vrot.lane.b32.xlu0 %v964, 36
          %v1052 = vpop.permute.xlu0 %1051
          %1053 = vrot.lane.b32.xlu0 %v965, 36
          %v1054 = vpop.permute.xlu0 %1053
          %1055 = vrot.lane.b32.xlu0 %v966, 36
          %v1056 = vpop.permute.xlu0 %1055
          %1057 = vrot.lane.b32.xlu0 %v967, 36
          %v1058 = vpop.permute.xlu0 %1057
          %1059 = vrot.lane.b32.xlu0 %v968, 36
          %v1060 = vpop.permute.xlu0 %1059
          %1061 = vrot.lane.b32.xlu0 %v969, 36
          %v1062 = vpop.permute.xlu0 %1061
          %1063 = vrot.lane.b32.xlu0 %v970, 36
          %v1064 = vpop.permute.xlu0 %1063
          %1065 = vrot.lane.b32.xlu0 %v971, 36
          %v1066 = vpop.permute.xlu0 %1065
          %1067 = vrot.lane.b32.xlu0 %v972, 36
          %v1068 = vpop.permute.xlu0 %1067
          %vm1101 = vcmask 589088
          %1102 = vst.msk [vmem:[#allocation4] sm:$0xff] %vm1101, %v1006
          %1103 = vst.msk [vmem:[#allocation4 + $0x18] sm:$0xff] %vm1101, %v1008
          %1104 = vst.msk [vmem:[#allocation4 + $0x30] sm:$0xff] %vm1101, %v1010
          %1105 = vst.msk [vmem:[#allocation4 + $0x48] sm:$0xff] %vm1101, %v1012
          %1106 = vst.msk [vmem:[#allocation4 + $0x60] sm:$0xff] %vm1101, %v1014
          %1107 = vst.msk [vmem:[#allocation4 + $0x78] sm:$0xff] %vm1101, %v1016
          %1108 = vst.msk [vmem:[#allocation4 + $0x90] sm:$0xff] %vm1101, %v1018
          %1109 = vst.msk [vmem:[#allocation4 + $0xa8] sm:$0xff] %vm1101, %v1020
          %1110 = vst.msk [vmem:[#allocation4 + $0xc0] sm:$0xff] %vm1101, %v1022
          %1111 = vst.msk [vmem:[#allocation4 + $0xd8] sm:$0xff] %vm1101, %v1024
          %1112 = vst.msk [vmem:[#allocation4 + $0xf0] sm:$0xff] %vm1101, %v1026
          %1113 = vst.msk [vmem:[#allocation4 + $0x108] sm:$0xff] %vm1101, %v1028
          %1114 = vst.msk [vmem:[#allocation4 + $0x120] sm:$0xff] %vm1101, %v1030
          %1115 = vst.msk [vmem:[#allocation4 + $0x138] sm:$0xff] %vm1101, %v1032
          %1116 = vst.msk [vmem:[#allocation4 + $0x150] sm:$0xff] %vm1101, %v1034
          %1117 = vst.msk [vmem:[#allocation4 + $0x168] sm:$0xff] %vm1101, %v1036
          %1118 = vst.msk [vmem:[#allocation4 + $0x180] sm:$0xff] %vm1101, %v1038
          %1119 = vst.msk [vmem:[#allocation4 + $0x198] sm:$0xff] %vm1101, %v1040
          %1120 = vst.msk [vmem:[#allocation4 + $0x1b0] sm:$0xff] %vm1101, %v1042
          %1121 = vst.msk [vmem:[#allocation4 + $0x1c8] sm:$0xff] %vm1101, %v1044
          %1122 = vst.msk [vmem:[#allocation4 + $0x1e0] sm:$0xff] %vm1101, %v1046
          %1123 = vst.msk [vmem:[#allocation4 + $0x1f8] sm:$0xff] %vm1101, %v1048
          %1124 = vst.msk [vmem:[#allocation4 + $0x210] sm:$0xff] %vm1101, %v1050
          %1125 = vst.msk [vmem:[#allocation4 + $0x228] sm:$0xff] %vm1101, %v1052
          %1126 = vst.msk [vmem:[#allocation4 + $0x240] sm:$0xff] %vm1101, %v1054
          %1127 = vst.msk [vmem:[#allocation4 + $0x258] sm:$0xff] %vm1101, %v1056
          %1128 = vst.msk [vmem:[#allocation4 + $0x270] sm:$0xff] %vm1101, %v1058
          %1129 = vst.msk [vmem:[#allocation4 + $0x288] sm:$0xff] %vm1101, %v1060
          %1130 = vst.msk [vmem:[#allocation4 + $0x2a0] sm:$0xff] %vm1101, %v1062
          %1131 = vst.msk [vmem:[#allocation4 + $0x2b8] sm:$0xff] %vm1101, %v1064
          %1132 = vst.msk [vmem:[#allocation4 + $0x2d0] sm:$0xff] %vm1101, %v1066
          %1133 = vst.msk [vmem:[#allocation4 + $0x2e8] sm:$0xff] %vm1101, %v1068
          %v1134 = vld [vmem:[#allocation2 + $0x2] sm:$0xff]
          %v1135 = vld [vmem:[#allocation2 + $0xa] sm:$0xff]
          %v1136 = vld [vmem:[#allocation2 + $0x1a] sm:$0xff]
          %v1137 = vld [vmem:[#allocation2 + $0x22] sm:$0xff]
          %v1138 = vld [vmem:[#allocation2 + $0x32] sm:$0xff]
          %v1139 = vld [vmem:[#allocation2 + $0x3a] sm:$0xff]
          %v1140 = vld [vmem:[#allocation2 + $0x4a] sm:$0xff]
          %v1141 = vld [vmem:[#allocation2 + $0x52] sm:$0xff]
          %v1142 = vld [vmem:[#allocation2 + $0x62] sm:$0xff]
          %v1143 = vld [vmem:[#allocation2 + $0x6a] sm:$0xff]
          %v1144 = vld [vmem:[#allocation2 + $0x7a] sm:$0xff]
          %v1145 = vld [vmem:[#allocation2 + $0x82] sm:$0xff]
          %v1146 = vld [vmem:[#allocation2 + $0x92] sm:$0xff]
          %v1147 = vld [vmem:[#allocation2 + $0x9a] sm:$0xff]
          %v1148 = vld [vmem:[#allocation2 + $0xaa] sm:$0xff]
          %v1149 = vld [vmem:[#allocation2 + $0xb2] sm:$0xff]
          %v1150 = vld [vmem:[#allocation2 + $0xc2] sm:$0xff]
          %v1151 = vld [vmem:[#allocation2 + $0xca] sm:$0xff]
          %v1152 = vld [vmem:[#allocation2 + $0xda] sm:$0xff]
          %v1153 = vld [vmem:[#allocation2 + $0xe2] sm:$0xff]
          %v1154 = vld [vmem:[#allocation2 + $0xf2] sm:$0xff]
          %v1155 = vld [vmem:[#allocation2 + $0xfa] sm:$0xff]
          %v1156 = vld [vmem:[#allocation2 + $0x10a] sm:$0xff]
          %v1157 = vld [vmem:[#allocation2 + $0x112] sm:$0xff]
          %v1158 = vld [vmem:[#allocation2 + $0x122] sm:$0xff]
          %v1159 = vld [vmem:[#allocation2 + $0x12a] sm:$0xff]
          %v1160 = vld [vmem:[#allocation2 + $0x13a] sm:$0xff]
          %v1161 = vld [vmem:[#allocation2 + $0x142] sm:$0xff]
          %v1162 = vld [vmem:[#allocation2 + $0x152] sm:$0xff]
          %v1163 = vld [vmem:[#allocation2 + $0x15a] sm:$0xff]
          %v1164 = vld [vmem:[#allocation2 + $0x16a] sm:$0xff]
          %v1165 = vld [vmem:[#allocation2 + $0x172] sm:$0xff]
          %1198 = vrot.lane.b32.xlu0 %v1134, 72
          %v1199 = vpop.permute.xlu0 %1198
          %1200 = vrot.lane.b32.xlu0 %v1135, 72
          %v1201 = vpop.permute.xlu0 %1200
          %1202 = vrot.lane.b32.xlu0 %v1136, 72
          %v1203 = vpop.permute.xlu0 %1202
          %1204 = vrot.lane.b32.xlu0 %v1137, 72
          %v1205 = vpop.permute.xlu0 %1204
          %1206 = vrot.lane.b32.xlu0 %v1138, 72
          %v1207 = vpop.permute.xlu0 %1206
          %1208 = vrot.lane.b32.xlu0 %v1139, 72
          %v1209 = vpop.permute.xlu0 %1208
          %1210 = vrot.lane.b32.xlu0 %v1140, 72
          %v1211 = vpop.permute.xlu0 %1210
          %1212 = vrot.lane.b32.xlu0 %v1141, 72
          %v1213 = vpop.permute.xlu0 %1212
          %1214 = vrot.lane.b32.xlu0 %v1142, 72
          %v1215 = vpop.permute.xlu0 %1214
          %1216 = vrot.lane.b32.xlu0 %v1143, 72
          %v1217 = vpop.permute.xlu0 %1216
          %1218 = vrot.lane.b32.xlu0 %v1144, 72
          %v1219 = vpop.permute.xlu0 %1218
          %1220 = vrot.lane.b32.xlu0 %v1145, 72
          %v1221 = vpop.permute.xlu0 %1220
          %1222 = vrot.lane.b32.xlu0 %v1146, 72
          %v1223 = vpop.permute.xlu0 %1222
          %1224 = vrot.lane.b32.xlu0 %v1147, 72
          %v1225 = vpop.permute.xlu0 %1224
          %1226 = vrot.lane.b32.xlu0 %v1148, 72
          %v1227 = vpop.permute.xlu0 %1226
          %1228 = vrot.lane.b32.xlu0 %v1149, 72
          %v1229 = vpop.permute.xlu0 %1228
          %1230 = vrot.lane.b32.xlu0 %v1150, 72
          %v1231 = vpop.permute.xlu0 %1230
          %1232 = vrot.lane.b32.xlu0 %v1151, 72
          %v1233 = vpop.permute.xlu0 %1232
          %1234 = vrot.lane.b32.xlu0 %v1152, 72
          %v1235 = vpop.permute.xlu0 %1234
          %1236 = vrot.lane.b32.xlu0 %v1153, 72
          %v1237 = vpop.permute.xlu0 %1236
          %1238 = vrot.lane.b32.xlu0 %v1154, 72
          %v1239 = vpop.permute.xlu0 %1238
          %1240 = vrot.lane.b32.xlu0 %v1155, 72
          %v1241 = vpop.permute.xlu0 %1240
          %1242 = vrot.lane.b32.xlu0 %v1156, 72
          %v1243 = vpop.permute.xlu0 %1242
          %1244 = vrot.lane.b32.xlu0 %v1157, 72
          %v1245 = vpop.permute.xlu0 %1244
          %1246 = vrot.lane.b32.xlu0 %v1158, 72
          %v1247 = vpop.permute.xlu0 %1246
          %1248 = vrot.lane.b32.xlu0 %v1159, 72
          %v1249 = vpop.permute.xlu0 %1248
          %1250 = vrot.lane.b32.xlu0 %v1160, 72
          %v1251 = vpop.permute.xlu0 %1250
          %1252 = vrot.lane.b32.xlu0 %v1161, 72
          %v1253 = vpop.permute.xlu0 %1252
          %1254 = vrot.lane.b32.xlu0 %v1162, 72
          %v1255 = vpop.permute.xlu0 %1254
          %1256 = vrot.lane.b32.xlu0 %v1163, 72
          %v1257 = vpop.permute.xlu0 %1256
          %1258 = vrot.lane.b32.xlu0 %v1164, 72
          %v1259 = vpop.permute.xlu0 %1258
          %1260 = vrot.lane.b32.xlu0 %v1165, 72
          %v1261 = vpop.permute.xlu0 %1260
          %vm1294 = vcmask 884288
          %1295 = vst.msk [vmem:[#allocation4] sm:$0xff] %vm1294, %v1199
          %1296 = vst.msk [vmem:[#allocation4 + $0x18] sm:$0xff] %vm1294, %v1201
          %1297 = vst.msk [vmem:[#allocation4 + $0x30] sm:$0xff] %vm1294, %v1203
          %1298 = vst.msk [vmem:[#allocation4 + $0x48] sm:$0xff] %vm1294, %v1205
          %1299 = vst.msk [vmem:[#allocation4 + $0x60] sm:$0xff] %vm1294, %v1207
          %1300 = vst.msk [vmem:[#allocation4 + $0x78] sm:$0xff] %vm1294, %v1209
          %1301 = vst.msk [vmem:[#allocation4 + $0x90] sm:$0xff] %vm1294, %v1211
          %1302 = vst.msk [vmem:[#allocation4 + $0xa8] sm:$0xff] %vm1294, %v1213
          %1303 = vst.msk [vmem:[#allocation4 + $0xc0] sm:$0xff] %vm1294, %v1215
          %1304 = vst.msk [vmem:[#allocation4 + $0xd8] sm:$0xff] %vm1294, %v1217
          %1305 = vst.msk [vmem:[#allocation4 + $0xf0] sm:$0xff] %vm1294, %v1219
          %1306 = vst.msk [vmem:[#allocation4 + $0x108] sm:$0xff] %vm1294, %v1221
          %1307 = vst.msk [vmem:[#allocation4 + $0x120] sm:$0xff] %vm1294, %v1223
          %1308 = vst.msk [vmem:[#allocation4 + $0x138] sm:$0xff] %vm1294, %v1225
          %1309 = vst.msk [vmem:[#allocation4 + $0x150] sm:$0xff] %vm1294, %v1227
          %1310 = vst.msk [vmem:[#allocation4 + $0x168] sm:$0xff] %vm1294, %v1229
          %1311 = vst.msk [vmem:[#allocation4 + $0x180] sm:$0xff] %vm1294, %v1231
          %1312 = vst.msk [vmem:[#allocation4 + $0x198] sm:$0xff] %vm1294, %v1233
          %1313 = vst.msk [vmem:[#allocation4 + $0x1b0] sm:$0xff] %vm1294, %v1235
          %1314 = vst.msk [vmem:[#allocation4 + $0x1c8] sm:$0xff] %vm1294, %v1237
          %1315 = vst.msk [vmem:[#allocation4 + $0x1e0] sm:$0xff] %vm1294, %v1239
          %1316 = vst.msk [vmem:[#allocation4 + $0x1f8] sm:$0xff] %vm1294, %v1241
          %1317 = vst.msk [vmem:[#allocation4 + $0x210] sm:$0xff] %vm1294, %v1243
          %1318 = vst.msk [vmem:[#allocation4 + $0x228] sm:$0xff] %vm1294, %v1245
          %1319 = vst.msk [vmem:[#allocation4 + $0x240] sm:$0xff] %vm1294, %v1247
          %1320 = vst.msk [vmem:[#allocation4 + $0x258] sm:$0xff] %vm1294, %v1249
          %1321 = vst.msk [vmem:[#allocation4 + $0x270] sm:$0xff] %vm1294, %v1251
          %1322 = vst.msk [vmem:[#allocation4 + $0x288] sm:$0xff] %vm1294, %v1253
          %1323 = vst.msk [vmem:[#allocation4 + $0x2a0] sm:$0xff] %vm1294, %v1255
          %1324 = vst.msk [vmem:[#allocation4 + $0x2b8] sm:$0xff] %vm1294, %v1257
          %1325 = vst.msk [vmem:[#allocation4 + $0x2d0] sm:$0xff] %vm1294, %v1259
          %1326 = vst.msk [vmem:[#allocation4 + $0x2e8] sm:$0xff] %vm1294, %v1261
          %v1327 = vld [vmem:[%s650] sm:$0xff]
          %v1328 = vld [vmem:[%s650 + $0x8] sm:$0xff]
          %v1329 = vld [vmem:[%s650 + $0x18] sm:$0xff]
          %v1330 = vld [vmem:[%s650 + $0x20] sm:$0xff]
          %v1331 = vld [vmem:[%s650 + $0x30] sm:$0xff]
          %v1332 = vld [vmem:[%s650 + $0x38] sm:$0xff]
          %v1333 = vld [vmem:[%s650 + $0x48] sm:$0xff]
          %v1334 = vld [vmem:[%s650 + $0x50] sm:$0xff]
          %v1335 = vld [vmem:[%s650 + $0x60] sm:$0xff]
          %v1336 = vld [vmem:[%s650 + $0x68] sm:$0xff]
          %v1337 = vld [vmem:[%s650 + $0x78] sm:$0xff]
          %v1338 = vld [vmem:[%s650 + $0x80] sm:$0xff]
          %v1339 = vld [vmem:[%s650 + $0x90] sm:$0xff]
          %v1340 = vld [vmem:[%s650 + $0x98] sm:$0xff]
          %v1341 = vld [vmem:[%s650 + $0xa8] sm:$0xff]
          %v1342 = vld [vmem:[%s650 + $0xb0] sm:$0xff]
          %v1343 = vld [vmem:[%s650 + $0xc0] sm:$0xff]
          %v1344 = vld [vmem:[%s650 + $0xc8] sm:$0xff]
          %v1345 = vld [vmem:[%s650 + $0xd8] sm:$0xff]
          %v1346 = vld [vmem:[%s650 + $0xe0] sm:$0xff]
          %v1347 = vld [vmem:[%s650 + $0xf0] sm:$0xff]
          %v1348 = vld [vmem:[%s650 + $0xf8] sm:$0xff]
          %v1349 = vld [vmem:[%s650 + $0x108] sm:$0xff]
          %v1350 = vld [vmem:[%s650 + $0x110] sm:$0xff]
          %v1351 = vld [vmem:[%s650 + $0x120] sm:$0xff]
          %v1352 = vld [vmem:[%s650 + $0x128] sm:$0xff]
          %v1353 = vld [vmem:[%s650 + $0x138] sm:$0xff]
          %v1354 = vld [vmem:[%s650 + $0x140] sm:$0xff]
          %v1355 = vld [vmem:[%s650 + $0x150] sm:$0xff]
          %v1356 = vld [vmem:[%s650 + $0x158] sm:$0xff]
          %v1357 = vld [vmem:[%s650 + $0x168] sm:$0xff]
          %v1358 = vld [vmem:[%s650 + $0x170] sm:$0xff]
          %1391 = vrot.lane.b32.xlu0 %v1327, 108
          %v1392 = vpop.permute.xlu0 %1391
          %1393 = vrot.lane.b32.xlu0 %v1328, 108
          %v1394 = vpop.permute.xlu0 %1393
          %1395 = vrot.lane.b32.xlu0 %v1329, 108
          %v1396 = vpop.permute.xlu0 %1395
          %1397 = vrot.lane.b32.xlu0 %v1330, 108
          %v1398 = vpop.permute.xlu0 %1397
          %1399 = vrot.lane.b32.xlu0 %v1331, 108
          %v1400 = vpop.permute.xlu0 %1399
          %1401 = vrot.lane.b32.xlu0 %v1332, 108
          %v1402 = vpop.permute.xlu0 %1401
          %1403 = vrot.lane.b32.xlu0 %v1333, 108
          %v1404 = vpop.permute.xlu0 %1403
          %1405 = vrot.lane.b32.xlu0 %v1334, 108
          %v1406 = vpop.permute.xlu0 %1405
          %1407 = vrot.lane.b32.xlu0 %v1335, 108
          %v1408 = vpop.permute.xlu0 %1407
          %1409 = vrot.lane.b32.xlu0 %v1336, 108
          %v1410 = vpop.permute.xlu0 %1409
          %1411 = vrot.lane.b32.xlu0 %v1337, 108
          %v1412 = vpop.permute.xlu0 %1411
          %1413 = vrot.lane.b32.xlu0 %v1338, 108
          %v1414 = vpop.permute.xlu0 %1413
          %1415 = vrot.lane.b32.xlu0 %v1339, 108
          %v1416 = vpop.permute.xlu0 %1415
          %1417 = vrot.lane.b32.xlu0 %v1340, 108
          %v1418 = vpop.permute.xlu0 %1417
          %1419 = vrot.lane.b32.xlu0 %v1341, 108
          %v1420 = vpop.permute.xlu0 %1419
          %1421 = vrot.lane.b32.xlu0 %v1342, 108
          %v1422 = vpop.permute.xlu0 %1421
          %1423 = vrot.lane.b32.xlu0 %v1343, 108
          %v1424 = vpop.permute.xlu0 %1423
          %1425 = vrot.lane.b32.xlu0 %v1344, 108
          %v1426 = vpop.permute.xlu0 %1425
          %1427 = vrot.lane.b32.xlu0 %v1345, 108
          %v1428 = vpop.permute.xlu0 %1427
          %1429 = vrot.lane.b32.xlu0 %v1346, 108
          %v1430 = vpop.permute.xlu0 %1429
          %1431 = vrot.lane.b32.xlu0 %v1347, 108
          %v1432 = vpop.permute.xlu0 %1431
          %1433 = vrot.lane.b32.xlu0 %v1348, 108
          %v1434 = vpop.permute.xlu0 %1433
          %1435 = vrot.lane.b32.xlu0 %v1349, 108
          %v1436 = vpop.permute.xlu0 %1435
          %1437 = vrot.lane.b32.xlu0 %v1350, 108
          %v1438 = vpop.permute.xlu0 %1437
          %1439 = vrot.lane.b32.xlu0 %v1351, 108
          %v1440 = vpop.permute.xlu0 %1439
          %1441 = vrot.lane.b32.xlu0 %v1352, 108
          %v1442 = vpop.permute.xlu0 %1441
          %1443 = vrot.lane.b32.xlu0 %v1353, 108
          %v1444 = vpop.permute.xlu0 %1443
          %1445 = vrot.lane.b32.xlu0 %v1354, 108
          %v1446 = vpop.permute.xlu0 %1445
          %1447 = vrot.lane.b32.xlu0 %v1355, 108
          %v1448 = vpop.permute.xlu0 %1447
          %1449 = vrot.lane.b32.xlu0 %v1356, 108
          %v1450 = vpop.permute.xlu0 %1449
          %1451 = vrot.lane.b32.xlu0 %v1357, 108
          %v1452 = vpop.permute.xlu0 %1451
          %1453 = vrot.lane.b32.xlu0 %v1358, 108
          %v1454 = vpop.permute.xlu0 %1453
          %vm1487 = vcmask 1048416
          %1488 = vst.msk [vmem:[#allocation4] sm:$0xff] %vm1487, %v1392
          %vm1489 = vcmask 130048
          %1490 = vst.msk [vmem:[#allocation4 + $0x8] sm:$0xff] %vm1489, %v1392
          %1491 = vst.msk [vmem:[#allocation4 + $0x18] sm:$0xff] %vm1487, %v1394
          %1492 = vst.msk [vmem:[#allocation4 + $0x20] sm:$0xff] %vm1489, %v1394
          %1493 = vst.msk [vmem:[#allocation4 + $0x30] sm:$0xff] %vm1487, %v1396
          %1494 = vst.msk [vmem:[#allocation4 + $0x38] sm:$0xff] %vm1489, %v1396
          %1495 = vst.msk [vmem:[#allocation4 + $0x48] sm:$0xff] %vm1487, %v1398
          %1496 = vst.msk [vmem:[#allocation4 + $0x50] sm:$0xff] %vm1489, %v1398
          %1497 = vst.msk [vmem:[#allocation4 + $0x60] sm:$0xff] %vm1487, %v1400
          %1498 = vst.msk [vmem:[#allocation4 + $0x68] sm:$0xff] %vm1489, %v1400
          %1499 = vst.msk [vmem:[#allocation4 + $0x78] sm:$0xff] %vm1487, %v1402
          %1500 = vst.msk [vmem:[#allocation4 + $0x80] sm:$0xff] %vm1489, %v1402
          %1501 = vst.msk [vmem:[#allocation4 + $0x90] sm:$0xff] %vm1487, %v1404
          %1502 = vst.msk [vmem:[#allocation4 + $0x98] sm:$0xff] %vm1489, %v1404
          %1503 = vst.msk [vmem:[#allocation4 + $0xa8] sm:$0xff] %vm1487, %v1406
          %1504 = vst.msk [vmem:[#allocation4 + $0xb0] sm:$0xff] %vm1489, %v1406
          %1505 = vst.msk [vmem:[#allocation4 + $0xc0] sm:$0xff] %vm1487, %v1408
          %1506 = vst.msk [vmem:[#allocation4 + $0xc8] sm:$0xff] %vm1489, %v1408
          %1507 = vst.msk [vmem:[#allocation4 + $0xd8] sm:$0xff] %vm1487, %v1410
          %1508 = vst.msk [vmem:[#allocation4 + $0xe0] sm:$0xff] %vm1489, %v1410
          %1509 = vst.msk [vmem:[#allocation4 + $0xf0] sm:$0xff] %vm1487, %v1412
          %1510 = vst.msk [vmem:[#allocation4 + $0xf8] sm:$0xff] %vm1489, %v1412
          %1511 = vst.msk [vmem:[#allocation4 + $0x108] sm:$0xff] %vm1487, %v1414
          %1512 = vst.msk [vmem:[#allocation4 + $0x110] sm:$0xff] %vm1489, %v1414
          %1513 = vst.msk [vmem:[#allocation4 + $0x120] sm:$0xff] %vm1487, %v1416
          %1514 = vst.msk [vmem:[#allocation4 + $0x128] sm:$0xff] %vm1489, %v1416
          %1515 = vst.msk [vmem:[#allocation4 + $0x138] sm:$0xff] %vm1487, %v1418
          %1516 = vst.msk [vmem:[#allocation4 + $0x140] sm:$0xff] %vm1489, %v1418
          %1517 = vst.msk [vmem:[#allocation4 + $0x150] sm:$0xff] %vm1487, %v1420
          %1518 = vst.msk [vmem:[#allocation4 + $0x158] sm:$0xff] %vm1489, %v1420
          %1519 = vst.msk [vmem:[#allocation4 + $0x168] sm:$0xff] %vm1487, %v1422
          %1520 = vst.msk [vmem:[#allocation4 + $0x170] sm:$0xff] %vm1489, %v1422
          %1521 = vst.msk [vmem:[#allocation4 + $0x180] sm:$0xff] %vm1487, %v1424
          %1522 = vst.msk [vmem:[#allocation4 + $0x188] sm:$0xff] %vm1489, %v1424
          %1523 = vst.msk [vmem:[#allocation4 + $0x198] sm:$0xff] %vm1487, %v1426
          %1524 = vst.msk [vmem:[#allocation4 + $0x1a0] sm:$0xff] %vm1489, %v1426
          %1525 = vst.msk [vmem:[#allocation4 + $0x1b0] sm:$0xff] %vm1487, %v1428
          %1526 = vst.msk [vmem:[#allocation4 + $0x1b8] sm:$0xff] %vm1489, %v1428
          %1527 = vst.msk [vmem:[#allocation4 + $0x1c8] sm:$0xff] %vm1487, %v1430
          %1528 = vst.msk [vmem:[#allocation4 + $0x1d0] sm:$0xff] %vm1489, %v1430
          %1529 = vst.msk [vmem:[#allocation4 + $0x1e0] sm:$0xff] %vm1487, %v1432
          %1530 = vst.msk [vmem:[#allocation4 + $0x1e8] sm:$0xff] %vm1489, %v1432
          %1531 = vst.msk [vmem:[#allocation4 + $0x1f8] sm:$0xff] %vm1487, %v1434
          %1532 = vst.msk [vmem:[#allocation4 + $0x200] sm:$0xff] %vm1489, %v1434
          %1533 = vst.msk [vmem:[#allocation4 + $0x210] sm:$0xff] %vm1487, %v1436
          %1534 = vst.msk [vmem:[#allocation4 + $0x218] sm:$0xff] %vm1489, %v1436
          %1535 = vst.msk [vmem:[#allocation4 + $0x228] sm:$0xff] %vm1487, %v1438
          %1536 = vst.msk [vmem:[#allocation4 + $0x230] sm:$0xff] %vm1489, %v1438
          %1537 = vst.msk [vmem:[#allocation4 + $0x240] sm:$0xff] %vm1487, %v1440
          %1538 = vst.msk [vmem:[#allocation4 + $0x248] sm:$0xff] %vm1489, %v1440
          %1539 = vst.msk [vmem:[#allocation4 + $0x258] sm:$0xff] %vm1487, %v1442
          %1540 = vst.msk [vmem:[#allocation4 + $0x260] sm:$0xff] %vm1489, %v1442
          %1541 = vst.msk [vmem:[#allocation4 + $0x270] sm:$0xff] %vm1487, %v1444
          %1542 = vst.msk [vmem:[#allocation4 + $0x278] sm:$0xff] %vm1489, %v1444
          %1543 = vst.msk [vmem:[#allocation4 + $0x288] sm:$0xff] %vm1487, %v1446
          %1544 = vst.msk [vmem:[#allocation4 + $0x290] sm:$0xff] %vm1489, %v1446
          %1545 = vst.msk [vmem:[#allocation4 + $0x2a0] sm:$0xff] %vm1487, %v1448
          %1546 = vst.msk [vmem:[#allocation4 + $0x2a8] sm:$0xff] %vm1489, %v1448
          %1547 = vst.msk [vmem:[#allocation4 + $0x2b8] sm:$0xff] %vm1487, %v1450
          %1548 = vst.msk [vmem:[#allocation4 + $0x2c0] sm:$0xff] %vm1489, %v1450
          %1549 = vst.msk [vmem:[#allocation4 + $0x2d0] sm:$0xff] %vm1487, %v1452
          %1550 = vst.msk [vmem:[#allocation4 + $0x2d8] sm:$0xff] %vm1489, %v1452
          %1551 = vst.msk [vmem:[#allocation4 + $0x2e8] sm:$0xff] %vm1487, %v1454
          %1552 = vst.msk [vmem:[#allocation4 + $0x2f0] sm:$0xff] %vm1489, %v1454
          %v1553 = vld [vmem:[%s650 + $0x1] sm:$0xff]
          %v1554 = vld [vmem:[%s650 + $0x9] sm:$0xff]
          %v1555 = vld [vmem:[%s650 + $0x19] sm:$0xff]
          %v1556 = vld [vmem:[%s650 + $0x21] sm:$0xff]
          %v1557 = vld [vmem:[%s650 + $0x31] sm:$0xff]
          %v1558 = vld [vmem:[%s650 + $0x39] sm:$0xff]
          %v1559 = vld [vmem:[%s650 + $0x49] sm:$0xff]
          %v1560 = vld [vmem:[%s650 + $0x51] sm:$0xff]
          %v1561 = vld [vmem:[%s650 + $0x61] sm:$0xff]
          %v1562 = vld [vmem:[%s650 + $0x69] sm:$0xff]
          %v1563 = vld [vmem:[%s650 + $0x79] sm:$0xff]
          %v1564 = vld [vmem:[%s650 + $0x81] sm:$0xff]
          %v1565 = vld [vmem:[%s650 + $0x91] sm:$0xff]
          %v1566 = vld [vmem:[%s650 + $0x99] sm:$0xff]
          %v1567 = vld [vmem:[%s650 + $0xa9] sm:$0xff]
          %v1568 = vld [vmem:[%s650 + $0xb1] sm:$0xff]
          %v1569 = vld [vmem:[%s650 + $0xc1] sm:$0xff]
          %v1570 = vld [vmem:[%s650 + $0xc9] sm:$0xff]
          %v1571 = vld [vmem:[%s650 + $0xd9] sm:$0xff]
          %v1572 = vld [vmem:[%s650 + $0xe1] sm:$0xff]
          %v1573 = vld [vmem:[%s650 + $0xf1] sm:$0xff]
          %v1574 = vld [vmem:[%s650 + $0xf9] sm:$0xff]
          %v1575 = vld [vmem:[%s650 + $0x109] sm:$0xff]
          %v1576 = vld [vmem:[%s650 + $0x111] sm:$0xff]
          %v1577 = vld [vmem:[%s650 + $0x121] sm:$0xff]
          %v1578 = vld [vmem:[%s650 + $0x129] sm:$0xff]
          %v1579 = vld [vmem:[%s650 + $0x139] sm:$0xff]
          %v1580 = vld [vmem:[%s650 + $0x141] sm:$0xff]
          %v1581 = vld [vmem:[%s650 + $0x151] sm:$0xff]
          %v1582 = vld [vmem:[%s650 + $0x159] sm:$0xff]
          %v1583 = vld [vmem:[%s650 + $0x169] sm:$0xff]
          %v1584 = vld [vmem:[%s650 + $0x171] sm:$0xff]
          %1617 = vrot.lane.b32.xlu0 %v1553, 16
          %v1618 = vpop.permute.xlu0 %1617
          %1619 = vrot.lane.b32.xlu0 %v1554, 16
          %v1620 = vpop.permute.xlu0 %1619
          %1621 = vrot.lane.b32.xlu0 %v1555, 16
          %v1622 = vpop.permute.xlu0 %1621
          %1623 = vrot.lane.b32.xlu0 %v1556, 16
          %v1624 = vpop.permute.xlu0 %1623
          %1625 = vrot.lane.b32.xlu0 %v1557, 16
          %v1626 = vpop.permute.xlu0 %1625
          %1627 = vrot.lane.b32.xlu0 %v1558, 16
          %v1628 = vpop.permute.xlu0 %1627
          %1629 = vrot.lane.b32.xlu0 %v1559, 16
          %v1630 = vpop.permute.xlu0 %1629
          %1631 = vrot.lane.b32.xlu0 %v1560, 16
          %v1632 = vpop.permute.xlu0 %1631
          %1633 = vrot.lane.b32.xlu0 %v1561, 16
          %v1634 = vpop.permute.xlu0 %1633
          %1635 = vrot.lane.b32.xlu0 %v1562, 16
          %v1636 = vpop.permute.xlu0 %1635
          %1637 = vrot.lane.b32.xlu0 %v1563, 16
          %v1638 = vpop.permute.xlu0 %1637
          %1639 = vrot.lane.b32.xlu0 %v1564, 16
          %v1640 = vpop.permute.xlu0 %1639
          %1641 = vrot.lane.b32.xlu0 %v1565, 16
          %v1642 = vpop.permute.xlu0 %1641
          %1643 = vrot.lane.b32.xlu0 %v1566, 16
          %v1644 = vpop.permute.xlu0 %1643
          %1645 = vrot.lane.b32.xlu0 %v1567, 16
          %v1646 = vpop.permute.xlu0 %1645
          %1647 = vrot.lane.b32.xlu0 %v1568, 16
          %v1648 = vpop.permute.xlu0 %1647
          %1649 = vrot.lane.b32.xlu0 %v1569, 16
          %v1650 = vpop.permute.xlu0 %1649
          %1651 = vrot.lane.b32.xlu0 %v1570, 16
          %v1652 = vpop.permute.xlu0 %1651
          %1653 = vrot.lane.b32.xlu0 %v1571, 16
          %v1654 = vpop.permute.xlu0 %1653
          %1655 = vrot.lane.b32.xlu0 %v1572, 16
          %v1656 = vpop.permute.xlu0 %1655
          %1657 = vrot.lane.b32.xlu0 %v1573, 16
          %v1658 = vpop.permute.xlu0 %1657
          %1659 = vrot.lane.b32.xlu0 %v1574, 16
          %v1660 = vpop.permute.xlu0 %1659
          %1661 = vrot.lane.b32.xlu0 %v1575, 16
          %v1662 = vpop.permute.xlu0 %1661
          %1663 = vrot.lane.b32.xlu0 %v1576, 16
          %v1664 = vpop.permute.xlu0 %1663
          %1665 = vrot.lane.b32.xlu0 %v1577, 16
          %v1666 = vpop.permute.xlu0 %1665
          %1667 = vrot.lane.b32.xlu0 %v1578, 16
          %v1668 = vpop.permute.xlu0 %1667
          %1669 = vrot.lane.b32.xlu0 %v1579, 16
          %v1670 = vpop.permute.xlu0 %1669
          %1671 = vrot.lane.b32.xlu0 %v1580, 16
          %v1672 = vpop.permute.xlu0 %1671
          %1673 = vrot.lane.b32.xlu0 %v1581, 16
          %v1674 = vpop.permute.xlu0 %1673
          %1675 = vrot.lane.b32.xlu0 %v1582, 16
          %v1676 = vpop.permute.xlu0 %1675
          %1677 = vrot.lane.b32.xlu0 %v1583, 16
          %v1678 = vpop.permute.xlu0 %1677
          %1679 = vrot.lane.b32.xlu0 %v1584, 16
          %v1680 = vpop.permute.xlu0 %1679
          %vm1713 = vcmask 425088
          %1714 = vst.msk [vmem:[#allocation4 + $0x8] sm:$0xff] %vm1713, %v1618
          %1715 = vst.msk [vmem:[#allocation4 + $0x20] sm:$0xff] %vm1713, %v1620
          %1716 = vst.msk [vmem:[#allocation4 + $0x38] sm:$0xff] %vm1713, %v1622
          %1717 = vst.msk [vmem:[#allocation4 + $0x50] sm:$0xff] %vm1713, %v1624
          %1718 = vst.msk [vmem:[#allocation4 + $0x68] sm:$0xff] %vm1713, %v1626
          %1719 = vst.msk [vmem:[#allocation4 + $0x80] sm:$0xff] %vm1713, %v1628
          %1720 = vst.msk [vmem:[#allocation4 + $0x98] sm:$0xff] %vm1713, %v1630
          %1721 = vst.msk [vmem:[#allocation4 + $0xb0] sm:$0xff] %vm1713, %v1632
          %1722 = vst.msk [vmem:[#allocation4 + $0xc8] sm:$0xff] %vm1713, %v1634
          %1723 = vst.msk [vmem:[#allocation4 + $0xe0] sm:$0xff] %vm1713, %v1636
          %1724 = vst.msk [vmem:[#allocation4 + $0xf8] sm:$0xff] %vm1713, %v1638
          %1725 = vst.msk [vmem:[#allocation4 + $0x110] sm:$0xff] %vm1713, %v1640
          %1726 = vst.msk [vmem:[#allocation4 + $0x128] sm:$0xff] %vm1713, %v1642
          %1727 = vst.msk [vmem:[#allocation4 + $0x140] sm:$0xff] %vm1713, %v1644
          %1728 = vst.msk [vmem:[#allocation4 + $0x158] sm:$0xff] %vm1713, %v1646
          %1729 = vst.msk [vmem:[#allocation4 + $0x170] sm:$0xff] %vm1713, %v1648
          %1730 = vst.msk [vmem:[#allocation4 + $0x188] sm:$0xff] %vm1713, %v1650
          %1731 = vst.msk [vmem:[#allocation4 + $0x1a0] sm:$0xff] %vm1713, %v1652
          %1732 = vst.msk [vmem:[#allocation4 + $0x1b8] sm:$0xff] %vm1713, %v1654
          %1733 = vst.msk [vmem:[#allocation4 + $0x1d0] sm:$0xff] %vm1713, %v1656
          %1734 = vst.msk [vmem:[#allocation4 + $0x1e8] sm:$0xff] %vm1713, %v1658
          %1735 = vst.msk [vmem:[#allocation4 + $0x200] sm:$0xff] %vm1713, %v1660
          %1736 = vst.msk [vmem:[#allocation4 + $0x218] sm:$0xff] %vm1713, %v1662
          %1737 = vst.msk [vmem:[#allocation4 + $0x230] sm:$0xff] %vm1713, %v1664
          %1738 = vst.msk [vmem:[#allocation4 + $0x248] sm:$0xff] %vm1713, %v1666
          %1739 = vst.msk [vmem:[#allocation4 + $0x260] sm:$0xff] %vm1713, %v1668
          %1740 = vst.msk [vmem:[#allocation4 + $0x278] sm:$0xff] %vm1713, %v1670
          %1741 = vst.msk [vmem:[#allocation4 + $0x290] sm:$0xff] %vm1713, %v1672
          %1742 = vst.msk [vmem:[#allocation4 + $0x2a8] sm:$0xff] %vm1713, %v1674
          %1743 = vst.msk [vmem:[#allocation4 + $0x2c0] sm:$0xff] %vm1713, %v1676
          %1744 = vst.msk [vmem:[#allocation4 + $0x2d8] sm:$0xff] %vm1713, %v1678
          %1745 = vst.msk [vmem:[#allocation4 + $0x2f0] sm:$0xff] %vm1713, %v1680
          %v1746 = vld [vmem:[%s650 + $0x2] sm:$0xff]
          %v1747 = vld [vmem:[%s650 + $0xa] sm:$0xff]
          %v1748 = vld [vmem:[%s650 + $0x1a] sm:$0xff]
          %v1749 = vld [vmem:[%s650 + $0x22] sm:$0xff]
          %v1750 = vld [vmem:[%s650 + $0x32] sm:$0xff]
          %v1751 = vld [vmem:[%s650 + $0x3a] sm:$0xff]
          %v1752 = vld [vmem:[%s650 + $0x4a] sm:$0xff]
          %v1753 = vld [vmem:[%s650 + $0x52] sm:$0xff]
          %v1754 = vld [vmem:[%s650 + $0x62] sm:$0xff]
          %v1755 = vld [vmem:[%s650 + $0x6a] sm:$0xff]
          %v1756 = vld [vmem:[%s650 + $0x7a] sm:$0xff]
          %v1757 = vld [vmem:[%s650 + $0x82] sm:$0xff]
          %v1758 = vld [vmem:[%s650 + $0x92] sm:$0xff]
          %v1759 = vld [vmem:[%s650 + $0x9a] sm:$0xff]
          %v1760 = vld [vmem:[%s650 + $0xaa] sm:$0xff]
          %v1761 = vld [vmem:[%s650 + $0xb2] sm:$0xff]
          %v1762 = vld [vmem:[%s650 + $0xc2] sm:$0xff]
          %v1763 = vld [vmem:[%s650 + $0xca] sm:$0xff]
          %v1764 = vld [vmem:[%s650 + $0xda] sm:$0xff]
          %v1765 = vld [vmem:[%s650 + $0xe2] sm:$0xff]
          %v1766 = vld [vmem:[%s650 + $0xf2] sm:$0xff]
          %v1767 = vld [vmem:[%s650 + $0xfa] sm:$0xff]
          %v1768 = vld [vmem:[%s650 + $0x10a] sm:$0xff]
          %v1769 = vld [vmem:[%s650 + $0x112] sm:$0xff]
          %v1770 = vld [vmem:[%s650 + $0x122] sm:$0xff]
          %v1771 = vld [vmem:[%s650 + $0x12a] sm:$0xff]
          %v1772 = vld [vmem:[%s650 + $0x13a] sm:$0xff]
          %v1773 = vld [vmem:[%s650 + $0x142] sm:$0xff]
          %v1774 = vld [vmem:[%s650 + $0x152] sm:$0xff]
          %v1775 = vld [vmem:[%s650 + $0x15a] sm:$0xff]
          %v1776 = vld [vmem:[%s650 + $0x16a] sm:$0xff]
          %v1777 = vld [vmem:[%s650 + $0x172] sm:$0xff]
          %1810 = vrot.lane.b32.xlu0 %v1746, 52
          %v1811 = vpop.permute.xlu0 %1810
          %1812 = vrot.lane.b32.xlu0 %v1747, 52
          %v1813 = vpop.permute.xlu0 %1812
          %1814 = vrot.lane.b32.xlu0 %v1748, 52
          %v1815 = vpop.permute.xlu0 %1814
          %1816 = vrot.lane.b32.xlu0 %v1749, 52
          %v1817 = vpop.permute.xlu0 %1816
          %1818 = vrot.lane.b32.xlu0 %v1750, 52
          %v1819 = vpop.permute.xlu0 %1818
          %1820 = vrot.lane.b32.xlu0 %v1751, 52
          %v1821 = vpop.permute.xlu0 %1820
          %1822 = vrot.lane.b32.xlu0 %v1752, 52
          %v1823 = vpop.permute.xlu0 %1822
          %1824 = vrot.lane.b32.xlu0 %v1753, 52
          %v1825 = vpop.permute.xlu0 %1824
          %1826 = vrot.lane.b32.xlu0 %v1754, 52
          %v1827 = vpop.permute.xlu0 %1826
          %1828 = vrot.lane.b32.xlu0 %v1755, 52
          %v1829 = vpop.permute.xlu0 %1828
          %1830 = vrot.lane.b32.xlu0 %v1756, 52
          %v1831 = vpop.permute.xlu0 %1830
          %1832 = vrot.lane.b32.xlu0 %v1757, 52
          %v1833 = vpop.permute.xlu0 %1832
          %1834 = vrot.lane.b32.xlu0 %v1758, 52
          %v1835 = vpop.permute.xlu0 %1834
          %1836 = vrot.lane.b32.xlu0 %v1759, 52
          %v1837 = vpop.permute.xlu0 %1836
          %1838 = vrot.lane.b32.xlu0 %v1760, 52
          %v1839 = vpop.permute.xlu0 %1838
          %1840 = vrot.lane.b32.xlu0 %v1761, 52
          %v1841 = vpop.permute.xlu0 %1840
          %1842 = vrot.lane.b32.xlu0 %v1762, 52
          %v1843 = vpop.permute.xlu0 %1842
          %1844 = vrot.lane.b32.xlu0 %v1763, 52
          %v1845 = vpop.permute.xlu0 %1844
          %1846 = vrot.lane.b32.xlu0 %v1764, 52
          %v1847 = vpop.permute.xlu0 %1846
          %1848 = vrot.lane.b32.xlu0 %v1765, 52
          %v1849 = vpop.permute.xlu0 %1848
          %1850 = vrot.lane.b32.xlu0 %v1766, 52
          %v1851 = vpop.permute.xlu0 %1850
          %1852 = vrot.lane.b32.xlu0 %v1767, 52
          %v1853 = vpop.permute.xlu0 %1852
          %1854 = vrot.lane.b32.xlu0 %v1768, 52
          %v1855 = vpop.permute.xlu0 %1854
          %1856 = vrot.lane.b32.xlu0 %v1769, 52
          %v1857 = vpop.permute.xlu0 %1856
          %1858 = vrot.lane.b32.xlu0 %v1770, 52
          %v1859 = vpop.permute.xlu0 %1858
          %1860 = vrot.lane.b32.xlu0 %v1771, 52
          %v1861 = vpop.permute.xlu0 %1860
          %1862 = vrot.lane.b32.xlu0 %v1772, 52
          %v1863 = vpop.permute.xlu0 %1862
          %1864 = vrot.lane.b32.xlu0 %v1773, 52
          %v1865 = vpop.permute.xlu0 %1864
          %1866 = vrot.lane.b32.xlu0 %v1774, 52
          %v1867 = vpop.permute.xlu0 %1866
          %1868 = vrot.lane.b32.xlu0 %v1775, 52
          %v1869 = vpop.permute.xlu0 %1868
          %1870 = vrot.lane.b32.xlu0 %v1776, 52
          %v1871 = vpop.permute.xlu0 %1870
          %1872 = vrot.lane.b32.xlu0 %v1777, 52
          %v1873 = vpop.permute.xlu0 %1872
          %vm1906 = vcmask 720288
          %1907 = vst.msk [vmem:[#allocation4 + $0x8] sm:$0xff] %vm1906, %v1811
          %1908 = vst.msk [vmem:[#allocation4 + $0x20] sm:$0xff] %vm1906, %v1813
          %1909 = vst.msk [vmem:[#allocation4 + $0x38] sm:$0xff] %vm1906, %v1815
          %1910 = vst.msk [vmem:[#allocation4 + $0x50] sm:$0xff] %vm1906, %v1817
          %1911 = vst.msk [vmem:[#allocation4 + $0x68] sm:$0xff] %vm1906, %v1819
          %1912 = vst.msk [vmem:[#allocation4 + $0x80] sm:$0xff] %vm1906, %v1821
          %1913 = vst.msk [vmem:[#allocation4 + $0x98] sm:$0xff] %vm1906, %v1823
          %1914 = vst.msk [vmem:[#allocation4 + $0xb0] sm:$0xff] %vm1906, %v1825
          %1915 = vst.msk [vmem:[#allocation4 + $0xc8] sm:$0xff] %vm1906, %v1827
          %1916 = vst.msk [vmem:[#allocation4 + $0xe0] sm:$0xff] %vm1906, %v1829
          %1917 = vst.msk [vmem:[#allocation4 + $0xf8] sm:$0xff] %vm1906, %v1831
          %1918 = vst.msk [vmem:[#allocation4 + $0x110] sm:$0xff] %vm1906, %v1833
          %1919 = vst.msk [vmem:[#allocation4 + $0x128] sm:$0xff] %vm1906, %v1835
          %1920 = vst.msk [vmem:[#allocation4 + $0x140] sm:$0xff] %vm1906, %v1837
          %1921 = vst.msk [vmem:[#allocation4 + $0x158] sm:$0xff] %vm1906, %v1839
          %1922 = vst.msk [vmem:[#allocation4 + $0x170] sm:$0xff] %vm1906, %v1841
          %1923 = vst.msk [vmem:[#allocation4 + $0x188] sm:$0xff] %vm1906, %v1843
          %1924 = vst.msk [vmem:[#allocation4 + $0x1a0] sm:$0xff] %vm1906, %v1845
          %1925 = vst.msk [vmem:[#allocation4 + $0x1b8] sm:$0xff] %vm1906, %v1847
          %1926 = vst.msk [vmem:[#allocation4 + $0x1d0] sm:$0xff] %vm1906, %v1849
          %1927 = vst.msk [vmem:[#allocation4 + $0x1e8] sm:$0xff] %vm1906, %v1851
          %1928 = vst.msk [vmem:[#allocation4 + $0x200] sm:$0xff] %vm1906, %v1853
          %1929 = vst.msk [vmem:[#allocation4 + $0x218] sm:$0xff] %vm1906, %v1855
          %1930 = vst.msk [vmem:[#allocation4 + $0x230] sm:$0xff] %vm1906, %v1857
          %1931 = vst.msk [vmem:[#allocation4 + $0x248] sm:$0xff] %vm1906, %v1859
          %1932 = vst.msk [vmem:[#allocation4 + $0x260] sm:$0xff] %vm1906, %v1861
          %1933 = vst.msk [vmem:[#allocation4 + $0x278] sm:$0xff] %vm1906, %v1863
          %1934 = vst.msk [vmem:[#allocation4 + $0x290] sm:$0xff] %vm1906, %v1865
          %1935 = vst.msk [vmem:[#allocation4 + $0x2a8] sm:$0xff] %vm1906, %v1867
          %1936 = vst.msk [vmem:[#allocation4 + $0x2c0] sm:$0xff] %vm1906, %v1869
          %1937 = vst.msk [vmem:[#allocation4 + $0x2d8] sm:$0xff] %vm1906, %v1871
          %1938 = vst.msk [vmem:[#allocation4 + $0x2f0] sm:$0xff] %vm1906, %v1873
          %s1939 = scalar_lea.vmem [#allocation2], 48
          %v1940 = vld [vmem:[%s1939] sm:$0xff]
          %v1941 = vld [vmem:[%s1939 + $0x8] sm:$0xff]
          %v1942 = vld [vmem:[%s1939 + $0x18] sm:$0xff]
          %v1943 = vld [vmem:[%s1939 + $0x20] sm:$0xff]
          %v1944 = vld [vmem:[%s1939 + $0x30] sm:$0xff]
          %v1945 = vld [vmem:[%s1939 + $0x38] sm:$0xff]
          %v1946 = vld [vmem:[%s1939 + $0x48] sm:$0xff]
          %v1947 = vld [vmem:[%s1939 + $0x50] sm:$0xff]
          %v1948 = vld [vmem:[%s1939 + $0x60] sm:$0xff]
          %v1949 = vld [vmem:[%s1939 + $0x68] sm:$0xff]
          %v1950 = vld [vmem:[%s1939 + $0x78] sm:$0xff]
          %v1951 = vld [vmem:[%s1939 + $0x80] sm:$0xff]
          %v1952 = vld [vmem:[%s1939 + $0x90] sm:$0xff]
          %v1953 = vld [vmem:[%s1939 + $0x98] sm:$0xff]
          %v1954 = vld [vmem:[%s1939 + $0xa8] sm:$0xff]
          %v1955 = vld [vmem:[%s1939 + $0xb0] sm:$0xff]
          %v1956 = vld [vmem:[%s1939 + $0xc0] sm:$0xff]
          %v1957 = vld [vmem:[%s1939 + $0xc8] sm:$0xff]
          %v1958 = vld [vmem:[%s1939 + $0xd8] sm:$0xff]
          %v1959 = vld [vmem:[%s1939 + $0xe0] sm:$0xff]
          %v1960 = vld [vmem:[%s1939 + $0xf0] sm:$0xff]
          %v1961 = vld [vmem:[%s1939 + $0xf8] sm:$0xff]
          %v1962 = vld [vmem:[%s1939 + $0x108] sm:$0xff]
          %v1963 = vld [vmem:[%s1939 + $0x110] sm:$0xff]
          %v1964 = vld [vmem:[%s1939 + $0x120] sm:$0xff]
          %v1965 = vld [vmem:[%s1939 + $0x128] sm:$0xff]
          %v1966 = vld [vmem:[%s1939 + $0x138] sm:$0xff]
          %v1967 = vld [vmem:[%s1939 + $0x140] sm:$0xff]
          %v1968 = vld [vmem:[%s1939 + $0x150] sm:$0xff]
          %v1969 = vld [vmem:[%s1939 + $0x158] sm:$0xff]
          %v1970 = vld [vmem:[%s1939 + $0x168] sm:$0xff]
          %v1971 = vld [vmem:[%s1939 + $0x170] sm:$0xff]
          %2004 = vrot.lane.b32.xlu0 %v1940, 88
          %v2005 = vpop.permute.xlu0 %2004
          %2006 = vrot.lane.b32.xlu0 %v1941, 88
          %v2007 = vpop.permute.xlu0 %2006
          %2008 = vrot.lane.b32.xlu0 %v1942, 88
          %v2009 = vpop.permute.xlu0 %2008
          %2010 = vrot.lane.b32.xlu0 %v1943, 88
          %v2011 = vpop.permute.xlu0 %2010
          %2012 = vrot.lane.b32.xlu0 %v1944, 88
          %v2013 = vpop.permute.xlu0 %2012
          %2014 = vrot.lane.b32.xlu0 %v1945, 88
          %v2015 = vpop.permute.xlu0 %2014
          %2016 = vrot.lane.b32.xlu0 %v1946, 88
          %v2017 = vpop.permute.xlu0 %2016
          %2018 = vrot.lane.b32.xlu0 %v1947, 88
          %v2019 = vpop.permute.xlu0 %2018
          %2020 = vrot.lane.b32.xlu0 %v1948, 88
          %v2021 = vpop.permute.xlu0 %2020
          %2022 = vrot.lane.b32.xlu0 %v1949, 88
          %v2023 = vpop.permute.xlu0 %2022
          %2024 = vrot.lane.b32.xlu0 %v1950, 88
          %v2025 = vpop.permute.xlu0 %2024
          %2026 = vrot.lane.b32.xlu0 %v1951, 88
          %v2027 = vpop.permute.xlu0 %2026
          %2028 = vrot.lane.b32.xlu0 %v1952, 88
          %v2029 = vpop.permute.xlu0 %2028
          %2030 = vrot.lane.b32.xlu0 %v1953, 88
          %v2031 = vpop.permute.xlu0 %2030
          %2032 = vrot.lane.b32.xlu0 %v1954, 88
          %v2033 = vpop.permute.xlu0 %2032
          %2034 = vrot.lane.b32.xlu0 %v1955, 88
          %v2035 = vpop.permute.xlu0 %2034
          %2036 = vrot.lane.b32.xlu0 %v1956, 88
          %v2037 = vpop.permute.xlu0 %2036
          %2038 = vrot.lane.b32.xlu0 %v1957, 88
          %v2039 = vpop.permute.xlu0 %2038
          %2040 = vrot.lane.b32.xlu0 %v1958, 88
          %v2041 = vpop.permute.xlu0 %2040
          %2042 = vrot.lane.b32.xlu0 %v1959, 88
          %v2043 = vpop.permute.xlu0 %2042
          %2044 = vrot.lane.b32.xlu0 %v1960, 88
          %v2045 = vpop.permute.xlu0 %2044
          %2046 = vrot.lane.b32.xlu0 %v1961, 88
          %v2047 = vpop.permute.xlu0 %2046
          %2048 = vrot.lane.b32.xlu0 %v1962, 88
          %v2049 = vpop.permute.xlu0 %2048
          %2050 = vrot.lane.b32.xlu0 %v1963, 88
          %v2051 = vpop.permute.xlu0 %2050
          %2052 = vrot.lane.b32.xlu0 %v1964, 88
          %v2053 = vpop.permute.xlu0 %2052
          %2054 = vrot.lane.b32.xlu0 %v1965, 88
          %v2055 = vpop.permute.xlu0 %2054
          %2056 = vrot.lane.b32.xlu0 %v1966, 88
          %v2057 = vpop.permute.xlu0 %2056
          %2058 = vrot.lane.b32.xlu0 %v1967, 88
          %v2059 = vpop.permute.xlu0 %2058
          %2060 = vrot.lane.b32.xlu0 %v1968, 88
          %v2061 = vpop.permute.xlu0 %2060
          %2062 = vrot.lane.b32.xlu0 %v1969, 88
          %v2063 = vpop.permute.xlu0 %2062
          %2064 = vrot.lane.b32.xlu0 %v1970, 88
          %v2065 = vpop.permute.xlu0 %2064
          %2066 = vrot.lane.b32.xlu0 %v1971, 88
          %v2067 = vpop.permute.xlu0 %2066
          %vm2100 = vcmask 1015488
          %2101 = vst.msk [vmem:[#allocation4 + $0x8] sm:$0xff] %vm2100, %v2005
          %2102 = vst.msk [vmem:[#allocation4 + $0x20] sm:$0xff] %vm2100, %v2007
          %2103 = vst.msk [vmem:[#allocation4 + $0x38] sm:$0xff] %vm2100, %v2009
          %2104 = vst.msk [vmem:[#allocation4 + $0x50] sm:$0xff] %vm2100, %v2011
          %2105 = vst.msk [vmem:[#allocation4 + $0x68] sm:$0xff] %vm2100, %v2013
          %2106 = vst.msk [vmem:[#allocation4 + $0x80] sm:$0xff] %vm2100, %v2015
          %2107 = vst.msk [vmem:[#allocation4 + $0x98] sm:$0xff] %vm2100, %v2017
          %2108 = vst.msk [vmem:[#allocation4 + $0xb0] sm:$0xff] %vm2100, %v2019
          %2109 = vst.msk [vmem:[#allocation4 + $0xc8] sm:$0xff] %vm2100, %v2021
          %2110 = vst.msk [vmem:[#allocation4 + $0xe0] sm:$0xff] %vm2100, %v2023
          %2111 = vst.msk [vmem:[#allocation4 + $0xf8] sm:$0xff] %vm2100, %v2025
          %2112 = vst.msk [vmem:[#allocation4 + $0x110] sm:$0xff] %vm2100, %v2027
          %2113 = vst.msk [vmem:[#allocation4 + $0x128] sm:$0xff] %vm2100, %v2029
          %2114 = vst.msk [vmem:[#allocation4 + $0x140] sm:$0xff] %vm2100, %v2031
          %2115 = vst.msk [vmem:[#allocation4 + $0x158] sm:$0xff] %vm2100, %v2033
          %2116 = vst.msk [vmem:[#allocation4 + $0x170] sm:$0xff] %vm2100, %v2035
          %2117 = vst.msk [vmem:[#allocation4 + $0x188] sm:$0xff] %vm2100, %v2037
          %2118 = vst.msk [vmem:[#allocation4 + $0x1a0] sm:$0xff] %vm2100, %v2039
          %2119 = vst.msk [vmem:[#allocation4 + $0x1b8] sm:$0xff] %vm2100, %v2041
          %2120 = vst.msk [vmem:[#allocation4 + $0x1d0] sm:$0xff] %vm2100, %v2043
          %2121 = vst.msk [vmem:[#allocation4 + $0x1e8] sm:$0xff] %vm2100, %v2045
          %2122 = vst.msk [vmem:[#allocation4 + $0x200] sm:$0xff] %vm2100, %v2047
          %2123 = vst.msk [vmem:[#allocation4 + $0x218] sm:$0xff] %vm2100, %v2049
          %2124 = vst.msk [vmem:[#allocation4 + $0x230] sm:$0xff] %vm2100, %v2051
          %2125 = vst.msk [vmem:[#allocation4 + $0x248] sm:$0xff] %vm2100, %v2053
          %2126 = vst.msk [vmem:[#allocation4 + $0x260] sm:$0xff] %vm2100, %v2055
          %2127 = vst.msk [vmem:[#allocation4 + $0x278] sm:$0xff] %vm2100, %v2057
          %2128 = vst.msk [vmem:[#allocation4 + $0x290] sm:$0xff] %vm2100, %v2059
          %2129 = vst.msk [vmem:[#allocation4 + $0x2a8] sm:$0xff] %vm2100, %v2061
          %2130 = vst.msk [vmem:[#allocation4 + $0x2c0] sm:$0xff] %vm2100, %v2063
          %2131 = vst.msk [vmem:[#allocation4 + $0x2d8] sm:$0xff] %vm2100, %v2065
          %2132 = vst.msk [vmem:[#allocation4 + $0x2f0] sm:$0xff] %vm2100, %v2067
          %v2133 = vld [vmem:[%s1939 + $0x1] sm:$0xff]
          %v2134 = vld [vmem:[%s1939 + $0x9] sm:$0xff]
          %v2135 = vld [vmem:[%s1939 + $0x19] sm:$0xff]
          %v2136 = vld [vmem:[%s1939 + $0x21] sm:$0xff]
          %v2137 = vld [vmem:[%s1939 + $0x31] sm:$0xff]
          %v2138 = vld [vmem:[%s1939 + $0x39] sm:$0xff]
          %v2139 = vld [vmem:[%s1939 + $0x49] sm:$0xff]
          %v2140 = vld [vmem:[%s1939 + $0x51] sm:$0xff]
          %v2141 = vld [vmem:[%s1939 + $0x61] sm:$0xff]
          %v2142 = vld [vmem:[%s1939 + $0x69] sm:$0xff]
          %v2143 = vld [vmem:[%s1939 + $0x79] sm:$0xff]
          %v2144 = vld [vmem:[%s1939 + $0x81] sm:$0xff]
          %v2145 = vld [vmem:[%s1939 + $0x91] sm:$0xff]
          %v2146 = vld [vmem:[%s1939 + $0x99] sm:$0xff]
          %v2147 = vld [vmem:[%s1939 + $0xa9] sm:$0xff]
          %v2148 = vld [vmem:[%s1939 + $0xb1] sm:$0xff]
          %v2149 = vld [vmem:[%s1939 + $0xc1] sm:$0xff]
          %v2150 = vld [vmem:[%s1939 + $0xc9] sm:$0xff]
          %v2151 = vld [vmem:[%s1939 + $0xd9] sm:$0xff]
          %v2152 = vld [vmem:[%s1939 + $0xe1] sm:$0xff]
          %v2153 = vld [vmem:[%s1939 + $0xf1] sm:$0xff]
          %v2154 = vld [vmem:[%s1939 + $0xf9] sm:$0xff]
          %v2155 = vld [vmem:[%s1939 + $0x109] sm:$0xff]
          %v2156 = vld [vmem:[%s1939 + $0x111] sm:$0xff]
          %v2157 = vld [vmem:[%s1939 + $0x121] sm:$0xff]
          %v2158 = vld [vmem:[%s1939 + $0x129] sm:$0xff]
          %v2159 = vld [vmem:[%s1939 + $0x139] sm:$0xff]
          %v2160 = vld [vmem:[%s1939 + $0x141] sm:$0xff]
          %v2161 = vld [vmem:[%s1939 + $0x151] sm:$0xff]
          %v2162 = vld [vmem:[%s1939 + $0x159] sm:$0xff]
          %v2163 = vld [vmem:[%s1939 + $0x169] sm:$0xff]
          %v2164 = vld [vmem:[%s1939 + $0x171] sm:$0xff]
          %2197 = vrot.lane.b32.xlu0 %v2133, 124
          %v2198 = vpop.permute.xlu0 %2197
          %2199 = vrot.lane.b32.xlu0 %v2134, 124
          %v2200 = vpop.permute.xlu0 %2199
          %2201 = vrot.lane.b32.xlu0 %v2135, 124
          %v2202 = vpop.permute.xlu0 %2201
          %2203 = vrot.lane.b32.xlu0 %v2136, 124
          %v2204 = vpop.permute.xlu0 %2203
          %2205 = vrot.lane.b32.xlu0 %v2137, 124
          %v2206 = vpop.permute.xlu0 %2205
          %2207 = vrot.lane.b32.xlu0 %v2138, 124
          %v2208 = vpop.permute.xlu0 %2207
          %2209 = vrot.lane.b32.xlu0 %v2139, 124
          %v2210 = vpop.permute.xlu0 %2209
          %2211 = vrot.lane.b32.xlu0 %v2140, 124
          %v2212 = vpop.permute.xlu0 %2211
          %2213 = vrot.lane.b32.xlu0 %v2141, 124
          %v2214 = vpop.permute.xlu0 %2213
          %2215 = vrot.lane.b32.xlu0 %v2142, 124
          %v2216 = vpop.permute.xlu0 %2215
          %2217 = vrot.lane.b32.xlu0 %v2143, 124
          %v2218 = vpop.permute.xlu0 %2217
          %2219 = vrot.lane.b32.xlu0 %v2144, 124
          %v2220 = vpop.permute.xlu0 %2219
          %2221 = vrot.lane.b32.xlu0 %v2145, 124
          %v2222 = vpop.permute.xlu0 %2221
          %2223 = vrot.lane.b32.xlu0 %v2146, 124
          %v2224 = vpop.permute.xlu0 %2223
          %2225 = vrot.lane.b32.xlu0 %v2147, 124
          %v2226 = vpop.permute.xlu0 %2225
          %2227 = vrot.lane.b32.xlu0 %v2148, 124
          %v2228 = vpop.permute.xlu0 %2227
          %2229 = vrot.lane.b32.xlu0 %v2149, 124
          %v2230 = vpop.permute.xlu0 %2229
          %2231 = vrot.lane.b32.xlu0 %v2150, 124
          %v2232 = vpop.permute.xlu0 %2231
          %2233 = vrot.lane.b32.xlu0 %v2151, 124
          %v2234 = vpop.permute.xlu0 %2233
          %2235 = vrot.lane.b32.xlu0 %v2152, 124
          %v2236 = vpop.permute.xlu0 %2235
          %2237 = vrot.lane.b32.xlu0 %v2153, 124
          %v2238 = vpop.permute.xlu0 %2237
          %2239 = vrot.lane.b32.xlu0 %v2154, 124
          %v2240 = vpop.permute.xlu0 %2239
          %2241 = vrot.lane.b32.xlu0 %v2155, 124
          %v2242 = vpop.permute.xlu0 %2241
          %2243 = vrot.lane.b32.xlu0 %v2156, 124
          %v2244 = vpop.permute.xlu0 %2243
          %2245 = vrot.lane.b32.xlu0 %v2157, 124
          %v2246 = vpop.permute.xlu0 %2245
          %2247 = vrot.lane.b32.xlu0 %v2158, 124
          %v2248 = vpop.permute.xlu0 %2247
          %2249 = vrot.lane.b32.xlu0 %v2159, 124
          %v2250 = vpop.permute.xlu0 %2249
          %2251 = vrot.lane.b32.xlu0 %v2160, 124
          %v2252 = vpop.permute.xlu0 %2251
          %2253 = vrot.lane.b32.xlu0 %v2161, 124
          %v2254 = vpop.permute.xlu0 %2253
          %2255 = vrot.lane.b32.xlu0 %v2162, 124
          %v2256 = vpop.permute.xlu0 %2255
          %2257 = vrot.lane.b32.xlu0 %v2163, 124
          %v2258 = vpop.permute.xlu0 %2257
          %2259 = vrot.lane.b32.xlu0 %v2164, 124
          %v2260 = vpop.permute.xlu0 %2259
          %vm2293 = vcmask 1048544
          %2294 = vst.msk [vmem:[#allocation4 + $0x8] sm:$0xff] %vm2293, %v2198
          %2295 = vst.msk [vmem:[#allocation4 + $0x10] sm:$0xff] %vm481, %v2198
          %2296 = vst.msk [vmem:[#allocation4 + $0x20] sm:$0xff] %vm2293, %v2200
          %2297 = vst.msk [vmem:[#allocation4 + $0x28] sm:$0xff] %vm481, %v2200
          %2298 = vst.msk [vmem:[#allocation4 + $0x38] sm:$0xff] %vm2293, %v2202
          %2299 = vst.msk [vmem:[#allocation4 + $0x40] sm:$0xff] %vm481, %v2202
          %2300 = vst.msk [vmem:[#allocation4 + $0x50] sm:$0xff] %vm2293, %v2204
          %2301 = vst.msk [vmem:[#allocation4 + $0x58] sm:$0xff] %vm481, %v2204
          %2302 = vst.msk [vmem:[#allocation4 + $0x68] sm:$0xff] %vm2293, %v2206
          %2303 = vst.msk [vmem:[#allocation4 + $0x70] sm:$0xff] %vm481, %v2206
          %2304 = vst.msk [vmem:[#allocation4 + $0x80] sm:$0xff] %vm2293, %v2208
          %2305 = vst.msk [vmem:[#allocation4 + $0x88] sm:$0xff] %vm481, %v2208
          %2306 = vst.msk [vmem:[#allocation4 + $0x98] sm:$0xff] %vm2293, %v2210
          %2307 = vst.msk [vmem:[#allocation4 + $0xa0] sm:$0xff] %vm481, %v2210
          %2308 = vst.msk [vmem:[#allocation4 + $0xb0] sm:$0xff] %vm2293, %v2212
          %2309 = vst.msk [vmem:[#allocation4 + $0xb8] sm:$0xff] %vm481, %v2212
          %2310 = vst.msk [vmem:[#allocation4 + $0xc8] sm:$0xff] %vm2293, %v2214
          %2311 = vst.msk [vmem:[#allocation4 + $0xd0] sm:$0xff] %vm481, %v2214
          %2312 = vst.msk [vmem:[#allocation4 + $0xe0] sm:$0xff] %vm2293, %v2216
          %2313 = vst.msk [vmem:[#allocation4 + $0xe8] sm:$0xff] %vm481, %v2216
          %2314 = vst.msk [vmem:[#allocation4 + $0xf8] sm:$0xff] %vm2293, %v2218
          %2315 = vst.msk [vmem:[#allocation4 + $0x100] sm:$0xff] %vm481, %v2218
          %2316 = vst.msk [vmem:[#allocation4 + $0x110] sm:$0xff] %vm2293, %v2220
          %2317 = vst.msk [vmem:[#allocation4 + $0x118] sm:$0xff] %vm481, %v2220
          %2318 = vst.msk [vmem:[#allocation4 + $0x128] sm:$0xff] %vm2293, %v2222
          %2319 = vst.msk [vmem:[#allocation4 + $0x130] sm:$0xff] %vm481, %v2222
          %2320 = vst.msk [vmem:[#allocation4 + $0x140] sm:$0xff] %vm2293, %v2224
          %2321 = vst.msk [vmem:[#allocation4 + $0x148] sm:$0xff] %vm481, %v2224
          %2322 = vst.msk [vmem:[#allocation4 + $0x158] sm:$0xff] %vm2293, %v2226
          %2323 = vst.msk [vmem:[#allocation4 + $0x160] sm:$0xff] %vm481, %v2226
          %2324 = vst.msk [vmem:[#allocation4 + $0x170] sm:$0xff] %vm2293, %v2228
          %2325 = vst.msk [vmem:[#allocation4 + $0x178] sm:$0xff] %vm481, %v2228
          %2326 = vst.msk [vmem:[#allocation4 + $0x188] sm:$0xff] %vm2293, %v2230
          %2327 = vst.msk [vmem:[#allocation4 + $0x190] sm:$0xff] %vm481, %v2230
          %2328 = vst.msk [vmem:[#allocation4 + $0x1a0] sm:$0xff] %vm2293, %v2232
          %2329 = vst.msk [vmem:[#allocation4 + $0x1a8] sm:$0xff] %vm481, %v2232
          %2330 = vst.msk [vmem:[#allocation4 + $0x1b8] sm:$0xff] %vm2293, %v2234
          %2331 = vst.msk [vmem:[#allocation4 + $0x1c0] sm:$0xff] %vm481, %v2234
          %2332 = vst.msk [vmem:[#allocation4 + $0x1d0] sm:$0xff] %vm2293, %v2236
          %2333 = vst.msk [vmem:[#allocation4 + $0x1d8] sm:$0xff] %vm481, %v2236
          %2334 = vst.msk [vmem:[#allocation4 + $0x1e8] sm:$0xff] %vm2293, %v2238
          %2335 = vst.msk [vmem:[#allocation4 + $0x1f0] sm:$0xff] %vm481, %v2238
          %2336 = vst.msk [vmem:[#allocation4 + $0x200] sm:$0xff] %vm2293, %v2240
          %2337 = vst.msk [vmem:[#allocation4 + $0x208] sm:$0xff] %vm481, %v2240
          %2338 = vst.msk [vmem:[#allocation4 + $0x218] sm:$0xff] %vm2293, %v2242
          %2339 = vst.msk [vmem:[#allocation4 + $0x220] sm:$0xff] %vm481, %v2242
          %2340 = vst.msk [vmem:[#allocation4 + $0x230] sm:$0xff] %vm2293, %v2244
          %2341 = vst.msk [vmem:[#allocation4 + $0x238] sm:$0xff] %vm481, %v2244
          %2342 = vst.msk [vmem:[#allocation4 + $0x248] sm:$0xff] %vm2293, %v2246
          %2343 = vst.msk [vmem:[#allocation4 + $0x250] sm:$0xff] %vm481, %v2246
          %2344 = vst.msk [vmem:[#allocation4 + $0x260] sm:$0xff] %vm2293, %v2248
          %2345 = vst.msk [vmem:[#allocation4 + $0x268] sm:$0xff] %vm481, %v2248
          %2346 = vst.msk [vmem:[#allocation4 + $0x278] sm:$0xff] %vm2293, %v2250
          %2347 = vst.msk [vmem:[#allocation4 + $0x280] sm:$0xff] %vm481, %v2250
          %2348 = vst.msk [vmem:[#allocation4 + $0x290] sm:$0xff] %vm2293, %v2252
          %2349 = vst.msk [vmem:[#allocation4 + $0x298] sm:$0xff] %vm481, %v2252
          %2350 = vst.msk [vmem:[#allocation4 + $0x2a8] sm:$0xff] %vm2293, %v2254
          %2351 = vst.msk [vmem:[#allocation4 + $0x2b0] sm:$0xff] %vm481, %v2254
          %2352 = vst.msk [vmem:[#allocation4 + $0x2c0] sm:$0xff] %vm2293, %v2256
          %2353 = vst.msk [vmem:[#allocation4 + $0x2c8] sm:$0xff] %vm481, %v2256
          %2354 = vst.msk [vmem:[#allocation4 + $0x2d8] sm:$0xff] %vm2293, %v2258
          %2355 = vst.msk [vmem:[#allocation4 + $0x2e0] sm:$0xff] %vm481, %v2258
          %2356 = vst.msk [vmem:[#allocation4 + $0x2f0] sm:$0xff] %vm2293, %v2260
          %2357 = vst.msk [vmem:[#allocation4 + $0x2f8] sm:$0xff] %vm481, %v2260
          %v2358 = vld [vmem:[%s1939 + $0x2] sm:$0xff]
          %v2359 = vld [vmem:[%s1939 + $0xa] sm:$0xff]
          %v2360 = vld [vmem:[%s1939 + $0x1a] sm:$0xff]
          %v2361 = vld [vmem:[%s1939 + $0x22] sm:$0xff]
          %v2362 = vld [vmem:[%s1939 + $0x32] sm:$0xff]
          %v2363 = vld [vmem:[%s1939 + $0x3a] sm:$0xff]
          %v2364 = vld [vmem:[%s1939 + $0x4a] sm:$0xff]
          %v2365 = vld [vmem:[%s1939 + $0x52] sm:$0xff]
          %v2366 = vld [vmem:[%s1939 + $0x62] sm:$0xff]
          %v2367 = vld [vmem:[%s1939 + $0x6a] sm:$0xff]
          %v2368 = vld [vmem:[%s1939 + $0x7a] sm:$0xff]
          %v2369 = vld [vmem:[%s1939 + $0x82] sm:$0xff]
          %v2370 = vld [vmem:[%s1939 + $0x92] sm:$0xff]
          %v2371 = vld [vmem:[%s1939 + $0x9a] sm:$0xff]
          %v2372 = vld [vmem:[%s1939 + $0xaa] sm:$0xff]
          %v2373 = vld [vmem:[%s1939 + $0xb2] sm:$0xff]
          %v2374 = vld [vmem:[%s1939 + $0xc2] sm:$0xff]
          %v2375 = vld [vmem:[%s1939 + $0xca] sm:$0xff]
          %v2376 = vld [vmem:[%s1939 + $0xda] sm:$0xff]
          %v2377 = vld [vmem:[%s1939 + $0xe2] sm:$0xff]
          %v2378 = vld [vmem:[%s1939 + $0xf2] sm:$0xff]
          %v2379 = vld [vmem:[%s1939 + $0xfa] sm:$0xff]
          %v2380 = vld [vmem:[%s1939 + $0x10a] sm:$0xff]
          %v2381 = vld [vmem:[%s1939 + $0x112] sm:$0xff]
          %v2382 = vld [vmem:[%s1939 + $0x122] sm:$0xff]
          %v2383 = vld [vmem:[%s1939 + $0x12a] sm:$0xff]
          %v2384 = vld [vmem:[%s1939 + $0x13a] sm:$0xff]
          %v2385 = vld [vmem:[%s1939 + $0x142] sm:$0xff]
          %v2386 = vld [vmem:[%s1939 + $0x152] sm:$0xff]
          %v2387 = vld [vmem:[%s1939 + $0x15a] sm:$0xff]
          %v2388 = vld [vmem:[%s1939 + $0x16a] sm:$0xff]
          %v2389 = vld [vmem:[%s1939 + $0x172] sm:$0xff]
          %2422 = vrot.lane.b32.xlu0 %v2358, 32
          %v2423 = vpop.permute.xlu0 %2422
          %2424 = vrot.lane.b32.xlu0 %v2359, 32
          %v2425 = vpop.permute.xlu0 %2424
          %2426 = vrot.lane.b32.xlu0 %v2360, 32
          %v2427 = vpop.permute.xlu0 %2426
          %2428 = vrot.lane.b32.xlu0 %v2361, 32
          %v2429 = vpop.permute.xlu0 %2428
          %2430 = vrot.lane.b32.xlu0 %v2362, 32
          %v2431 = vpop.permute.xlu0 %2430
          %2432 = vrot.lane.b32.xlu0 %v2363, 32
          %v2433 = vpop.permute.xlu0 %2432
          %2434 = vrot.lane.b32.xlu0 %v2364, 32
          %v2435 = vpop.permute.xlu0 %2434
          %2436 = vrot.lane.b32.xlu0 %v2365, 32
          %v2437 = vpop.permute.xlu0 %2436
          %2438 = vrot.lane.b32.xlu0 %v2366, 32
          %v2439 = vpop.permute.xlu0 %2438
          %2440 = vrot.lane.b32.xlu0 %v2367, 32
          %v2441 = vpop.permute.xlu0 %2440
          %2442 = vrot.lane.b32.xlu0 %v2368, 32
          %v2443 = vpop.permute.xlu0 %2442
          %2444 = vrot.lane.b32.xlu0 %v2369, 32
          %v2445 = vpop.permute.xlu0 %2444
          %2446 = vrot.lane.b32.xlu0 %v2370, 32
          %v2447 = vpop.permute.xlu0 %2446
          %2448 = vrot.lane.b32.xlu0 %v2371, 32
          %v2449 = vpop.permute.xlu0 %2448
          %2450 = vrot.lane.b32.xlu0 %v2372, 32
          %v2451 = vpop.permute.xlu0 %2450
          %2452 = vrot.lane.b32.xlu0 %v2373, 32
          %v2453 = vpop.permute.xlu0 %2452
          %2454 = vrot.lane.b32.xlu0 %v2374, 32
          %v2455 = vpop.permute.xlu0 %2454
          %2456 = vrot.lane.b32.xlu0 %v2375, 32
          %v2457 = vpop.permute.xlu0 %2456
          %2458 = vrot.lane.b32.xlu0 %v2376, 32
          %v2459 = vpop.permute.xlu0 %2458
          %2460 = vrot.lane.b32.xlu0 %v2377, 32
          %v2461 = vpop.permute.xlu0 %2460
          %2462 = vrot.lane.b32.xlu0 %v2378, 32
          %v2463 = vpop.permute.xlu0 %2462
          %2464 = vrot.lane.b32.xlu0 %v2379, 32
          %v2465 = vpop.permute.xlu0 %2464
          %2466 = vrot.lane.b32.xlu0 %v2380, 32
          %v2467 = vpop.permute.xlu0 %2466
          %2468 = vrot.lane.b32.xlu0 %v2381, 32
          %v2469 = vpop.permute.xlu0 %2468
          %2470 = vrot.lane.b32.xlu0 %v2382, 32
          %v2471 = vpop.permute.xlu0 %2470
          %2472 = vrot.lane.b32.xlu0 %v2383, 32
          %v2473 = vpop.permute.xlu0 %2472
          %2474 = vrot.lane.b32.xlu0 %v2384, 32
          %v2475 = vpop.permute.xlu0 %2474
          %2476 = vrot.lane.b32.xlu0 %v2385, 32
          %v2477 = vpop.permute.xlu0 %2476
          %2478 = vrot.lane.b32.xlu0 %v2386, 32
          %v2479 = vpop.permute.xlu0 %2478
          %2480 = vrot.lane.b32.xlu0 %v2387, 32
          %v2481 = vpop.permute.xlu0 %2480
          %2482 = vrot.lane.b32.xlu0 %v2388, 32
          %v2483 = vpop.permute.xlu0 %2482
          %2484 = vrot.lane.b32.xlu0 %v2389, 32
          %v2485 = vpop.permute.xlu0 %2484
          %vm2518 = vcmask 556288
          %2519 = vst.msk [vmem:[#allocation4 + $0x10] sm:$0xff] %vm2518, %v2423
          %2520 = vst.msk [vmem:[#allocation4 + $0x28] sm:$0xff] %vm2518, %v2425
          %2521 = vst.msk [vmem:[#allocation4 + $0x40] sm:$0xff] %vm2518, %v2427
          %2522 = vst.msk [vmem:[#allocation4 + $0x58] sm:$0xff] %vm2518, %v2429
          %2523 = vst.msk [vmem:[#allocation4 + $0x70] sm:$0xff] %vm2518, %v2431
          %2524 = vst.msk [vmem:[#allocation4 + $0x88] sm:$0xff] %vm2518, %v2433
          %2525 = vst.msk [vmem:[#allocation4 + $0xa0] sm:$0xff] %vm2518, %v2435
          %2526 = vst.msk [vmem:[#allocation4 + $0xb8] sm:$0xff] %vm2518, %v2437
          %2527 = vst.msk [vmem:[#allocation4 + $0xd0] sm:$0xff] %vm2518, %v2439
          %2528 = vst.msk [vmem:[#allocation4 + $0xe8] sm:$0xff] %vm2518, %v2441
          %2529 = vst.msk [vmem:[#allocation4 + $0x100] sm:$0xff] %vm2518, %v2443
          %2530 = vst.msk [vmem:[#allocation4 + $0x118] sm:$0xff] %vm2518, %v2445
          %2531 = vst.msk [vmem:[#allocation4 + $0x130] sm:$0xff] %vm2518, %v2447
          %2532 = vst.msk [vmem:[#allocation4 + $0x148] sm:$0xff] %vm2518, %v2449
          %2533 = vst.msk [vmem:[#allocation4 + $0x160] sm:$0xff] %vm2518, %v2451
          %2534 = vst.msk [vmem:[#allocation4 + $0x178] sm:$0xff] %vm2518, %v2453
          %2535 = vst.msk [vmem:[#allocation4 + $0x190] sm:$0xff] %vm2518, %v2455
          %2536 = vst.msk [vmem:[#allocation4 + $0x1a8] sm:$0xff] %vm2518, %v2457
          %2537 = vst.msk [vmem:[#allocation4 + $0x1c0] sm:$0xff] %vm2518, %v2459
          %2538 = vst.msk [vmem:[#allocation4 + $0x1d8] sm:$0xff] %vm2518, %v2461
          %2539 = vst.msk [vmem:[#allocation4 + $0x1f0] sm:$0xff] %vm2518, %v2463
          %2540 = vst.msk [vmem:[#allocation4 + $0x208] sm:$0xff] %vm2518, %v2465
          %2541 = vst.msk [vmem:[#allocation4 + $0x220] sm:$0xff] %vm2518, %v2467
          %2542 = vst.msk [vmem:[#allocation4 + $0x238] sm:$0xff] %vm2518, %v2469
          %2543 = vst.msk [vmem:[#allocation4 + $0x250] sm:$0xff] %vm2518, %v2471
          %2544 = vst.msk [vmem:[#allocation4 + $0x268] sm:$0xff] %vm2518, %v2473
          %2545 = vst.msk [vmem:[#allocation4 + $0x280] sm:$0xff] %vm2518, %v2475
          %2546 = vst.msk [vmem:[#allocation4 + $0x298] sm:$0xff] %vm2518, %v2477
          %2547 = vst.msk [vmem:[#allocation4 + $0x2b0] sm:$0xff] %vm2518, %v2479
          %2548 = vst.msk [vmem:[#allocation4 + $0x2c8] sm:$0xff] %vm2518, %v2481
          %2549 = vst.msk [vmem:[#allocation4 + $0x2e0] sm:$0xff] %vm2518, %v2483
          %2550 = vst.msk [vmem:[#allocation4 + $0x2f8] sm:$0xff] %vm2518, %v2485
          %v2551 = vld [vmem:[#allocation4] sm:$0xff]
          %v2552 = vld [vmem:[#allocation4 + $0x8] sm:$0xff]
          %v2553 = vld [vmem:[#allocation4 + $0x10] sm:$0xff]
          %v2554 = vld [vmem:[#allocation4 + $0x18] sm:$0xff]
          %v2555 = vld [vmem:[#allocation4 + $0x20] sm:$0xff]
          %v2556 = vld [vmem:[#allocation4 + $0x28] sm:$0xff]
          %v2557 = vld [vmem:[#allocation4 + $0x30] sm:$0xff]
          %v2558 = vld [vmem:[#allocation4 + $0x38] sm:$0xff]
          %v2559 = vld [vmem:[#allocation4 + $0x40] sm:$0xff]
          %v2560 = vld [vmem:[#allocation4 + $0x48] sm:$0xff]
          %v2561 = vld [vmem:[#allocation4 + $0x50] sm:$0xff]
          %v2562 = vld [vmem:[#allocation4 + $0x58] sm:$0xff]
          %v2563 = vld [vmem:[#allocation4 + $0x60] sm:$0xff]
          %v2564 = vld [vmem:[#allocation4 + $0x68] sm:$0xff]
          %v2565 = vld [vmem:[#allocation4 + $0x70] sm:$0xff]
          %v2566 = vld [vmem:[#allocation4 + $0x78] sm:$0xff]
          %v2567 = vld [vmem:[#allocation4 + $0x80] sm:$0xff]
          %v2568 = vld [vmem:[#allocation4 + $0x88] sm:$0xff]
          %v2569 = vld [vmem:[#allocation4 + $0x90] sm:$0xff]
          %v2570 = vld [vmem:[#allocation4 + $0x98] sm:$0xff]
          %v2571 = vld [vmem:[#allocation4 + $0xa0] sm:$0xff]
          %v2572 = vld [vmem:[#allocation4 + $0xa8] sm:$0xff]
          %v2573 = vld [vmem:[#allocation4 + $0xb0] sm:$0xff]
          %v2574 = vld [vmem:[#allocation4 + $0xb8] sm:$0xff]
          %v2575 = vld [vmem:[#allocation4 + $0xc0] sm:$0xff]
          %v2576 = vld [vmem:[#allocation4 + $0xc8] sm:$0xff]
          %v2577 = vld [vmem:[#allocation4 + $0xd0] sm:$0xff]
          %v2578 = vld [vmem:[#allocation4 + $0xd8] sm:$0xff]
          %v2579 = vld [vmem:[#allocation4 + $0xe0] sm:$0xff]
          %v2580 = vld [vmem:[#allocation4 + $0xe8] sm:$0xff]
          %v2581 = vld [vmem:[#allocation4 + $0xf0] sm:$0xff]
          %v2582 = vld [vmem:[#allocation4 + $0xf8] sm:$0xff]
          %v2583 = vld [vmem:[#allocation4 + $0x100] sm:$0xff]
          %v2584 = vld [vmem:[#allocation4 + $0x108] sm:$0xff]
          %v2585 = vld [vmem:[#allocation4 + $0x110] sm:$0xff]
          %v2586 = vld [vmem:[#allocation4 + $0x118] sm:$0xff]
          %v2587 = vld [vmem:[#allocation4 + $0x120] sm:$0xff]
          %v2588 = vld [vmem:[#allocation4 + $0x128] sm:$0xff]
          %v2589 = vld [vmem:[#allocation4 + $0x130] sm:$0xff]
          %v2590 = vld [vmem:[#allocation4 + $0x138] sm:$0xff]
          %v2591 = vld [vmem:[#allocation4 + $0x140] sm:$0xff]
          %v2592 = vld [vmem:[#allocation4 + $0x148] sm:$0xff]
          %v2593 = vld [vmem:[#allocation4 + $0x150] sm:$0xff]
          %v2594 = vld [vmem:[#allocation4 + $0x158] sm:$0xff]
          %v2595 = vld [vmem:[#allocation4 + $0x160] sm:$0xff]
          %v2596 = vld [vmem:[#allocation4 + $0x168] sm:$0xff]
          %v2597 = vld [vmem:[#allocation4 + $0x170] sm:$0xff]
          %v2598 = vld [vmem:[#allocation4 + $0x178] sm:$0xff]
          %v2599 = vld [vmem:[#allocation4 + $0x180] sm:$0xff]
          %v2600 = vld [vmem:[#allocation4 + $0x188] sm:$0xff]
          %v2601 = vld [vmem:[#allocation4 + $0x190] sm:$0xff]
          %v2602 = vld [vmem:[#allocation4 + $0x198] sm:$0xff]
          %v2603 = vld [vmem:[#allocation4 + $0x1a0] sm:$0xff]
          %v2604 = vld [vmem:[#allocation4 + $0x1a8] sm:$0xff]
          %v2605 = vld [vmem:[#allocation4 + $0x1b0] sm:$0xff]
          %v2606 = vld [vmem:[#allocation4 + $0x1b8] sm:$0xff]
          %v2607 = vld [vmem:[#allocation4 + $0x1c0] sm:$0xff]
          %v2608 = vld [vmem:[#allocation4 + $0x1c8] sm:$0xff]
          %v2609 = vld [vmem:[#allocation4 + $0x1d0] sm:$0xff]
          %v2610 = vld [vmem:[#allocation4 + $0x1d8] sm:$0xff]
          %v2611 = vld [vmem:[#allocation4 + $0x1e0] sm:$0xff]
          %v2612 = vld [vmem:[#allocation4 + $0x1e8] sm:$0xff]
          %v2613 = vld [vmem:[#allocation4 + $0x1f0] sm:$0xff]
          %v2614 = vld [vmem:[#allocation4 + $0x1f8] sm:$0xff]
          %v2615 = vld [vmem:[#allocation4 + $0x200] sm:$0xff]
          %v2616 = vld [vmem:[#allocation4 + $0x208] sm:$0xff]
          %v2617 = vld [vmem:[#allocation4 + $0x210] sm:$0xff]
          %v2618 = vld [vmem:[#allocation4 + $0x218] sm:$0xff]
          %v2619 = vld [vmem:[#allocation4 + $0x220] sm:$0xff]
          %v2620 = vld [vmem:[#allocation4 + $0x228] sm:$0xff]
          %v2621 = vld [vmem:[#allocation4 + $0x230] sm:$0xff]
          %v2622 = vld [vmem:[#allocation4 + $0x238] sm:$0xff]
          %v2623 = vld [vmem:[#allocation4 + $0x240] sm:$0xff]
          %v2624 = vld [vmem:[#allocation4 + $0x248] sm:$0xff]
          %v2625 = vld [vmem:[#allocation4 + $0x250] sm:$0xff]
          %v2626 = vld [vmem:[#allocation4 + $0x258] sm:$0xff]
          %v2627 = vld [vmem:[#allocation4 + $0x260] sm:$0xff]
          %v2628 = vld [vmem:[#allocation4 + $0x268] sm:$0xff]
          %v2629 = vld [vmem:[#allocation4 + $0x270] sm:$0xff]
          %v2630 = vld [vmem:[#allocation4 + $0x278] sm:$0xff]
          %v2631 = vld [vmem:[#allocation4 + $0x280] sm:$0xff]
          %v2632 = vld [vmem:[#allocation4 + $0x288] sm:$0xff]
          %v2633 = vld [vmem:[#allocation4 + $0x290] sm:$0xff]
          %v2634 = vld [vmem:[#allocation4 + $0x298] sm:$0xff]
          %v2635 = vld [vmem:[#allocation4 + $0x2a0] sm:$0xff]
          %v2636 = vld [vmem:[#allocation4 + $0x2a8] sm:$0xff]
          %v2637 = vld [vmem:[#allocation4 + $0x2b0] sm:$0xff]
          %v2638 = vld [vmem:[#allocation4 + $0x2b8] sm:$0xff]
          %v2639 = vld [vmem:[#allocation4 + $0x2c0] sm:$0xff]
          %v2640 = vld [vmem:[#allocation4 + $0x2c8] sm:$0xff]
          %v2641 = vld [vmem:[#allocation4 + $0x2d0] sm:$0xff]
          %v2642 = vld [vmem:[#allocation4 + $0x2d8] sm:$0xff]
          %v2643 = vld [vmem:[#allocation4 + $0x2e0] sm:$0xff]
          %v2644 = vld [vmem:[#allocation4 + $0x2e8] sm:$0xff]
          %v2645 = vld [vmem:[#allocation4 + $0x2f0] sm:$0xff]
          %v2646 = vld [vmem:[#allocation4 + $0x2f8] sm:$0xff]
          %v2647 = vld [vmem:[%s1] sm:$0xff]
          %v2648 = vld [vmem:[%s1 + $0x8] sm:$0xff]
          %v2649 = vld [vmem:[%s1 + $0x10] sm:$0xff]
          %v2650 = vld [vmem:[%s1 + $0x18] sm:$0xff]
          %v2651 = vld [vmem:[%s1 + $0x20] sm:$0xff]
          %v2652 = vld [vmem:[%s1 + $0x28] sm:$0xff]
          %v2653 = vld [vmem:[%s1 + $0x30] sm:$0xff]
          %v2654 = vld [vmem:[%s1 + $0x38] sm:$0xff]
          %v2655 = vld [vmem:[%s1 + $0x40] sm:$0xff]
          %v2656 = vld [vmem:[%s1 + $0x48] sm:$0xff]
          %v2657 = vld [vmem:[%s1 + $0x50] sm:$0xff]
          %v2658 = vld [vmem:[%s1 + $0x58] sm:$0xff]
          %v2659 = vld [vmem:[%s1 + $0x60] sm:$0xff]
          %v2660 = vld [vmem:[%s1 + $0x68] sm:$0xff]
          %v2661 = vld [vmem:[%s1 + $0x70] sm:$0xff]
          %v2662 = vld [vmem:[%s1 + $0x78] sm:$0xff]
          %v2663 = vld [vmem:[%s1 + $0x80] sm:$0xff]
          %v2664 = vld [vmem:[%s1 + $0x88] sm:$0xff]
          %v2665 = vld [vmem:[%s1 + $0x90] sm:$0xff]
          %v2666 = vld [vmem:[%s1 + $0x98] sm:$0xff]
          %v2667 = vld [vmem:[%s1 + $0xa0] sm:$0xff]
          %v2668 = vld [vmem:[%s1 + $0xa8] sm:$0xff]
          %v2669 = vld [vmem:[%s1 + $0xb0] sm:$0xff]
          %v2670 = vld [vmem:[%s1 + $0xb8] sm:$0xff]
          %v2671 = vld [vmem:[%s1 + $0xc0] sm:$0xff]
          %v2672 = vld [vmem:[%s1 + $0xc8] sm:$0xff]
          %v2673 = vld [vmem:[%s1 + $0xd0] sm:$0xff]
          %v2674 = vld [vmem:[%s1 + $0xd8] sm:$0xff]
          %v2675 = vld [vmem:[%s1 + $0xe0] sm:$0xff]
          %v2676 = vld [vmem:[%s1 + $0xe8] sm:$0xff]
          %v2677 = vld [vmem:[%s1 + $0xf0] sm:$0xff]
          %v2678 = vld [vmem:[%s1 + $0xf8] sm:$0xff]
          %v2679 = vld [vmem:[%s1 + $0x100] sm:$0xff]
          %v2680 = vld [vmem:[%s1 + $0x108] sm:$0xff]
          %v2681 = vld [vmem:[%s1 + $0x110] sm:$0xff]
          %v2682 = vld [vmem:[%s1 + $0x118] sm:$0xff]
          %v2683 = vld [vmem:[%s1 + $0x120] sm:$0xff]
          %v2684 = vld [vmem:[%s1 + $0x128] sm:$0xff]
          %v2685 = vld [vmem:[%s1 + $0x130] sm:$0xff]
          %v2686 = vld [vmem:[%s1 + $0x138] sm:$0xff]
          %v2687 = vld [vmem:[%s1 + $0x140] sm:$0xf]
          %v2688 = vld [vmem:[%s2] sm:$0x1]
          %v2690 = vlaneseq
          %v2691 = vshrl.u32 %v2690, 7
          %v2692 = vsub.s32 0, %v2691
          %v2693 = vrot.slane %v2688, %v2692
          %vm2695 = vcmask 556032
          %v2697 = vsel %vm2695, %v2553, 0
          %v2700 = vsel %vm2695, %v2556, 0
          %v2703 = vsel %vm2695, %v2559, 0
          %v2706 = vsel %vm2695, %v2562, 0
          %v2709 = vsel %vm2695, %v2565, 0
          %v2712 = vsel %vm2695, %v2568, 0
          %v2715 = vsel %vm2695, %v2571, 0
          %v2718 = vsel %vm2695, %v2574, 0
          %v2721 = vsel %vm2695, %v2577, 0
          %v2724 = vsel %vm2695, %v2580, 0
          %v2727 = vsel %vm2695, %v2583, 0
          %v2730 = vsel %vm2695, %v2586, 0
          %v2733 = vsel %vm2695, %v2589, 0
          %v2736 = vsel %vm2695, %v2592, 0
          %v2739 = vsel %vm2695, %v2595, 0
          %v2742 = vsel %vm2695, %v2598, 0
          %v2745 = vsel %vm2695, %v2601, 0
          %v2748 = vsel %vm2695, %v2604, 0
          %v2751 = vsel %vm2695, %v2607, 0
          %v2754 = vsel %vm2695, %v2610, 0
          %v2757 = vsel %vm2695, %v2613, 0
          %v2760 = vsel %vm2695, %v2616, 0
          %v2763 = vsel %vm2695, %v2619, 0
          %v2766 = vsel %vm2695, %v2622, 0
          %v2769 = vsel %vm2695, %v2625, 0
          %v2772 = vsel %vm2695, %v2628, 0
          %v2775 = vsel %vm2695, %v2631, 0
          %v2778 = vsel %vm2695, %v2634, 0
          %v2781 = vsel %vm2695, %v2637, 0
          %v2784 = vsel %vm2695, %v2640, 0
          %v2787 = vsel %vm2695, %v2643, 0
          %v2790 = vsel %vm2695, %v2646, 0
          %vm2792 = vcmask 1043456
          %v2794 = vsel %vm2792, %v2687, 0
          %2796 = vmatprep.subr.mxu0 0.0
          %2797 = vmatpush1.msra.mxu0 %v2662
          %2798 = vmatprep.subr.mxu0 0.0
          %2799 = vmatpush1.msra.mxu0 %v2661
          %2800 = vmatprep.subr.mxu0 0.0
          %2801 = vmatpush1.msra.mxu0 %v2660
          %2802 = vmatprep.subr.mxu0 0.0
          %2803 = vmatpush1.msra.mxu0 %v2659
          %2804 = vmatprep.subr.mxu0 0.0
          %2805 = vmatpush1.msra.mxu0 %v2658
          %2806 = vmatprep.subr.mxu0 0.0
          %2807 = vmatpush1.msra.mxu0 %v2657
          %2808 = vmatprep.subr.mxu0 0.0
          %2809 = vmatpush1.msra.mxu0 %v2656
          %2810 = vmatprep.subr.mxu0 0.0
          %2811 = vmatpush1.msra.mxu0 %v2655
          %2812 = vmatprep.subr.mxu0 0.0
          %2813 = vmatpush1.msra.mxu0 %v2654
          %2814 = vmatprep.subr.mxu0 0.0
          %2815 = vmatpush1.msra.mxu0 %v2653
          %2816 = vmatprep.subr.mxu0 0.0
          %2817 = vmatpush1.msra.mxu0 %v2652
          %2818 = vmatprep.subr.mxu0 0.0
          %2819 = vmatpush1.msra.mxu0 %v2651
          %2820 = vmatprep.subr.mxu0 0.0
          %2821 = vmatpush1.msra.mxu0 %v2650
          %2822 = vmatprep.subr.mxu0 0.0
          %2823 = vmatpush1.msra.mxu0 %v2649
          %2824 = vmatprep.subr.mxu0 0.0
          %2825 = vmatpush1.msra.mxu0 %v2648
          %2826 = vmatprep.subr.mxu0 0.0
          %2827 = vmatpush1.msra.mxu0 %v2647
          %2828 = vmatprep.subr.mxu0 0.0
          %2829 = vmatpush2.msra.mxu0 %v2678
          %2830 = vmatprep.subr.mxu0 0.0
          %2831 = vmatpush2.msra.mxu0 %v2677
          %2832 = vmatprep.subr.mxu0 0.0
          %2833 = vmatpush2.msra.mxu0 %v2676
          %2834 = vmatprep.subr.mxu0 0.0
          %2835 = vmatpush2.msra.mxu0 %v2675
          %2836 = vmatprep.subr.mxu0 0.0
          %2837 = vmatpush2.msra.mxu0 %v2674
          %2838 = vmatprep.subr.mxu0 0.0
          %2839 = vmatpush2.msra.mxu0 %v2673
          %2840 = vmatprep.subr.mxu0 0.0
          %2841 = vmatpush2.msra.mxu0 %v2672
          %2842 = vmatprep.subr.mxu0 0.0
          %2843 = vmatpush2.msra.mxu0 %v2671
          %2844 = vmatprep.subr.mxu0 0.0
          %2845 = vmatpush2.msra.mxu0 %v2670
          %2846 = vmatprep.subr.mxu0 0.0
          %2847 = vmatpush2.msra.mxu0 %v2669
          %2848 = vmatprep.subr.mxu0 0.0
          %2849 = vmatpush2.msra.mxu0 %v2668
          %2850 = vmatprep.subr.mxu0 0.0
          %2851 = vmatpush2.msra.mxu0 %v2667
          %2852 = vmatprep.subr.mxu0 0.0
          %2853 = vmatpush2.msra.mxu0 %v2666
          %2854 = vmatprep.subr.mxu0 0.0
          %2855 = vmatpush2.msra.mxu0 %v2665
          %2856 = vmatprep.subr.mxu0 0.0
          %2857 = vmatpush2.msra.mxu0 %v2664
          %2858 = vmatprep.subr.mxu0 0.0
          %2859 = vmatpush2.msra.mxu0 %v2663
          %2860 = vmatprep.mubr.f32.mxu0 %v2552
          %2861 = vmatmul.mubr.f32.gmra.mxu0 %v2551
          %v2862 = vpop.f32.mrf.mxu0
          %v2863 = vadd.f32 %v2693, %v2862
          %v2864 = vpop.f32.mrf.mxu0
          %2865 = vmatprep.mubr.f32.mxu0 %v2555
          %2866 = vmatmul.mubr.f32.gmra.mxu0 %v2554
          %v2867 = vpop.f32.mrf.mxu0
          %v2868 = vadd.f32 %v2693, %v2867
          %v2869 = vpop.f32.mrf.mxu0
          %2870 = vmatprep.mubr.f32.mxu0 %v2558
          %2871 = vmatmul.mubr.f32.gmra.mxu0 %v2557
          %v2872 = vpop.f32.mrf.mxu0
          %v2873 = vadd.f32 %v2693, %v2872
          %v2874 = vpop.f32.mrf.mxu0
          %2875 = vmatprep.mubr.f32.mxu0 %v2561
          %2876 = vmatmul.mubr.f32.gmra.mxu0 %v2560
          %v2877 = vpop.f32.mrf.mxu0
          %v2878 = vadd.f32 %v2693, %v2877
          %v2879 = vpop.f32.mrf.mxu0
          %2880 = vmatprep.mubr.f32.mxu0 %v2564
          %2881 = vmatmul.mubr.f32.gmra.mxu0 %v2563
          %v2882 = vpop.f32.mrf.mxu0
          %v2883 = vadd.f32 %v2693, %v2882
          %v2884 = vpop.f32.mrf.mxu0
          %2885 = vmatprep.mubr.f32.mxu0 %v2567
          %2886 = vmatmul.mubr.f32.gmra.mxu0 %v2566
          %v2887 = vpop.f32.mrf.mxu0
          %v2888 = vadd.f32 %v2693, %v2887
          %v2889 = vpop.f32.mrf.mxu0
          %2890 = vmatprep.mubr.f32.mxu0 %v2570
          %2891 = vmatmul.mubr.f32.gmra.mxu0 %v2569
          %v2892 = vpop.f32.mrf.mxu0
          %v2893 = vadd.f32 %v2693, %v2892
          %v2894 = vpop.f32.mrf.mxu0
          %2895 = vmatprep.mubr.f32.mxu0 %v2573
          %2896 = vmatmul.mubr.f32.gmra.mxu0 %v2572
          %v2897 = vpop.f32.mrf.mxu0
          %v2898 = vadd.f32 %v2693, %v2897
          %v2899 = vpop.f32.mrf.mxu0
          %2900 = vmatprep.mubr.f32.mxu0 %v2576
          %2901 = vmatmul.mubr.f32.gmra.mxu0 %v2575
          %v2902 = vpop.f32.mrf.mxu0
          %v2903 = vadd.f32 %v2693, %v2902
          %v2904 = vpop.f32.mrf.mxu0
          %2905 = vmatprep.mubr.f32.mxu0 %v2579
          %2906 = vmatmul.mubr.f32.gmra.mxu0 %v2578
          %v2907 = vpop.f32.mrf.mxu0
          %v2908 = vadd.f32 %v2693, %v2907
          %v2909 = vpop.f32.mrf.mxu0
          %2910 = vmatprep.mubr.f32.mxu0 %v2582
          %2911 = vmatmul.mubr.f32.gmra.mxu0 %v2581
          %v2912 = vpop.f32.mrf.mxu0
          %v2913 = vadd.f32 %v2693, %v2912
          %v2914 = vpop.f32.mrf.mxu0
          %2915 = vmatprep.mubr.f32.mxu0 %v2585
          %2916 = vmatmul.mubr.f32.gmra.mxu0 %v2584
          %v2917 = vpop.f32.mrf.mxu0
          %v2918 = vadd.f32 %v2693, %v2917
          %v2919 = vpop.f32.mrf.mxu0
          %2920 = vmatprep.mubr.f32.mxu0 %v2588
          %2921 = vmatmul.mubr.f32.gmra.mxu0 %v2587
          %v2922 = vpop.f32.mrf.mxu0
          %v2923 = vadd.f32 %v2693, %v2922
          %v2924 = vpop.f32.mrf.mxu0
          %2925 = vmatprep.mubr.f32.mxu0 %v2591
          %2926 = vmatmul.mubr.f32.gmra.mxu0 %v2590
          %v2927 = vpop.f32.mrf.mxu0
          %v2928 = vadd.f32 %v2693, %v2927
          %v2929 = vpop.f32.mrf.mxu0
          %2930 = vmatprep.mubr.f32.mxu0 %v2594
          %2931 = vmatmul.mubr.f32.gmra.mxu0 %v2593
          %v2932 = vpop.f32.mrf.mxu0
          %v2933 = vadd.f32 %v2693, %v2932
          %v2934 = vpop.f32.mrf.mxu0
          %2935 = vmatprep.mubr.f32.mxu0 %v2597
          %2936 = vmatmul.mubr.f32.gmra.mxu0 %v2596
          %v2937 = vpop.f32.mrf.mxu0
          %v2938 = vadd.f32 %v2693, %v2937
          %v2939 = vpop.f32.mrf.mxu0
          %2940 = vmatprep.mubr.f32.mxu0 %v2600
          %2941 = vmatmul.mubr.f32.gmra.mxu0 %v2599
          %v2942 = vpop.f32.mrf.mxu0
          %v2943 = vadd.f32 %v2693, %v2942
          %v2944 = vpop.f32.mrf.mxu0
          %2945 = vmatprep.mubr.f32.mxu0 %v2603
          %2946 = vmatmul.mubr.f32.gmra.mxu0 %v2602
          %v2947 = vpop.f32.mrf.mxu0
          %v2948 = vadd.f32 %v2693, %v2947
          %v2949 = vpop.f32.mrf.mxu0
          %2950 = vmatprep.mubr.f32.mxu0 %v2606
          %2951 = vmatmul.mubr.f32.gmra.mxu0 %v2605
          %v2952 = vpop.f32.mrf.mxu0
          %v2953 = vadd.f32 %v2693, %v2952
          %v2954 = vpop.f32.mrf.mxu0
          %2955 = vmatprep.mubr.f32.mxu0 %v2609
          %2956 = vmatmul.mubr.f32.gmra.mxu0 %v2608
          %v2957 = vpop.f32.mrf.mxu0
          %v2958 = vadd.f32 %v2693, %v2957
          %v2959 = vpop.f32.mrf.mxu0
          %2960 = vmatprep.mubr.f32.mxu0 %v2612
          %2961 = vmatmul.mubr.f32.gmra.mxu0 %v2611
          %v2962 = vpop.f32.mrf.mxu0
          %v2963 = vadd.f32 %v2693, %v2962
          %v2964 = vpop.f32.mrf.mxu0
          %2965 = vmatprep.mubr.f32.mxu0 %v2615
          %2966 = vmatmul.mubr.f32.gmra.mxu0 %v2614
          %v2967 = vpop.f32.mrf.mxu0
          %v2968 = vadd.f32 %v2693, %v2967
          %v2969 = vpop.f32.mrf.mxu0
          %2970 = vmatprep.mubr.f32.mxu0 %v2618
          %2971 = vmatmul.mubr.f32.gmra.mxu0 %v2617
          %v2972 = vpop.f32.mrf.mxu0
          %v2973 = vadd.f32 %v2693, %v2972
          %v2974 = vpop.f32.mrf.mxu0
          %2975 = vmatprep.mubr.f32.mxu0 %v2621
          %2976 = vmatmul.mubr.f32.gmra.mxu0 %v2620
          %v2977 = vpop.f32.mrf.mxu0
          %v2978 = vadd.f32 %v2693, %v2977
          %v2979 = vpop.f32.mrf.mxu0
          %2980 = vmatprep.mubr.f32.mxu0 %v2624
          %2981 = vmatmul.mubr.f32.gmra.mxu0 %v2623
          %v2982 = vpop.f32.mrf.mxu0
          %v2983 = vadd.f32 %v2693, %v2982
          %v2984 = vpop.f32.mrf.mxu0
          %2985 = vmatprep.mubr.f32.mxu0 %v2627
          %2986 = vmatmul.mubr.f32.gmra.mxu0 %v2626
          %v2987 = vpop.f32.mrf.mxu0
          %v2988 = vadd.f32 %v2693, %v2987
          %v2989 = vpop.f32.mrf.mxu0
          %2990 = vmatprep.mubr.f32.mxu0 %v2630
          %2991 = vmatmul.mubr.f32.gmra.mxu0 %v2629
          %v2992 = vpop.f32.mrf.mxu0
          %v2993 = vadd.f32 %v2693, %v2992
          %v2994 = vpop.f32.mrf.mxu0
          %2995 = vmatprep.mubr.f32.mxu0 %v2633
          %2996 = vmatmul.mubr.f32.gmra.mxu0 %v2632
          %v2997 = vpop.f32.mrf.mxu0
          %v2998 = vadd.f32 %v2693, %v2997
          %v2999 = vpop.f32.mrf.mxu0
          %3000 = vmatprep.mubr.f32.mxu0 %v2636
          %3001 = vmatmul.mubr.f32.gmra.mxu0 %v2635
          %v3002 = vpop.f32.mrf.mxu0
          %v3003 = vadd.f32 %v2693, %v3002
          %v3004 = vpop.f32.mrf.mxu0
          %3005 = vmatprep.mubr.f32.mxu0 %v2639
          %3006 = vmatmul.mubr.f32.gmra.mxu0 %v2638
          %v3007 = vpop.f32.mrf.mxu0
          %v3008 = vadd.f32 %v2693, %v3007
          %v3009 = vpop.f32.mrf.mxu0
          %3010 = vmatprep.mubr.f32.mxu0 %v2642
          %3011 = vmatmul.mubr.f32.gmra.mxu0 %v2641
          %v3012 = vpop.f32.mrf.mxu0
          %v3013 = vadd.f32 %v2693, %v3012
          %v3014 = vpop.f32.mrf.mxu0
          %3015 = vmatprep.mubr.f32.mxu0 %v2645
          %3016 = vmatmul.mubr.f32.gmra.mxu0 %v2644
          %v3017 = vpop.f32.mrf.mxu0
          %v3018 = vadd.f32 %v2693, %v3017
          %v3019 = vpop.f32.mrf.mxu0
          %3020 = vdwg.mxu0
          %3021 = vmatprep.subr.mxu0 0.0
          %3022 = vmatpush1.msra.mxu0 0.0
          %3023 = vmatprep.subr.mxu0 0.0
          %3024 = vmatpush1.msra.mxu0 0.0
          %3025 = vmatprep.subr.mxu0 0.0
          %3026 = vmatpush1.msra.mxu0 0.0
          %3027 = vmatprep.subr.mxu0 0.0
          %3028 = vmatpush1.msra.mxu0 0.0
          %3029 = vmatprep.subr.mxu0 0.0
          %3030 = vmatpush1.msra.mxu0 0.0
          %3031 = vmatprep.subr.mxu0 0.0
          %3032 = vmatpush1.msra.mxu0 0.0
          %3033 = vmatprep.subr.mxu0 0.0
          %3034 = vmatpush1.msra.mxu0 0.0
          %3035 = vmatprep.subr.mxu0 0.0
          %3036 = vmatpush1.msra.mxu0 %v2794
          %3037 = vmatprep.subr.mxu0 0.0
          %3038 = vmatpush1.msra.mxu0 %v2686
          %3039 = vmatprep.subr.mxu0 0.0
          %3040 = vmatpush1.msra.mxu0 %v2685
          %3041 = vmatprep.subr.mxu0 0.0
          %3042 = vmatpush1.msra.mxu0 %v2684
          %3043 = vmatprep.subr.mxu0 0.0
          %3044 = vmatpush1.msra.mxu0 %v2683
          %3045 = vmatprep.subr.mxu0 0.0
          %3046 = vmatpush1.msra.mxu0 %v2682
          %3047 = vmatprep.subr.mxu0 0.0
          %3048 = vmatpush1.msra.mxu0 %v2681
          %3049 = vmatprep.subr.mxu0 0.0
          %3050 = vmatpush1.msra.mxu0 %v2680
          %3051 = vmatprep.subr.mxu0 0.0
          %3052 = vmatpush1.msra.mxu0 %v2679
          %3053 = vmatprep.subr.mxu0 0.0
          %3054 = vmatpush2.msra.mxu0 0.0
          %3055 = vmatprep.subr.mxu0 0.0
          %3056 = vmatpush2.msra.mxu0 0.0
          %3057 = vmatprep.subr.mxu0 0.0
          %3058 = vmatpush2.msra.mxu0 0.0
          %3059 = vmatprep.subr.mxu0 0.0
          %3060 = vmatpush2.msra.mxu0 0.0
          %3061 = vmatprep.subr.mxu0 0.0
          %3062 = vmatpush2.msra.mxu0 0.0
          %3063 = vmatprep.subr.mxu0 0.0
          %3064 = vmatpush2.msra.mxu0 0.0
          %3065 = vmatprep.subr.mxu0 0.0
          %3066 = vmatpush2.msra.mxu0 0.0
          %3067 = vmatprep.subr.mxu0 0.0
          %3068 = vmatpush2.msra.mxu0 0.0
          %3069 = vmatprep.subr.mxu0 0.0
          %3070 = vmatpush2.msra.mxu0 0.0
          %3071 = vmatprep.subr.mxu0 0.0
          %3072 = vmatpush2.msra.mxu0 0.0
          %3073 = vmatprep.subr.mxu0 0.0
          %3074 = vmatpush2.msra.mxu0 0.0
          %3075 = vmatprep.subr.mxu0 0.0
          %3076 = vmatpush2.msra.mxu0 0.0
          %3077 = vmatprep.subr.mxu0 0.0
          %3078 = vmatpush2.msra.mxu0 0.0
          %3079 = vmatprep.subr.mxu0 0.0
          %3080 = vmatpush2.msra.mxu0 0.0
          %3081 = vmatprep.subr.mxu0 0.0
          %3082 = vmatpush2.msra.mxu0 0.0
          %3083 = vmatprep.subr.mxu0 0.0
          %3084 = vmatpush2.msra.mxu0 0.0
          %3085 = vmatprep.mubr.f32.mxu0 0.0
          %3086 = vmatmul.mubr.f32.gmra.mxu0 %v2697
          %v3087 = vpop.f32.mrf.mxu0
          %v3088 = vadd.f32 %v2863, %v3087
          %v3089 = vpop.f32.mrf.mxu0
          %3090 = vmatprep.mubr.f32.mxu0 0.0
          %3091 = vmatmul.mubr.f32.gmra.mxu0 %v2700
          %v3092 = vpop.f32.mrf.mxu0
          %v3093 = vadd.f32 %v2868, %v3092
          %v3094 = vpop.f32.mrf.mxu0
          %3095 = vmatprep.mubr.f32.mxu0 0.0
          %3096 = vmatmul.mubr.f32.gmra.mxu0 %v2703
          %v3097 = vpop.f32.mrf.mxu0
          %v3098 = vadd.f32 %v2873, %v3097
          %v3099 = vpop.f32.mrf.mxu0
          %3100 = vmatprep.mubr.f32.mxu0 0.0
          %3101 = vmatmul.mubr.f32.gmra.mxu0 %v2706
          %v3102 = vpop.f32.mrf.mxu0
          %v3103 = vadd.f32 %v2878, %v3102
          %v3104 = vpop.f32.mrf.mxu0
          %3105 = vmatprep.mubr.f32.mxu0 0.0
          %3106 = vmatmul.mubr.f32.gmra.mxu0 %v2709
          %v3107 = vpop.f32.mrf.mxu0
          %v3108 = vadd.f32 %v2883, %v3107
          %v3109 = vpop.f32.mrf.mxu0
          %3110 = vmatprep.mubr.f32.mxu0 0.0
          %3111 = vmatmul.mubr.f32.gmra.mxu0 %v2712
          %v3112 = vpop.f32.mrf.mxu0
          %v3113 = vadd.f32 %v2888, %v3112
          %v3114 = vpop.f32.mrf.mxu0
          %3115 = vmatprep.mubr.f32.mxu0 0.0
          %3116 = vmatmul.mubr.f32.gmra.mxu0 %v2715
          %v3117 = vpop.f32.mrf.mxu0
          %v3118 = vadd.f32 %v2893, %v3117
          %v3119 = vpop.f32.mrf.mxu0
          %3120 = vmatprep.mubr.f32.mxu0 0.0
          %3121 = vmatmul.mubr.f32.gmra.mxu0 %v2718
          %v3122 = vpop.f32.mrf.mxu0
          %v3123 = vadd.f32 %v2898, %v3122
          %v3124 = vpop.f32.mrf.mxu0
          %3125 = vmatprep.mubr.f32.mxu0 0.0
          %3126 = vmatmul.mubr.f32.gmra.mxu0 %v2721
          %v3127 = vpop.f32.mrf.mxu0
          %v3128 = vadd.f32 %v2903, %v3127
          %v3129 = vpop.f32.mrf.mxu0
          %3130 = vmatprep.mubr.f32.mxu0 0.0
          %3131 = vmatmul.mubr.f32.gmra.mxu0 %v2724
          %v3132 = vpop.f32.mrf.mxu0
          %v3133 = vadd.f32 %v2908, %v3132
          %v3134 = vpop.f32.mrf.mxu0
          %3135 = vmatprep.mubr.f32.mxu0 0.0
          %3136 = vmatmul.mubr.f32.gmra.mxu0 %v2727
          %v3137 = vpop.f32.mrf.mxu0
          %v3138 = vadd.f32 %v2913, %v3137
          %v3139 = vpop.f32.mrf.mxu0
          %3140 = vmatprep.mubr.f32.mxu0 0.0
          %3141 = vmatmul.mubr.f32.gmra.mxu0 %v2730
          %v3142 = vpop.f32.mrf.mxu0
          %v3143 = vadd.f32 %v2918, %v3142
          %v3144 = vpop.f32.mrf.mxu0
          %3145 = vmatprep.mubr.f32.mxu0 0.0
          %3146 = vmatmul.mubr.f32.gmra.mxu0 %v2733
          %v3147 = vpop.f32.mrf.mxu0
          %v3148 = vadd.f32 %v2923, %v3147
          %v3149 = vpop.f32.mrf.mxu0
          %3150 = vmatprep.mubr.f32.mxu0 0.0
          %3151 = vmatmul.mubr.f32.gmra.mxu0 %v2736
          %v3152 = vpop.f32.mrf.mxu0
          %v3153 = vadd.f32 %v2928, %v3152
          %v3154 = vpop.f32.mrf.mxu0
          %3155 = vmatprep.mubr.f32.mxu0 0.0
          %3156 = vmatmul.mubr.f32.gmra.mxu0 %v2739
          %v3157 = vpop.f32.mrf.mxu0
          %v3158 = vadd.f32 %v2933, %v3157
          %v3159 = vpop.f32.mrf.mxu0
          %3160 = vmatprep.mubr.f32.mxu0 0.0
          %3161 = vmatmul.mubr.f32.gmra.mxu0 %v2742
          %v3162 = vpop.f32.mrf.mxu0
          %v3163 = vadd.f32 %v2938, %v3162
          %v3164 = vpop.f32.mrf.mxu0
          %3165 = vmatprep.mubr.f32.mxu0 0.0
          %3166 = vmatmul.mubr.f32.gmra.mxu0 %v2745
          %v3167 = vpop.f32.mrf.mxu0
          %v3168 = vadd.f32 %v2943, %v3167
          %v3169 = vpop.f32.mrf.mxu0
          %3170 = vmatprep.mubr.f32.mxu0 0.0
          %3171 = vmatmul.mubr.f32.gmra.mxu0 %v2748
          %v3172 = vpop.f32.mrf.mxu0
          %v3173 = vadd.f32 %v2948, %v3172
          %v3174 = vpop.f32.mrf.mxu0
          %3175 = vmatprep.mubr.f32.mxu0 0.0
          %3176 = vmatmul.mubr.f32.gmra.mxu0 %v2751
          %v3177 = vpop.f32.mrf.mxu0
          %v3178 = vadd.f32 %v2953, %v3177
          %v3179 = vpop.f32.mrf.mxu0
          %3180 = vmatprep.mubr.f32.mxu0 0.0
          %3181 = vmatmul.mubr.f32.gmra.mxu0 %v2754
          %v3182 = vpop.f32.mrf.mxu0
          %v3183 = vadd.f32 %v2958, %v3182
          %v3184 = vpop.f32.mrf.mxu0
          %3185 = vmatprep.mubr.f32.mxu0 0.0
          %3186 = vmatmul.mubr.f32.gmra.mxu0 %v2757
          %v3187 = vpop.f32.mrf.mxu0
          %v3188 = vadd.f32 %v2963, %v3187
          %v3189 = vpop.f32.mrf.mxu0
          %3190 = vmatprep.mubr.f32.mxu0 0.0
          %3191 = vmatmul.mubr.f32.gmra.mxu0 %v2760
          %v3192 = vpop.f32.mrf.mxu0
          %v3193 = vadd.f32 %v2968, %v3192
          %v3194 = vpop.f32.mrf.mxu0
          %3195 = vmatprep.mubr.f32.mxu0 0.0
          %3196 = vmatmul.mubr.f32.gmra.mxu0 %v2763
          %v3197 = vpop.f32.mrf.mxu0
          %v3198 = vadd.f32 %v2973, %v3197
          %v3199 = vpop.f32.mrf.mxu0
          %3200 = vmatprep.mubr.f32.mxu0 0.0
          %3201 = vmatmul.mubr.f32.gmra.mxu0 %v2766
          %v3202 = vpop.f32.mrf.mxu0
          %v3203 = vadd.f32 %v2978, %v3202
          %v3204 = vpop.f32.mrf.mxu0
          %3205 = vmatprep.mubr.f32.mxu0 0.0
          %3206 = vmatmul.mubr.f32.gmra.mxu0 %v2769
          %v3207 = vpop.f32.mrf.mxu0
          %v3208 = vadd.f32 %v2983, %v3207
          %v3209 = vpop.f32.mrf.mxu0
          %3210 = vmatprep.mubr.f32.mxu0 0.0
          %3211 = vmatmul.mubr.f32.gmra.mxu0 %v2772
          %v3212 = vpop.f32.mrf.mxu0
          %v3213 = vadd.f32 %v2988, %v3212
          %v3214 = vpop.f32.mrf.mxu0
          %3215 = vmatprep.mubr.f32.mxu0 0.0
          %3216 = vmatmul.mubr.f32.gmra.mxu0 %v2775
          %v3217 = vpop.f32.mrf.mxu0
          %v3218 = vadd.f32 %v2993, %v3217
          %v3219 = vpop.f32.mrf.mxu0
          %3220 = vmatprep.mubr.f32.mxu0 0.0
          %3221 = vmatmul.mubr.f32.gmra.mxu0 %v2778
          %v3222 = vpop.f32.mrf.mxu0
          %v3223 = vadd.f32 %v2998, %v3222
          %v3224 = vpop.f32.mrf.mxu0
          %3225 = vmatprep.mubr.f32.mxu0 0.0
          %3226 = vmatmul.mubr.f32.gmra.mxu0 %v2781
          %v3227 = vpop.f32.mrf.mxu0
          %v3228 = vadd.f32 %v3003, %v3227
          %v3229 = vpop.f32.mrf.mxu0
          %3230 = vmatprep.mubr.f32.mxu0 0.0
          %3231 = vmatmul.mubr.f32.gmra.mxu0 %v2784
          %v3232 = vpop.f32.mrf.mxu0
          %v3233 = vadd.f32 %v3008, %v3232
          %v3234 = vpop.f32.mrf.mxu0
          %3235 = vmatprep.mubr.f32.mxu0 0.0
          %3236 = vmatmul.mubr.f32.gmra.mxu0 %v2787
          %v3237 = vpop.f32.mrf.mxu0
          %v3238 = vadd.f32 %v3013, %v3237
          %v3239 = vpop.f32.mrf.mxu0
          %3240 = vmatprep.mubr.f32.mxu0 0.0
          %3241 = vmatmul.mubr.f32.gmra.mxu0 %v2790
          %v3242 = vpop.f32.mrf.mxu0
          %v3243 = vadd.f32 %v3018, %v3242
          %v3244 = vpop.f32.mrf.mxu0
          %3245 = vdwg.mxu0
          %v3246 = vxor.u32 %v3088, 2147483648
          %v3247 = vxor.u32 %v3093, 2147483648
          %v3248 = vxor.u32 %v3098, 2147483648
          %v3249 = vxor.u32 %v3103, 2147483648
          %v3250 = vxor.u32 %v3108, 2147483648
          %v3251 = vxor.u32 %v3113, 2147483648
          %v3252 = vxor.u32 %v3118, 2147483648
          %v3253 = vxor.u32 %v3123, 2147483648
          %v3254 = vxor.u32 %v3128, 2147483648
          %v3255 = vxor.u32 %v3133, 2147483648
          %v3256 = vxor.u32 %v3138, 2147483648
          %v3257 = vxor.u32 %v3143, 2147483648
          %v3258 = vxor.u32 %v3148, 2147483648
          %v3259 = vxor.u32 %v3153, 2147483648
          %v3260 = vxor.u32 %v3158, 2147483648
          %v3261 = vxor.u32 %v3163, 2147483648
          %v3262 = vxor.u32 %v3168, 2147483648
          %v3263 = vxor.u32 %v3173, 2147483648
          %v3264 = vxor.u32 %v3178, 2147483648
          %v3265 = vxor.u32 %v3183, 2147483648
          %v3266 = vxor.u32 %v3188, 2147483648
          %v3267 = vxor.u32 %v3193, 2147483648
          %v3268 = vxor.u32 %v3198, 2147483648
          %v3269 = vxor.u32 %v3203, 2147483648
          %v3270 = vxor.u32 %v3208, 2147483648
          %v3271 = vxor.u32 %v3213, 2147483648
          %v3272 = vxor.u32 %v3218, 2147483648
          %v3273 = vxor.u32 %v3223, 2147483648
          %v3274 = vxor.u32 %v3228, 2147483648
          %v3275 = vxor.u32 %v3233, 2147483648
          %v3276 = vxor.u32 %v3238, 2147483648
          %v3277 = vxor.u32 %v3243, 2147483648
          %v3278 = vmul.f32 %v3246, 1.442695
          %v3279 = vpow.pop %v3278
          %v3280 = vmul.f32 %v3247, 1.442695
          %v3281 = vpow.pop %v3280
          %v3282 = vmul.f32 %v3248, 1.442695
          %v3283 = vpow.pop %v3282
          %v3284 = vmul.f32 %v3249, 1.442695
          %v3285 = vpow.pop %v3284
          %v3286 = vmul.f32 %v3250, 1.442695
          %v3287 = vpow.pop %v3286
          %v3288 = vmul.f32 %v3251, 1.442695
          %v3289 = vpow.pop %v3288
          %v3290 = vmul.f32 %v3252, 1.442695
          %v3291 = vpow.pop %v3290
          %v3292 = vmul.f32 %v3253, 1.442695
          %v3293 = vpow.pop %v3292
          %v3294 = vmul.f32 %v3254, 1.442695
          %v3295 = vpow.pop %v3294
          %v3296 = vmul.f32 %v3255, 1.442695
          %v3297 = vpow.pop %v3296
          %v3298 = vmul.f32 %v3256, 1.442695
          %v3299 = vpow.pop %v3298
          %v3300 = vmul.f32 %v3257, 1.442695
          %v3301 = vpow.pop %v3300
          %v3302 = vmul.f32 %v3258, 1.442695
          %v3303 = vpow.pop %v3302
          %v3304 = vmul.f32 %v3259, 1.442695
          %v3305 = vpow.pop %v3304
          %v3306 = vmul.f32 %v3260, 1.442695
          %v3307 = vpow.pop %v3306
          %v3308 = vmul.f32 %v3261, 1.442695
          %v3309 = vpow.pop %v3308
          %v3310 = vmul.f32 %v3262, 1.442695
          %v3311 = vpow.pop %v3310
          %v3312 = vmul.f32 %v3263, 1.442695
          %v3313 = vpow.pop %v3312
          %v3314 = vmul.f32 %v3264, 1.442695
          %v3315 = vpow.pop %v3314
          %v3316 = vmul.f32 %v3265, 1.442695
          %v3317 = vpow.pop %v3316
          %v3318 = vmul.f32 %v3266, 1.442695
          %v3319 = vpow.pop %v3318
          %v3320 = vmul.f32 %v3267, 1.442695
          %v3321 = vpow.pop %v3320
          %v3322 = vmul.f32 %v3268, 1.442695
          %v3323 = vpow.pop %v3322
          %v3324 = vmul.f32 %v3269, 1.442695
          %v3325 = vpow.pop %v3324
          %v3326 = vmul.f32 %v3270, 1.442695
          %v3327 = vpow.pop %v3326
          %v3328 = vmul.f32 %v3271, 1.442695
          %v3329 = vpow.pop %v3328
          %v3330 = vmul.f32 %v3272, 1.442695
          %v3331 = vpow.pop %v3330
          %v3332 = vmul.f32 %v3273, 1.442695
          %v3333 = vpow.pop %v3332
          %v3334 = vmul.f32 %v3274, 1.442695
          %v3335 = vpow.pop %v3334
          %v3336 = vmul.f32 %v3275, 1.442695
          %v3337 = vpow.pop %v3336
          %v3338 = vmul.f32 %v3276, 1.442695
          %v3339 = vpow.pop %v3338
          %v3340 = vmul.f32 %v3277, 1.442695
          %v3341 = vpow.pop %v3340
          %v3342 = vadd.f32 %v3279, 1.0
          %v3343 = vadd.f32 %v3281, 1.0
          %v3344 = vadd.f32 %v3283, 1.0
          %v3345 = vadd.f32 %v3285, 1.0
          %v3346 = vadd.f32 %v3287, 1.0
          %v3347 = vadd.f32 %v3289, 1.0
          %v3348 = vadd.f32 %v3291, 1.0
          %v3349 = vadd.f32 %v3293, 1.0
          %v3350 = vadd.f32 %v3295, 1.0
          %v3351 = vadd.f32 %v3297, 1.0
          %v3352 = vadd.f32 %v3299, 1.0
          %v3353 = vadd.f32 %v3301, 1.0
          %v3354 = vadd.f32 %v3303, 1.0
          %v3355 = vadd.f32 %v3305, 1.0
          %v3356 = vadd.f32 %v3307, 1.0
          %v3357 = vadd.f32 %v3309, 1.0
          %v3358 = vadd.f32 %v3311, 1.0
          %v3359 = vadd.f32 %v3313, 1.0
          %v3360 = vadd.f32 %v3315, 1.0
          %v3361 = vadd.f32 %v3317, 1.0
          %v3362 = vadd.f32 %v3319, 1.0
          %v3363 = vadd.f32 %v3321, 1.0
          %v3364 = vadd.f32 %v3323, 1.0
          %v3365 = vadd.f32 %v3325, 1.0
          %v3366 = vadd.f32 %v3327, 1.0
          %v3367 = vadd.f32 %v3329, 1.0
          %v3368 = vadd.f32 %v3331, 1.0
          %v3369 = vadd.f32 %v3333, 1.0
          %v3370 = vadd.f32 %v3335, 1.0
          %v3371 = vadd.f32 %v3337, 1.0
          %v3372 = vadd.f32 %v3339, 1.0
          %v3373 = vadd.f32 %v3341, 1.0
          %v3374 = vrcp.pop %v3342
          %v3375 = vmul.f32 1.0, %v3374
          %v3376 = vrcp.pop %v3343
          %v3377 = vmul.f32 1.0, %v3376
          %v3378 = vrcp.pop %v3344
          %v3379 = vmul.f32 1.0, %v3378
          %v3380 = vrcp.pop %v3345
          %v3381 = vmul.f32 1.0, %v3380
          %v3382 = vrcp.pop %v3346
          %v3383 = vmul.f32 1.0, %v3382
          %v3384 = vrcp.pop %v3347
          %v3385 = vmul.f32 1.0, %v3384
          %v3386 = vrcp.pop %v3348
          %v3387 = vmul.f32 1.0, %v3386
          %v3388 = vrcp.pop %v3349
          %v3389 = vmul.f32 1.0, %v3388
          %v3390 = vrcp.pop %v3350
          %v3391 = vmul.f32 1.0, %v3390
          %v3392 = vrcp.pop %v3351
          %v3393 = vmul.f32 1.0, %v3392
          %v3394 = vrcp.pop %v3352
          %v3395 = vmul.f32 1.0, %v3394
          %v3396 = vrcp.pop %v3353
          %v3397 = vmul.f32 1.0, %v3396
          %v3398 = vrcp.pop %v3354
          %v3399 = vmul.f32 1.0, %v3398
          %v3400 = vrcp.pop %v3355
          %v3401 = vmul.f32 1.0, %v3400
          %v3402 = vrcp.pop %v3356
          %v3403 = vmul.f32 1.0, %v3402
          %v3404 = vrcp.pop %v3357
          %v3405 = vmul.f32 1.0, %v3404
          %v3406 = vrcp.pop %v3358
          %v3407 = vmul.f32 1.0, %v3406
          %v3408 = vrcp.pop %v3359
          %v3409 = vmul.f32 1.0, %v3408
          %v3410 = vrcp.pop %v3360
          %v3411 = vmul.f32 1.0, %v3410
          %v3412 = vrcp.pop %v3361
          %v3413 = vmul.f32 1.0, %v3412
          %v3414 = vrcp.pop %v3362
          %v3415 = vmul.f32 1.0, %v3414
          %v3416 = vrcp.pop %v3363
          %v3417 = vmul.f32 1.0, %v3416
          %v3418 = vrcp.pop %v3364
          %v3419 = vmul.f32 1.0, %v3418
          %v3420 = vrcp.pop %v3365
          %v3421 = vmul.f32 1.0, %v3420
          %v3422 = vrcp.pop %v3366
          %v3423 = vmul.f32 1.0, %v3422
          %v3424 = vrcp.pop %v3367
          %v3425 = vmul.f32 1.0, %v3424
          %v3426 = vrcp.pop %v3368
          %v3427 = vmul.f32 1.0, %v3426
          %v3428 = vrcp.pop %v3369
          %v3429 = vmul.f32 1.0, %v3428
          %v3430 = vrcp.pop %v3370
          %v3431 = vmul.f32 1.0, %v3430
          %v3432 = vrcp.pop %v3371
          %v3433 = vmul.f32 1.0, %v3432
          %v3434 = vrcp.pop %v3372
          %v3435 = vmul.f32 1.0, %v3434
          %v3436 = vrcp.pop %v3373
          %v3437 = vmul.f32 1.0, %v3436
          %v3438 = vtanh.pop %v3088
          %v3439 = vtanh.pop %v3093
          %v3440 = vtanh.pop %v3098
          %v3441 = vtanh.pop %v3103
          %v3442 = vtanh.pop %v3108
          %v3443 = vtanh.pop %v3113
          %v3444 = vtanh.pop %v3118
          %v3445 = vtanh.pop %v3123
          %v3446 = vtanh.pop %v3128
          %v3447 = vtanh.pop %v3133
          %v3448 = vtanh.pop %v3138
          %v3449 = vtanh.pop %v3143
          %v3450 = vtanh.pop %v3148
          %v3451 = vtanh.pop %v3153
          %v3452 = vtanh.pop %v3158
          %v3453 = vtanh.pop %v3163
          %v3454 = vtanh.pop %v3168
          %v3455 = vtanh.pop %v3173
          %v3456 = vtanh.pop %v3178
          %v3457 = vtanh.pop %v3183
          %v3458 = vtanh.pop %v3188
          %v3459 = vtanh.pop %v3193
          %v3460 = vtanh.pop %v3198
          %v3461 = vtanh.pop %v3203
          %v3462 = vtanh.pop %v3208
          %v3463 = vtanh.pop %v3213
          %v3464 = vtanh.pop %v3218
          %v3465 = vtanh.pop %v3223
          %v3466 = vtanh.pop %v3228
          %v3467 = vtanh.pop %v3233
          %v3468 = vtanh.pop %v3238
          %v3469 = vtanh.pop %v3243
          %v3470 = vld [vmem:[#allocation7] sm:$0xff]
          %v3471 = vld [vmem:[#allocation7 + $0x8] sm:$0xff]
          %v3472 = vld [vmem:[#allocation7 + $0x10] sm:$0xff]
          %v3473 = vld [vmem:[#allocation7 + $0x18] sm:$0xff]
          %v3474 = vld [vmem:[#allocation7 + $0x20] sm:$0xff]
          %v3475 = vld [vmem:[#allocation7 + $0x28] sm:$0xff]
          %v3476 = vld [vmem:[#allocation7 + $0x30] sm:$0xff]
          %v3477 = vld [vmem:[#allocation7 + $0x38] sm:$0xff]
          %v3478 = vld [vmem:[#allocation7 + $0x40] sm:$0xff]
          %v3479 = vld [vmem:[#allocation7 + $0x48] sm:$0xff]
          %v3480 = vld [vmem:[#allocation7 + $0x50] sm:$0xff]
          %v3481 = vld [vmem:[#allocation7 + $0x58] sm:$0xff]
          %v3482 = vld [vmem:[#allocation7 + $0x60] sm:$0xff]
          %v3483 = vld [vmem:[#allocation7 + $0x68] sm:$0xff]
          %v3484 = vld [vmem:[#allocation7 + $0x70] sm:$0xff]
          %v3485 = vld [vmem:[#allocation7 + $0x78] sm:$0xff]
          %v3486 = vld [vmem:[#allocation7 + $0x80] sm:$0xff]
          %v3487 = vld [vmem:[#allocation7 + $0x88] sm:$0xff]
          %v3488 = vld [vmem:[#allocation7 + $0x90] sm:$0xff]
          %v3489 = vld [vmem:[#allocation7 + $0x98] sm:$0xff]
          %v3490 = vld [vmem:[#allocation7 + $0xa0] sm:$0xff]
          %v3491 = vld [vmem:[#allocation7 + $0xa8] sm:$0xff]
          %v3492 = vld [vmem:[#allocation7 + $0xb0] sm:$0xff]
          %v3493 = vld [vmem:[#allocation7 + $0xb8] sm:$0xff]
          %v3494 = vld [vmem:[#allocation7 + $0xc0] sm:$0xff]
          %v3495 = vld [vmem:[#allocation7 + $0xc8] sm:$0xff]
          %v3496 = vld [vmem:[#allocation7 + $0xd0] sm:$0xff]
          %v3497 = vld [vmem:[#allocation7 + $0xd8] sm:$0xff]
          %v3498 = vld [vmem:[#allocation7 + $0xe0] sm:$0xff]
          %v3499 = vld [vmem:[#allocation7 + $0xe8] sm:$0xff]
          %v3500 = vld [vmem:[#allocation7 + $0xf0] sm:$0xff]
          %v3501 = vld [vmem:[#allocation7 + $0xf8] sm:$0xff]
          %3534 = vrot.lane.b32.xlu0 %v3470, 32
          %v3535 = vpop.permute.xlu0 %3534
          %3536 = vrot.lane.b32.xlu0 %v3471, 32
          %v3537 = vpop.permute.xlu0 %3536
          %3538 = vrot.lane.b32.xlu0 %v3472, 32
          %v3539 = vpop.permute.xlu0 %3538
          %3540 = vrot.lane.b32.xlu0 %v3473, 32
          %v3541 = vpop.permute.xlu0 %3540
          %3542 = vrot.lane.b32.xlu0 %v3474, 32
          %v3543 = vpop.permute.xlu0 %3542
          %3544 = vrot.lane.b32.xlu0 %v3475, 32
          %v3545 = vpop.permute.xlu0 %3544
          %3546 = vrot.lane.b32.xlu0 %v3476, 32
          %v3547 = vpop.permute.xlu0 %3546
          %3548 = vrot.lane.b32.xlu0 %v3477, 32
          %v3549 = vpop.permute.xlu0 %3548
          %3550 = vrot.lane.b32.xlu0 %v3478, 32
          %v3551 = vpop.permute.xlu0 %3550
          %3552 = vrot.lane.b32.xlu0 %v3479, 32
          %v3553 = vpop.permute.xlu0 %3552
          %3554 = vrot.lane.b32.xlu0 %v3480, 32
          %v3555 = vpop.permute.xlu0 %3554
          %3556 = vrot.lane.b32.xlu0 %v3481, 32
          %v3557 = vpop.permute.xlu0 %3556
          %3558 = vrot.lane.b32.xlu0 %v3482, 32
          %v3559 = vpop.permute.xlu0 %3558
          %3560 = vrot.lane.b32.xlu0 %v3483, 32
          %v3561 = vpop.permute.xlu0 %3560
          %3562 = vrot.lane.b32.xlu0 %v3484, 32
          %v3563 = vpop.permute.xlu0 %3562
          %3564 = vrot.lane.b32.xlu0 %v3485, 32
          %v3565 = vpop.permute.xlu0 %3564
          %3566 = vrot.lane.b32.xlu0 %v3486, 32
          %v3567 = vpop.permute.xlu0 %3566
          %3568 = vrot.lane.b32.xlu0 %v3487, 32
          %v3569 = vpop.permute.xlu0 %3568
          %3570 = vrot.lane.b32.xlu0 %v3488, 32
          %v3571 = vpop.permute.xlu0 %3570
          %3572 = vrot.lane.b32.xlu0 %v3489, 32
          %v3573 = vpop.permute.xlu0 %3572
          %3574 = vrot.lane.b32.xlu0 %v3490, 32
          %v3575 = vpop.permute.xlu0 %3574
          %3576 = vrot.lane.b32.xlu0 %v3491, 32
          %v3577 = vpop.permute.xlu0 %3576
          %3578 = vrot.lane.b32.xlu0 %v3492, 32
          %v3579 = vpop.permute.xlu0 %3578
          %3580 = vrot.lane.b32.xlu0 %v3493, 32
          %v3581 = vpop.permute.xlu0 %3580
          %3582 = vrot.lane.b32.xlu0 %v3494, 32
          %v3583 = vpop.permute.xlu0 %3582
          %3584 = vrot.lane.b32.xlu0 %v3495, 32
          %v3585 = vpop.permute.xlu0 %3584
          %3586 = vrot.lane.b32.xlu0 %v3496, 32
          %v3587 = vpop.permute.xlu0 %3586
          %3588 = vrot.lane.b32.xlu0 %v3497, 32
          %v3589 = vpop.permute.xlu0 %3588
          %3590 = vrot.lane.b32.xlu0 %v3498, 32
          %v3591 = vpop.permute.xlu0 %3590
          %3592 = vrot.lane.b32.xlu0 %v3499, 32
          %v3593 = vpop.permute.xlu0 %3592
          %3594 = vrot.lane.b32.xlu0 %v3500, 32
          %v3595 = vpop.permute.xlu0 %3594
          %3596 = vrot.lane.b32.xlu0 %v3501, 32
          %v3597 = vpop.permute.xlu0 %3596
          %v3630 = vmul.f32 %v3375, %v3535
          %v3631 = vmul.f32 %v3377, %v3537
          %v3632 = vmul.f32 %v3379, %v3539
          %v3633 = vmul.f32 %v3381, %v3541
          %v3634 = vmul.f32 %v3383, %v3543
          %v3635 = vmul.f32 %v3385, %v3545
          %v3636 = vmul.f32 %v3387, %v3547
          %v3637 = vmul.f32 %v3389, %v3549
          %v3638 = vmul.f32 %v3391, %v3551
          %v3639 = vmul.f32 %v3393, %v3553
          %v3640 = vmul.f32 %v3395, %v3555
          %v3641 = vmul.f32 %v3397, %v3557
          %v3642 = vmul.f32 %v3399, %v3559
          %v3643 = vmul.f32 %v3401, %v3561
          %v3644 = vmul.f32 %v3403, %v3563
          %v3645 = vmul.f32 %v3405, %v3565
          %v3646 = vmul.f32 %v3407, %v3567
          %v3647 = vmul.f32 %v3409, %v3569
          %v3648 = vmul.f32 %v3411, %v3571
          %v3649 = vmul.f32 %v3413, %v3573
          %v3650 = vmul.f32 %v3415, %v3575
          %v3651 = vmul.f32 %v3417, %v3577
          %v3652 = vmul.f32 %v3419, %v3579
          %v3653 = vmul.f32 %v3421, %v3581
          %v3654 = vmul.f32 %v3423, %v3583
          %v3655 = vmul.f32 %v3425, %v3585
          %v3656 = vmul.f32 %v3427, %v3587
          %v3657 = vmul.f32 %v3429, %v3589
          %v3658 = vmul.f32 %v3431, %v3591
          %v3659 = vmul.f32 %v3433, %v3593
          %v3660 = vmul.f32 %v3435, %v3595
          %v3661 = vmul.f32 %v3437, %v3597
          %3694 = vrot.lane.b32.xlu0 %v3438, 32
          %v3695 = vpop.permute.xlu0 %3694
          %3696 = vrot.lane.b32.xlu0 %v3439, 32
          %v3697 = vpop.permute.xlu0 %3696
          %3698 = vrot.lane.b32.xlu0 %v3440, 32
          %v3699 = vpop.permute.xlu0 %3698
          %3700 = vrot.lane.b32.xlu0 %v3441, 32
          %v3701 = vpop.permute.xlu0 %3700
          %3702 = vrot.lane.b32.xlu0 %v3442, 32
          %v3703 = vpop.permute.xlu0 %3702
          %3704 = vrot.lane.b32.xlu0 %v3443, 32
          %v3705 = vpop.permute.xlu0 %3704
          %3706 = vrot.lane.b32.xlu0 %v3444, 32
          %v3707 = vpop.permute.xlu0 %3706
          %3708 = vrot.lane.b32.xlu0 %v3445, 32
          %v3709 = vpop.permute.xlu0 %3708
          %3710 = vrot.lane.b32.xlu0 %v3446, 32
          %v3711 = vpop.permute.xlu0 %3710
          %3712 = vrot.lane.b32.xlu0 %v3447, 32
          %v3713 = vpop.permute.xlu0 %3712
          %3714 = vrot.lane.b32.xlu0 %v3448, 32
          %v3715 = vpop.permute.xlu0 %3714
          %3716 = vrot.lane.b32.xlu0 %v3449, 32
          %v3717 = vpop.permute.xlu0 %3716
          %3718 = vrot.lane.b32.xlu0 %v3450, 32
          %v3719 = vpop.permute.xlu0 %3718
          %3720 = vrot.lane.b32.xlu0 %v3451, 32
          %v3721 = vpop.permute.xlu0 %3720
          %3722 = vrot.lane.b32.xlu0 %v3452, 32
          %v3723 = vpop.permute.xlu0 %3722
          %3724 = vrot.lane.b32.xlu0 %v3453, 32
          %v3725 = vpop.permute.xlu0 %3724
          %3726 = vrot.lane.b32.xlu0 %v3454, 32
          %v3727 = vpop.permute.xlu0 %3726
          %3728 = vrot.lane.b32.xlu0 %v3455, 32
          %v3729 = vpop.permute.xlu0 %3728
          %3730 = vrot.lane.b32.xlu0 %v3456, 32
          %v3731 = vpop.permute.xlu0 %3730
          %3732 = vrot.lane.b32.xlu0 %v3457, 32
          %v3733 = vpop.permute.xlu0 %3732
          %3734 = vrot.lane.b32.xlu0 %v3458, 32
          %v3735 = vpop.permute.xlu0 %3734
          %3736 = vrot.lane.b32.xlu0 %v3459, 32
          %v3737 = vpop.permute.xlu0 %3736
          %3738 = vrot.lane.b32.xlu0 %v3460, 32
          %v3739 = vpop.permute.xlu0 %3738
          %3740 = vrot.lane.b32.xlu0 %v3461, 32
          %v3741 = vpop.permute.xlu0 %3740
          %3742 = vrot.lane.b32.xlu0 %v3462, 32
          %v3743 = vpop.permute.xlu0 %3742
          %3744 = vrot.lane.b32.xlu0 %v3463, 32
          %v3745 = vpop.permute.xlu0 %3744
          %3746 = vrot.lane.b32.xlu0 %v3464, 32
          %v3747 = vpop.permute.xlu0 %3746
          %3748 = vrot.lane.b32.xlu0 %v3465, 32
          %v3749 = vpop.permute.xlu0 %3748
          %3750 = vrot.lane.b32.xlu0 %v3466, 32
          %v3751 = vpop.permute.xlu0 %3750
          %3752 = vrot.lane.b32.xlu0 %v3467, 32
          %v3753 = vpop.permute.xlu0 %3752
          %3754 = vrot.lane.b32.xlu0 %v3468, 32
          %v3755 = vpop.permute.xlu0 %3754
          %3756 = vrot.lane.b32.xlu0 %v3469, 32
          %v3757 = vpop.permute.xlu0 %3756
          %v3790 = vmul.f32 %v3375, %v3695
          %v3791 = vmul.f32 %v3377, %v3697
          %v3792 = vmul.f32 %v3379, %v3699
          %v3793 = vmul.f32 %v3381, %v3701
          %v3794 = vmul.f32 %v3383, %v3703
          %v3795 = vmul.f32 %v3385, %v3705
          %v3796 = vmul.f32 %v3387, %v3707
          %v3797 = vmul.f32 %v3389, %v3709
          %v3798 = vmul.f32 %v3391, %v3711
          %v3799 = vmul.f32 %v3393, %v3713
          %v3800 = vmul.f32 %v3395, %v3715
          %v3801 = vmul.f32 %v3397, %v3717
          %v3802 = vmul.f32 %v3399, %v3719
          %v3803 = vmul.f32 %v3401, %v3721
          %v3804 = vmul.f32 %v3403, %v3723
          %v3805 = vmul.f32 %v3405, %v3725
          %v3806 = vmul.f32 %v3407, %v3727
          %v3807 = vmul.f32 %v3409, %v3729
          %v3808 = vmul.f32 %v3411, %v3731
          %v3809 = vmul.f32 %v3413, %v3733
          %v3810 = vmul.f32 %v3415, %v3735
          %v3811 = vmul.f32 %v3417, %v3737
          %v3812 = vmul.f32 %v3419, %v3739
          %v3813 = vmul.f32 %v3421, %v3741
          %v3814 = vmul.f32 %v3423, %v3743
          %v3815 = vmul.f32 %v3425, %v3745
          %v3816 = vmul.f32 %v3427, %v3747
          %v3817 = vmul.f32 %v3429, %v3749
          %v3818 = vmul.f32 %v3431, %v3751
          %v3819 = vmul.f32 %v3433, %v3753
          %v3820 = vmul.f32 %v3435, %v3755
          %v3821 = vmul.f32 %v3437, %v3757
          %3854 = vrot.lane.b32.xlu0 %v3790, 32
          %v3855 = vpop.permute.xlu0 %3854
          %3856 = vrot.lane.b32.xlu0 %v3791, 32
          %v3857 = vpop.permute.xlu0 %3856
          %3858 = vrot.lane.b32.xlu0 %v3792, 32
          %v3859 = vpop.permute.xlu0 %3858
          %3860 = vrot.lane.b32.xlu0 %v3793, 32
          %v3861 = vpop.permute.xlu0 %3860
          %3862 = vrot.lane.b32.xlu0 %v3794, 32
          %v3863 = vpop.permute.xlu0 %3862
          %3864 = vrot.lane.b32.xlu0 %v3795, 32
          %v3865 = vpop.permute.xlu0 %3864
          %3866 = vrot.lane.b32.xlu0 %v3796, 32
          %v3867 = vpop.permute.xlu0 %3866
          %3868 = vrot.lane.b32.xlu0 %v3797, 32
          %v3869 = vpop.permute.xlu0 %3868
          %3870 = vrot.lane.b32.xlu0 %v3798, 32
          %v3871 = vpop.permute.xlu0 %3870
          %3872 = vrot.lane.b32.xlu0 %v3799, 32
          %v3873 = vpop.permute.xlu0 %3872
          %3874 = vrot.lane.b32.xlu0 %v3800, 32
          %v3875 = vpop.permute.xlu0 %3874
          %3876 = vrot.lane.b32.xlu0 %v3801, 32
          %v3877 = vpop.permute.xlu0 %3876
          %3878 = vrot.lane.b32.xlu0 %v3802, 32
          %v3879 = vpop.permute.xlu0 %3878
          %3880 = vrot.lane.b32.xlu0 %v3803, 32
          %v3881 = vpop.permute.xlu0 %3880
          %3882 = vrot.lane.b32.xlu0 %v3804, 32
          %v3883 = vpop.permute.xlu0 %3882
          %3884 = vrot.lane.b32.xlu0 %v3805, 32
          %v3885 = vpop.permute.xlu0 %3884
          %3886 = vrot.lane.b32.xlu0 %v3806, 32
          %v3887 = vpop.permute.xlu0 %3886
          %3888 = vrot.lane.b32.xlu0 %v3807, 32
          %v3889 = vpop.permute.xlu0 %3888
          %3890 = vrot.lane.b32.xlu0 %v3808, 32
          %v3891 = vpop.permute.xlu0 %3890
          %3892 = vrot.lane.b32.xlu0 %v3809, 32
          %v3893 = vpop.permute.xlu0 %3892
          %3894 = vrot.lane.b32.xlu0 %v3810, 32
          %v3895 = vpop.permute.xlu0 %3894
          %3896 = vrot.lane.b32.xlu0 %v3811, 32
          %v3897 = vpop.permute.xlu0 %3896
          %3898 = vrot.lane.b32.xlu0 %v3812, 32
          %v3899 = vpop.permute.xlu0 %3898
          %3900 = vrot.lane.b32.xlu0 %v3813, 32
          %v3901 = vpop.permute.xlu0 %3900
          %3902 = vrot.lane.b32.xlu0 %v3814, 32
          %v3903 = vpop.permute.xlu0 %3902
          %3904 = vrot.lane.b32.xlu0 %v3815, 32
          %v3905 = vpop.permute.xlu0 %3904
          %3906 = vrot.lane.b32.xlu0 %v3816, 32
          %v3907 = vpop.permute.xlu0 %3906
          %3908 = vrot.lane.b32.xlu0 %v3817, 32
          %v3909 = vpop.permute.xlu0 %3908
          %3910 = vrot.lane.b32.xlu0 %v3818, 32
          %v3911 = vpop.permute.xlu0 %3910
          %3912 = vrot.lane.b32.xlu0 %v3819, 32
          %v3913 = vpop.permute.xlu0 %3912
          %3914 = vrot.lane.b32.xlu0 %v3820, 32
          %v3915 = vpop.permute.xlu0 %3914
          %3916 = vrot.lane.b32.xlu0 %v3821, 32
          %v3917 = vpop.permute.xlu0 %3916
          %v3950 = vadd.f32 %v3630, %v3855
          %v3951 = vadd.f32 %v3631, %v3857
          %v3952 = vadd.f32 %v3632, %v3859
          %v3953 = vadd.f32 %v3633, %v3861
          %v3954 = vadd.f32 %v3634, %v3863
          %v3955 = vadd.f32 %v3635, %v3865
          %v3956 = vadd.f32 %v3636, %v3867
          %v3957 = vadd.f32 %v3637, %v3869
          %v3958 = vadd.f32 %v3638, %v3871
          %v3959 = vadd.f32 %v3639, %v3873
          %v3960 = vadd.f32 %v3640, %v3875
          %v3961 = vadd.f32 %v3641, %v3877
          %v3962 = vadd.f32 %v3642, %v3879
          %v3963 = vadd.f32 %v3643, %v3881
          %v3964 = vadd.f32 %v3644, %v3883
          %v3965 = vadd.f32 %v3645, %v3885
          %v3966 = vadd.f32 %v3646, %v3887
          %v3967 = vadd.f32 %v3647, %v3889
          %v3968 = vadd.f32 %v3648, %v3891
          %v3969 = vadd.f32 %v3649, %v3893
          %v3970 = vadd.f32 %v3650, %v3895
          %v3971 = vadd.f32 %v3651, %v3897
          %v3972 = vadd.f32 %v3652, %v3899
          %v3973 = vadd.f32 %v3653, %v3901
          %v3974 = vadd.f32 %v3654, %v3903
          %v3975 = vadd.f32 %v3655, %v3905
          %v3976 = vadd.f32 %v3656, %v3907
          %v3977 = vadd.f32 %v3657, %v3909
          %v3978 = vadd.f32 %v3658, %v3911
          %v3979 = vadd.f32 %v3659, %v3913
          %v3980 = vadd.f32 %v3660, %v3915
          %v3981 = vadd.f32 %v3661, %v3917
          %v3982 = vtanh.pop %v3950
          %v3983 = vtanh.pop %v3951
          %v3984 = vtanh.pop %v3952
          %v3985 = vtanh.pop %v3953
          %v3986 = vtanh.pop %v3954
          %v3987 = vtanh.pop %v3955
          %v3988 = vtanh.pop %v3956
          %v3989 = vtanh.pop %v3957
          %v3990 = vtanh.pop %v3958
          %v3991 = vtanh.pop %v3959
          %v3992 = vtanh.pop %v3960
          %v3993 = vtanh.pop %v3961
          %v3994 = vtanh.pop %v3962
          %v3995 = vtanh.pop %v3963
          %v3996 = vtanh.pop %v3964
          %v3997 = vtanh.pop %v3965
          %v3998 = vtanh.pop %v3966
          %v3999 = vtanh.pop %v3967
          %v4000 = vtanh.pop %v3968
          %v4001 = vtanh.pop %v3969
          %v4002 = vtanh.pop %v3970
          %v4003 = vtanh.pop %v3971
          %v4004 = vtanh.pop %v3972
          %v4005 = vtanh.pop %v3973
          %v4006 = vtanh.pop %v3974
          %v4007 = vtanh.pop %v3975
          %v4008 = vtanh.pop %v3976
          %v4009 = vtanh.pop %v3977
          %v4010 = vtanh.pop %v3978
          %v4011 = vtanh.pop %v3979
          %v4012 = vtanh.pop %v3980
          %v4013 = vtanh.pop %v3981
          %4046 = vrot.lane.b32.xlu0 %v3982, 32
          %v4047 = vpop.permute.xlu0 %4046
          %4048 = vrot.lane.b32.xlu0 %v3983, 32
          %v4049 = vpop.permute.xlu0 %4048
          %4050 = vrot.lane.b32.xlu0 %v3984, 32
          %v4051 = vpop.permute.xlu0 %4050
          %4052 = vrot.lane.b32.xlu0 %v3985, 32
          %v4053 = vpop.permute.xlu0 %4052
          %4054 = vrot.lane.b32.xlu0 %v3986, 32
          %v4055 = vpop.permute.xlu0 %4054
          %4056 = vrot.lane.b32.xlu0 %v3987, 32
          %v4057 = vpop.permute.xlu0 %4056
          %4058 = vrot.lane.b32.xlu0 %v3988, 32
          %v4059 = vpop.permute.xlu0 %4058
          %4060 = vrot.lane.b32.xlu0 %v3989, 32
          %v4061 = vpop.permute.xlu0 %4060
          %4062 = vrot.lane.b32.xlu0 %v3990, 32
          %v4063 = vpop.permute.xlu0 %4062
          %4064 = vrot.lane.b32.xlu0 %v3991, 32
          %v4065 = vpop.permute.xlu0 %4064
          %4066 = vrot.lane.b32.xlu0 %v3992, 32
          %v4067 = vpop.permute.xlu0 %4066
          %4068 = vrot.lane.b32.xlu0 %v3993, 32
          %v4069 = vpop.permute.xlu0 %4068
          %4070 = vrot.lane.b32.xlu0 %v3994, 32
          %v4071 = vpop.permute.xlu0 %4070
          %4072 = vrot.lane.b32.xlu0 %v3995, 32
          %v4073 = vpop.permute.xlu0 %4072
          %4074 = vrot.lane.b32.xlu0 %v3996, 32
          %v4075 = vpop.permute.xlu0 %4074
          %4076 = vrot.lane.b32.xlu0 %v3997, 32
          %v4077 = vpop.permute.xlu0 %4076
          %4078 = vrot.lane.b32.xlu0 %v3998, 32
          %v4079 = vpop.permute.xlu0 %4078
          %4080 = vrot.lane.b32.xlu0 %v3999, 32
          %v4081 = vpop.permute.xlu0 %4080
          %4082 = vrot.lane.b32.xlu0 %v4000, 32
          %v4083 = vpop.permute.xlu0 %4082
          %4084 = vrot.lane.b32.xlu0 %v4001, 32
          %v4085 = vpop.permute.xlu0 %4084
          %4086 = vrot.lane.b32.xlu0 %v4002, 32
          %v4087 = vpop.permute.xlu0 %4086
          %4088 = vrot.lane.b32.xlu0 %v4003, 32
          %v4089 = vpop.permute.xlu0 %4088
          %4090 = vrot.lane.b32.xlu0 %v4004, 32
          %v4091 = vpop.permute.xlu0 %4090
          %4092 = vrot.lane.b32.xlu0 %v4005, 32
          %v4093 = vpop.permute.xlu0 %4092
          %4094 = vrot.lane.b32.xlu0 %v4006, 32
          %v4095 = vpop.permute.xlu0 %4094
          %4096 = vrot.lane.b32.xlu0 %v4007, 32
          %v4097 = vpop.permute.xlu0 %4096
          %4098 = vrot.lane.b32.xlu0 %v4008, 32
          %v4099 = vpop.permute.xlu0 %4098
          %4100 = vrot.lane.b32.xlu0 %v4009, 32
          %v4101 = vpop.permute.xlu0 %4100
          %4102 = vrot.lane.b32.xlu0 %v4010, 32
          %v4103 = vpop.permute.xlu0 %4102
          %4104 = vrot.lane.b32.xlu0 %v4011, 32
          %v4105 = vpop.permute.xlu0 %4104
          %4106 = vrot.lane.b32.xlu0 %v4012, 32
          %v4107 = vpop.permute.xlu0 %4106
          %4108 = vrot.lane.b32.xlu0 %v4013, 32
          %v4109 = vpop.permute.xlu0 %4108
          %v4142 = vmul.f32 %v3375, %v4047
          %v4143 = vmul.f32 %v3377, %v4049
          %v4144 = vmul.f32 %v3379, %v4051
          %v4145 = vmul.f32 %v3381, %v4053
          %v4146 = vmul.f32 %v3383, %v4055
          %v4147 = vmul.f32 %v3385, %v4057
          %v4148 = vmul.f32 %v3387, %v4059
          %v4149 = vmul.f32 %v3389, %v4061
          %v4150 = vmul.f32 %v3391, %v4063
          %v4151 = vmul.f32 %v3393, %v4065
          %v4152 = vmul.f32 %v3395, %v4067
          %v4153 = vmul.f32 %v3397, %v4069
          %v4154 = vmul.f32 %v3399, %v4071
          %v4155 = vmul.f32 %v3401, %v4073
          %v4156 = vmul.f32 %v3403, %v4075
          %v4157 = vmul.f32 %v3405, %v4077
          %v4158 = vmul.f32 %v3407, %v4079
          %v4159 = vmul.f32 %v3409, %v4081
          %v4160 = vmul.f32 %v3411, %v4083
          %v4161 = vmul.f32 %v3413, %v4085
          %v4162 = vmul.f32 %v3415, %v4087
          %v4163 = vmul.f32 %v3417, %v4089
          %v4164 = vmul.f32 %v3419, %v4091
          %v4165 = vmul.f32 %v3421, %v4093
          %v4166 = vmul.f32 %v3423, %v4095
          %v4167 = vmul.f32 %v3425, %v4097
          %v4168 = vmul.f32 %v3427, %v4099
          %v4169 = vmul.f32 %v3429, %v4101
          %v4170 = vmul.f32 %v3431, %v4103
          %v4171 = vmul.f32 %v3433, %v4105
          %v4172 = vmul.f32 %v3435, %v4107
          %v4173 = vmul.f32 %v3437, %v4109
          %4206 = vrot.lane.b32.xlu0 %v3950, 96
          %v4207 = vpop.permute.xlu0 %4206
          %4208 = vrot.lane.b32.xlu0 %v3951, 96
          %v4209 = vpop.permute.xlu0 %4208
          %4210 = vrot.lane.b32.xlu0 %v3952, 96
          %v4211 = vpop.permute.xlu0 %4210
          %4212 = vrot.lane.b32.xlu0 %v3953, 96
          %v4213 = vpop.permute.xlu0 %4212
          %4214 = vrot.lane.b32.xlu0 %v3954, 96
          %v4215 = vpop.permute.xlu0 %4214
          %4216 = vrot.lane.b32.xlu0 %v3955, 96
          %v4217 = vpop.permute.xlu0 %4216
          %4218 = vrot.lane.b32.xlu0 %v3956, 96
          %v4219 = vpop.permute.xlu0 %4218
          %4220 = vrot.lane.b32.xlu0 %v3957, 96
          %v4221 = vpop.permute.xlu0 %4220
          %4222 = vrot.lane.b32.xlu0 %v3958, 96
          %v4223 = vpop.permute.xlu0 %4222
          %4224 = vrot.lane.b32.xlu0 %v3959, 96
          %v4225 = vpop.permute.xlu0 %4224
          %4226 = vrot.lane.b32.xlu0 %v3960, 96
          %v4227 = vpop.permute.xlu0 %4226
          %4228 = vrot.lane.b32.xlu0 %v3961, 96
          %v4229 = vpop.permute.xlu0 %4228
          %4230 = vrot.lane.b32.xlu0 %v3962, 96
          %v4231 = vpop.permute.xlu0 %4230
          %4232 = vrot.lane.b32.xlu0 %v3963, 96
          %v4233 = vpop.permute.xlu0 %4232
          %4234 = vrot.lane.b32.xlu0 %v3964, 96
          %v4235 = vpop.permute.xlu0 %4234
          %4236 = vrot.lane.b32.xlu0 %v3965, 96
          %v4237 = vpop.permute.xlu0 %4236
          %4238 = vrot.lane.b32.xlu0 %v3966, 96
          %v4239 = vpop.permute.xlu0 %4238
          %4240 = vrot.lane.b32.xlu0 %v3967, 96
          %v4241 = vpop.permute.xlu0 %4240
          %4242 = vrot.lane.b32.xlu0 %v3968, 96
          %v4243 = vpop.permute.xlu0 %4242
          %4244 = vrot.lane.b32.xlu0 %v3969, 96
          %v4245 = vpop.permute.xlu0 %4244
          %4246 = vrot.lane.b32.xlu0 %v3970, 96
          %v4247 = vpop.permute.xlu0 %4246
          %4248 = vrot.lane.b32.xlu0 %v3971, 96
          %v4249 = vpop.permute.xlu0 %4248
          %4250 = vrot.lane.b32.xlu0 %v3972, 96
          %v4251 = vpop.permute.xlu0 %4250
          %4252 = vrot.lane.b32.xlu0 %v3973, 96
          %v4253 = vpop.permute.xlu0 %4252
          %4254 = vrot.lane.b32.xlu0 %v3974, 96
          %v4255 = vpop.permute.xlu0 %4254
          %4256 = vrot.lane.b32.xlu0 %v3975, 96
          %v4257 = vpop.permute.xlu0 %4256
          %4258 = vrot.lane.b32.xlu0 %v3976, 96
          %v4259 = vpop.permute.xlu0 %4258
          %4260 = vrot.lane.b32.xlu0 %v3977, 96
          %v4261 = vpop.permute.xlu0 %4260
          %4262 = vrot.lane.b32.xlu0 %v3978, 96
          %v4263 = vpop.permute.xlu0 %4262
          %4264 = vrot.lane.b32.xlu0 %v3979, 96
          %v4265 = vpop.permute.xlu0 %4264
          %4266 = vrot.lane.b32.xlu0 %v3980, 96
          %v4267 = vpop.permute.xlu0 %4266
          %4268 = vrot.lane.b32.xlu0 %v3981, 96
          %v4269 = vpop.permute.xlu0 %4268
          %4302 = vst.msk [vmem:[#allocation7] sm:$0xff] %vm481, %v4207
          %4303 = vst.msk [vmem:[#allocation7 + $0x8] sm:$0xff] %vm481, %v4209
          %4304 = vst.msk [vmem:[#allocation7 + $0x10] sm:$0xff] %vm481, %v4211
          %4305 = vst.msk [vmem:[#allocation7 + $0x18] sm:$0xff] %vm481, %v4213
          %4306 = vst.msk [vmem:[#allocation7 + $0x20] sm:$0xff] %vm481, %v4215
          %4307 = vst.msk [vmem:[#allocation7 + $0x28] sm:$0xff] %vm481, %v4217
          %4308 = vst.msk [vmem:[#allocation7 + $0x30] sm:$0xff] %vm481, %v4219
          %4309 = vst.msk [vmem:[#allocation7 + $0x38] sm:$0xff] %vm481, %v4221
          %4310 = vst.msk [vmem:[#allocation7 + $0x40] sm:$0xff] %vm481, %v4223
          %4311 = vst.msk [vmem:[#allocation7 + $0x48] sm:$0xff] %vm481, %v4225
          %4312 = vst.msk [vmem:[#allocation7 + $0x50] sm:$0xff] %vm481, %v4227
          %4313 = vst.msk [vmem:[#allocation7 + $0x58] sm:$0xff] %vm481, %v4229
          %4314 = vst.msk [vmem:[#allocation7 + $0x60] sm:$0xff] %vm481, %v4231
          %4315 = vst.msk [vmem:[#allocation7 + $0x68] sm:$0xff] %vm481, %v4233
          %4316 = vst.msk [vmem:[#allocation7 + $0x70] sm:$0xff] %vm481, %v4235
          %4317 = vst.msk [vmem:[#allocation7 + $0x78] sm:$0xff] %vm481, %v4237
          %4318 = vst.msk [vmem:[#allocation7 + $0x80] sm:$0xff] %vm481, %v4239
          %4319 = vst.msk [vmem:[#allocation7 + $0x88] sm:$0xff] %vm481, %v4241
          %4320 = vst.msk [vmem:[#allocation7 + $0x90] sm:$0xff] %vm481, %v4243
          %4321 = vst.msk [vmem:[#allocation7 + $0x98] sm:$0xff] %vm481, %v4245
          %4322 = vst.msk [vmem:[#allocation7 + $0xa0] sm:$0xff] %vm481, %v4247
          %4323 = vst.msk [vmem:[#allocation7 + $0xa8] sm:$0xff] %vm481, %v4249
          %4324 = vst.msk [vmem:[#allocation7 + $0xb0] sm:$0xff] %vm481, %v4251
          %4325 = vst.msk [vmem:[#allocation7 + $0xb8] sm:$0xff] %vm481, %v4253
          %4326 = vst.msk [vmem:[#allocation7 + $0xc0] sm:$0xff] %vm481, %v4255
          %4327 = vst.msk [vmem:[#allocation7 + $0xc8] sm:$0xff] %vm481, %v4257
          %4328 = vst.msk [vmem:[#allocation7 + $0xd0] sm:$0xff] %vm481, %v4259
          %4329 = vst.msk [vmem:[#allocation7 + $0xd8] sm:$0xff] %vm481, %v4261
          %4330 = vst.msk [vmem:[#allocation7 + $0xe0] sm:$0xff] %vm481, %v4263
          %4331 = vst.msk [vmem:[#allocation7 + $0xe8] sm:$0xff] %vm481, %v4265
          %4332 = vst.msk [vmem:[#allocation7 + $0xf0] sm:$0xff] %vm481, %v4267
          %4333 = vst.msk [vmem:[#allocation7 + $0xf8] sm:$0xff] %vm481, %v4269
          %4366 = vrot.lane.b32.xlu0 %v4142, 64
          %v4367 = vpop.permute.xlu0 %4366
          %4368 = vrot.lane.b32.xlu0 %v4143, 64
          %v4369 = vpop.permute.xlu0 %4368
          %4370 = vrot.lane.b32.xlu0 %v4144, 64
          %v4371 = vpop.permute.xlu0 %4370
          %4372 = vrot.lane.b32.xlu0 %v4145, 64
          %v4373 = vpop.permute.xlu0 %4372
          %4374 = vrot.lane.b32.xlu0 %v4146, 64
          %v4375 = vpop.permute.xlu0 %4374
          %4376 = vrot.lane.b32.xlu0 %v4147, 64
          %v4377 = vpop.permute.xlu0 %4376
          %4378 = vrot.lane.b32.xlu0 %v4148, 64
          %v4379 = vpop.permute.xlu0 %4378
          %4380 = vrot.lane.b32.xlu0 %v4149, 64
          %v4381 = vpop.permute.xlu0 %4380
          %4382 = vrot.lane.b32.xlu0 %v4150, 64
          %v4383 = vpop.permute.xlu0 %4382
          %4384 = vrot.lane.b32.xlu0 %v4151, 64
          %v4385 = vpop.permute.xlu0 %4384
          %4386 = vrot.lane.b32.xlu0 %v4152, 64
          %v4387 = vpop.permute.xlu0 %4386
          %4388 = vrot.lane.b32.xlu0 %v4153, 64
          %v4389 = vpop.permute.xlu0 %4388
          %4390 = vrot.lane.b32.xlu0 %v4154, 64
          %v4391 = vpop.permute.xlu0 %4390
          %4392 = vrot.lane.b32.xlu0 %v4155, 64
          %v4393 = vpop.permute.xlu0 %4392
          %4394 = vrot.lane.b32.xlu0 %v4156, 64
          %v4395 = vpop.permute.xlu0 %4394
          %4396 = vrot.lane.b32.xlu0 %v4157, 64
          %v4397 = vpop.permute.xlu0 %4396
          %4398 = vrot.lane.b32.xlu0 %v4158, 64
          %v4399 = vpop.permute.xlu0 %4398
          %4400 = vrot.lane.b32.xlu0 %v4159, 64
          %v4401 = vpop.permute.xlu0 %4400
          %4402 = vrot.lane.b32.xlu0 %v4160, 64
          %v4403 = vpop.permute.xlu0 %4402
          %4404 = vrot.lane.b32.xlu0 %v4161, 64
          %v4405 = vpop.permute.xlu0 %4404
          %4406 = vrot.lane.b32.xlu0 %v4162, 64
          %v4407 = vpop.permute.xlu0 %4406
          %4408 = vrot.lane.b32.xlu0 %v4163, 64
          %v4409 = vpop.permute.xlu0 %4408
          %4410 = vrot.lane.b32.xlu0 %v4164, 64
          %v4411 = vpop.permute.xlu0 %4410
          %4412 = vrot.lane.b32.xlu0 %v4165, 64
          %v4413 = vpop.permute.xlu0 %4412
          %4414 = vrot.lane.b32.xlu0 %v4166, 64
          %v4415 = vpop.permute.xlu0 %4414
          %4416 = vrot.lane.b32.xlu0 %v4167, 64
          %v4417 = vpop.permute.xlu0 %4416
          %4418 = vrot.lane.b32.xlu0 %v4168, 64
          %v4419 = vpop.permute.xlu0 %4418
          %4420 = vrot.lane.b32.xlu0 %v4169, 64
          %v4421 = vpop.permute.xlu0 %4420
          %4422 = vrot.lane.b32.xlu0 %v4170, 64
          %v4423 = vpop.permute.xlu0 %4422
          %4424 = vrot.lane.b32.xlu0 %v4171, 64
          %v4425 = vpop.permute.xlu0 %4424
          %4426 = vrot.lane.b32.xlu0 %v4172, 64
          %v4427 = vpop.permute.xlu0 %4426
          %4428 = vrot.lane.b32.xlu0 %v4173, 64
          %v4429 = vpop.permute.xlu0 %4428
          %4462 = vst.msk [vmem:[#allocation6] sm:$0xff] %vm481, %v4367
          %4463 = vst.msk [vmem:[#allocation6 + $0x8] sm:$0xff] %vm481, %v4369
          %4464 = vst.msk [vmem:[#allocation6 + $0x10] sm:$0xff] %vm481, %v4371
          %4465 = vst.msk [vmem:[#allocation6 + $0x18] sm:$0xff] %vm481, %v4373
          %4466 = vst.msk [vmem:[#allocation6 + $0x20] sm:$0xff] %vm481, %v4375
          %4467 = vst.msk [vmem:[#allocation6 + $0x28] sm:$0xff] %vm481, %v4377
          %4468 = vst.msk [vmem:[#allocation6 + $0x30] sm:$0xff] %vm481, %v4379
          %4469 = vst.msk [vmem:[#allocation6 + $0x38] sm:$0xff] %vm481, %v4381
          %4470 = vst.msk [vmem:[#allocation6 + $0x40] sm:$0xff] %vm481, %v4383
          %4471 = vst.msk [vmem:[#allocation6 + $0x48] sm:$0xff] %vm481, %v4385
          %4472 = vst.msk [vmem:[#allocation6 + $0x50] sm:$0xff] %vm481, %v4387
          %4473 = vst.msk [vmem:[#allocation6 + $0x58] sm:$0xff] %vm481, %v4389
          %4474 = vst.msk [vmem:[#allocation6 + $0x60] sm:$0xff] %vm481, %v4391
          %4475 = vst.msk [vmem:[#allocation6 + $0x68] sm:$0xff] %vm481, %v4393
          %4476 = vst.msk [vmem:[#allocation6 + $0x70] sm:$0xff] %vm481, %v4395
          %4477 = vst.msk [vmem:[#allocation6 + $0x78] sm:$0xff] %vm481, %v4397
          %4478 = vst.msk [vmem:[#allocation6 + $0x80] sm:$0xff] %vm481, %v4399
          %4479 = vst.msk [vmem:[#allocation6 + $0x88] sm:$0xff] %vm481, %v4401
          %4480 = vst.msk [vmem:[#allocation6 + $0x90] sm:$0xff] %vm481, %v4403
          %4481 = vst.msk [vmem:[#allocation6 + $0x98] sm:$0xff] %vm481, %v4405
          %4482 = vst.msk [vmem:[#allocation6 + $0xa0] sm:$0xff] %vm481, %v4407
          %4483 = vst.msk [vmem:[#allocation6 + $0xa8] sm:$0xff] %vm481, %v4409
          %4484 = vst.msk [vmem:[#allocation6 + $0xb0] sm:$0xff] %vm481, %v4411
          %4485 = vst.msk [vmem:[#allocation6 + $0xb8] sm:$0xff] %vm481, %v4413
          %4486 = vst.msk [vmem:[#allocation6 + $0xc0] sm:$0xff] %vm481, %v4415
          %4487 = vst.msk [vmem:[#allocation6 + $0xc8] sm:$0xff] %vm481, %v4417
          %4488 = vst.msk [vmem:[#allocation6 + $0xd0] sm:$0xff] %vm481, %v4419
          %4489 = vst.msk [vmem:[#allocation6 + $0xd8] sm:$0xff] %vm481, %v4421
          %4490 = vst.msk [vmem:[#allocation6 + $0xe0] sm:$0xff] %vm481, %v4423
          %4491 = vst.msk [vmem:[#allocation6 + $0xe8] sm:$0xff] %vm481, %v4425
          %4492 = vst.msk [vmem:[#allocation6 + $0xf0] sm:$0xff] %vm481, %v4427
          %4493 = vst.msk [vmem:[#allocation6 + $0xf8] sm:$0xff] %vm481, %v4429
          %s4494 = scalar_lea.vmem [#allocation3], 24
          %4495 = vst.msk [vmem:[%s4494 + $0x1] sm:$0xff] %vm481, %v4367
          %4496 = vst.msk [vmem:[%s4494 + $0x9] sm:$0xff] %vm481, %v4369
          %4497 = vst.msk [vmem:[%s4494 + $0x19] sm:$0xff] %vm481, %v4371
          %4498 = vst.msk [vmem:[%s4494 + $0x21] sm:$0xff] %vm481, %v4373
          %4499 = vst.msk [vmem:[%s4494 + $0x31] sm:$0xff] %vm481, %v4375
          %4500 = vst.msk [vmem:[%s4494 + $0x39] sm:$0xff] %vm481, %v4377
          %4501 = vst.msk [vmem:[%s4494 + $0x49] sm:$0xff] %vm481, %v4379
          %4502 = vst.msk [vmem:[%s4494 + $0x51] sm:$0xff] %vm481, %v4381
          %4503 = vst.msk [vmem:[%s4494 + $0x61] sm:$0xff] %vm481, %v4383
          %4504 = vst.msk [vmem:[%s4494 + $0x69] sm:$0xff] %vm481, %v4385
          %4505 = vst.msk [vmem:[%s4494 + $0x79] sm:$0xff] %vm481, %v4387
          %4506 = vst.msk [vmem:[%s4494 + $0x81] sm:$0xff] %vm481, %v4389
          %4507 = vst.msk [vmem:[%s4494 + $0x91] sm:$0xff] %vm481, %v4391
          %4508 = vst.msk [vmem:[%s4494 + $0x99] sm:$0xff] %vm481, %v4393
          %4509 = vst.msk [vmem:[%s4494 + $0xa9] sm:$0xff] %vm481, %v4395
          %4510 = vst.msk [vmem:[%s4494 + $0xb1] sm:$0xff] %vm481, %v4397
          %4511 = vst.msk [vmem:[%s4494 + $0xc1] sm:$0xff] %vm481, %v4399
          %4512 = vst.msk [vmem:[%s4494 + $0xc9] sm:$0xff] %vm481, %v4401
          %4513 = vst.msk [vmem:[%s4494 + $0xd9] sm:$0xff] %vm481, %v4403
          %4514 = vst.msk [vmem:[%s4494 + $0xe1] sm:$0xff] %vm481, %v4405
          %4515 = vst.msk [vmem:[%s4494 + $0xf1] sm:$0xff] %vm481, %v4407
          %4516 = vst.msk [vmem:[%s4494 + $0xf9] sm:$0xff] %vm481, %v4409
          %4517 = vst.msk [vmem:[%s4494 + $0x109] sm:$0xff] %vm481, %v4411
          %4518 = vst.msk [vmem:[%s4494 + $0x111] sm:$0xff] %vm481, %v4413
          %4519 = vst.msk [vmem:[%s4494 + $0x121] sm:$0xff] %vm481, %v4415
          %4520 = vst.msk [vmem:[%s4494 + $0x129] sm:$0xff] %vm481, %v4417
          %4521 = vst.msk [vmem:[%s4494 + $0x139] sm:$0xff] %vm481, %v4419
          %4522 = vst.msk [vmem:[%s4494 + $0x141] sm:$0xff] %vm481, %v4421
          %4523 = vst.msk [vmem:[%s4494 + $0x151] sm:$0xff] %vm481, %v4423
          %4524 = vst.msk [vmem:[%s4494 + $0x159] sm:$0xff] %vm481, %v4425
          %4525 = vst.msk [vmem:[%s4494 + $0x169] sm:$0xff] %vm481, %v4427
          %4526 = vst.msk [vmem:[%s4494 + $0x171] sm:$0xff] %vm481, %v4429
          %v4527 = vld [vmem:[#allocation8] sm:$0xff]
          %v4528 = vld [vmem:[#allocation8 + $0x8] sm:$0xff]
          %v4529 = vld [vmem:[#allocation8 + $0x10] sm:$0xff]
          %v4530 = vld [vmem:[#allocation8 + $0x18] sm:$0xff]
          %v4531 = vld [vmem:[#allocation8 + $0x20] sm:$0xff]
          %v4532 = vld [vmem:[#allocation8 + $0x28] sm:$0xff]
          %v4533 = vld [vmem:[#allocation8 + $0x30] sm:$0xff]
          %v4534 = vld [vmem:[#allocation8 + $0x38] sm:$0xff]
          %v4535 = vld [vmem:[#allocation8 + $0x40] sm:$0xff]
          %v4536 = vld [vmem:[#allocation8 + $0x48] sm:$0xff]
          %v4537 = vld [vmem:[#allocation8 + $0x50] sm:$0xff]
          %v4538 = vld [vmem:[#allocation8 + $0x58] sm:$0xff]
          %v4539 = vld [vmem:[#allocation8 + $0x60] sm:$0xff]
          %v4540 = vld [vmem:[#allocation8 + $0x68] sm:$0xff]
          %v4541 = vld [vmem:[#allocation8 + $0x70] sm:$0xff]
          %v4542 = vld [vmem:[#allocation8 + $0x78] sm:$0xff]
          %v4543 = vld [vmem:[#allocation8 + $0x80] sm:$0xff]
          %v4544 = vld [vmem:[#allocation8 + $0x88] sm:$0xff]
          %v4545 = vld [vmem:[#allocation8 + $0x90] sm:$0xff]
          %v4546 = vld [vmem:[#allocation8 + $0x98] sm:$0xff]
          %v4547 = vld [vmem:[#allocation8 + $0xa0] sm:$0xff]
          %v4548 = vld [vmem:[#allocation8 + $0xa8] sm:$0xff]
          %v4549 = vld [vmem:[#allocation8 + $0xb0] sm:$0xff]
          %v4550 = vld [vmem:[#allocation8 + $0xb8] sm:$0xff]
          %v4551 = vld [vmem:[#allocation8 + $0xc0] sm:$0xff]
          %v4552 = vld [vmem:[#allocation8 + $0xc8] sm:$0xff]
          %v4553 = vld [vmem:[#allocation8 + $0xd0] sm:$0xff]
          %v4554 = vld [vmem:[#allocation8 + $0xd8] sm:$0xff]
          %v4555 = vld [vmem:[#allocation8 + $0xe0] sm:$0xff]
          %v4556 = vld [vmem:[#allocation8 + $0xe8] sm:$0xff]
          %v4557 = vld [vmem:[#allocation8 + $0xf0] sm:$0xff]
          %v4558 = vld [vmem:[#allocation8 + $0xf8] sm:$0xff]
          %4591 = vrot.lane.b32.xlu0 %v4527, 32
          %v4592 = vpop.permute.xlu0 %4591
          %4593 = vrot.lane.b32.xlu0 %v4528, 32
          %v4594 = vpop.permute.xlu0 %4593
          %4595 = vrot.lane.b32.xlu0 %v4529, 32
          %v4596 = vpop.permute.xlu0 %4595
          %4597 = vrot.lane.b32.xlu0 %v4530, 32
          %v4598 = vpop.permute.xlu0 %4597
          %4599 = vrot.lane.b32.xlu0 %v4531, 32
          %v4600 = vpop.permute.xlu0 %4599
          %4601 = vrot.lane.b32.xlu0 %v4532, 32
          %v4602 = vpop.permute.xlu0 %4601
          %4603 = vrot.lane.b32.xlu0 %v4533, 32
          %v4604 = vpop.permute.xlu0 %4603
          %4605 = vrot.lane.b32.xlu0 %v4534, 32
          %v4606 = vpop.permute.xlu0 %4605
          %4607 = vrot.lane.b32.xlu0 %v4535, 32
          %v4608 = vpop.permute.xlu0 %4607
          %4609 = vrot.lane.b32.xlu0 %v4536, 32
          %v4610 = vpop.permute.xlu0 %4609
          %4611 = vrot.lane.b32.xlu0 %v4537, 32
          %v4612 = vpop.permute.xlu0 %4611
          %4613 = vrot.lane.b32.xlu0 %v4538, 32
          %v4614 = vpop.permute.xlu0 %4613
          %4615 = vrot.lane.b32.xlu0 %v4539, 32
          %v4616 = vpop.permute.xlu0 %4615
          %4617 = vrot.lane.b32.xlu0 %v4540, 32
          %v4618 = vpop.permute.xlu0 %4617
          %4619 = vrot.lane.b32.xlu0 %v4541, 32
          %v4620 = vpop.permute.xlu0 %4619
          %4621 = vrot.lane.b32.xlu0 %v4542, 32
          %v4622 = vpop.permute.xlu0 %4621
          %4623 = vrot.lane.b32.xlu0 %v4543, 32
          %v4624 = vpop.permute.xlu0 %4623
          %4625 = vrot.lane.b32.xlu0 %v4544, 32
          %v4626 = vpop.permute.xlu0 %4625
          %4627 = vrot.lane.b32.xlu0 %v4545, 32
          %v4628 = vpop.permute.xlu0 %4627
          %4629 = vrot.lane.b32.xlu0 %v4546, 32
          %v4630 = vpop.permute.xlu0 %4629
          %4631 = vrot.lane.b32.xlu0 %v4547, 32
          %v4632 = vpop.permute.xlu0 %4631
          %4633 = vrot.lane.b32.xlu0 %v4548, 32
          %v4634 = vpop.permute.xlu0 %4633
          %4635 = vrot.lane.b32.xlu0 %v4549, 32
          %v4636 = vpop.permute.xlu0 %4635
          %4637 = vrot.lane.b32.xlu0 %v4550, 32
          %v4638 = vpop.permute.xlu0 %4637
          %4639 = vrot.lane.b32.xlu0 %v4551, 32
          %v4640 = vpop.permute.xlu0 %4639
          %4641 = vrot.lane.b32.xlu0 %v4552, 32
          %v4642 = vpop.permute.xlu0 %4641
          %4643 = vrot.lane.b32.xlu0 %v4553, 32
          %v4644 = vpop.permute.xlu0 %4643
          %4645 = vrot.lane.b32.xlu0 %v4554, 32
          %v4646 = vpop.permute.xlu0 %4645
          %4647 = vrot.lane.b32.xlu0 %v4555, 32
          %v4648 = vpop.permute.xlu0 %4647
          %4649 = vrot.lane.b32.xlu0 %v4556, 32
          %v4650 = vpop.permute.xlu0 %4649
          %4651 = vrot.lane.b32.xlu0 %v4557, 32
          %v4652 = vpop.permute.xlu0 %4651
          %4653 = vrot.lane.b32.xlu0 %v4558, 32
          %v4654 = vpop.permute.xlu0 %4653
          %vm4687 = vcmask 523520
          %4688 = vst.msk [vmem:[%s4494 + $0x1] sm:$0xff] %vm4687, %v4592
          %4689 = vst.msk [vmem:[%s4494 + $0x9] sm:$0xff] %vm4687, %v4594
          %4690 = vst.msk [vmem:[%s4494 + $0x19] sm:$0xff] %vm4687, %v4596
          %4691 = vst.msk [vmem:[%s4494 + $0x21] sm:$0xff] %vm4687, %v4598
          %4692 = vst.msk [vmem:[%s4494 + $0x31] sm:$0xff] %vm4687, %v4600
          %4693 = vst.msk [vmem:[%s4494 + $0x39] sm:$0xff] %vm4687, %v4602
          %4694 = vst.msk [vmem:[%s4494 + $0x49] sm:$0xff] %vm4687, %v4604
          %4695 = vst.msk [vmem:[%s4494 + $0x51] sm:$0xff] %vm4687, %v4606
          %4696 = vst.msk [vmem:[%s4494 + $0x61] sm:$0xff] %vm4687, %v4608
          %4697 = vst.msk [vmem:[%s4494 + $0x69] sm:$0xff] %vm4687, %v4610
          %4698 = vst.msk [vmem:[%s4494 + $0x79] sm:$0xff] %vm4687, %v4612
          %4699 = vst.msk [vmem:[%s4494 + $0x81] sm:$0xff] %vm4687, %v4614
          %4700 = vst.msk [vmem:[%s4494 + $0x91] sm:$0xff] %vm4687, %v4616
          %4701 = vst.msk [vmem:[%s4494 + $0x99] sm:$0xff] %vm4687, %v4618
          %4702 = vst.msk [vmem:[%s4494 + $0xa9] sm:$0xff] %vm4687, %v4620
          %4703 = vst.msk [vmem:[%s4494 + $0xb1] sm:$0xff] %vm4687, %v4622
          %4704 = vst.msk [vmem:[%s4494 + $0xc1] sm:$0xff] %vm4687, %v4624
          %4705 = vst.msk [vmem:[%s4494 + $0xc9] sm:$0xff] %vm4687, %v4626
          %4706 = vst.msk [vmem:[%s4494 + $0xd9] sm:$0xff] %vm4687, %v4628
          %4707 = vst.msk [vmem:[%s4494 + $0xe1] sm:$0xff] %vm4687, %v4630
          %4708 = vst.msk [vmem:[%s4494 + $0xf1] sm:$0xff] %vm4687, %v4632
          %4709 = vst.msk [vmem:[%s4494 + $0xf9] sm:$0xff] %vm4687, %v4634
          %4710 = vst.msk [vmem:[%s4494 + $0x109] sm:$0xff] %vm4687, %v4636
          %4711 = vst.msk [vmem:[%s4494 + $0x111] sm:$0xff] %vm4687, %v4638
          %4712 = vst.msk [vmem:[%s4494 + $0x121] sm:$0xff] %vm4687, %v4640
          %4713 = vst.msk [vmem:[%s4494 + $0x129] sm:$0xff] %vm4687, %v4642
          %4714 = vst.msk [vmem:[%s4494 + $0x139] sm:$0xff] %vm4687, %v4644
          %4715 = vst.msk [vmem:[%s4494 + $0x141] sm:$0xff] %vm4687, %v4646
          %4716 = vst.msk [vmem:[%s4494 + $0x151] sm:$0xff] %vm4687, %v4648
          %4717 = vst.msk [vmem:[%s4494 + $0x159] sm:$0xff] %vm4687, %v4650
          %4718 = vst.msk [vmem:[%s4494 + $0x169] sm:$0xff] %vm4687, %v4652
          %4719 = vst.msk [vmem:[%s4494 + $0x171] sm:$0xff] %vm4687, %v4654
          %v4720 = vld [vmem:[#allocation3] sm:$0xff]
          %v4721 = vld [vmem:[#allocation3 + $0x8] sm:$0xff]
          %v4722 = vld [vmem:[#allocation3 + $0x18] sm:$0xff]
          %v4723 = vld [vmem:[#allocation3 + $0x20] sm:$0xff]
          %v4724 = vld [vmem:[#allocation3 + $0x30] sm:$0xff]
          %v4725 = vld [vmem:[#allocation3 + $0x38] sm:$0xff]
          %v4726 = vld [vmem:[#allocation3 + $0x48] sm:$0xff]
          %v4727 = vld [vmem:[#allocation3 + $0x50] sm:$0xff]
          %v4728 = vld [vmem:[#allocation3 + $0x60] sm:$0xff]
          %v4729 = vld [vmem:[#allocation3 + $0x68] sm:$0xff]
          %v4730 = vld [vmem:[#allocation3 + $0x78] sm:$0xff]
          %v4731 = vld [vmem:[#allocation3 + $0x80] sm:$0xff]
          %v4732 = vld [vmem:[#allocation3 + $0x90] sm:$0xff]
          %v4733 = vld [vmem:[#allocation3 + $0x98] sm:$0xff]
          %v4734 = vld [vmem:[#allocation3 + $0xa8] sm:$0xff]
          %v4735 = vld [vmem:[#allocation3 + $0xb0] sm:$0xff]
          %v4736 = vld [vmem:[#allocation3 + $0xc0] sm:$0xff]
          %v4737 = vld [vmem:[#allocation3 + $0xc8] sm:$0xff]
          %v4738 = vld [vmem:[#allocation3 + $0xd8] sm:$0xff]
          %v4739 = vld [vmem:[#allocation3 + $0xe0] sm:$0xff]
          %v4740 = vld [vmem:[#allocation3 + $0xf0] sm:$0xff]
          %v4741 = vld [vmem:[#allocation3 + $0xf8] sm:$0xff]
          %v4742 = vld [vmem:[#allocation3 + $0x108] sm:$0xff]
          %v4743 = vld [vmem:[#allocation3 + $0x110] sm:$0xff]
          %v4744 = vld [vmem:[#allocation3 + $0x120] sm:$0xff]
          %v4745 = vld [vmem:[#allocation3 + $0x128] sm:$0xff]
          %v4746 = vld [vmem:[#allocation3 + $0x138] sm:$0xff]
          %v4747 = vld [vmem:[#allocation3 + $0x140] sm:$0xff]
          %v4748 = vld [vmem:[#allocation3 + $0x150] sm:$0xff]
          %v4749 = vld [vmem:[#allocation3 + $0x158] sm:$0xff]
          %v4750 = vld [vmem:[#allocation3 + $0x168] sm:$0xff]
          %v4751 = vld [vmem:[#allocation3 + $0x170] sm:$0xff]
          %4752 = vst.msk [vmem:[#allocation5] sm:$0xff] %vm425, %v4720
          %4753 = vst.msk [vmem:[#allocation5 + $0x28] sm:$0xff] %vm425, %v4721
          %4754 = vst.msk [vmem:[#allocation5 + $0x50] sm:$0xff] %vm425, %v4722
          %4755 = vst.msk [vmem:[#allocation5 + $0x78] sm:$0xff] %vm425, %v4723
          %4756 = vst.msk [vmem:[#allocation5 + $0xa0] sm:$0xff] %vm425, %v4724
          %4757 = vst.msk [vmem:[#allocation5 + $0xc8] sm:$0xff] %vm425, %v4725
          %4758 = vst.msk [vmem:[#allocation5 + $0xf0] sm:$0xff] %vm425, %v4726
          %4759 = vst.msk [vmem:[#allocation5 + $0x118] sm:$0xff] %vm425, %v4727
          %4760 = vst.msk [vmem:[#allocation5 + $0x140] sm:$0xff] %vm425, %v4728
          %4761 = vst.msk [vmem:[#allocation5 + $0x168] sm:$0xff] %vm425, %v4729
          %4762 = vst.msk [vmem:[#allocation5 + $0x190] sm:$0xff] %vm425, %v4730
          %4763 = vst.msk [vmem:[#allocation5 + $0x1b8] sm:$0xff] %vm425, %v4731
          %4764 = vst.msk [vmem:[#allocation5 + $0x1e0] sm:$0xff] %vm425, %v4732
          %4765 = vst.msk [vmem:[#allocation5 + $0x208] sm:$0xff] %vm425, %v4733
          %4766 = vst.msk [vmem:[#allocation5 + $0x230] sm:$0xff] %vm425, %v4734
          %4767 = vst.msk [vmem:[#allocation5 + $0x258] sm:$0xff] %vm425, %v4735
          %4768 = vst.msk [vmem:[#allocation5 + $0x280] sm:$0xff] %vm425, %v4736
          %4769 = vst.msk [vmem:[#allocation5 + $0x2a8] sm:$0xff] %vm425, %v4737
          %4770 = vst.msk [vmem:[#allocation5 + $0x2d0] sm:$0xff] %vm425, %v4738
          %4771 = vst.msk [vmem:[#allocation5 + $0x2f8] sm:$0xff] %vm425, %v4739
          %4772 = vst.msk [vmem:[#allocation5 + $0x320] sm:$0xff] %vm425, %v4740
          %4773 = vst.msk [vmem:[#allocation5 + $0x348] sm:$0xff] %vm425, %v4741
          %4774 = vst.msk [vmem:[#allocation5 + $0x370] sm:$0xff] %vm425, %v4742
          %4775 = vst.msk [vmem:[#allocation5 + $0x398] sm:$0xff] %vm425, %v4743
          %4776 = vst.msk [vmem:[#allocation5 + $0x3c0] sm:$0xff] %vm425, %v4744
          %4777 = vst.msk [vmem:[#allocation5 + $0x3e8] sm:$0xff] %vm425, %v4745
          %4778 = vst.msk [vmem:[#allocation5 + $0x410] sm:$0xff] %vm425, %v4746
          %4779 = vst.msk [vmem:[#allocation5 + $0x438] sm:$0xff] %vm425, %v4747
          %4780 = vst.msk [vmem:[#allocation5 + $0x460] sm:$0xff] %vm425, %v4748
          %4781 = vst.msk [vmem:[#allocation5 + $0x488] sm:$0xff] %vm425, %v4749
          %4782 = vst.msk [vmem:[#allocation5 + $0x4b0] sm:$0xff] %vm425, %v4750
          %4783 = vst.msk [vmem:[#allocation5 + $0x4d8] sm:$0xff] %vm425, %v4751
          %v4784 = vld [vmem:[#allocation3 + $0x1] sm:$0xff]
          %v4785 = vld [vmem:[#allocation3 + $0x9] sm:$0xff]
          %v4786 = vld [vmem:[#allocation3 + $0x19] sm:$0xff]
          %v4787 = vld [vmem:[#allocation3 + $0x21] sm:$0xff]
          %v4788 = vld [vmem:[#allocation3 + $0x31] sm:$0xff]
          %v4789 = vld [vmem:[#allocation3 + $0x39] sm:$0xff]
          %v4790 = vld [vmem:[#allocation3 + $0x49] sm:$0xff]
          %v4791 = vld [vmem:[#allocation3 + $0x51] sm:$0xff]
          %v4792 = vld [vmem:[#allocation3 + $0x61] sm:$0xff]
          %v4793 = vld [vmem:[#allocation3 + $0x69] sm:$0xff]
          %v4794 = vld [vmem:[#allocation3 + $0x79] sm:$0xff]
          %v4795 = vld [vmem:[#allocation3 + $0x81] sm:$0xff]
          %v4796 = vld [vmem:[#allocation3 + $0x91] sm:$0xff]
          %v4797 = vld [vmem:[#allocation3 + $0x99] sm:$0xff]
          %v4798 = vld [vmem:[#allocation3 + $0xa9] sm:$0xff]
          %v4799 = vld [vmem:[#allocation3 + $0xb1] sm:$0xff]
          %v4800 = vld [vmem:[#allocation3 + $0xc1] sm:$0xff]
          %v4801 = vld [vmem:[#allocation3 + $0xc9] sm:$0xff]
          %v4802 = vld [vmem:[#allocation3 + $0xd9] sm:$0xff]
          %v4803 = vld [vmem:[#allocation3 + $0xe1] sm:$0xff]
          %v4804 = vld [vmem:[#allocation3 + $0xf1] sm:$0xff]
          %v4805 = vld [vmem:[#allocation3 + $0xf9] sm:$0xff]
          %v4806 = vld [vmem:[#allocation3 + $0x109] sm:$0xff]
          %v4807 = vld [vmem:[#allocation3 + $0x111] sm:$0xff]
          %v4808 = vld [vmem:[#allocation3 + $0x121] sm:$0xff]
          %v4809 = vld [vmem:[#allocation3 + $0x129] sm:$0xff]
          %v4810 = vld [vmem:[#allocation3 + $0x139] sm:$0xff]
          %v4811 = vld [vmem:[#allocation3 + $0x141] sm:$0xff]
          %v4812 = vld [vmem:[#allocation3 + $0x151] sm:$0xff]
          %v4813 = vld [vmem:[#allocation3 + $0x159] sm:$0xff]
          %v4814 = vld [vmem:[#allocation3 + $0x169] sm:$0xff]
          %v4815 = vld [vmem:[#allocation3 + $0x171] sm:$0xff]
          %4848 = vrot.lane.b32.xlu0 %v4784, 64
          %v4849 = vpop.permute.xlu0 %4848
          %4850 = vrot.lane.b32.xlu0 %v4785, 64
          %v4851 = vpop.permute.xlu0 %4850
          %4852 = vrot.lane.b32.xlu0 %v4786, 64
          %v4853 = vpop.permute.xlu0 %4852
          %4854 = vrot.lane.b32.xlu0 %v4787, 64
          %v4855 = vpop.permute.xlu0 %4854
          %4856 = vrot.lane.b32.xlu0 %v4788, 64
          %v4857 = vpop.permute.xlu0 %4856
          %4858 = vrot.lane.b32.xlu0 %v4789, 64
          %v4859 = vpop.permute.xlu0 %4858
          %4860 = vrot.lane.b32.xlu0 %v4790, 64
          %v4861 = vpop.permute.xlu0 %4860
          %4862 = vrot.lane.b32.xlu0 %v4791, 64
          %v4863 = vpop.permute.xlu0 %4862
          %4864 = vrot.lane.b32.xlu0 %v4792, 64
          %v4865 = vpop.permute.xlu0 %4864
          %4866 = vrot.lane.b32.xlu0 %v4793, 64
          %v4867 = vpop.permute.xlu0 %4866
          %4868 = vrot.lane.b32.xlu0 %v4794, 64
          %v4869 = vpop.permute.xlu0 %4868
          %4870 = vrot.lane.b32.xlu0 %v4795, 64
          %v4871 = vpop.permute.xlu0 %4870
          %4872 = vrot.lane.b32.xlu0 %v4796, 64
          %v4873 = vpop.permute.xlu0 %4872
          %4874 = vrot.lane.b32.xlu0 %v4797, 64
          %v4875 = vpop.permute.xlu0 %4874
          %4876 = vrot.lane.b32.xlu0 %v4798, 64
          %v4877 = vpop.permute.xlu0 %4876
          %4878 = vrot.lane.b32.xlu0 %v4799, 64
          %v4879 = vpop.permute.xlu0 %4878
          %4880 = vrot.lane.b32.xlu0 %v4800, 64
          %v4881 = vpop.permute.xlu0 %4880
          %4882 = vrot.lane.b32.xlu0 %v4801, 64
          %v4883 = vpop.permute.xlu0 %4882
          %4884 = vrot.lane.b32.xlu0 %v4802, 64
          %v4885 = vpop.permute.xlu0 %4884
          %4886 = vrot.lane.b32.xlu0 %v4803, 64
          %v4887 = vpop.permute.xlu0 %4886
          %4888 = vrot.lane.b32.xlu0 %v4804, 64
          %v4889 = vpop.permute.xlu0 %4888
          %4890 = vrot.lane.b32.xlu0 %v4805, 64
          %v4891 = vpop.permute.xlu0 %4890
          %4892 = vrot.lane.b32.xlu0 %v4806, 64
          %v4893 = vpop.permute.xlu0 %4892
          %4894 = vrot.lane.b32.xlu0 %v4807, 64
          %v4895 = vpop.permute.xlu0 %4894
          %4896 = vrot.lane.b32.xlu0 %v4808, 64
          %v4897 = vpop.permute.xlu0 %4896
          %4898 = vrot.lane.b32.xlu0 %v4809, 64
          %v4899 = vpop.permute.xlu0 %4898
          %4900 = vrot.lane.b32.xlu0 %v4810, 64
          %v4901 = vpop.permute.xlu0 %4900
          %4902 = vrot.lane.b32.xlu0 %v4811, 64
          %v4903 = vpop.permute.xlu0 %4902
          %4904 = vrot.lane.b32.xlu0 %v4812, 64
          %v4905 = vpop.permute.xlu0 %4904
          %4906 = vrot.lane.b32.xlu0 %v4813, 64
          %v4907 = vpop.permute.xlu0 %4906
          %4908 = vrot.lane.b32.xlu0 %v4814, 64
          %v4909 = vpop.permute.xlu0 %4908
          %4910 = vrot.lane.b32.xlu0 %v4815, 64
          %v4911 = vpop.permute.xlu0 %4910
          %vm4944 = vcmask 1048064
          %4945 = vst.msk [vmem:[#allocation5] sm:$0xff] %vm4944, %v4849
          %4946 = vst.msk [vmem:[#allocation5 + $0x28] sm:$0xff] %vm4944, %v4851
          %4947 = vst.msk [vmem:[#allocation5 + $0x50] sm:$0xff] %vm4944, %v4853
          %4948 = vst.msk [vmem:[#allocation5 + $0x78] sm:$0xff] %vm4944, %v4855
          %4949 = vst.msk [vmem:[#allocation5 + $0xa0] sm:$0xff] %vm4944, %v4857
          %4950 = vst.msk [vmem:[#allocation5 + $0xc8] sm:$0xff] %vm4944, %v4859
          %4951 = vst.msk [vmem:[#allocation5 + $0xf0] sm:$0xff] %vm4944, %v4861
          %4952 = vst.msk [vmem:[#allocation5 + $0x118] sm:$0xff] %vm4944, %v4863
          %4953 = vst.msk [vmem:[#allocation5 + $0x140] sm:$0xff] %vm4944, %v4865
          %4954 = vst.msk [vmem:[#allocation5 + $0x168] sm:$0xff] %vm4944, %v4867
          %4955 = vst.msk [vmem:[#allocation5 + $0x190] sm:$0xff] %vm4944, %v4869
          %4956 = vst.msk [vmem:[#allocation5 + $0x1b8] sm:$0xff] %vm4944, %v4871
          %4957 = vst.msk [vmem:[#allocation5 + $0x1e0] sm:$0xff] %vm4944, %v4873
          %4958 = vst.msk [vmem:[#allocation5 + $0x208] sm:$0xff] %vm4944, %v4875
          %4959 = vst.msk [vmem:[#allocation5 + $0x230] sm:$0xff] %vm4944, %v4877
          %4960 = vst.msk [vmem:[#allocation5 + $0x258] sm:$0xff] %vm4944, %v4879
          %4961 = vst.msk [vmem:[#allocation5 + $0x280] sm:$0xff] %vm4944, %v4881
          %4962 = vst.msk [vmem:[#allocation5 + $0x2a8] sm:$0xff] %vm4944, %v4883
          %4963 = vst.msk [vmem:[#allocation5 + $0x2d0] sm:$0xff] %vm4944, %v4885
          %4964 = vst.msk [vmem:[#allocation5 + $0x2f8] sm:$0xff] %vm4944, %v4887
          %4965 = vst.msk [vmem:[#allocation5 + $0x320] sm:$0xff] %vm4944, %v4889
          %4966 = vst.msk [vmem:[#allocation5 + $0x348] sm:$0xff] %vm4944, %v4891
          %4967 = vst.msk [vmem:[#allocation5 + $0x370] sm:$0xff] %vm4944, %v4893
          %4968 = vst.msk [vmem:[#allocation5 + $0x398] sm:$0xff] %vm4944, %v4895
          %4969 = vst.msk [vmem:[#allocation5 + $0x3c0] sm:$0xff] %vm4944, %v4897
          %4970 = vst.msk [vmem:[#allocation5 + $0x3e8] sm:$0xff] %vm4944, %v4899
          %4971 = vst.msk [vmem:[#allocation5 + $0x410] sm:$0xff] %vm4944, %v4901
          %4972 = vst.msk [vmem:[#allocation5 + $0x438] sm:$0xff] %vm4944, %v4903
          %4973 = vst.msk [vmem:[#allocation5 + $0x460] sm:$0xff] %vm4944, %v4905
          %4974 = vst.msk [vmem:[#allocation5 + $0x488] sm:$0xff] %vm4944, %v4907
          %4975 = vst.msk [vmem:[#allocation5 + $0x4b0] sm:$0xff] %vm4944, %v4909
          %4976 = vst.msk [vmem:[#allocation5 + $0x4d8] sm:$0xff] %vm4944, %v4911
          %v4977 = vld [vmem:[#allocation3 + $0x2] sm:$0xff]
          %v4978 = vld [vmem:[#allocation3 + $0xa] sm:$0xff]
          %v4979 = vld [vmem:[#allocation3 + $0x1a] sm:$0xff]
          %v4980 = vld [vmem:[#allocation3 + $0x22] sm:$0xff]
          %v4981 = vld [vmem:[#allocation3 + $0x32] sm:$0xff]
          %v4982 = vld [vmem:[#allocation3 + $0x3a] sm:$0xff]
          %v4983 = vld [vmem:[#allocation3 + $0x4a] sm:$0xff]
          %v4984 = vld [vmem:[#allocation3 + $0x52] sm:$0xff]
          %v4985 = vld [vmem:[#allocation3 + $0x62] sm:$0xff]
          %v4986 = vld [vmem:[#allocation3 + $0x6a] sm:$0xff]
          %v4987 = vld [vmem:[#allocation3 + $0x7a] sm:$0xff]
          %v4988 = vld [vmem:[#allocation3 + $0x82] sm:$0xff]
          %v4989 = vld [vmem:[#allocation3 + $0x92] sm:$0xff]
          %v4990 = vld [vmem:[#allocation3 + $0x9a] sm:$0xff]
          %v4991 = vld [vmem:[#allocation3 + $0xaa] sm:$0xff]
          %v4992 = vld [vmem:[#allocation3 + $0xb2] sm:$0xff]
          %v4993 = vld [vmem:[#allocation3 + $0xc2] sm:$0xff]
          %v4994 = vld [vmem:[#allocation3 + $0xca] sm:$0xff]
          %v4995 = vld [vmem:[#allocation3 + $0xda] sm:$0xff]
          %v4996 = vld [vmem:[#allocation3 + $0xe2] sm:$0xff]
          %v4997 = vld [vmem:[#allocation3 + $0xf2] sm:$0xff]
          %v4998 = vld [vmem:[#allocation3 + $0xfa] sm:$0xff]
          %v4999 = vld [vmem:[#allocation3 + $0x10a] sm:$0xff]
          %v5000 = vld [vmem:[#allocation3 + $0x112] sm:$0xff]
          %v5001 = vld [vmem:[#allocation3 + $0x122] sm:$0xff]
          %v5002 = vld [vmem:[#allocation3 + $0x12a] sm:$0xff]
          %v5003 = vld [vmem:[#allocation3 + $0x13a] sm:$0xff]
          %v5004 = vld [vmem:[#allocation3 + $0x142] sm:$0xff]
          %v5005 = vld [vmem:[#allocation3 + $0x152] sm:$0xff]
          %v5006 = vld [vmem:[#allocation3 + $0x15a] sm:$0xff]
          %v5007 = vld [vmem:[#allocation3 + $0x16a] sm:$0xff]
          %v5008 = vld [vmem:[#allocation3 + $0x172] sm:$0xff]
          %5009 = vst.msk [vmem:[#allocation5 + $0x8] sm:$0xff] %vm425, %v4977
          %5010 = vst.msk [vmem:[#allocation5 + $0x30] sm:$0xff] %vm425, %v4978
          %5011 = vst.msk [vmem:[#allocation5 + $0x58] sm:$0xff] %vm425, %v4979
          %5012 = vst.msk [vmem:[#allocation5 + $0x80] sm:$0xff] %vm425, %v4980
          %5013 = vst.msk [vmem:[#allocation5 + $0xa8] sm:$0xff] %vm425, %v4981
          %5014 = vst.msk [vmem:[#allocation5 + $0xd0] sm:$0xff] %vm425, %v4982
          %5015 = vst.msk [vmem:[#allocation5 + $0xf8] sm:$0xff] %vm425, %v4983
          %5016 = vst.msk [vmem:[#allocation5 + $0x120] sm:$0xff] %vm425, %v4984
          %5017 = vst.msk [vmem:[#allocation5 + $0x148] sm:$0xff] %vm425, %v4985
          %5018 = vst.msk [vmem:[#allocation5 + $0x170] sm:$0xff] %vm425, %v4986
          %5019 = vst.msk [vmem:[#allocation5 + $0x198] sm:$0xff] %vm425, %v4987
          %5020 = vst.msk [vmem:[#allocation5 + $0x1c0] sm:$0xff] %vm425, %v4988
          %5021 = vst.msk [vmem:[#allocation5 + $0x1e8] sm:$0xff] %vm425, %v4989
          %5022 = vst.msk [vmem:[#allocation5 + $0x210] sm:$0xff] %vm425, %v4990
          %5023 = vst.msk [vmem:[#allocation5 + $0x238] sm:$0xff] %vm425, %v4991
          %5024 = vst.msk [vmem:[#allocation5 + $0x260] sm:$0xff] %vm425, %v4992
          %5025 = vst.msk [vmem:[#allocation5 + $0x288] sm:$0xff] %vm425, %v4993
          %5026 = vst.msk [vmem:[#allocation5 + $0x2b0] sm:$0xff] %vm425, %v4994
          %5027 = vst.msk [vmem:[#allocation5 + $0x2d8] sm:$0xff] %vm425, %v4995
          %5028 = vst.msk [vmem:[#allocation5 + $0x300] sm:$0xff] %vm425, %v4996
          %5029 = vst.msk [vmem:[#allocation5 + $0x328] sm:$0xff] %vm425, %v4997
          %5030 = vst.msk [vmem:[#allocation5 + $0x350] sm:$0xff] %vm425, %v4998
          %5031 = vst.msk [vmem:[#allocation5 + $0x378] sm:$0xff] %vm425, %v4999
          %5032 = vst.msk [vmem:[#allocation5 + $0x3a0] sm:$0xff] %vm425, %v5000
          %5033 = vst.msk [vmem:[#allocation5 + $0x3c8] sm:$0xff] %vm425, %v5001
          %5034 = vst.msk [vmem:[#allocation5 + $0x3f0] sm:$0xff] %vm425, %v5002
          %5035 = vst.msk [vmem:[#allocation5 + $0x418] sm:$0xff] %vm425, %v5003
          %5036 = vst.msk [vmem:[#allocation5 + $0x440] sm:$0xff] %vm425, %v5004
          %5037 = vst.msk [vmem:[#allocation5 + $0x468] sm:$0xff] %vm425, %v5005
          %5038 = vst.msk [vmem:[#allocation5 + $0x490] sm:$0xff] %vm425, %v5006
          %5039 = vst.msk [vmem:[#allocation5 + $0x4b8] sm:$0xff] %vm425, %v5007
          %5040 = vst.msk [vmem:[#allocation5 + $0x4e0] sm:$0xff] %vm425, %v5008
          %v5041 = vld [vmem:[%s4494] sm:$0xff]
          %v5042 = vld [vmem:[%s4494 + $0x8] sm:$0xff]
          %v5043 = vld [vmem:[%s4494 + $0x18] sm:$0xff]
          %v5044 = vld [vmem:[%s4494 + $0x20] sm:$0xff]
          %v5045 = vld [vmem:[%s4494 + $0x30] sm:$0xff]
          %v5046 = vld [vmem:[%s4494 + $0x38] sm:$0xff]
          %v5047 = vld [vmem:[%s4494 + $0x48] sm:$0xff]
          %v5048 = vld [vmem:[%s4494 + $0x50] sm:$0xff]
          %v5049 = vld [vmem:[%s4494 + $0x60] sm:$0xff]
          %v5050 = vld [vmem:[%s4494 + $0x68] sm:$0xff]
          %v5051 = vld [vmem:[%s4494 + $0x78] sm:$0xff]
          %v5052 = vld [vmem:[%s4494 + $0x80] sm:$0xff]
          %v5053 = vld [vmem:[%s4494 + $0x90] sm:$0xff]
          %v5054 = vld [vmem:[%s4494 + $0x98] sm:$0xff]
          %v5055 = vld [vmem:[%s4494 + $0xa8] sm:$0xff]
          %v5056 = vld [vmem:[%s4494 + $0xb0] sm:$0xff]
          %v5057 = vld [vmem:[%s4494 + $0xc0] sm:$0xff]
          %v5058 = vld [vmem:[%s4494 + $0xc8] sm:$0xff]
          %v5059 = vld [vmem:[%s4494 + $0xd8] sm:$0xff]
          %v5060 = vld [vmem:[%s4494 + $0xe0] sm:$0xff]
          %v5061 = vld [vmem:[%s4494 + $0xf0] sm:$0xff]
          %v5062 = vld [vmem:[%s4494 + $0xf8] sm:$0xff]
          %v5063 = vld [vmem:[%s4494 + $0x108] sm:$0xff]
          %v5064 = vld [vmem:[%s4494 + $0x110] sm:$0xff]
          %v5065 = vld [vmem:[%s4494 + $0x120] sm:$0xff]
          %v5066 = vld [vmem:[%s4494 + $0x128] sm:$0xff]
          %v5067 = vld [vmem:[%s4494 + $0x138] sm:$0xff]
          %v5068 = vld [vmem:[%s4494 + $0x140] sm:$0xff]
          %v5069 = vld [vmem:[%s4494 + $0x150] sm:$0xff]
          %v5070 = vld [vmem:[%s4494 + $0x158] sm:$0xff]
          %v5071 = vld [vmem:[%s4494 + $0x168] sm:$0xff]
          %v5072 = vld [vmem:[%s4494 + $0x170] sm:$0xff]
          %5105 = vrot.lane.b32.xlu0 %v5041, 64
          %v5106 = vpop.permute.xlu0 %5105
          %5107 = vrot.lane.b32.xlu0 %v5042, 64
          %v5108 = vpop.permute.xlu0 %5107
          %5109 = vrot.lane.b32.xlu0 %v5043, 64
          %v5110 = vpop.permute.xlu0 %5109
          %5111 = vrot.lane.b32.xlu0 %v5044, 64
          %v5112 = vpop.permute.xlu0 %5111
          %5113 = vrot.lane.b32.xlu0 %v5045, 64
          %v5114 = vpop.permute.xlu0 %5113
          %5115 = vrot.lane.b32.xlu0 %v5046, 64
          %v5116 = vpop.permute.xlu0 %5115
          %5117 = vrot.lane.b32.xlu0 %v5047, 64
          %v5118 = vpop.permute.xlu0 %5117
          %5119 = vrot.lane.b32.xlu0 %v5048, 64
          %v5120 = vpop.permute.xlu0 %5119
          %5121 = vrot.lane.b32.xlu0 %v5049, 64
          %v5122 = vpop.permute.xlu0 %5121
          %5123 = vrot.lane.b32.xlu0 %v5050, 64
          %v5124 = vpop.permute.xlu0 %5123
          %5125 = vrot.lane.b32.xlu0 %v5051, 64
          %v5126 = vpop.permute.xlu0 %5125
          %5127 = vrot.lane.b32.xlu0 %v5052, 64
          %v5128 = vpop.permute.xlu0 %5127
          %5129 = vrot.lane.b32.xlu0 %v5053, 64
          %v5130 = vpop.permute.xlu0 %5129
          %5131 = vrot.lane.b32.xlu0 %v5054, 64
          %v5132 = vpop.permute.xlu0 %5131
          %5133 = vrot.lane.b32.xlu0 %v5055, 64
          %v5134 = vpop.permute.xlu0 %5133
          %5135 = vrot.lane.b32.xlu0 %v5056, 64
          %v5136 = vpop.permute.xlu0 %5135
          %5137 = vrot.lane.b32.xlu0 %v5057, 64
          %v5138 = vpop.permute.xlu0 %5137
          %5139 = vrot.lane.b32.xlu0 %v5058, 64
          %v5140 = vpop.permute.xlu0 %5139
          %5141 = vrot.lane.b32.xlu0 %v5059, 64
          %v5142 = vpop.permute.xlu0 %5141
          %5143 = vrot.lane.b32.xlu0 %v5060, 64
          %v5144 = vpop.permute.xlu0 %5143
          %5145 = vrot.lane.b32.xlu0 %v5061, 64
          %v5146 = vpop.permute.xlu0 %5145
          %5147 = vrot.lane.b32.xlu0 %v5062, 64
          %v5148 = vpop.permute.xlu0 %5147
          %5149 = vrot.lane.b32.xlu0 %v5063, 64
          %v5150 = vpop.permute.xlu0 %5149
          %5151 = vrot.lane.b32.xlu0 %v5064, 64
          %v5152 = vpop.permute.xlu0 %5151
          %5153 = vrot.lane.b32.xlu0 %v5065, 64
          %v5154 = vpop.permute.xlu0 %5153
          %5155 = vrot.lane.b32.xlu0 %v5066, 64
          %v5156 = vpop.permute.xlu0 %5155
          %5157 = vrot.lane.b32.xlu0 %v5067, 64
          %v5158 = vpop.permute.xlu0 %5157
          %5159 = vrot.lane.b32.xlu0 %v5068, 64
          %v5160 = vpop.permute.xlu0 %5159
          %5161 = vrot.lane.b32.xlu0 %v5069, 64
          %v5162 = vpop.permute.xlu0 %5161
          %5163 = vrot.lane.b32.xlu0 %v5070, 64
          %v5164 = vpop.permute.xlu0 %5163
          %5165 = vrot.lane.b32.xlu0 %v5071, 64
          %v5166 = vpop.permute.xlu0 %5165
          %5167 = vrot.lane.b32.xlu0 %v5072, 64
          %v5168 = vpop.permute.xlu0 %5167
          %5201 = vst.msk [vmem:[#allocation5 + $0x8] sm:$0xff] %vm4944, %v5106
          %5202 = vst.msk [vmem:[#allocation5 + $0x30] sm:$0xff] %vm4944, %v5108
          %5203 = vst.msk [vmem:[#allocation5 + $0x58] sm:$0xff] %vm4944, %v5110
          %5204 = vst.msk [vmem:[#allocation5 + $0x80] sm:$0xff] %vm4944, %v5112
          %5205 = vst.msk [vmem:[#allocation5 + $0xa8] sm:$0xff] %vm4944, %v5114
          %5206 = vst.msk [vmem:[#allocation5 + $0xd0] sm:$0xff] %vm4944, %v5116
          %5207 = vst.msk [vmem:[#allocation5 + $0xf8] sm:$0xff] %vm4944, %v5118
          %5208 = vst.msk [vmem:[#allocation5 + $0x120] sm:$0xff] %vm4944, %v5120
          %5209 = vst.msk [vmem:[#allocation5 + $0x148] sm:$0xff] %vm4944, %v5122
          %5210 = vst.msk [vmem:[#allocation5 + $0x170] sm:$0xff] %vm4944, %v5124
          %5211 = vst.msk [vmem:[#allocation5 + $0x198] sm:$0xff] %vm4944, %v5126
          %5212 = vst.msk [vmem:[#allocation5 + $0x1c0] sm:$0xff] %vm4944, %v5128
          %5213 = vst.msk [vmem:[#allocation5 + $0x1e8] sm:$0xff] %vm4944, %v5130
          %5214 = vst.msk [vmem:[#allocation5 + $0x210] sm:$0xff] %vm4944, %v5132
          %5215 = vst.msk [vmem:[#allocation5 + $0x238] sm:$0xff] %vm4944, %v5134
          %5216 = vst.msk [vmem:[#allocation5 + $0x260] sm:$0xff] %vm4944, %v5136
          %5217 = vst.msk [vmem:[#allocation5 + $0x288] sm:$0xff] %vm4944, %v5138
          %5218 = vst.msk [vmem:[#allocation5 + $0x2b0] sm:$0xff] %vm4944, %v5140
          %5219 = vst.msk [vmem:[#allocation5 + $0x2d8] sm:$0xff] %vm4944, %v5142
          %5220 = vst.msk [vmem:[#allocation5 + $0x300] sm:$0xff] %vm4944, %v5144
          %5221 = vst.msk [vmem:[#allocation5 + $0x328] sm:$0xff] %vm4944, %v5146
          %5222 = vst.msk [vmem:[#allocation5 + $0x350] sm:$0xff] %vm4944, %v5148
          %5223 = vst.msk [vmem:[#allocation5 + $0x378] sm:$0xff] %vm4944, %v5150
          %5224 = vst.msk [vmem:[#allocation5 + $0x3a0] sm:$0xff] %vm4944, %v5152
          %5225 = vst.msk [vmem:[#allocation5 + $0x3c8] sm:$0xff] %vm4944, %v5154
          %5226 = vst.msk [vmem:[#allocation5 + $0x3f0] sm:$0xff] %vm4944, %v5156
          %5227 = vst.msk [vmem:[#allocation5 + $0x418] sm:$0xff] %vm4944, %v5158
          %5228 = vst.msk [vmem:[#allocation5 + $0x440] sm:$0xff] %vm4944, %v5160
          %5229 = vst.msk [vmem:[#allocation5 + $0x468] sm:$0xff] %vm4944, %v5162
          %5230 = vst.msk [vmem:[#allocation5 + $0x490] sm:$0xff] %vm4944, %v5164
          %5231 = vst.msk [vmem:[#allocation5 + $0x4b8] sm:$0xff] %vm4944, %v5166
          %5232 = vst.msk [vmem:[#allocation5 + $0x4e0] sm:$0xff] %vm4944, %v5168
          %v5233 = vld [vmem:[%s4494 + $0x1] sm:$0xff]
          %v5234 = vld [vmem:[%s4494 + $0x9] sm:$0xff]
          %v5235 = vld [vmem:[%s4494 + $0x19] sm:$0xff]
          %v5236 = vld [vmem:[%s4494 + $0x21] sm:$0xff]
          %v5237 = vld [vmem:[%s4494 + $0x31] sm:$0xff]
          %v5238 = vld [vmem:[%s4494 + $0x39] sm:$0xff]
          %v5239 = vld [vmem:[%s4494 + $0x49] sm:$0xff]
          %v5240 = vld [vmem:[%s4494 + $0x51] sm:$0xff]
          %v5241 = vld [vmem:[%s4494 + $0x61] sm:$0xff]
          %v5242 = vld [vmem:[%s4494 + $0x69] sm:$0xff]
          %v5243 = vld [vmem:[%s4494 + $0x79] sm:$0xff]
          %v5244 = vld [vmem:[%s4494 + $0x81] sm:$0xff]
          %v5245 = vld [vmem:[%s4494 + $0x91] sm:$0xff]
          %v5246 = vld [vmem:[%s4494 + $0x99] sm:$0xff]
          %v5247 = vld [vmem:[%s4494 + $0xa9] sm:$0xff]
          %v5248 = vld [vmem:[%s4494 + $0xb1] sm:$0xff]
          %v5249 = vld [vmem:[%s4494 + $0xc1] sm:$0xff]
          %v5250 = vld [vmem:[%s4494 + $0xc9] sm:$0xff]
          %v5251 = vld [vmem:[%s4494 + $0xd9] sm:$0xff]
          %v5252 = vld [vmem:[%s4494 + $0xe1] sm:$0xff]
          %v5253 = vld [vmem:[%s4494 + $0xf1] sm:$0xff]
          %v5254 = vld [vmem:[%s4494 + $0xf9] sm:$0xff]
          %v5255 = vld [vmem:[%s4494 + $0x109] sm:$0xff]
          %v5256 = vld [vmem:[%s4494 + $0x111] sm:$0xff]
          %v5257 = vld [vmem:[%s4494 + $0x121] sm:$0xff]
          %v5258 = vld [vmem:[%s4494 + $0x129] sm:$0xff]
          %v5259 = vld [vmem:[%s4494 + $0x139] sm:$0xff]
          %v5260 = vld [vmem:[%s4494 + $0x141] sm:$0xff]
          %v5261 = vld [vmem:[%s4494 + $0x151] sm:$0xff]
          %v5262 = vld [vmem:[%s4494 + $0x159] sm:$0xff]
          %v5263 = vld [vmem:[%s4494 + $0x169] sm:$0xff]
          %v5264 = vld [vmem:[%s4494 + $0x171] sm:$0xff]
          %5265 = vst.msk [vmem:[#allocation5 + $0x10] sm:$0xff] %vm425, %v5233
          %5266 = vst.msk [vmem:[#allocation5 + $0x38] sm:$0xff] %vm425, %v5234
          %5267 = vst.msk [vmem:[#allocation5 + $0x60] sm:$0xff] %vm425, %v5235
          %5268 = vst.msk [vmem:[#allocation5 + $0x88] sm:$0xff] %vm425, %v5236
          %5269 = vst.msk [vmem:[#allocation5 + $0xb0] sm:$0xff] %vm425, %v5237
          %5270 = vst.msk [vmem:[#allocation5 + $0xd8] sm:$0xff] %vm425, %v5238
          %5271 = vst.msk [vmem:[#allocation5 + $0x100] sm:$0xff] %vm425, %v5239
          %5272 = vst.msk [vmem:[#allocation5 + $0x128] sm:$0xff] %vm425, %v5240
          %5273 = vst.msk [vmem:[#allocation5 + $0x150] sm:$0xff] %vm425, %v5241
          %5274 = vst.msk [vmem:[#allocation5 + $0x178] sm:$0xff] %vm425, %v5242
          %5275 = vst.msk [vmem:[#allocation5 + $0x1a0] sm:$0xff] %vm425, %v5243
          %5276 = vst.msk [vmem:[#allocation5 + $0x1c8] sm:$0xff] %vm425, %v5244
          %5277 = vst.msk [vmem:[#allocation5 + $0x1f0] sm:$0xff] %vm425, %v5245
          %5278 = vst.msk [vmem:[#allocation5 + $0x218] sm:$0xff] %vm425, %v5246
          %5279 = vst.msk [vmem:[#allocation5 + $0x240] sm:$0xff] %vm425, %v5247
          %5280 = vst.msk [vmem:[#allocation5 + $0x268] sm:$0xff] %vm425, %v5248
          %5281 = vst.msk [vmem:[#allocation5 + $0x290] sm:$0xff] %vm425, %v5249
          %5282 = vst.msk [vmem:[#allocation5 + $0x2b8] sm:$0xff] %vm425, %v5250
          %5283 = vst.msk [vmem:[#allocation5 + $0x2e0] sm:$0xff] %vm425, %v5251
          %5284 = vst.msk [vmem:[#allocation5 + $0x308] sm:$0xff] %vm425, %v5252
          %5285 = vst.msk [vmem:[#allocation5 + $0x330] sm:$0xff] %vm425, %v5253
          %5286 = vst.msk [vmem:[#allocation5 + $0x358] sm:$0xff] %vm425, %v5254
          %5287 = vst.msk [vmem:[#allocation5 + $0x380] sm:$0xff] %vm425, %v5255
          %5288 = vst.msk [vmem:[#allocation5 + $0x3a8] sm:$0xff] %vm425, %v5256
          %5289 = vst.msk [vmem:[#allocation5 + $0x3d0] sm:$0xff] %vm425, %v5257
          %5290 = vst.msk [vmem:[#allocation5 + $0x3f8] sm:$0xff] %vm425, %v5258
          %5291 = vst.msk [vmem:[#allocation5 + $0x420] sm:$0xff] %vm425, %v5259
          %5292 = vst.msk [vmem:[#allocation5 + $0x448] sm:$0xff] %vm425, %v5260
          %5293 = vst.msk [vmem:[#allocation5 + $0x470] sm:$0xff] %vm425, %v5261
          %5294 = vst.msk [vmem:[#allocation5 + $0x498] sm:$0xff] %vm425, %v5262
          %5295 = vst.msk [vmem:[#allocation5 + $0x4c0] sm:$0xff] %vm425, %v5263
          %5296 = vst.msk [vmem:[#allocation5 + $0x4e8] sm:$0xff] %vm425, %v5264
          %v5297 = vld [vmem:[%s4494 + $0x2] sm:$0xff]
          %v5298 = vld [vmem:[%s4494 + $0xa] sm:$0xff]
          %v5299 = vld [vmem:[%s4494 + $0x1a] sm:$0xff]
          %v5300 = vld [vmem:[%s4494 + $0x22] sm:$0xff]
          %v5301 = vld [vmem:[%s4494 + $0x32] sm:$0xff]
          %v5302 = vld [vmem:[%s4494 + $0x3a] sm:$0xff]
          %v5303 = vld [vmem:[%s4494 + $0x4a] sm:$0xff]
          %v5304 = vld [vmem:[%s4494 + $0x52] sm:$0xff]
          %v5305 = vld [vmem:[%s4494 + $0x62] sm:$0xff]
          %v5306 = vld [vmem:[%s4494 + $0x6a] sm:$0xff]
          %v5307 = vld [vmem:[%s4494 + $0x7a] sm:$0xff]
          %v5308 = vld [vmem:[%s4494 + $0x82] sm:$0xff]
          %v5309 = vld [vmem:[%s4494 + $0x92] sm:$0xff]
          %v5310 = vld [vmem:[%s4494 + $0x9a] sm:$0xff]
          %v5311 = vld [vmem:[%s4494 + $0xaa] sm:$0xff]
          %v5312 = vld [vmem:[%s4494 + $0xb2] sm:$0xff]
          %v5313 = vld [vmem:[%s4494 + $0xc2] sm:$0xff]
          %v5314 = vld [vmem:[%s4494 + $0xca] sm:$0xff]
          %v5315 = vld [vmem:[%s4494 + $0xda] sm:$0xff]
          %v5316 = vld [vmem:[%s4494 + $0xe2] sm:$0xff]
          %v5317 = vld [vmem:[%s4494 + $0xf2] sm:$0xff]
          %v5318 = vld [vmem:[%s4494 + $0xfa] sm:$0xff]
          %v5319 = vld [vmem:[%s4494 + $0x10a] sm:$0xff]
          %v5320 = vld [vmem:[%s4494 + $0x112] sm:$0xff]
          %v5321 = vld [vmem:[%s4494 + $0x122] sm:$0xff]
          %v5322 = vld [vmem:[%s4494 + $0x12a] sm:$0xff]
          %v5323 = vld [vmem:[%s4494 + $0x13a] sm:$0xff]
          %v5324 = vld [vmem:[%s4494 + $0x142] sm:$0xff]
          %v5325 = vld [vmem:[%s4494 + $0x152] sm:$0xff]
          %v5326 = vld [vmem:[%s4494 + $0x15a] sm:$0xff]
          %v5327 = vld [vmem:[%s4494 + $0x16a] sm:$0xff]
          %v5328 = vld [vmem:[%s4494 + $0x172] sm:$0xff]
          %5361 = vrot.lane.b32.xlu0 %v5297, 64
          %v5362 = vpop.permute.xlu0 %5361
          %5363 = vrot.lane.b32.xlu0 %v5298, 64
          %v5364 = vpop.permute.xlu0 %5363
          %5365 = vrot.lane.b32.xlu0 %v5299, 64
          %v5366 = vpop.permute.xlu0 %5365
          %5367 = vrot.lane.b32.xlu0 %v5300, 64
          %v5368 = vpop.permute.xlu0 %5367
          %5369 = vrot.lane.b32.xlu0 %v5301, 64
          %v5370 = vpop.permute.xlu0 %5369
          %5371 = vrot.lane.b32.xlu0 %v5302, 64
          %v5372 = vpop.permute.xlu0 %5371
          %5373 = vrot.lane.b32.xlu0 %v5303, 64
          %v5374 = vpop.permute.xlu0 %5373
          %5375 = vrot.lane.b32.xlu0 %v5304, 64
          %v5376 = vpop.permute.xlu0 %5375
          %5377 = vrot.lane.b32.xlu0 %v5305, 64
          %v5378 = vpop.permute.xlu0 %5377
          %5379 = vrot.lane.b32.xlu0 %v5306, 64
          %v5380 = vpop.permute.xlu0 %5379
          %5381 = vrot.lane.b32.xlu0 %v5307, 64
          %v5382 = vpop.permute.xlu0 %5381
          %5383 = vrot.lane.b32.xlu0 %v5308, 64
          %v5384 = vpop.permute.xlu0 %5383
          %5385 = vrot.lane.b32.xlu0 %v5309, 64
          %v5386 = vpop.permute.xlu0 %5385
          %5387 = vrot.lane.b32.xlu0 %v5310, 64
          %v5388 = vpop.permute.xlu0 %5387
          %5389 = vrot.lane.b32.xlu0 %v5311, 64
          %v5390 = vpop.permute.xlu0 %5389
          %5391 = vrot.lane.b32.xlu0 %v5312, 64
          %v5392 = vpop.permute.xlu0 %5391
          %5393 = vrot.lane.b32.xlu0 %v5313, 64
          %v5394 = vpop.permute.xlu0 %5393
          %5395 = vrot.lane.b32.xlu0 %v5314, 64
          %v5396 = vpop.permute.xlu0 %5395
          %5397 = vrot.lane.b32.xlu0 %v5315, 64
          %v5398 = vpop.permute.xlu0 %5397
          %5399 = vrot.lane.b32.xlu0 %v5316, 64
          %v5400 = vpop.permute.xlu0 %5399
          %5401 = vrot.lane.b32.xlu0 %v5317, 64
          %v5402 = vpop.permute.xlu0 %5401
          %5403 = vrot.lane.b32.xlu0 %v5318, 64
          %v5404 = vpop.permute.xlu0 %5403
          %5405 = vrot.lane.b32.xlu0 %v5319, 64
          %v5406 = vpop.permute.xlu0 %5405
          %5407 = vrot.lane.b32.xlu0 %v5320, 64
          %v5408 = vpop.permute.xlu0 %5407
          %5409 = vrot.lane.b32.xlu0 %v5321, 64
          %v5410 = vpop.permute.xlu0 %5409
          %5411 = vrot.lane.b32.xlu0 %v5322, 64
          %v5412 = vpop.permute.xlu0 %5411
          %5413 = vrot.lane.b32.xlu0 %v5323, 64
          %v5414 = vpop.permute.xlu0 %5413
          %5415 = vrot.lane.b32.xlu0 %v5324, 64
          %v5416 = vpop.permute.xlu0 %5415
          %5417 = vrot.lane.b32.xlu0 %v5325, 64
          %v5418 = vpop.permute.xlu0 %5417
          %5419 = vrot.lane.b32.xlu0 %v5326, 64
          %v5420 = vpop.permute.xlu0 %5419
          %5421 = vrot.lane.b32.xlu0 %v5327, 64
          %v5422 = vpop.permute.xlu0 %5421
          %5423 = vrot.lane.b32.xlu0 %v5328, 64
          %v5424 = vpop.permute.xlu0 %5423
          %5457 = vst.msk [vmem:[#allocation5 + $0x10] sm:$0xff] %vm4944, %v5362
          %5458 = vst.msk [vmem:[#allocation5 + $0x38] sm:$0xff] %vm4944, %v5364
          %5459 = vst.msk [vmem:[#allocation5 + $0x60] sm:$0xff] %vm4944, %v5366
          %5460 = vst.msk [vmem:[#allocation5 + $0x88] sm:$0xff] %vm4944, %v5368
          %5461 = vst.msk [vmem:[#allocation5 + $0xb0] sm:$0xff] %vm4944, %v5370
          %5462 = vst.msk [vmem:[#allocation5 + $0xd8] sm:$0xff] %vm4944, %v5372
          %5463 = vst.msk [vmem:[#allocation5 + $0x100] sm:$0xff] %vm4944, %v5374
          %5464 = vst.msk [vmem:[#allocation5 + $0x128] sm:$0xff] %vm4944, %v5376
          %5465 = vst.msk [vmem:[#allocation5 + $0x150] sm:$0xff] %vm4944, %v5378
          %5466 = vst.msk [vmem:[#allocation5 + $0x178] sm:$0xff] %vm4944, %v5380
          %5467 = vst.msk [vmem:[#allocation5 + $0x1a0] sm:$0xff] %vm4944, %v5382
          %5468 = vst.msk [vmem:[#allocation5 + $0x1c8] sm:$0xff] %vm4944, %v5384
          %5469 = vst.msk [vmem:[#allocation5 + $0x1f0] sm:$0xff] %vm4944, %v5386
          %5470 = vst.msk [vmem:[#allocation5 + $0x218] sm:$0xff] %vm4944, %v5388
          %5471 = vst.msk [vmem:[#allocation5 + $0x240] sm:$0xff] %vm4944, %v5390
          %5472 = vst.msk [vmem:[#allocation5 + $0x268] sm:$0xff] %vm4944, %v5392
          %5473 = vst.msk [vmem:[#allocation5 + $0x290] sm:$0xff] %vm4944, %v5394
          %5474 = vst.msk [vmem:[#allocation5 + $0x2b8] sm:$0xff] %vm4944, %v5396
          %5475 = vst.msk [vmem:[#allocation5 + $0x2e0] sm:$0xff] %vm4944, %v5398
          %5476 = vst.msk [vmem:[#allocation5 + $0x308] sm:$0xff] %vm4944, %v5400
          %5477 = vst.msk [vmem:[#allocation5 + $0x330] sm:$0xff] %vm4944, %v5402
          %5478 = vst.msk [vmem:[#allocation5 + $0x358] sm:$0xff] %vm4944, %v5404
          %5479 = vst.msk [vmem:[#allocation5 + $0x380] sm:$0xff] %vm4944, %v5406
          %5480 = vst.msk [vmem:[#allocation5 + $0x3a8] sm:$0xff] %vm4944, %v5408
          %5481 = vst.msk [vmem:[#allocation5 + $0x3d0] sm:$0xff] %vm4944, %v5410
          %5482 = vst.msk [vmem:[#allocation5 + $0x3f8] sm:$0xff] %vm4944, %v5412
          %5483 = vst.msk [vmem:[#allocation5 + $0x420] sm:$0xff] %vm4944, %v5414
          %5484 = vst.msk [vmem:[#allocation5 + $0x448] sm:$0xff] %vm4944, %v5416
          %5485 = vst.msk [vmem:[#allocation5 + $0x470] sm:$0xff] %vm4944, %v5418
          %5486 = vst.msk [vmem:[#allocation5 + $0x498] sm:$0xff] %vm4944, %v5420
          %5487 = vst.msk [vmem:[#allocation5 + $0x4c0] sm:$0xff] %vm4944, %v5422
          %5488 = vst.msk [vmem:[#allocation5 + $0x4e8] sm:$0xff] %vm4944, %v5424
          %s5489 = scalar_lea.vmem [#allocation3], 48
          %v5490 = vld [vmem:[%s5489] sm:$0xff]
          %v5491 = vld [vmem:[%s5489 + $0x8] sm:$0xff]
          %v5492 = vld [vmem:[%s5489 + $0x18] sm:$0xff]
          %v5493 = vld [vmem:[%s5489 + $0x20] sm:$0xff]
          %v5494 = vld [vmem:[%s5489 + $0x30] sm:$0xff]
          %v5495 = vld [vmem:[%s5489 + $0x38] sm:$0xff]
          %v5496 = vld [vmem:[%s5489 + $0x48] sm:$0xff]
          %v5497 = vld [vmem:[%s5489 + $0x50] sm:$0xff]
          %v5498 = vld [vmem:[%s5489 + $0x60] sm:$0xff]
          %v5499 = vld [vmem:[%s5489 + $0x68] sm:$0xff]
          %v5500 = vld [vmem:[%s5489 + $0x78] sm:$0xff]
          %v5501 = vld [vmem:[%s5489 + $0x80] sm:$0xff]
          %v5502 = vld [vmem:[%s5489 + $0x90] sm:$0xff]
          %v5503 = vld [vmem:[%s5489 + $0x98] sm:$0xff]
          %v5504 = vld [vmem:[%s5489 + $0xa8] sm:$0xff]
          %v5505 = vld [vmem:[%s5489 + $0xb0] sm:$0xff]
          %v5506 = vld [vmem:[%s5489 + $0xc0] sm:$0xff]
          %v5507 = vld [vmem:[%s5489 + $0xc8] sm:$0xff]
          %v5508 = vld [vmem:[%s5489 + $0xd8] sm:$0xff]
          %v5509 = vld [vmem:[%s5489 + $0xe0] sm:$0xff]
          %v5510 = vld [vmem:[%s5489 + $0xf0] sm:$0xff]
          %v5511 = vld [vmem:[%s5489 + $0xf8] sm:$0xff]
          %v5512 = vld [vmem:[%s5489 + $0x108] sm:$0xff]
          %v5513 = vld [vmem:[%s5489 + $0x110] sm:$0xff]
          %v5514 = vld [vmem:[%s5489 + $0x120] sm:$0xff]
          %v5515 = vld [vmem:[%s5489 + $0x128] sm:$0xff]
          %v5516 = vld [vmem:[%s5489 + $0x138] sm:$0xff]
          %v5517 = vld [vmem:[%s5489 + $0x140] sm:$0xff]
          %v5518 = vld [vmem:[%s5489 + $0x150] sm:$0xff]
          %v5519 = vld [vmem:[%s5489 + $0x158] sm:$0xff]
          %v5520 = vld [vmem:[%s5489 + $0x168] sm:$0xff]
          %v5521 = vld [vmem:[%s5489 + $0x170] sm:$0xff]
          %5522 = vst.msk [vmem:[#allocation5 + $0x18] sm:$0xff] %vm425, %v5490
          %5523 = vst.msk [vmem:[#allocation5 + $0x40] sm:$0xff] %vm425, %v5491
          %5524 = vst.msk [vmem:[#allocation5 + $0x68] sm:$0xff] %vm425, %v5492
          %5525 = vst.msk [vmem:[#allocation5 + $0x90] sm:$0xff] %vm425, %v5493
          %5526 = vst.msk [vmem:[#allocation5 + $0xb8] sm:$0xff] %vm425, %v5494
          %5527 = vst.msk [vmem:[#allocation5 + $0xe0] sm:$0xff] %vm425, %v5495
          %5528 = vst.msk [vmem:[#allocation5 + $0x108] sm:$0xff] %vm425, %v5496
          %5529 = vst.msk [vmem:[#allocation5 + $0x130] sm:$0xff] %vm425, %v5497
          %5530 = vst.msk [vmem:[#allocation5 + $0x158] sm:$0xff] %vm425, %v5498
          %5531 = vst.msk [vmem:[#allocation5 + $0x180] sm:$0xff] %vm425, %v5499
          %5532 = vst.msk [vmem:[#allocation5 + $0x1a8] sm:$0xff] %vm425, %v5500
          %5533 = vst.msk [vmem:[#allocation5 + $0x1d0] sm:$0xff] %vm425, %v5501
          %5534 = vst.msk [vmem:[#allocation5 + $0x1f8] sm:$0xff] %vm425, %v5502
          %5535 = vst.msk [vmem:[#allocation5 + $0x220] sm:$0xff] %vm425, %v5503
          %5536 = vst.msk [vmem:[#allocation5 + $0x248] sm:$0xff] %vm425, %v5504
          %5537 = vst.msk [vmem:[#allocation5 + $0x270] sm:$0xff] %vm425, %v5505
          %5538 = vst.msk [vmem:[#allocation5 + $0x298] sm:$0xff] %vm425, %v5506
          %5539 = vst.msk [vmem:[#allocation5 + $0x2c0] sm:$0xff] %vm425, %v5507
          %5540 = vst.msk [vmem:[#allocation5 + $0x2e8] sm:$0xff] %vm425, %v5508
          %5541 = vst.msk [vmem:[#allocation5 + $0x310] sm:$0xff] %vm425, %v5509
          %5542 = vst.msk [vmem:[#allocation5 + $0x338] sm:$0xff] %vm425, %v5510
          %5543 = vst.msk [vmem:[#allocation5 + $0x360] sm:$0xff] %vm425, %v5511
          %5544 = vst.msk [vmem:[#allocation5 + $0x388] sm:$0xff] %vm425, %v5512
          %5545 = vst.msk [vmem:[#allocation5 + $0x3b0] sm:$0xff] %vm425, %v5513
          %5546 = vst.msk [vmem:[#allocation5 + $0x3d8] sm:$0xff] %vm425, %v5514
          %5547 = vst.msk [vmem:[#allocation5 + $0x400] sm:$0xff] %vm425, %v5515
          %5548 = vst.msk [vmem:[#allocation5 + $0x428] sm:$0xff] %vm425, %v5516
          %5549 = vst.msk [vmem:[#allocation5 + $0x450] sm:$0xff] %vm425, %v5517
          %5550 = vst.msk [vmem:[#allocation5 + $0x478] sm:$0xff] %vm425, %v5518
          %5551 = vst.msk [vmem:[#allocation5 + $0x4a0] sm:$0xff] %vm425, %v5519
          %5552 = vst.msk [vmem:[#allocation5 + $0x4c8] sm:$0xff] %vm425, %v5520
          %5553 = vst.msk [vmem:[#allocation5 + $0x4f0] sm:$0xff] %vm425, %v5521
          %v5554 = vld [vmem:[%s5489 + $0x1] sm:$0xff]
          %v5555 = vld [vmem:[%s5489 + $0x9] sm:$0xff]
          %v5556 = vld [vmem:[%s5489 + $0x19] sm:$0xff]
          %v5557 = vld [vmem:[%s5489 + $0x21] sm:$0xff]
          %v5558 = vld [vmem:[%s5489 + $0x31] sm:$0xff]
          %v5559 = vld [vmem:[%s5489 + $0x39] sm:$0xff]
          %v5560 = vld [vmem:[%s5489 + $0x49] sm:$0xff]
          %v5561 = vld [vmem:[%s5489 + $0x51] sm:$0xff]
          %v5562 = vld [vmem:[%s5489 + $0x61] sm:$0xff]
          %v5563 = vld [vmem:[%s5489 + $0x69] sm:$0xff]
          %v5564 = vld [vmem:[%s5489 + $0x79] sm:$0xff]
          %v5565 = vld [vmem:[%s5489 + $0x81] sm:$0xff]
          %v5566 = vld [vmem:[%s5489 + $0x91] sm:$0xff]
          %v5567 = vld [vmem:[%s5489 + $0x99] sm:$0xff]
          %v5568 = vld [vmem:[%s5489 + $0xa9] sm:$0xff]
          %v5569 = vld [vmem:[%s5489 + $0xb1] sm:$0xff]
          %v5570 = vld [vmem:[%s5489 + $0xc1] sm:$0xff]
          %v5571 = vld [vmem:[%s5489 + $0xc9] sm:$0xff]
          %v5572 = vld [vmem:[%s5489 + $0xd9] sm:$0xff]
          %v5573 = vld [vmem:[%s5489 + $0xe1] sm:$0xff]
          %v5574 = vld [vmem:[%s5489 + $0xf1] sm:$0xff]
          %v5575 = vld [vmem:[%s5489 + $0xf9] sm:$0xff]
          %v5576 = vld [vmem:[%s5489 + $0x109] sm:$0xff]
          %v5577 = vld [vmem:[%s5489 + $0x111] sm:$0xff]
          %v5578 = vld [vmem:[%s5489 + $0x121] sm:$0xff]
          %v5579 = vld [vmem:[%s5489 + $0x129] sm:$0xff]
          %v5580 = vld [vmem:[%s5489 + $0x139] sm:$0xff]
          %v5581 = vld [vmem:[%s5489 + $0x141] sm:$0xff]
          %v5582 = vld [vmem:[%s5489 + $0x151] sm:$0xff]
          %v5583 = vld [vmem:[%s5489 + $0x159] sm:$0xff]
          %v5584 = vld [vmem:[%s5489 + $0x169] sm:$0xff]
          %v5585 = vld [vmem:[%s5489 + $0x171] sm:$0xff]
          %5618 = vrot.lane.b32.xlu0 %v5554, 64
          %v5619 = vpop.permute.xlu0 %5618
          %5620 = vrot.lane.b32.xlu0 %v5555, 64
          %v5621 = vpop.permute.xlu0 %5620
          %5622 = vrot.lane.b32.xlu0 %v5556, 64
          %v5623 = vpop.permute.xlu0 %5622
          %5624 = vrot.lane.b32.xlu0 %v5557, 64
          %v5625 = vpop.permute.xlu0 %5624
          %5626 = vrot.lane.b32.xlu0 %v5558, 64
          %v5627 = vpop.permute.xlu0 %5626
          %5628 = vrot.lane.b32.xlu0 %v5559, 64
          %v5629 = vpop.permute.xlu0 %5628
          %5630 = vrot.lane.b32.xlu0 %v5560, 64
          %v5631 = vpop.permute.xlu0 %5630
          %5632 = vrot.lane.b32.xlu0 %v5561, 64
          %v5633 = vpop.permute.xlu0 %5632
          %5634 = vrot.lane.b32.xlu0 %v5562, 64
          %v5635 = vpop.permute.xlu0 %5634
          %5636 = vrot.lane.b32.xlu0 %v5563, 64
          %v5637 = vpop.permute.xlu0 %5636
          %5638 = vrot.lane.b32.xlu0 %v5564, 64
          %v5639 = vpop.permute.xlu0 %5638
          %5640 = vrot.lane.b32.xlu0 %v5565, 64
          %v5641 = vpop.permute.xlu0 %5640
          %5642 = vrot.lane.b32.xlu0 %v5566, 64
          %v5643 = vpop.permute.xlu0 %5642
          %5644 = vrot.lane.b32.xlu0 %v5567, 64
          %v5645 = vpop.permute.xlu0 %5644
          %5646 = vrot.lane.b32.xlu0 %v5568, 64
          %v5647 = vpop.permute.xlu0 %5646
          %5648 = vrot.lane.b32.xlu0 %v5569, 64
          %v5649 = vpop.permute.xlu0 %5648
          %5650 = vrot.lane.b32.xlu0 %v5570, 64
          %v5651 = vpop.permute.xlu0 %5650
          %5652 = vrot.lane.b32.xlu0 %v5571, 64
          %v5653 = vpop.permute.xlu0 %5652
          %5654 = vrot.lane.b32.xlu0 %v5572, 64
          %v5655 = vpop.permute.xlu0 %5654
          %5656 = vrot.lane.b32.xlu0 %v5573, 64
          %v5657 = vpop.permute.xlu0 %5656
          %5658 = vrot.lane.b32.xlu0 %v5574, 64
          %v5659 = vpop.permute.xlu0 %5658
          %5660 = vrot.lane.b32.xlu0 %v5575, 64
          %v5661 = vpop.permute.xlu0 %5660
          %5662 = vrot.lane.b32.xlu0 %v5576, 64
          %v5663 = vpop.permute.xlu0 %5662
          %5664 = vrot.lane.b32.xlu0 %v5577, 64
          %v5665 = vpop.permute.xlu0 %5664
          %5666 = vrot.lane.b32.xlu0 %v5578, 64
          %v5667 = vpop.permute.xlu0 %5666
          %5668 = vrot.lane.b32.xlu0 %v5579, 64
          %v5669 = vpop.permute.xlu0 %5668
          %5670 = vrot.lane.b32.xlu0 %v5580, 64
          %v5671 = vpop.permute.xlu0 %5670
          %5672 = vrot.lane.b32.xlu0 %v5581, 64
          %v5673 = vpop.permute.xlu0 %5672
          %5674 = vrot.lane.b32.xlu0 %v5582, 64
          %v5675 = vpop.permute.xlu0 %5674
          %5676 = vrot.lane.b32.xlu0 %v5583, 64
          %v5677 = vpop.permute.xlu0 %5676
          %5678 = vrot.lane.b32.xlu0 %v5584, 64
          %v5679 = vpop.permute.xlu0 %5678
          %5680 = vrot.lane.b32.xlu0 %v5585, 64
          %v5681 = vpop.permute.xlu0 %5680
          %5714 = vst.msk [vmem:[#allocation5 + $0x18] sm:$0xff] %vm4944, %v5619
          %5715 = vst.msk [vmem:[#allocation5 + $0x40] sm:$0xff] %vm4944, %v5621
          %5716 = vst.msk [vmem:[#allocation5 + $0x68] sm:$0xff] %vm4944, %v5623
          %5717 = vst.msk [vmem:[#allocation5 + $0x90] sm:$0xff] %vm4944, %v5625
          %5718 = vst.msk [vmem:[#allocation5 + $0xb8] sm:$0xff] %vm4944, %v5627
          %5719 = vst.msk [vmem:[#allocation5 + $0xe0] sm:$0xff] %vm4944, %v5629
          %5720 = vst.msk [vmem:[#allocation5 + $0x108] sm:$0xff] %vm4944, %v5631
          %5721 = vst.msk [vmem:[#allocation5 + $0x130] sm:$0xff] %vm4944, %v5633
          %5722 = vst.msk [vmem:[#allocation5 + $0x158] sm:$0xff] %vm4944, %v5635
          %5723 = vst.msk [vmem:[#allocation5 + $0x180] sm:$0xff] %vm4944, %v5637
          %5724 = vst.msk [vmem:[#allocation5 + $0x1a8] sm:$0xff] %vm4944, %v5639
          %5725 = vst.msk [vmem:[#allocation5 + $0x1d0] sm:$0xff] %vm4944, %v5641
          %5726 = vst.msk [vmem:[#allocation5 + $0x1f8] sm:$0xff] %vm4944, %v5643
          %5727 = vst.msk [vmem:[#allocation5 + $0x220] sm:$0xff] %vm4944, %v5645
          %5728 = vst.msk [vmem:[#allocation5 + $0x248] sm:$0xff] %vm4944, %v5647
          %5729 = vst.msk [vmem:[#allocation5 + $0x270] sm:$0xff] %vm4944, %v5649
          %5730 = vst.msk [vmem:[#allocation5 + $0x298] sm:$0xff] %vm4944, %v5651
          %5731 = vst.msk [vmem:[#allocation5 + $0x2c0] sm:$0xff] %vm4944, %v5653
          %5732 = vst.msk [vmem:[#allocation5 + $0x2e8] sm:$0xff] %vm4944, %v5655
          %5733 = vst.msk [vmem:[#allocation5 + $0x310] sm:$0xff] %vm4944, %v5657
          %5734 = vst.msk [vmem:[#allocation5 + $0x338] sm:$0xff] %vm4944, %v5659
          %5735 = vst.msk [vmem:[#allocation5 + $0x360] sm:$0xff] %vm4944, %v5661
          %5736 = vst.msk [vmem:[#allocation5 + $0x388] sm:$0xff] %vm4944, %v5663
          %5737 = vst.msk [vmem:[#allocation5 + $0x3b0] sm:$0xff] %vm4944, %v5665
          %5738 = vst.msk [vmem:[#allocation5 + $0x3d8] sm:$0xff] %vm4944, %v5667
          %5739 = vst.msk [vmem:[#allocation5 + $0x400] sm:$0xff] %vm4944, %v5669
          %5740 = vst.msk [vmem:[#allocation5 + $0x428] sm:$0xff] %vm4944, %v5671
          %5741 = vst.msk [vmem:[#allocation5 + $0x450] sm:$0xff] %vm4944, %v5673
          %5742 = vst.msk [vmem:[#allocation5 + $0x478] sm:$0xff] %vm4944, %v5675
          %5743 = vst.msk [vmem:[#allocation5 + $0x4a0] sm:$0xff] %vm4944, %v5677
          %5744 = vst.msk [vmem:[#allocation5 + $0x4c8] sm:$0xff] %vm4944, %v5679
          %5745 = vst.msk [vmem:[#allocation5 + $0x4f0] sm:$0xff] %vm4944, %v5681
          %v5746 = vld [vmem:[%s5489 + $0x2] sm:$0xff]
          %v5747 = vld [vmem:[%s5489 + $0xa] sm:$0xff]
          %v5748 = vld [vmem:[%s5489 + $0x1a] sm:$0xff]
          %v5749 = vld [vmem:[%s5489 + $0x22] sm:$0xff]
          %v5750 = vld [vmem:[%s5489 + $0x32] sm:$0xff]
          %v5751 = vld [vmem:[%s5489 + $0x3a] sm:$0xff]
          %v5752 = vld [vmem:[%s5489 + $0x4a] sm:$0xff]
          %v5753 = vld [vmem:[%s5489 + $0x52] sm:$0xff]
          %v5754 = vld [vmem:[%s5489 + $0x62] sm:$0xff]
          %v5755 = vld [vmem:[%s5489 + $0x6a] sm:$0xff]
          %v5756 = vld [vmem:[%s5489 + $0x7a] sm:$0xff]
          %v5757 = vld [vmem:[%s5489 + $0x82] sm:$0xff]
          %v5758 = vld [vmem:[%s5489 + $0x92] sm:$0xff]
          %v5759 = vld [vmem:[%s5489 + $0x9a] sm:$0xff]
          %v5760 = vld [vmem:[%s5489 + $0xaa] sm:$0xff]
          %v5761 = vld [vmem:[%s5489 + $0xb2] sm:$0xff]
          %v5762 = vld [vmem:[%s5489 + $0xc2] sm:$0xff]
          %v5763 = vld [vmem:[%s5489 + $0xca] sm:$0xff]
          %v5764 = vld [vmem:[%s5489 + $0xda] sm:$0xff]
          %v5765 = vld [vmem:[%s5489 + $0xe2] sm:$0xff]
          %v5766 = vld [vmem:[%s5489 + $0xf2] sm:$0xff]
          %v5767 = vld [vmem:[%s5489 + $0xfa] sm:$0xff]
          %v5768 = vld [vmem:[%s5489 + $0x10a] sm:$0xff]
          %v5769 = vld [vmem:[%s5489 + $0x112] sm:$0xff]
          %v5770 = vld [vmem:[%s5489 + $0x122] sm:$0xff]
          %v5771 = vld [vmem:[%s5489 + $0x12a] sm:$0xff]
          %v5772 = vld [vmem:[%s5489 + $0x13a] sm:$0xff]
          %v5773 = vld [vmem:[%s5489 + $0x142] sm:$0xff]
          %v5774 = vld [vmem:[%s5489 + $0x152] sm:$0xff]
          %v5775 = vld [vmem:[%s5489 + $0x15a] sm:$0xff]
          %v5776 = vld [vmem:[%s5489 + $0x16a] sm:$0xff]
          %v5777 = vld [vmem:[%s5489 + $0x172] sm:$0xff]
          %5778 = vst.msk [vmem:[#allocation5 + $0x20] sm:$0xff] %vm425, %v5746
          %5779 = vst.msk [vmem:[#allocation5 + $0x48] sm:$0xff] %vm425, %v5747
          %5780 = vst.msk [vmem:[#allocation5 + $0x70] sm:$0xff] %vm425, %v5748
          %5781 = vst.msk [vmem:[#allocation5 + $0x98] sm:$0xff] %vm425, %v5749
          %5782 = vst.msk [vmem:[#allocation5 + $0xc0] sm:$0xff] %vm425, %v5750
          %5783 = vst.msk [vmem:[#allocation5 + $0xe8] sm:$0xff] %vm425, %v5751
          %5784 = vst.msk [vmem:[#allocation5 + $0x110] sm:$0xff] %vm425, %v5752
          %5785 = vst.msk [vmem:[#allocation5 + $0x138] sm:$0xff] %vm425, %v5753
          %5786 = vst.msk [vmem:[#allocation5 + $0x160] sm:$0xff] %vm425, %v5754
          %5787 = vst.msk [vmem:[#allocation5 + $0x188] sm:$0xff] %vm425, %v5755
          %5788 = vst.msk [vmem:[#allocation5 + $0x1b0] sm:$0xff] %vm425, %v5756
          %5789 = vst.msk [vmem:[#allocation5 + $0x1d8] sm:$0xff] %vm425, %v5757
          %5790 = vst.msk [vmem:[#allocation5 + $0x200] sm:$0xff] %vm425, %v5758
          %5791 = vst.msk [vmem:[#allocation5 + $0x228] sm:$0xff] %vm425, %v5759
          %5792 = vst.msk [vmem:[#allocation5 + $0x250] sm:$0xff] %vm425, %v5760
          %5793 = vst.msk [vmem:[#allocation5 + $0x278] sm:$0xff] %vm425, %v5761
          %5794 = vst.msk [vmem:[#allocation5 + $0x2a0] sm:$0xff] %vm425, %v5762
          %5795 = vst.msk [vmem:[#allocation5 + $0x2c8] sm:$0xff] %vm425, %v5763
          %5796 = vst.msk [vmem:[#allocation5 + $0x2f0] sm:$0xff] %vm425, %v5764
          %5797 = vst.msk [vmem:[#allocation5 + $0x318] sm:$0xff] %vm425, %v5765
          %5798 = vst.msk [vmem:[#allocation5 + $0x340] sm:$0xff] %vm425, %v5766
          %5799 = vst.msk [vmem:[#allocation5 + $0x368] sm:$0xff] %vm425, %v5767
          %5800 = vst.msk [vmem:[#allocation5 + $0x390] sm:$0xff] %vm425, %v5768
          %5801 = vst.msk [vmem:[#allocation5 + $0x3b8] sm:$0xff] %vm425, %v5769
          %5802 = vst.msk [vmem:[#allocation5 + $0x3e0] sm:$0xff] %vm425, %v5770
          %5803 = vst.msk [vmem:[#allocation5 + $0x408] sm:$0xff] %vm425, %v5771
          %5804 = vst.msk [vmem:[#allocation5 + $0x430] sm:$0xff] %vm425, %v5772
          %5805 = vst.msk [vmem:[#allocation5 + $0x458] sm:$0xff] %vm425, %v5773
          %5806 = vst.msk [vmem:[#allocation5 + $0x480] sm:$0xff] %vm425, %v5774
          %5807 = vst.msk [vmem:[#allocation5 + $0x4a8] sm:$0xff] %vm425, %v5775
          %5808 = vst.msk [vmem:[#allocation5 + $0x4d0] sm:$0xff] %vm425, %v5776
          %5809 = vst.msk [vmem:[#allocation5 + $0x4f8] sm:$0xff] %vm425, %v5777
          %v5810 = vld [vmem:[#allocation5] sm:$0xff]
          %v5811 = vld [vmem:[#allocation5 + $0x8] sm:$0xff]
          %v5812 = vld [vmem:[#allocation5 + $0x10] sm:$0xff]
          %v5813 = vld [vmem:[#allocation5 + $0x18] sm:$0xff]
          %v5814 = vld [vmem:[#allocation5 + $0x20] sm:$0xff]
          %v5815 = vld [vmem:[#allocation5 + $0x28] sm:$0xff]
          %v5816 = vld [vmem:[#allocation5 + $0x30] sm:$0xff]
          %v5817 = vld [vmem:[#allocation5 + $0x38] sm:$0xff]
          %v5818 = vld [vmem:[#allocation5 + $0x40] sm:$0xff]
          %v5819 = vld [vmem:[#allocation5 + $0x48] sm:$0xff]
          %v5820 = vld [vmem:[#allocation5 + $0x50] sm:$0xff]
          %v5821 = vld [vmem:[#allocation5 + $0x58] sm:$0xff]
          %v5822 = vld [vmem:[#allocation5 + $0x60] sm:$0xff]
          %v5823 = vld [vmem:[#allocation5 + $0x68] sm:$0xff]
          %v5824 = vld [vmem:[#allocation5 + $0x70] sm:$0xff]
          %v5825 = vld [vmem:[#allocation5 + $0x78] sm:$0xff]
          %v5826 = vld [vmem:[#allocation5 + $0x80] sm:$0xff]
          %v5827 = vld [vmem:[#allocation5 + $0x88] sm:$0xff]
          %v5828 = vld [vmem:[#allocation5 + $0x90] sm:$0xff]
          %v5829 = vld [vmem:[#allocation5 + $0x98] sm:$0xff]
          %v5830 = vld [vmem:[#allocation5 + $0xa0] sm:$0xff]
          %v5831 = vld [vmem:[#allocation5 + $0xa8] sm:$0xff]
          %v5832 = vld [vmem:[#allocation5 + $0xb0] sm:$0xff]
          %v5833 = vld [vmem:[#allocation5 + $0xb8] sm:$0xff]
          %v5834 = vld [vmem:[#allocation5 + $0xc0] sm:$0xff]
          %v5835 = vld [vmem:[#allocation5 + $0xc8] sm:$0xff]
          %v5836 = vld [vmem:[#allocation5 + $0xd0] sm:$0xff]
          %v5837 = vld [vmem:[#allocation5 + $0xd8] sm:$0xff]
          %v5838 = vld [vmem:[#allocation5 + $0xe0] sm:$0xff]
          %v5839 = vld [vmem:[#allocation5 + $0xe8] sm:$0xff]
          %v5840 = vld [vmem:[#allocation5 + $0xf0] sm:$0xff]
          %v5841 = vld [vmem:[#allocation5 + $0xf8] sm:$0xff]
          %v5842 = vld [vmem:[#allocation5 + $0x100] sm:$0xff]
          %v5843 = vld [vmem:[#allocation5 + $0x108] sm:$0xff]
          %v5844 = vld [vmem:[#allocation5 + $0x110] sm:$0xff]
          %v5845 = vld [vmem:[#allocation5 + $0x118] sm:$0xff]
          %v5846 = vld [vmem:[#allocation5 + $0x120] sm:$0xff]
          %v5847 = vld [vmem:[#allocation5 + $0x128] sm:$0xff]
          %v5848 = vld [vmem:[#allocation5 + $0x130] sm:$0xff]
          %v5849 = vld [vmem:[#allocation5 + $0x138] sm:$0xff]
          %v5850 = vld [vmem:[#allocation5 + $0x140] sm:$0xff]
          %v5851 = vld [vmem:[#allocation5 + $0x148] sm:$0xff]
          %v5852 = vld [vmem:[#allocation5 + $0x150] sm:$0xff]
          %v5853 = vld [vmem:[#allocation5 + $0x158] sm:$0xff]
          %v5854 = vld [vmem:[#allocation5 + $0x160] sm:$0xff]
          %v5855 = vld [vmem:[#allocation5 + $0x168] sm:$0xff]
          %v5856 = vld [vmem:[#allocation5 + $0x170] sm:$0xff]
          %v5857 = vld [vmem:[#allocation5 + $0x178] sm:$0xff]
          %v5858 = vld [vmem:[#allocation5 + $0x180] sm:$0xff]
          %v5859 = vld [vmem:[#allocation5 + $0x188] sm:$0xff]
          %v5860 = vld [vmem:[#allocation5 + $0x190] sm:$0xff]
          %v5861 = vld [vmem:[#allocation5 + $0x198] sm:$0xff]
          %v5862 = vld [vmem:[#allocation5 + $0x1a0] sm:$0xff]
          %v5863 = vld [vmem:[#allocation5 + $0x1a8] sm:$0xff]
          %v5864 = vld [vmem:[#allocation5 + $0x1b0] sm:$0xff]
          %v5865 = vld [vmem:[#allocation5 + $0x1b8] sm:$0xff]
          %v5866 = vld [vmem:[#allocation5 + $0x1c0] sm:$0xff]
          %v5867 = vld [vmem:[#allocation5 + $0x1c8] sm:$0xff]
          %v5868 = vld [vmem:[#allocation5 + $0x1d0] sm:$0xff]
          %v5869 = vld [vmem:[#allocation5 + $0x1d8] sm:$0xff]
          %v5870 = vld [vmem:[#allocation5 + $0x1e0] sm:$0xff]
          %v5871 = vld [vmem:[#allocation5 + $0x1e8] sm:$0xff]
          %v5872 = vld [vmem:[#allocation5 + $0x1f0] sm:$0xff]
          %v5873 = vld [vmem:[#allocation5 + $0x1f8] sm:$0xff]
          %v5874 = vld [vmem:[#allocation5 + $0x200] sm:$0xff]
          %v5875 = vld [vmem:[#allocation5 + $0x208] sm:$0xff]
          %v5876 = vld [vmem:[#allocation5 + $0x210] sm:$0xff]
          %v5877 = vld [vmem:[#allocation5 + $0x218] sm:$0xff]
          %v5878 = vld [vmem:[#allocation5 + $0x220] sm:$0xff]
          %v5879 = vld [vmem:[#allocation5 + $0x228] sm:$0xff]
          %v5880 = vld [vmem:[#allocation5 + $0x230] sm:$0xff]
          %v5881 = vld [vmem:[#allocation5 + $0x238] sm:$0xff]
          %v5882 = vld [vmem:[#allocation5 + $0x240] sm:$0xff]
          %v5883 = vld [vmem:[#allocation5 + $0x248] sm:$0xff]
          %v5884 = vld [vmem:[#allocation5 + $0x250] sm:$0xff]
          %v5885 = vld [vmem:[#allocation5 + $0x258] sm:$0xff]
          %v5886 = vld [vmem:[#allocation5 + $0x260] sm:$0xff]
          %v5887 = vld [vmem:[#allocation5 + $0x268] sm:$0xff]
          %v5888 = vld [vmem:[#allocation5 + $0x270] sm:$0xff]
          %v5889 = vld [vmem:[#allocation5 + $0x278] sm:$0xff]
          %v5890 = vld [vmem:[#allocation5 + $0x280] sm:$0xff]
          %v5891 = vld [vmem:[#allocation5 + $0x288] sm:$0xff]
          %v5892 = vld [vmem:[#allocation5 + $0x290] sm:$0xff]
          %v5893 = vld [vmem:[#allocation5 + $0x298] sm:$0xff]
          %v5894 = vld [vmem:[#allocation5 + $0x2a0] sm:$0xff]
          %v5895 = vld [vmem:[#allocation5 + $0x2a8] sm:$0xff]
          %v5896 = vld [vmem:[#allocation5 + $0x2b0] sm:$0xff]
          %v5897 = vld [vmem:[#allocation5 + $0x2b8] sm:$0xff]
          %v5898 = vld [vmem:[#allocation5 + $0x2c0] sm:$0xff]
          %v5899 = vld [vmem:[#allocation5 + $0x2c8] sm:$0xff]
          %v5900 = vld [vmem:[#allocation5 + $0x2d0] sm:$0xff]
          %v5901 = vld [vmem:[#allocation5 + $0x2d8] sm:$0xff]
          %v5902 = vld [vmem:[#allocation5 + $0x2e0] sm:$0xff]
          %v5903 = vld [vmem:[#allocation5 + $0x2e8] sm:$0xff]
          %v5904 = vld [vmem:[#allocation5 + $0x2f0] sm:$0xff]
          %v5905 = vld [vmem:[#allocation5 + $0x2f8] sm:$0xff]
          %v5906 = vld [vmem:[#allocation5 + $0x300] sm:$0xff]
          %v5907 = vld [vmem:[#allocation5 + $0x308] sm:$0xff]
          %v5908 = vld [vmem:[#allocation5 + $0x310] sm:$0xff]
          %v5909 = vld [vmem:[#allocation5 + $0x318] sm:$0xff]
          %v5910 = vld [vmem:[#allocation5 + $0x320] sm:$0xff]
          %v5911 = vld [vmem:[#allocation5 + $0x328] sm:$0xff]
          %v5912 = vld [vmem:[#allocation5 + $0x330] sm:$0xff]
          %v5913 = vld [vmem:[#allocation5 + $0x338] sm:$0xff]
          %v5914 = vld [vmem:[#allocation5 + $0x340] sm:$0xff]
          %v5915 = vld [vmem:[#allocation5 + $0x348] sm:$0xff]
          %v5916 = vld [vmem:[#allocation5 + $0x350] sm:$0xff]
          %v5917 = vld [vmem:[#allocation5 + $0x358] sm:$0xff]
          %v5918 = vld [vmem:[#allocation5 + $0x360] sm:$0xff]
          %v5919 = vld [vmem:[#allocation5 + $0x368] sm:$0xff]
          %v5920 = vld [vmem:[#allocation5 + $0x370] sm:$0xff]
          %v5921 = vld [vmem:[#allocation5 + $0x378] sm:$0xff]
          %v5922 = vld [vmem:[#allocation5 + $0x380] sm:$0xff]
          %v5923 = vld [vmem:[#allocation5 + $0x388] sm:$0xff]
          %v5924 = vld [vmem:[#allocation5 + $0x390] sm:$0xff]
          %v5925 = vld [vmem:[#allocation5 + $0x398] sm:$0xff]
          %v5926 = vld [vmem:[#allocation5 + $0x3a0] sm:$0xff]
          %v5927 = vld [vmem:[#allocation5 + $0x3a8] sm:$0xff]
          %v5928 = vld [vmem:[#allocation5 + $0x3b0] sm:$0xff]
          %v5929 = vld [vmem:[#allocation5 + $0x3b8] sm:$0xff]
          %v5930 = vld [vmem:[#allocation5 + $0x3c0] sm:$0xff]
          %v5931 = vld [vmem:[#allocation5 + $0x3c8] sm:$0xff]
          %v5932 = vld [vmem:[#allocation5 + $0x3d0] sm:$0xff]
          %v5933 = vld [vmem:[#allocation5 + $0x3d8] sm:$0xff]
          %v5934 = vld [vmem:[#allocation5 + $0x3e0] sm:$0xff]
          %v5935 = vld [vmem:[#allocation5 + $0x3e8] sm:$0xff]
          %v5936 = vld [vmem:[#allocation5 + $0x3f0] sm:$0xff]
          %v5937 = vld [vmem:[#allocation5 + $0x3f8] sm:$0xff]
          %v5938 = vld [vmem:[#allocation5 + $0x400] sm:$0xff]
          %v5939 = vld [vmem:[#allocation5 + $0x408] sm:$0xff]
          %v5940 = vld [vmem:[#allocation5 + $0x410] sm:$0xff]
          %v5941 = vld [vmem:[#allocation5 + $0x418] sm:$0xff]
          %v5942 = vld [vmem:[#allocation5 + $0x420] sm:$0xff]
          %v5943 = vld [vmem:[#allocation5 + $0x428] sm:$0xff]
          %v5944 = vld [vmem:[#allocation5 + $0x430] sm:$0xff]
          %v5945 = vld [vmem:[#allocation5 + $0x438] sm:$0xff]
          %v5946 = vld [vmem:[#allocation5 + $0x440] sm:$0xff]
          %v5947 = vld [vmem:[#allocation5 + $0x448] sm:$0xff]
          %v5948 = vld [vmem:[#allocation5 + $0x450] sm:$0xff]
          %v5949 = vld [vmem:[#allocation5 + $0x458] sm:$0xff]
          %v5950 = vld [vmem:[#allocation5 + $0x460] sm:$0xff]
          %v5951 = vld [vmem:[#allocation5 + $0x468] sm:$0xff]
          %v5952 = vld [vmem:[#allocation5 + $0x470] sm:$0xff]
          %v5953 = vld [vmem:[#allocation5 + $0x478] sm:$0xff]
          %v5954 = vld [vmem:[#allocation5 + $0x480] sm:$0xff]
          %v5955 = vld [vmem:[#allocation5 + $0x488] sm:$0xff]
          %v5956 = vld [vmem:[#allocation5 + $0x490] sm:$0xff]
          %v5957 = vld [vmem:[#allocation5 + $0x498] sm:$0xff]
          %v5958 = vld [vmem:[#allocation5 + $0x4a0] sm:$0xff]
          %v5959 = vld [vmem:[#allocation5 + $0x4a8] sm:$0xff]
          %v5960 = vld [vmem:[#allocation5 + $0x4b0] sm:$0xff]
          %v5961 = vld [vmem:[#allocation5 + $0x4b8] sm:$0xff]
          %v5962 = vld [vmem:[#allocation5 + $0x4c0] sm:$0xff]
          %v5963 = vld [vmem:[#allocation5 + $0x4c8] sm:$0xff]
          %v5964 = vld [vmem:[#allocation5 + $0x4d0] sm:$0xff]
          %v5965 = vld [vmem:[#allocation5 + $0x4d8] sm:$0xff]
          %v5966 = vld [vmem:[#allocation5 + $0x4e0] sm:$0xff]
          %v5967 = vld [vmem:[#allocation5 + $0x4e8] sm:$0xff]
          %v5968 = vld [vmem:[#allocation5 + $0x4f0] sm:$0xff]
          %v5969 = vld [vmem:[#allocation5 + $0x4f8] sm:$0xff]
          %v5970 = vld [vmem:[%s3] sm:$0xff]
          %v5971 = vld [vmem:[%s3 + $0x8] sm:$0xff]
          %v5972 = vld [vmem:[%s3 + $0x10] sm:$0xff]
          %v5973 = vld [vmem:[%s3 + $0x18] sm:$0xff]
          %v5974 = vld [vmem:[%s3 + $0x20] sm:$0xff]
          %v5975 = vld [vmem:[%s3 + $0x28] sm:$0xff]
          %v5976 = vld [vmem:[%s3 + $0x30] sm:$0xff]
          %v5977 = vld [vmem:[%s3 + $0x38] sm:$0xff]
          %v5978 = vld [vmem:[%s3 + $0x40] sm:$0xff]
          %v5979 = vld [vmem:[%s3 + $0x48] sm:$0xff]
          %v5980 = vld [vmem:[%s3 + $0x50] sm:$0xff]
          %v5981 = vld [vmem:[%s3 + $0x58] sm:$0xff]
          %v5982 = vld [vmem:[%s3 + $0x60] sm:$0xff]
          %v5983 = vld [vmem:[%s3 + $0x68] sm:$0xff]
          %v5984 = vld [vmem:[%s3 + $0x70] sm:$0xff]
          %v5985 = vld [vmem:[%s3 + $0x78] sm:$0xff]
          %v5986 = vld [vmem:[%s3 + $0x80] sm:$0xff]
          %v5987 = vld [vmem:[%s3 + $0x88] sm:$0xff]
          %v5988 = vld [vmem:[%s3 + $0x90] sm:$0xff]
          %v5989 = vld [vmem:[%s3 + $0x98] sm:$0xff]
          %v5990 = vld [vmem:[%s3 + $0xa0] sm:$0xff]
          %v5991 = vld [vmem:[%s3 + $0xa8] sm:$0xff]
          %v5992 = vld [vmem:[%s3 + $0xb0] sm:$0xff]
          %v5993 = vld [vmem:[%s3 + $0xb8] sm:$0xff]
          %v5994 = vld [vmem:[%s3 + $0xc0] sm:$0xff]
          %v5995 = vld [vmem:[%s3 + $0xc8] sm:$0xff]
          %v5996 = vld [vmem:[%s3 + $0xd0] sm:$0xff]
          %v5997 = vld [vmem:[%s3 + $0xd8] sm:$0xff]
          %v5998 = vld [vmem:[%s3 + $0xe0] sm:$0xff]
          %v5999 = vld [vmem:[%s3 + $0xe8] sm:$0xff]
          %v6000 = vld [vmem:[%s3 + $0xf0] sm:$0xff]
          %v6001 = vld [vmem:[%s3 + $0xf8] sm:$0xff]
          %v6002 = vld [vmem:[%s3 + $0x100] sm:$0xff]
          %v6003 = vld [vmem:[%s3 + $0x108] sm:$0xff]
          %v6004 = vld [vmem:[%s3 + $0x110] sm:$0xff]
          %v6005 = vld [vmem:[%s3 + $0x118] sm:$0xff]
          %v6006 = vld [vmem:[%s3 + $0x120] sm:$0xff]
          %v6007 = vld [vmem:[%s3 + $0x128] sm:$0xff]
          %v6008 = vld [vmem:[%s3 + $0x130] sm:$0xff]
          %v6009 = vld [vmem:[%s3 + $0x138] sm:$0xff]
          %v6010 = vld [vmem:[%s3 + $0x140] sm:$0xff]
          %v6011 = vld [vmem:[%s3 + $0x148] sm:$0xff]
          %v6012 = vld [vmem:[%s3 + $0x150] sm:$0xff]
          %v6013 = vld [vmem:[%s3 + $0x158] sm:$0xff]
          %v6014 = vld [vmem:[%s3 + $0x160] sm:$0xff]
          %v6015 = vld [vmem:[%s3 + $0x168] sm:$0xff]
          %v6016 = vld [vmem:[%s3 + $0x170] sm:$0xff]
          %v6017 = vld [vmem:[%s3 + $0x178] sm:$0xff]
          %v6018 = vld [vmem:[%s3 + $0x180] sm:$0xff]
          %v6019 = vld [vmem:[%s3 + $0x188] sm:$0xff]
          %v6020 = vld [vmem:[%s3 + $0x190] sm:$0xff]
          %v6021 = vld [vmem:[%s3 + $0x198] sm:$0xff]
          %v6022 = vld [vmem:[%s3 + $0x1a0] sm:$0xff]
          %v6023 = vld [vmem:[%s3 + $0x1a8] sm:$0xff]
          %v6024 = vld [vmem:[%s3 + $0x1b0] sm:$0xff]
          %v6025 = vld [vmem:[%s3 + $0x1b8] sm:$0xff]
          %v6026 = vld [vmem:[%s3 + $0x1c0] sm:$0xff]
          %v6027 = vld [vmem:[%s3 + $0x1c8] sm:$0xff]
          %v6028 = vld [vmem:[%s3 + $0x1d0] sm:$0xff]
          %v6029 = vld [vmem:[%s3 + $0x1d8] sm:$0xff]
          %v6030 = vld [vmem:[%s3 + $0x1e0] sm:$0xff]
          %v6031 = vld [vmem:[%s3 + $0x1e8] sm:$0xff]
          %v6032 = vld [vmem:[%s3 + $0x1f0] sm:$0xff]
          %v6033 = vld [vmem:[%s3 + $0x1f8] sm:$0xff]
          %v6034 = vld [vmem:[%s3 + $0x200] sm:$0xff]
          %v6035 = vld [vmem:[%s3 + $0x208] sm:$0xff]
          %v6036 = vld [vmem:[%s3 + $0x210] sm:$0xff]
          %v6037 = vld [vmem:[%s3 + $0x218] sm:$0xff]
          %v6038 = vld [vmem:[%s3 + $0x220] sm:$0xff]
          %v6039 = vld [vmem:[%s3 + $0x228] sm:$0xff]
          %v6040 = vld [vmem:[%s3 + $0x230] sm:$0xff]
          %v6041 = vld [vmem:[%s3 + $0x238] sm:$0xff]
          %v6042 = vld [vmem:[%s4] sm:$0x1]
          %v6044 = vlaneseq
          %v6045 = vshrl.u32 %v6044, 7
          %v6046 = vsub.s32 0, %v6045
          %v6047 = vrot.slane %v6042, %v6046
          %v6050 = vsel %vm425, %v5814, 0
          %v6053 = vsel %vm425, %v5819, 0
          %v6056 = vsel %vm425, %v5824, 0
          %v6059 = vsel %vm425, %v5829, 0
          %v6062 = vsel %vm425, %v5834, 0
          %v6065 = vsel %vm425, %v5839, 0
          %v6068 = vsel %vm425, %v5844, 0
          %v6071 = vsel %vm425, %v5849, 0
          %v6074 = vsel %vm425, %v5854, 0
          %v6077 = vsel %vm425, %v5859, 0
          %v6080 = vsel %vm425, %v5864, 0
          %v6083 = vsel %vm425, %v5869, 0
          %v6086 = vsel %vm425, %v5874, 0
          %v6089 = vsel %vm425, %v5879, 0
          %v6092 = vsel %vm425, %v5884, 0
          %v6095 = vsel %vm425, %v5889, 0
          %v6098 = vsel %vm425, %v5894, 0
          %v6101 = vsel %vm425, %v5899, 0
          %v6104 = vsel %vm425, %v5904, 0
          %v6107 = vsel %vm425, %v5909, 0
          %v6110 = vsel %vm425, %v5914, 0
          %v6113 = vsel %vm425, %v5919, 0
          %v6116 = vsel %vm425, %v5924, 0
          %v6119 = vsel %vm425, %v5929, 0
          %v6122 = vsel %vm425, %v5934, 0
          %v6125 = vsel %vm425, %v5939, 0
          %v6128 = vsel %vm425, %v5944, 0
          %v6131 = vsel %vm425, %v5949, 0
          %v6134 = vsel %vm425, %v5954, 0
          %v6137 = vsel %vm425, %v5959, 0
          %v6140 = vsel %vm425, %v5964, 0
          %v6143 = vsel %vm425, %v5969, 0
          %6145 = vmatprep.subr.mxu0 0.0
          %6146 = vmatpush1.msra.mxu0 %v5985
          %6147 = vmatprep.subr.mxu0 0.0
          %6148 = vmatpush1.msra.mxu0 %v5984
          %6149 = vmatprep.subr.mxu0 0.0
          %6150 = vmatpush1.msra.mxu0 %v5983
          %6151 = vmatprep.subr.mxu0 0.0
          %6152 = vmatpush1.msra.mxu0 %v5982
          %6153 = vmatprep.subr.mxu0 0.0
          %6154 = vmatpush1.msra.mxu0 %v5981
          %6155 = vmatprep.subr.mxu0 0.0
          %6156 = vmatpush1.msra.mxu0 %v5980
          %6157 = vmatprep.subr.mxu0 0.0
          %6158 = vmatpush1.msra.mxu0 %v5979
          %6159 = vmatprep.subr.mxu0 0.0
          %6160 = vmatpush1.msra.mxu0 %v5978
          %6161 = vmatprep.subr.mxu0 0.0
          %6162 = vmatpush1.msra.mxu0 %v5977
          %6163 = vmatprep.subr.mxu0 0.0
          %6164 = vmatpush1.msra.mxu0 %v5976
          %6165 = vmatprep.subr.mxu0 0.0
          %6166 = vmatpush1.msra.mxu0 %v5975
          %6167 = vmatprep.subr.mxu0 0.0
          %6168 = vmatpush1.msra.mxu0 %v5974
          %6169 = vmatprep.subr.mxu0 0.0
          %6170 = vmatpush1.msra.mxu0 %v5973
          %6171 = vmatprep.subr.mxu0 0.0
          %6172 = vmatpush1.msra.mxu0 %v5972
          %6173 = vmatprep.subr.mxu0 0.0
          %6174 = vmatpush1.msra.mxu0 %v5971
          %6175 = vmatprep.subr.mxu0 0.0
          %6176 = vmatpush1.msra.mxu0 %v5970
          %6177 = vmatprep.subr.mxu0 0.0
          %6178 = vmatpush2.msra.mxu0 %v6001
          %6179 = vmatprep.subr.mxu0 0.0
          %6180 = vmatpush2.msra.mxu0 %v6000
          %6181 = vmatprep.subr.mxu0 0.0
          %6182 = vmatpush2.msra.mxu0 %v5999
          %6183 = vmatprep.subr.mxu0 0.0
          %6184 = vmatpush2.msra.mxu0 %v5998
          %6185 = vmatprep.subr.mxu0 0.0
          %6186 = vmatpush2.msra.mxu0 %v5997
          %6187 = vmatprep.subr.mxu0 0.0
          %6188 = vmatpush2.msra.mxu0 %v5996
          %6189 = vmatprep.subr.mxu0 0.0
          %6190 = vmatpush2.msra.mxu0 %v5995
          %6191 = vmatprep.subr.mxu0 0.0
          %6192 = vmatpush2.msra.mxu0 %v5994
          %6193 = vmatprep.subr.mxu0 0.0
          %6194 = vmatpush2.msra.mxu0 %v5993
          %6195 = vmatprep.subr.mxu0 0.0
          %6196 = vmatpush2.msra.mxu0 %v5992
          %6197 = vmatprep.subr.mxu0 0.0
          %6198 = vmatpush2.msra.mxu0 %v5991
          %6199 = vmatprep.subr.mxu0 0.0
          %6200 = vmatpush2.msra.mxu0 %v5990
          %6201 = vmatprep.subr.mxu0 0.0
          %6202 = vmatpush2.msra.mxu0 %v5989
          %6203 = vmatprep.subr.mxu0 0.0
          %6204 = vmatpush2.msra.mxu0 %v5988
          %6205 = vmatprep.subr.mxu0 0.0
          %6206 = vmatpush2.msra.mxu0 %v5987
          %6207 = vmatprep.subr.mxu0 0.0
          %6208 = vmatpush2.msra.mxu0 %v5986
          %6209 = vmatprep.mubr.f32.mxu0 %v5811
          %6210 = vmatmul.mubr.f32.gmra.mxu0 %v5810
          %v6211 = vpop.f32.mrf.mxu0
          %v6212 = vadd.f32 %v6047, %v6211
          %v6213 = vpop.f32.mrf.mxu0
          %6214 = vmatprep.mubr.f32.mxu0 %v5816
          %6215 = vmatmul.mubr.f32.gmra.mxu0 %v5815
          %v6216 = vpop.f32.mrf.mxu0
          %v6217 = vadd.f32 %v6047, %v6216
          %v6218 = vpop.f32.mrf.mxu0
          %6219 = vmatprep.mubr.f32.mxu0 %v5821
          %6220 = vmatmul.mubr.f32.gmra.mxu0 %v5820
          %v6221 = vpop.f32.mrf.mxu0
          %v6222 = vadd.f32 %v6047, %v6221
          %v6223 = vpop.f32.mrf.mxu0
          %6224 = vmatprep.mubr.f32.mxu0 %v5826
          %6225 = vmatmul.mubr.f32.gmra.mxu0 %v5825
          %v6226 = vpop.f32.mrf.mxu0
          %v6227 = vadd.f32 %v6047, %v6226
          %v6228 = vpop.f32.mrf.mxu0
          %6229 = vmatprep.mubr.f32.mxu0 %v5831
          %6230 = vmatmul.mubr.f32.gmra.mxu0 %v5830
          %v6231 = vpop.f32.mrf.mxu0
          %v6232 = vadd.f32 %v6047, %v6231
          %v6233 = vpop.f32.mrf.mxu0
          %6234 = vmatprep.mubr.f32.mxu0 %v5836
          %6235 = vmatmul.mubr.f32.gmra.mxu0 %v5835
          %v6236 = vpop.f32.mrf.mxu0
          %v6237 = vadd.f32 %v6047, %v6236
          %v6238 = vpop.f32.mrf.mxu0
          %6239 = vmatprep.mubr.f32.mxu0 %v5841
          %6240 = vmatmul.mubr.f32.gmra.mxu0 %v5840
          %v6241 = vpop.f32.mrf.mxu0
          %v6242 = vadd.f32 %v6047, %v6241
          %v6243 = vpop.f32.mrf.mxu0
          %6244 = vmatprep.mubr.f32.mxu0 %v5846
          %6245 = vmatmul.mubr.f32.gmra.mxu0 %v5845
          %v6246 = vpop.f32.mrf.mxu0
          %v6247 = vadd.f32 %v6047, %v6246
          %v6248 = vpop.f32.mrf.mxu0
          %6249 = vmatprep.mubr.f32.mxu0 %v5851
          %6250 = vmatmul.mubr.f32.gmra.mxu0 %v5850
          %v6251 = vpop.f32.mrf.mxu0
          %v6252 = vadd.f32 %v6047, %v6251
          %v6253 = vpop.f32.mrf.mxu0
          %6254 = vmatprep.mubr.f32.mxu0 %v5856
          %6255 = vmatmul.mubr.f32.gmra.mxu0 %v5855
          %v6256 = vpop.f32.mrf.mxu0
          %v6257 = vadd.f32 %v6047, %v6256
          %v6258 = vpop.f32.mrf.mxu0
          %6259 = vmatprep.mubr.f32.mxu0 %v5861
          %6260 = vmatmul.mubr.f32.gmra.mxu0 %v5860
          %v6261 = vpop.f32.mrf.mxu0
          %v6262 = vadd.f32 %v6047, %v6261
          %v6263 = vpop.f32.mrf.mxu0
          %6264 = vmatprep.mubr.f32.mxu0 %v5866
          %6265 = vmatmul.mubr.f32.gmra.mxu0 %v5865
          %v6266 = vpop.f32.mrf.mxu0
          %v6267 = vadd.f32 %v6047, %v6266
          %v6268 = vpop.f32.mrf.mxu0
          %6269 = vmatprep.mubr.f32.mxu0 %v5871
          %6270 = vmatmul.mubr.f32.gmra.mxu0 %v5870
          %v6271 = vpop.f32.mrf.mxu0
          %v6272 = vadd.f32 %v6047, %v6271
          %v6273 = vpop.f32.mrf.mxu0
          %6274 = vmatprep.mubr.f32.mxu0 %v5876
          %6275 = vmatmul.mubr.f32.gmra.mxu0 %v5875
          %v6276 = vpop.f32.mrf.mxu0
          %v6277 = vadd.f32 %v6047, %v6276
          %v6278 = vpop.f32.mrf.mxu0
          %6279 = vmatprep.mubr.f32.mxu0 %v5881
          %6280 = vmatmul.mubr.f32.gmra.mxu0 %v5880
          %v6281 = vpop.f32.mrf.mxu0
          %v6282 = vadd.f32 %v6047, %v6281
          %v6283 = vpop.f32.mrf.mxu0
          %6284 = vmatprep.mubr.f32.mxu0 %v5886
          %6285 = vmatmul.mubr.f32.gmra.mxu0 %v5885
          %v6286 = vpop.f32.mrf.mxu0
          %v6287 = vadd.f32 %v6047, %v6286
          %v6288 = vpop.f32.mrf.mxu0
          %6289 = vmatprep.mubr.f32.mxu0 %v5891
          %6290 = vmatmul.mubr.f32.gmra.mxu0 %v5890
          %v6291 = vpop.f32.mrf.mxu0
          %v6292 = vadd.f32 %v6047, %v6291
          %v6293 = vpop.f32.mrf.mxu0
          %6294 = vmatprep.mubr.f32.mxu0 %v5896
          %6295 = vmatmul.mubr.f32.gmra.mxu0 %v5895
          %v6296 = vpop.f32.mrf.mxu0
          %v6297 = vadd.f32 %v6047, %v6296
          %v6298 = vpop.f32.mrf.mxu0
          %6299 = vmatprep.mubr.f32.mxu0 %v5901
          %6300 = vmatmul.mubr.f32.gmra.mxu0 %v5900
          %v6301 = vpop.f32.mrf.mxu0
          %v6302 = vadd.f32 %v6047, %v6301
          %v6303 = vpop.f32.mrf.mxu0
          %6304 = vmatprep.mubr.f32.mxu0 %v5906
          %6305 = vmatmul.mubr.f32.gmra.mxu0 %v5905
          %v6306 = vpop.f32.mrf.mxu0
          %v6307 = vadd.f32 %v6047, %v6306
          %v6308 = vpop.f32.mrf.mxu0
          %6309 = vmatprep.mubr.f32.mxu0 %v5911
          %6310 = vmatmul.mubr.f32.gmra.mxu0 %v5910
          %v6311 = vpop.f32.mrf.mxu0
          %v6312 = vadd.f32 %v6047, %v6311
          %v6313 = vpop.f32.mrf.mxu0
          %6314 = vmatprep.mubr.f32.mxu0 %v5916
          %6315 = vmatmul.mubr.f32.gmra.mxu0 %v5915
          %v6316 = vpop.f32.mrf.mxu0
          %v6317 = vadd.f32 %v6047, %v6316
          %v6318 = vpop.f32.mrf.mxu0
          %6319 = vmatprep.mubr.f32.mxu0 %v5921
          %6320 = vmatmul.mubr.f32.gmra.mxu0 %v5920
          %v6321 = vpop.f32.mrf.mxu0
          %v6322 = vadd.f32 %v6047, %v6321
          %v6323 = vpop.f32.mrf.mxu0
          %6324 = vmatprep.mubr.f32.mxu0 %v5926
          %6325 = vmatmul.mubr.f32.gmra.mxu0 %v5925
          %v6326 = vpop.f32.mrf.mxu0
          %v6327 = vadd.f32 %v6047, %v6326
          %v6328 = vpop.f32.mrf.mxu0
          %6329 = vmatprep.mubr.f32.mxu0 %v5931
          %6330 = vmatmul.mubr.f32.gmra.mxu0 %v5930
          %v6331 = vpop.f32.mrf.mxu0
          %v6332 = vadd.f32 %v6047, %v6331
          %v6333 = vpop.f32.mrf.mxu0
          %6334 = vmatprep.mubr.f32.mxu0 %v5936
          %6335 = vmatmul.mubr.f32.gmra.mxu0 %v5935
          %v6336 = vpop.f32.mrf.mxu0
          %v6337 = vadd.f32 %v6047, %v6336
          %v6338 = vpop.f32.mrf.mxu0
          %6339 = vmatprep.mubr.f32.mxu0 %v5941
          %6340 = vmatmul.mubr.f32.gmra.mxu0 %v5940
          %v6341 = vpop.f32.mrf.mxu0
          %v6342 = vadd.f32 %v6047, %v6341
          %v6343 = vpop.f32.mrf.mxu0
          %6344 = vmatprep.mubr.f32.mxu0 %v5946
          %6345 = vmatmul.mubr.f32.gmra.mxu0 %v5945
          %v6346 = vpop.f32.mrf.mxu0
          %v6347 = vadd.f32 %v6047, %v6346
          %v6348 = vpop.f32.mrf.mxu0
          %6349 = vmatprep.mubr.f32.mxu0 %v5951
          %6350 = vmatmul.mubr.f32.gmra.mxu0 %v5950
          %v6351 = vpop.f32.mrf.mxu0
          %v6352 = vadd.f32 %v6047, %v6351
          %v6353 = vpop.f32.mrf.mxu0
          %6354 = vmatprep.mubr.f32.mxu0 %v5956
          %6355 = vmatmul.mubr.f32.gmra.mxu0 %v5955
          %v6356 = vpop.f32.mrf.mxu0
          %v6357 = vadd.f32 %v6047, %v6356
          %v6358 = vpop.f32.mrf.mxu0
          %6359 = vmatprep.mubr.f32.mxu0 %v5961
          %6360 = vmatmul.mubr.f32.gmra.mxu0 %v5960
          %v6361 = vpop.f32.mrf.mxu0
          %v6362 = vadd.f32 %v6047, %v6361
          %v6363 = vpop.f32.mrf.mxu0
          %6364 = vmatprep.mubr.f32.mxu0 %v5966
          %6365 = vmatmul.mubr.f32.gmra.mxu0 %v5965
          %v6366 = vpop.f32.mrf.mxu0
          %v6367 = vadd.f32 %v6047, %v6366
          %v6368 = vpop.f32.mrf.mxu0
          %6369 = vdwg.mxu0
          %6370 = vmatprep.subr.mxu0 0.0
          %6371 = vmatpush1.msra.mxu0 %v6017
          %6372 = vmatprep.subr.mxu0 0.0
          %6373 = vmatpush1.msra.mxu0 %v6016
          %6374 = vmatprep.subr.mxu0 0.0
          %6375 = vmatpush1.msra.mxu0 %v6015
          %6376 = vmatprep.subr.mxu0 0.0
          %6377 = vmatpush1.msra.mxu0 %v6014
          %6378 = vmatprep.subr.mxu0 0.0
          %6379 = vmatpush1.msra.mxu0 %v6013
          %6380 = vmatprep.subr.mxu0 0.0
          %6381 = vmatpush1.msra.mxu0 %v6012
          %6382 = vmatprep.subr.mxu0 0.0
          %6383 = vmatpush1.msra.mxu0 %v6011
          %6384 = vmatprep.subr.mxu0 0.0
          %6385 = vmatpush1.msra.mxu0 %v6010
          %6386 = vmatprep.subr.mxu0 0.0
          %6387 = vmatpush1.msra.mxu0 %v6009
          %6388 = vmatprep.subr.mxu0 0.0
          %6389 = vmatpush1.msra.mxu0 %v6008
          %6390 = vmatprep.subr.mxu0 0.0
          %6391 = vmatpush1.msra.mxu0 %v6007
          %6392 = vmatprep.subr.mxu0 0.0
          %6393 = vmatpush1.msra.mxu0 %v6006
          %6394 = vmatprep.subr.mxu0 0.0
          %6395 = vmatpush1.msra.mxu0 %v6005
          %6396 = vmatprep.subr.mxu0 0.0
          %6397 = vmatpush1.msra.mxu0 %v6004
          %6398 = vmatprep.subr.mxu0 0.0
          %6399 = vmatpush1.msra.mxu0 %v6003
          %6400 = vmatprep.subr.mxu0 0.0
          %6401 = vmatpush1.msra.mxu0 %v6002
          %6402 = vmatprep.subr.mxu0 0.0
          %6403 = vmatpush2.msra.mxu0 %v6033
          %6404 = vmatprep.subr.mxu0 0.0
          %6405 = vmatpush2.msra.mxu0 %v6032
          %6406 = vmatprep.subr.mxu0 0.0
          %6407 = vmatpush2.msra.mxu0 %v6031
          %6408 = vmatprep.subr.mxu0 0.0
          %6409 = vmatpush2.msra.mxu0 %v6030
          %6410 = vmatprep.subr.mxu0 0.0
          %6411 = vmatpush2.msra.mxu0 %v6029
          %6412 = vmatprep.subr.mxu0 0.0
          %6413 = vmatpush2.msra.mxu0 %v6028
          %6414 = vmatprep.subr.mxu0 0.0
          %6415 = vmatpush2.msra.mxu0 %v6027
          %6416 = vmatprep.subr.mxu0 0.0
          %6417 = vmatpush2.msra.mxu0 %v6026
          %6418 = vmatprep.subr.mxu0 0.0
          %6419 = vmatpush2.msra.mxu0 %v6025
          %6420 = vmatprep.subr.mxu0 0.0
          %6421 = vmatpush2.msra.mxu0 %v6024
          %6422 = vmatprep.subr.mxu0 0.0
          %6423 = vmatpush2.msra.mxu0 %v6023
          %6424 = vmatprep.subr.mxu0 0.0
          %6425 = vmatpush2.msra.mxu0 %v6022
          %6426 = vmatprep.subr.mxu0 0.0
          %6427 = vmatpush2.msra.mxu0 %v6021
          %6428 = vmatprep.subr.mxu0 0.0
          %6429 = vmatpush2.msra.mxu0 %v6020
          %6430 = vmatprep.subr.mxu0 0.0
          %6431 = vmatpush2.msra.mxu0 %v6019
          %6432 = vmatprep.subr.mxu0 0.0
          %6433 = vmatpush2.msra.mxu0 %v6018
          %6434 = vmatprep.mubr.f32.mxu0 %v5813
          %6435 = vmatmul.mubr.f32.gmra.mxu0 %v5812
          %v6436 = vpop.f32.mrf.mxu0
          %v6437 = vadd.f32 %v6212, %v6436
          %v6438 = vpop.f32.mrf.mxu0
          %6439 = vmatprep.mubr.f32.mxu0 %v5818
          %6440 = vmatmul.mubr.f32.gmra.mxu0 %v5817
          %v6441 = vpop.f32.mrf.mxu0
          %v6442 = vadd.f32 %v6217, %v6441
          %v6443 = vpop.f32.mrf.mxu0
          %6444 = vmatprep.mubr.f32.mxu0 %v5823
          %6445 = vmatmul.mubr.f32.gmra.mxu0 %v5822
          %v6446 = vpop.f32.mrf.mxu0
          %v6447 = vadd.f32 %v6222, %v6446
          %v6448 = vpop.f32.mrf.mxu0
          %6449 = vmatprep.mubr.f32.mxu0 %v5828
          %6450 = vmatmul.mubr.f32.gmra.mxu0 %v5827
          %v6451 = vpop.f32.mrf.mxu0
          %v6452 = vadd.f32 %v6227, %v6451
          %v6453 = vpop.f32.mrf.mxu0
          %6454 = vmatprep.mubr.f32.mxu0 %v5833
          %6455 = vmatmul.mubr.f32.gmra.mxu0 %v5832
          %v6456 = vpop.f32.mrf.mxu0
          %v6457 = vadd.f32 %v6232, %v6456
          %v6458 = vpop.f32.mrf.mxu0
          %6459 = vmatprep.mubr.f32.mxu0 %v5838
          %6460 = vmatmul.mubr.f32.gmra.mxu0 %v5837
          %v6461 = vpop.f32.mrf.mxu0
          %v6462 = vadd.f32 %v6237, %v6461
          %v6463 = vpop.f32.mrf.mxu0
          %6464 = vmatprep.mubr.f32.mxu0 %v5843
          %6465 = vmatmul.mubr.f32.gmra.mxu0 %v5842
          %v6466 = vpop.f32.mrf.mxu0
          %v6467 = vadd.f32 %v6242, %v6466
          %v6468 = vpop.f32.mrf.mxu0
          %6469 = vmatprep.mubr.f32.mxu0 %v5848
          %6470 = vmatmul.mubr.f32.gmra.mxu0 %v5847
          %v6471 = vpop.f32.mrf.mxu0
          %v6472 = vadd.f32 %v6247, %v6471
          %v6473 = vpop.f32.mrf.mxu0
          %6474 = vmatprep.mubr.f32.mxu0 %v5853
          %6475 = vmatmul.mubr.f32.gmra.mxu0 %v5852
          %v6476 = vpop.f32.mrf.mxu0
          %v6477 = vadd.f32 %v6252, %v6476
          %v6478 = vpop.f32.mrf.mxu0
          %6479 = vmatprep.mubr.f32.mxu0 %v5858
          %6480 = vmatmul.mubr.f32.gmra.mxu0 %v5857
          %v6481 = vpop.f32.mrf.mxu0
          %v6482 = vadd.f32 %v6257, %v6481
          %v6483 = vpop.f32.mrf.mxu0
          %6484 = vmatprep.mubr.f32.mxu0 %v5863
          %6485 = vmatmul.mubr.f32.gmra.mxu0 %v5862
          %v6486 = vpop.f32.mrf.mxu0
          %v6487 = vadd.f32 %v6262, %v6486
          %v6488 = vpop.f32.mrf.mxu0
          %6489 = vmatprep.mubr.f32.mxu0 %v5868
          %6490 = vmatmul.mubr.f32.gmra.mxu0 %v5867
          %v6491 = vpop.f32.mrf.mxu0
          %v6492 = vadd.f32 %v6267, %v6491
          %v6493 = vpop.f32.mrf.mxu0
          %6494 = vmatprep.mubr.f32.mxu0 %v5873
          %6495 = vmatmul.mubr.f32.gmra.mxu0 %v5872
          %v6496 = vpop.f32.mrf.mxu0
          %v6497 = vadd.f32 %v6272, %v6496
          %v6498 = vpop.f32.mrf.mxu0
          %6499 = vmatprep.mubr.f32.mxu0 %v5878
          %6500 = vmatmul.mubr.f32.gmra.mxu0 %v5877
          %v6501 = vpop.f32.mrf.mxu0
          %v6502 = vadd.f32 %v6277, %v6501
          %v6503 = vpop.f32.mrf.mxu0
          %6504 = vmatprep.mubr.f32.mxu0 %v5883
          %6505 = vmatmul.mubr.f32.gmra.mxu0 %v5882
          %v6506 = vpop.f32.mrf.mxu0
          %v6507 = vadd.f32 %v6282, %v6506
          %v6508 = vpop.f32.mrf.mxu0
          %6509 = vmatprep.mubr.f32.mxu0 %v5888
          %6510 = vmatmul.mubr.f32.gmra.mxu0 %v5887
          %v6511 = vpop.f32.mrf.mxu0
          %v6512 = vadd.f32 %v6287, %v6511
          %v6513 = vpop.f32.mrf.mxu0
          %6514 = vmatprep.mubr.f32.mxu0 %v5893
          %6515 = vmatmul.mubr.f32.gmra.mxu0 %v5892
          %v6516 = vpop.f32.mrf.mxu0
          %v6517 = vadd.f32 %v6292, %v6516
          %v6518 = vpop.f32.mrf.mxu0
          %6519 = vmatprep.mubr.f32.mxu0 %v5898
          %6520 = vmatmul.mubr.f32.gmra.mxu0 %v5897
          %v6521 = vpop.f32.mrf.mxu0
          %v6522 = vadd.f32 %v6297, %v6521
          %v6523 = vpop.f32.mrf.mxu0
          %6524 = vmatprep.mubr.f32.mxu0 %v5903
          %6525 = vmatmul.mubr.f32.gmra.mxu0 %v5902
          %v6526 = vpop.f32.mrf.mxu0
          %v6527 = vadd.f32 %v6302, %v6526
          %v6528 = vpop.f32.mrf.mxu0
          %6529 = vmatprep.mubr.f32.mxu0 %v5908
          %6530 = vmatmul.mubr.f32.gmra.mxu0 %v5907
          %v6531 = vpop.f32.mrf.mxu0
          %v6532 = vadd.f32 %v6307, %v6531
          %v6533 = vpop.f32.mrf.mxu0
          %6534 = vmatprep.mubr.f32.mxu0 %v5913
          %6535 = vmatmul.mubr.f32.gmra.mxu0 %v5912
          %v6536 = vpop.f32.mrf.mxu0
          %v6537 = vadd.f32 %v6312, %v6536
          %v6538 = vpop.f32.mrf.mxu0
          %6539 = vmatprep.mubr.f32.mxu0 %v5918
          %6540 = vmatmul.mubr.f32.gmra.mxu0 %v5917
          %v6541 = vpop.f32.mrf.mxu0
          %v6542 = vadd.f32 %v6317, %v6541
          %v6543 = vpop.f32.mrf.mxu0
          %6544 = vmatprep.mubr.f32.mxu0 %v5923
          %6545 = vmatmul.mubr.f32.gmra.mxu0 %v5922
          %v6546 = vpop.f32.mrf.mxu0
          %v6547 = vadd.f32 %v6322, %v6546
          %v6548 = vpop.f32.mrf.mxu0
          %6549 = vmatprep.mubr.f32.mxu0 %v5928
          %6550 = vmatmul.mubr.f32.gmra.mxu0 %v5927
          %v6551 = vpop.f32.mrf.mxu0
          %v6552 = vadd.f32 %v6327, %v6551
          %v6553 = vpop.f32.mrf.mxu0
          %6554 = vmatprep.mubr.f32.mxu0 %v5933
          %6555 = vmatmul.mubr.f32.gmra.mxu0 %v5932
          %v6556 = vpop.f32.mrf.mxu0
          %v6557 = vadd.f32 %v6332, %v6556
          %v6558 = vpop.f32.mrf.mxu0
          %6559 = vmatprep.mubr.f32.mxu0 %v5938
          %6560 = vmatmul.mubr.f32.gmra.mxu0 %v5937
          %v6561 = vpop.f32.mrf.mxu0
          %v6562 = vadd.f32 %v6337, %v6561
          %v6563 = vpop.f32.mrf.mxu0
          %6564 = vmatprep.mubr.f32.mxu0 %v5943
          %6565 = vmatmul.mubr.f32.gmra.mxu0 %v5942
          %v6566 = vpop.f32.mrf.mxu0
          %v6567 = vadd.f32 %v6342, %v6566
          %v6568 = vpop.f32.mrf.mxu0
          %6569 = vmatprep.mubr.f32.mxu0 %v5948
          %6570 = vmatmul.mubr.f32.gmra.mxu0 %v5947
          %v6571 = vpop.f32.mrf.mxu0
          %v6572 = vadd.f32 %v6347, %v6571
          %v6573 = vpop.f32.mrf.mxu0
          %6574 = vmatprep.mubr.f32.mxu0 %v5953
          %6575 = vmatmul.mubr.f32.gmra.mxu0 %v5952
          %v6576 = vpop.f32.mrf.mxu0
          %v6577 = vadd.f32 %v6352, %v6576
          %v6578 = vpop.f32.mrf.mxu0
          %6579 = vmatprep.mubr.f32.mxu0 %v5958
          %6580 = vmatmul.mubr.f32.gmra.mxu0 %v5957
          %v6581 = vpop.f32.mrf.mxu0
          %v6582 = vadd.f32 %v6357, %v6581
          %v6583 = vpop.f32.mrf.mxu0
          %6584 = vmatprep.mubr.f32.mxu0 %v5963
          %6585 = vmatmul.mubr.f32.gmra.mxu0 %v5962
          %v6586 = vpop.f32.mrf.mxu0
          %v6587 = vadd.f32 %v6362, %v6586
          %v6588 = vpop.f32.mrf.mxu0
          %6589 = vmatprep.mubr.f32.mxu0 %v5968
          %6590 = vmatmul.mubr.f32.gmra.mxu0 %v5967
          %v6591 = vpop.f32.mrf.mxu0
          %v6592 = vadd.f32 %v6367, %v6591
          %v6593 = vpop.f32.mrf.mxu0
          %6594 = vdwg.mxu0
          %6595 = vmatprep.subr.mxu0 0.0
          %6596 = vmatpush1.msra.mxu0 0.0
          %6597 = vmatprep.subr.mxu0 0.0
          %6598 = vmatpush1.msra.mxu0 0.0
          %6599 = vmatprep.subr.mxu0 0.0
          %6600 = vmatpush1.msra.mxu0 0.0
          %6601 = vmatprep.subr.mxu0 0.0
          %6602 = vmatpush1.msra.mxu0 0.0
          %6603 = vmatprep.subr.mxu0 0.0
          %6604 = vmatpush1.msra.mxu0 0.0
          %6605 = vmatprep.subr.mxu0 0.0
          %6606 = vmatpush1.msra.mxu0 0.0
          %6607 = vmatprep.subr.mxu0 0.0
          %6608 = vmatpush1.msra.mxu0 0.0
          %6609 = vmatprep.subr.mxu0 0.0
          %6610 = vmatpush1.msra.mxu0 0.0
          %6611 = vmatprep.subr.mxu0 0.0
          %6612 = vmatpush1.msra.mxu0 %v6041
          %6613 = vmatprep.subr.mxu0 0.0
          %6614 = vmatpush1.msra.mxu0 %v6040
          %6615 = vmatprep.subr.mxu0 0.0
          %6616 = vmatpush1.msra.mxu0 %v6039
          %6617 = vmatprep.subr.mxu0 0.0
          %6618 = vmatpush1.msra.mxu0 %v6038
          %6619 = vmatprep.subr.mxu0 0.0
          %6620 = vmatpush1.msra.mxu0 %v6037
          %6621 = vmatprep.subr.mxu0 0.0
          %6622 = vmatpush1.msra.mxu0 %v6036
          %6623 = vmatprep.subr.mxu0 0.0
          %6624 = vmatpush1.msra.mxu0 %v6035
          %6625 = vmatprep.subr.mxu0 0.0
          %6626 = vmatpush1.msra.mxu0 %v6034
          %6627 = vmatprep.subr.mxu0 0.0
          %6628 = vmatpush2.msra.mxu0 0.0
          %6629 = vmatprep.subr.mxu0 0.0
          %6630 = vmatpush2.msra.mxu0 0.0
          %6631 = vmatprep.subr.mxu0 0.0
          %6632 = vmatpush2.msra.mxu0 0.0
          %6633 = vmatprep.subr.mxu0 0.0
          %6634 = vmatpush2.msra.mxu0 0.0
          %6635 = vmatprep.subr.mxu0 0.0
          %6636 = vmatpush2.msra.mxu0 0.0
          %6637 = vmatprep.subr.mxu0 0.0
          %6638 = vmatpush2.msra.mxu0 0.0
          %6639 = vmatprep.subr.mxu0 0.0
          %6640 = vmatpush2.msra.mxu0 0.0
          %6641 = vmatprep.subr.mxu0 0.0
          %6642 = vmatpush2.msra.mxu0 0.0
          %6643 = vmatprep.subr.mxu0 0.0
          %6644 = vmatpush2.msra.mxu0 0.0
          %6645 = vmatprep.subr.mxu0 0.0
          %6646 = vmatpush2.msra.mxu0 0.0
          %6647 = vmatprep.subr.mxu0 0.0
          %6648 = vmatpush2.msra.mxu0 0.0
          %6649 = vmatprep.subr.mxu0 0.0
          %6650 = vmatpush2.msra.mxu0 0.0
          %6651 = vmatprep.subr.mxu0 0.0
          %6652 = vmatpush2.msra.mxu0 0.0
          %6653 = vmatprep.subr.mxu0 0.0
          %6654 = vmatpush2.msra.mxu0 0.0
          %6655 = vmatprep.subr.mxu0 0.0
          %6656 = vmatpush2.msra.mxu0 0.0
          %6657 = vmatprep.subr.mxu0 0.0
          %6658 = vmatpush2.msra.mxu0 0.0
          %6659 = vmatprep.mubr.f32.mxu0 0.0
          %6660 = vmatmul.mubr.f32.gmra.mxu0 %v6050
          %v6661 = vpop.f32.mrf.mxu0
          %v6662 = vadd.f32 %v6437, %v6661
          %v6663 = vpop.f32.mrf.mxu0
          %6664 = vmatprep.mubr.f32.mxu0 0.0
          %6665 = vmatmul.mubr.f32.gmra.mxu0 %v6053
          %v6666 = vpop.f32.mrf.mxu0
          %v6667 = vadd.f32 %v6442, %v6666
          %v6668 = vpop.f32.mrf.mxu0
          %6669 = vmatprep.mubr.f32.mxu0 0.0
          %6670 = vmatmul.mubr.f32.gmra.mxu0 %v6056
          %v6671 = vpop.f32.mrf.mxu0
          %v6672 = vadd.f32 %v6447, %v6671
          %v6673 = vpop.f32.mrf.mxu0
          %6674 = vmatprep.mubr.f32.mxu0 0.0
          %6675 = vmatmul.mubr.f32.gmra.mxu0 %v6059
          %v6676 = vpop.f32.mrf.mxu0
          %v6677 = vadd.f32 %v6452, %v6676
          %v6678 = vpop.f32.mrf.mxu0
          %6679 = vmatprep.mubr.f32.mxu0 0.0
          %6680 = vmatmul.mubr.f32.gmra.mxu0 %v6062
          %v6681 = vpop.f32.mrf.mxu0
          %v6682 = vadd.f32 %v6457, %v6681
          %v6683 = vpop.f32.mrf.mxu0
          %6684 = vmatprep.mubr.f32.mxu0 0.0
          %6685 = vmatmul.mubr.f32.gmra.mxu0 %v6065
          %v6686 = vpop.f32.mrf.mxu0
          %v6687 = vadd.f32 %v6462, %v6686
          %v6688 = vpop.f32.mrf.mxu0
          %6689 = vmatprep.mubr.f32.mxu0 0.0
          %6690 = vmatmul.mubr.f32.gmra.mxu0 %v6068
          %v6691 = vpop.f32.mrf.mxu0
          %v6692 = vadd.f32 %v6467, %v6691
          %v6693 = vpop.f32.mrf.mxu0
          %6694 = vmatprep.mubr.f32.mxu0 0.0
          %6695 = vmatmul.mubr.f32.gmra.mxu0 %v6071
          %v6696 = vpop.f32.mrf.mxu0
          %v6697 = vadd.f32 %v6472, %v6696
          %v6698 = vpop.f32.mrf.mxu0
          %6699 = vmatprep.mubr.f32.mxu0 0.0
          %6700 = vmatmul.mubr.f32.gmra.mxu0 %v6074
          %v6701 = vpop.f32.mrf.mxu0
          %v6702 = vadd.f32 %v6477, %v6701
          %v6703 = vpop.f32.mrf.mxu0
          %6704 = vmatprep.mubr.f32.mxu0 0.0
          %6705 = vmatmul.mubr.f32.gmra.mxu0 %v6077
          %v6706 = vpop.f32.mrf.mxu0
          %v6707 = vadd.f32 %v6482, %v6706
          %v6708 = vpop.f32.mrf.mxu0
          %6709 = vmatprep.mubr.f32.mxu0 0.0
          %6710 = vmatmul.mubr.f32.gmra.mxu0 %v6080
          %v6711 = vpop.f32.mrf.mxu0
          %v6712 = vadd.f32 %v6487, %v6711
          %v6713 = vpop.f32.mrf.mxu0
          %6714 = vmatprep.mubr.f32.mxu0 0.0
          %6715 = vmatmul.mubr.f32.gmra.mxu0 %v6083
          %v6716 = vpop.f32.mrf.mxu0
          %v6717 = vadd.f32 %v6492, %v6716
          %v6718 = vpop.f32.mrf.mxu0
          %6719 = vmatprep.mubr.f32.mxu0 0.0
          %6720 = vmatmul.mubr.f32.gmra.mxu0 %v6086
          %v6721 = vpop.f32.mrf.mxu0
          %v6722 = vadd.f32 %v6497, %v6721
          %v6723 = vpop.f32.mrf.mxu0
          %6724 = vmatprep.mubr.f32.mxu0 0.0
          %6725 = vmatmul.mubr.f32.gmra.mxu0 %v6089
          %v6726 = vpop.f32.mrf.mxu0
          %v6727 = vadd.f32 %v6502, %v6726
          %v6728 = vpop.f32.mrf.mxu0
          %6729 = vmatprep.mubr.f32.mxu0 0.0
          %6730 = vmatmul.mubr.f32.gmra.mxu0 %v6092
          %v6731 = vpop.f32.mrf.mxu0
          %v6732 = vadd.f32 %v6507, %v6731
          %v6733 = vpop.f32.mrf.mxu0
          %6734 = vmatprep.mubr.f32.mxu0 0.0
          %6735 = vmatmul.mubr.f32.gmra.mxu0 %v6095
          %v6736 = vpop.f32.mrf.mxu0
          %v6737 = vadd.f32 %v6512, %v6736
          %v6738 = vpop.f32.mrf.mxu0
          %6739 = vmatprep.mubr.f32.mxu0 0.0
          %6740 = vmatmul.mubr.f32.gmra.mxu0 %v6098
          %v6741 = vpop.f32.mrf.mxu0
          %v6742 = vadd.f32 %v6517, %v6741
          %v6743 = vpop.f32.mrf.mxu0
          %6744 = vmatprep.mubr.f32.mxu0 0.0
          %6745 = vmatmul.mubr.f32.gmra.mxu0 %v6101
          %v6746 = vpop.f32.mrf.mxu0
          %v6747 = vadd.f32 %v6522, %v6746
          %v6748 = vpop.f32.mrf.mxu0
          %6749 = vmatprep.mubr.f32.mxu0 0.0
          %6750 = vmatmul.mubr.f32.gmra.mxu0 %v6104
          %v6751 = vpop.f32.mrf.mxu0
          %v6752 = vadd.f32 %v6527, %v6751
          %v6753 = vpop.f32.mrf.mxu0
          %6754 = vmatprep.mubr.f32.mxu0 0.0
          %6755 = vmatmul.mubr.f32.gmra.mxu0 %v6107
          %v6756 = vpop.f32.mrf.mxu0
          %v6757 = vadd.f32 %v6532, %v6756
          %v6758 = vpop.f32.mrf.mxu0
          %6759 = vmatprep.mubr.f32.mxu0 0.0
          %6760 = vmatmul.mubr.f32.gmra.mxu0 %v6110
          %v6761 = vpop.f32.mrf.mxu0
          %v6762 = vadd.f32 %v6537, %v6761
          %v6763 = vpop.f32.mrf.mxu0
          %6764 = vmatprep.mubr.f32.mxu0 0.0
          %6765 = vmatmul.mubr.f32.gmra.mxu0 %v6113
          %v6766 = vpop.f32.mrf.mxu0
          %v6767 = vadd.f32 %v6542, %v6766
          %v6768 = vpop.f32.mrf.mxu0
          %6769 = vmatprep.mubr.f32.mxu0 0.0
          %6770 = vmatmul.mubr.f32.gmra.mxu0 %v6116
          %v6771 = vpop.f32.mrf.mxu0
          %v6772 = vadd.f32 %v6547, %v6771
          %v6773 = vpop.f32.mrf.mxu0
          %6774 = vmatprep.mubr.f32.mxu0 0.0
          %6775 = vmatmul.mubr.f32.gmra.mxu0 %v6119
          %v6776 = vpop.f32.mrf.mxu0
          %v6777 = vadd.f32 %v6552, %v6776
          %v6778 = vpop.f32.mrf.mxu0
          %6779 = vmatprep.mubr.f32.mxu0 0.0
          %6780 = vmatmul.mubr.f32.gmra.mxu0 %v6122
          %v6781 = vpop.f32.mrf.mxu0
          %v6782 = vadd.f32 %v6557, %v6781
          %v6783 = vpop.f32.mrf.mxu0
          %6784 = vmatprep.mubr.f32.mxu0 0.0
          %6785 = vmatmul.mubr.f32.gmra.mxu0 %v6125
          %v6786 = vpop.f32.mrf.mxu0
          %v6787 = vadd.f32 %v6562, %v6786
          %v6788 = vpop.f32.mrf.mxu0
          %6789 = vmatprep.mubr.f32.mxu0 0.0
          %6790 = vmatmul.mubr.f32.gmra.mxu0 %v6128
          %v6791 = vpop.f32.mrf.mxu0
          %v6792 = vadd.f32 %v6567, %v6791
          %v6793 = vpop.f32.mrf.mxu0
          %6794 = vmatprep.mubr.f32.mxu0 0.0
          %6795 = vmatmul.mubr.f32.gmra.mxu0 %v6131
          %v6796 = vpop.f32.mrf.mxu0
          %v6797 = vadd.f32 %v6572, %v6796
          %v6798 = vpop.f32.mrf.mxu0
          %6799 = vmatprep.mubr.f32.mxu0 0.0
          %6800 = vmatmul.mubr.f32.gmra.mxu0 %v6134
          %v6801 = vpop.f32.mrf.mxu0
          %v6802 = vadd.f32 %v6577, %v6801
          %v6803 = vpop.f32.mrf.mxu0
          %6804 = vmatprep.mubr.f32.mxu0 0.0
          %6805 = vmatmul.mubr.f32.gmra.mxu0 %v6137
          %v6806 = vpop.f32.mrf.mxu0
          %v6807 = vadd.f32 %v6582, %v6806
          %v6808 = vpop.f32.mrf.mxu0
          %6809 = vmatprep.mubr.f32.mxu0 0.0
          %6810 = vmatmul.mubr.f32.gmra.mxu0 %v6140
          %v6811 = vpop.f32.mrf.mxu0
          %v6812 = vadd.f32 %v6587, %v6811
          %v6813 = vpop.f32.mrf.mxu0
          %6814 = vmatprep.mubr.f32.mxu0 0.0
          %6815 = vmatmul.mubr.f32.gmra.mxu0 %v6143
          %v6816 = vpop.f32.mrf.mxu0
          %v6817 = vadd.f32 %v6592, %v6816
          %v6818 = vpop.f32.mrf.mxu0
          %6819 = vdwg.mxu0
          %v6820 = vxor.u32 %v6662, 2147483648
          %v6821 = vxor.u32 %v6667, 2147483648
          %v6822 = vxor.u32 %v6672, 2147483648
          %v6823 = vxor.u32 %v6677, 2147483648
          %v6824 = vxor.u32 %v6682, 2147483648
          %v6825 = vxor.u32 %v6687, 2147483648
          %v6826 = vxor.u32 %v6692, 2147483648
          %v6827 = vxor.u32 %v6697, 2147483648
          %v6828 = vxor.u32 %v6702, 2147483648
          %v6829 = vxor.u32 %v6707, 2147483648
          %v6830 = vxor.u32 %v6712, 2147483648
          %v6831 = vxor.u32 %v6717, 2147483648
          %v6832 = vxor.u32 %v6722, 2147483648
          %v6833 = vxor.u32 %v6727, 2147483648
          %v6834 = vxor.u32 %v6732, 2147483648
          %v6835 = vxor.u32 %v6737, 2147483648
          %v6836 = vxor.u32 %v6742, 2147483648
          %v6837 = vxor.u32 %v6747, 2147483648
          %v6838 = vxor.u32 %v6752, 2147483648
          %v6839 = vxor.u32 %v6757, 2147483648
          %v6840 = vxor.u32 %v6762, 2147483648
          %v6841 = vxor.u32 %v6767, 2147483648
          %v6842 = vxor.u32 %v6772, 2147483648
          %v6843 = vxor.u32 %v6777, 2147483648
          %v6844 = vxor.u32 %v6782, 2147483648
          %v6845 = vxor.u32 %v6787, 2147483648
          %v6846 = vxor.u32 %v6792, 2147483648
          %v6847 = vxor.u32 %v6797, 2147483648
          %v6848 = vxor.u32 %v6802, 2147483648
          %v6849 = vxor.u32 %v6807, 2147483648
          %v6850 = vxor.u32 %v6812, 2147483648
          %v6851 = vxor.u32 %v6817, 2147483648
          %v6852 = vmul.f32 %v6820, 1.442695
          %v6853 = vpow.pop %v6852
          %v6854 = vmul.f32 %v6821, 1.442695
          %v6855 = vpow.pop %v6854
          %v6856 = vmul.f32 %v6822, 1.442695
          %v6857 = vpow.pop %v6856
          %v6858 = vmul.f32 %v6823, 1.442695
          %v6859 = vpow.pop %v6858
          %v6860 = vmul.f32 %v6824, 1.442695
          %v6861 = vpow.pop %v6860
          %v6862 = vmul.f32 %v6825, 1.442695
          %v6863 = vpow.pop %v6862
          %v6864 = vmul.f32 %v6826, 1.442695
          %v6865 = vpow.pop %v6864
          %v6866 = vmul.f32 %v6827, 1.442695
          %v6867 = vpow.pop %v6866
          %v6868 = vmul.f32 %v6828, 1.442695
          %v6869 = vpow.pop %v6868
          %v6870 = vmul.f32 %v6829, 1.442695
          %v6871 = vpow.pop %v6870
          %v6872 = vmul.f32 %v6830, 1.442695
          %v6873 = vpow.pop %v6872
          %v6874 = vmul.f32 %v6831, 1.442695
          %v6875 = vpow.pop %v6874
          %v6876 = vmul.f32 %v6832, 1.442695
          %v6877 = vpow.pop %v6876
          %v6878 = vmul.f32 %v6833, 1.442695
          %v6879 = vpow.pop %v6878
          %v6880 = vmul.f32 %v6834, 1.442695
          %v6881 = vpow.pop %v6880
          %v6882 = vmul.f32 %v6835, 1.442695
          %v6883 = vpow.pop %v6882
          %v6884 = vmul.f32 %v6836, 1.442695
          %v6885 = vpow.pop %v6884
          %v6886 = vmul.f32 %v6837, 1.442695
          %v6887 = vpow.pop %v6886
          %v6888 = vmul.f32 %v6838, 1.442695
          %v6889 = vpow.pop %v6888
          %v6890 = vmul.f32 %v6839, 1.442695
          %v6891 = vpow.pop %v6890
          %v6892 = vmul.f32 %v6840, 1.442695
          %v6893 = vpow.pop %v6892
          %v6894 = vmul.f32 %v6841, 1.442695
          %v6895 = vpow.pop %v6894
          %v6896 = vmul.f32 %v6842, 1.442695
          %v6897 = vpow.pop %v6896
          %v6898 = vmul.f32 %v6843, 1.442695
          %v6899 = vpow.pop %v6898
          %v6900 = vmul.f32 %v6844, 1.442695
          %v6901 = vpow.pop %v6900
          %v6902 = vmul.f32 %v6845, 1.442695
          %v6903 = vpow.pop %v6902
          %v6904 = vmul.f32 %v6846, 1.442695
          %v6905 = vpow.pop %v6904
          %v6906 = vmul.f32 %v6847, 1.442695
          %v6907 = vpow.pop %v6906
          %v6908 = vmul.f32 %v6848, 1.442695
          %v6909 = vpow.pop %v6908
          %v6910 = vmul.f32 %v6849, 1.442695
          %v6911 = vpow.pop %v6910
          %v6912 = vmul.f32 %v6850, 1.442695
          %v6913 = vpow.pop %v6912
          %v6914 = vmul.f32 %v6851, 1.442695
          %v6915 = vpow.pop %v6914
          %v6916 = vadd.f32 %v6853, 1.0
          %v6917 = vadd.f32 %v6855, 1.0
          %v6918 = vadd.f32 %v6857, 1.0
          %v6919 = vadd.f32 %v6859, 1.0
          %v6920 = vadd.f32 %v6861, 1.0
          %v6921 = vadd.f32 %v6863, 1.0
          %v6922 = vadd.f32 %v6865, 1.0
          %v6923 = vadd.f32 %v6867, 1.0
          %v6924 = vadd.f32 %v6869, 1.0
          %v6925 = vadd.f32 %v6871, 1.0
          %v6926 = vadd.f32 %v6873, 1.0
          %v6927 = vadd.f32 %v6875, 1.0
          %v6928 = vadd.f32 %v6877, 1.0
          %v6929 = vadd.f32 %v6879, 1.0
          %v6930 = vadd.f32 %v6881, 1.0
          %v6931 = vadd.f32 %v6883, 1.0
          %v6932 = vadd.f32 %v6885, 1.0
          %v6933 = vadd.f32 %v6887, 1.0
          %v6934 = vadd.f32 %v6889, 1.0
          %v6935 = vadd.f32 %v6891, 1.0
          %v6936 = vadd.f32 %v6893, 1.0
          %v6937 = vadd.f32 %v6895, 1.0
          %v6938 = vadd.f32 %v6897, 1.0
          %v6939 = vadd.f32 %v6899, 1.0
          %v6940 = vadd.f32 %v6901, 1.0
          %v6941 = vadd.f32 %v6903, 1.0
          %v6942 = vadd.f32 %v6905, 1.0
          %v6943 = vadd.f32 %v6907, 1.0
          %v6944 = vadd.f32 %v6909, 1.0
          %v6945 = vadd.f32 %v6911, 1.0
          %v6946 = vadd.f32 %v6913, 1.0
          %v6947 = vadd.f32 %v6915, 1.0
          %v6948 = vrcp.pop %v6916
          %v6949 = vmul.f32 1.0, %v6948
          %v6950 = vrcp.pop %v6917
          %v6951 = vmul.f32 1.0, %v6950
          %v6952 = vrcp.pop %v6918
          %v6953 = vmul.f32 1.0, %v6952
          %v6954 = vrcp.pop %v6919
          %v6955 = vmul.f32 1.0, %v6954
          %v6956 = vrcp.pop %v6920
          %v6957 = vmul.f32 1.0, %v6956
          %v6958 = vrcp.pop %v6921
          %v6959 = vmul.f32 1.0, %v6958
          %v6960 = vrcp.pop %v6922
          %v6961 = vmul.f32 1.0, %v6960
          %v6962 = vrcp.pop %v6923
          %v6963 = vmul.f32 1.0, %v6962
          %v6964 = vrcp.pop %v6924
          %v6965 = vmul.f32 1.0, %v6964
          %v6966 = vrcp.pop %v6925
          %v6967 = vmul.f32 1.0, %v6966
          %v6968 = vrcp.pop %v6926
          %v6969 = vmul.f32 1.0, %v6968
          %v6970 = vrcp.pop %v6927
          %v6971 = vmul.f32 1.0, %v6970
          %v6972 = vrcp.pop %v6928
          %v6973 = vmul.f32 1.0, %v6972
          %v6974 = vrcp.pop %v6929
          %v6975 = vmul.f32 1.0, %v6974
          %v6976 = vrcp.pop %v6930
          %v6977 = vmul.f32 1.0, %v6976
          %v6978 = vrcp.pop %v6931
          %v6979 = vmul.f32 1.0, %v6978
          %v6980 = vrcp.pop %v6932
          %v6981 = vmul.f32 1.0, %v6980
          %v6982 = vrcp.pop %v6933
          %v6983 = vmul.f32 1.0, %v6982
          %v6984 = vrcp.pop %v6934
          %v6985 = vmul.f32 1.0, %v6984
          %v6986 = vrcp.pop %v6935
          %v6987 = vmul.f32 1.0, %v6986
          %v6988 = vrcp.pop %v6936
          %v6989 = vmul.f32 1.0, %v6988
          %v6990 = vrcp.pop %v6937
          %v6991 = vmul.f32 1.0, %v6990
          %v6992 = vrcp.pop %v6938
          %v6993 = vmul.f32 1.0, %v6992
          %v6994 = vrcp.pop %v6939
          %v6995 = vmul.f32 1.0, %v6994
          %v6996 = vrcp.pop %v6940
          %v6997 = vmul.f32 1.0, %v6996
          %v6998 = vrcp.pop %v6941
          %v6999 = vmul.f32 1.0, %v6998
          %v7000 = vrcp.pop %v6942
          %v7001 = vmul.f32 1.0, %v7000
          %v7002 = vrcp.pop %v6943
          %v7003 = vmul.f32 1.0, %v7002
          %v7004 = vrcp.pop %v6944
          %v7005 = vmul.f32 1.0, %v7004
          %v7006 = vrcp.pop %v6945
          %v7007 = vmul.f32 1.0, %v7006
          %v7008 = vrcp.pop %v6946
          %v7009 = vmul.f32 1.0, %v7008
          %v7010 = vrcp.pop %v6947
          %v7011 = vmul.f32 1.0, %v7010
          %v7012 = vtanh.pop %v6662
          %v7013 = vtanh.pop %v6667
          %v7014 = vtanh.pop %v6672
          %v7015 = vtanh.pop %v6677
          %v7016 = vtanh.pop %v6682
          %v7017 = vtanh.pop %v6687
          %v7018 = vtanh.pop %v6692
          %v7019 = vtanh.pop %v6697
          %v7020 = vtanh.pop %v6702
          %v7021 = vtanh.pop %v6707
          %v7022 = vtanh.pop %v6712
          %v7023 = vtanh.pop %v6717
          %v7024 = vtanh.pop %v6722
          %v7025 = vtanh.pop %v6727
          %v7026 = vtanh.pop %v6732
          %v7027 = vtanh.pop %v6737
          %v7028 = vtanh.pop %v6742
          %v7029 = vtanh.pop %v6747
          %v7030 = vtanh.pop %v6752
          %v7031 = vtanh.pop %v6757
          %v7032 = vtanh.pop %v6762
          %v7033 = vtanh.pop %v6767
          %v7034 = vtanh.pop %v6772
          %v7035 = vtanh.pop %v6777
          %v7036 = vtanh.pop %v6782
          %v7037 = vtanh.pop %v6787
          %v7038 = vtanh.pop %v6792
          %v7039 = vtanh.pop %v6797
          %v7040 = vtanh.pop %v6802
          %v7041 = vtanh.pop %v6807
          %v7042 = vtanh.pop %v6812
          %v7043 = vtanh.pop %v6817
          %v7044 = vld [vmem:[#allocation9] sm:$0xff]
          %v7045 = vld [vmem:[#allocation9 + $0x8] sm:$0xff]
          %v7046 = vld [vmem:[#allocation9 + $0x10] sm:$0xff]
          %v7047 = vld [vmem:[#allocation9 + $0x18] sm:$0xff]
          %v7048 = vld [vmem:[#allocation9 + $0x20] sm:$0xff]
          %v7049 = vld [vmem:[#allocation9 + $0x28] sm:$0xff]
          %v7050 = vld [vmem:[#allocation9 + $0x30] sm:$0xff]
          %v7051 = vld [vmem:[#allocation9 + $0x38] sm:$0xff]
          %v7052 = vld [vmem:[#allocation9 + $0x40] sm:$0xff]
          %v7053 = vld [vmem:[#allocation9 + $0x48] sm:$0xff]
          %v7054 = vld [vmem:[#allocation9 + $0x50] sm:$0xff]
          %v7055 = vld [vmem:[#allocation9 + $0x58] sm:$0xff]
          %v7056 = vld [vmem:[#allocation9 + $0x60] sm:$0xff]
          %v7057 = vld [vmem:[#allocation9 + $0x68] sm:$0xff]
          %v7058 = vld [vmem:[#allocation9 + $0x70] sm:$0xff]
          %v7059 = vld [vmem:[#allocation9 + $0x78] sm:$0xff]
          %v7060 = vld [vmem:[#allocation9 + $0x80] sm:$0xff]
          %v7061 = vld [vmem:[#allocation9 + $0x88] sm:$0xff]
          %v7062 = vld [vmem:[#allocation9 + $0x90] sm:$0xff]
          %v7063 = vld [vmem:[#allocation9 + $0x98] sm:$0xff]
          %v7064 = vld [vmem:[#allocation9 + $0xa0] sm:$0xff]
          %v7065 = vld [vmem:[#allocation9 + $0xa8] sm:$0xff]
          %v7066 = vld [vmem:[#allocation9 + $0xb0] sm:$0xff]
          %v7067 = vld [vmem:[#allocation9 + $0xb8] sm:$0xff]
          %v7068 = vld [vmem:[#allocation9 + $0xc0] sm:$0xff]
          %v7069 = vld [vmem:[#allocation9 + $0xc8] sm:$0xff]
          %v7070 = vld [vmem:[#allocation9 + $0xd0] sm:$0xff]
          %v7071 = vld [vmem:[#allocation9 + $0xd8] sm:$0xff]
          %v7072 = vld [vmem:[#allocation9 + $0xe0] sm:$0xff]
          %v7073 = vld [vmem:[#allocation9 + $0xe8] sm:$0xff]
          %v7074 = vld [vmem:[#allocation9 + $0xf0] sm:$0xff]
          %v7075 = vld [vmem:[#allocation9 + $0xf8] sm:$0xff]
          %7108 = vrot.lane.b32.xlu0 %v7044, 32
          %v7109 = vpop.permute.xlu0 %7108
          %7110 = vrot.lane.b32.xlu0 %v7045, 32
          %v7111 = vpop.permute.xlu0 %7110
          %7112 = vrot.lane.b32.xlu0 %v7046, 32
          %v7113 = vpop.permute.xlu0 %7112
          %7114 = vrot.lane.b32.xlu0 %v7047, 32
          %v7115 = vpop.permute.xlu0 %7114
          %7116 = vrot.lane.b32.xlu0 %v7048, 32
          %v7117 = vpop.permute.xlu0 %7116
          %7118 = vrot.lane.b32.xlu0 %v7049, 32
          %v7119 = vpop.permute.xlu0 %7118
          %7120 = vrot.lane.b32.xlu0 %v7050, 32
          %v7121 = vpop.permute.xlu0 %7120
          %7122 = vrot.lane.b32.xlu0 %v7051, 32
          %v7123 = vpop.permute.xlu0 %7122
          %7124 = vrot.lane.b32.xlu0 %v7052, 32
          %v7125 = vpop.permute.xlu0 %7124
          %7126 = vrot.lane.b32.xlu0 %v7053, 32
          %v7127 = vpop.permute.xlu0 %7126
          %7128 = vrot.lane.b32.xlu0 %v7054, 32
          %v7129 = vpop.permute.xlu0 %7128
          %7130 = vrot.lane.b32.xlu0 %v7055, 32
          %v7131 = vpop.permute.xlu0 %7130
          %7132 = vrot.lane.b32.xlu0 %v7056, 32
          %v7133 = vpop.permute.xlu0 %7132
          %7134 = vrot.lane.b32.xlu0 %v7057, 32
          %v7135 = vpop.permute.xlu0 %7134
          %7136 = vrot.lane.b32.xlu0 %v7058, 32
          %v7137 = vpop.permute.xlu0 %7136
          %7138 = vrot.lane.b32.xlu0 %v7059, 32
          %v7139 = vpop.permute.xlu0 %7138
          %7140 = vrot.lane.b32.xlu0 %v7060, 32
          %v7141 = vpop.permute.xlu0 %7140
          %7142 = vrot.lane.b32.xlu0 %v7061, 32
          %v7143 = vpop.permute.xlu0 %7142
          %7144 = vrot.lane.b32.xlu0 %v7062, 32
          %v7145 = vpop.permute.xlu0 %7144
          %7146 = vrot.lane.b32.xlu0 %v7063, 32
          %v7147 = vpop.permute.xlu0 %7146
          %7148 = vrot.lane.b32.xlu0 %v7064, 32
          %v7149 = vpop.permute.xlu0 %7148
          %7150 = vrot.lane.b32.xlu0 %v7065, 32
          %v7151 = vpop.permute.xlu0 %7150
          %7152 = vrot.lane.b32.xlu0 %v7066, 32
          %v7153 = vpop.permute.xlu0 %7152
          %7154 = vrot.lane.b32.xlu0 %v7067, 32
          %v7155 = vpop.permute.xlu0 %7154
          %7156 = vrot.lane.b32.xlu0 %v7068, 32
          %v7157 = vpop.permute.xlu0 %7156
          %7158 = vrot.lane.b32.xlu0 %v7069, 32
          %v7159 = vpop.permute.xlu0 %7158
          %7160 = vrot.lane.b32.xlu0 %v7070, 32
          %v7161 = vpop.permute.xlu0 %7160
          %7162 = vrot.lane.b32.xlu0 %v7071, 32
          %v7163 = vpop.permute.xlu0 %7162
          %7164 = vrot.lane.b32.xlu0 %v7072, 32
          %v7165 = vpop.permute.xlu0 %7164
          %7166 = vrot.lane.b32.xlu0 %v7073, 32
          %v7167 = vpop.permute.xlu0 %7166
          %7168 = vrot.lane.b32.xlu0 %v7074, 32
          %v7169 = vpop.permute.xlu0 %7168
          %7170 = vrot.lane.b32.xlu0 %v7075, 32
          %v7171 = vpop.permute.xlu0 %7170
          %v7204 = vmul.f32 %v6949, %v7109
          %v7205 = vmul.f32 %v6951, %v7111
          %v7206 = vmul.f32 %v6953, %v7113
          %v7207 = vmul.f32 %v6955, %v7115
          %v7208 = vmul.f32 %v6957, %v7117
          %v7209 = vmul.f32 %v6959, %v7119
          %v7210 = vmul.f32 %v6961, %v7121
          %v7211 = vmul.f32 %v6963, %v7123
          %v7212 = vmul.f32 %v6965, %v7125
          %v7213 = vmul.f32 %v6967, %v7127
          %v7214 = vmul.f32 %v6969, %v7129
          %v7215 = vmul.f32 %v6971, %v7131
          %v7216 = vmul.f32 %v6973, %v7133
          %v7217 = vmul.f32 %v6975, %v7135
          %v7218 = vmul.f32 %v6977, %v7137
          %v7219 = vmul.f32 %v6979, %v7139
          %v7220 = vmul.f32 %v6981, %v7141
          %v7221 = vmul.f32 %v6983, %v7143
          %v7222 = vmul.f32 %v6985, %v7145
          %v7223 = vmul.f32 %v6987, %v7147
          %v7224 = vmul.f32 %v6989, %v7149
          %v7225 = vmul.f32 %v6991, %v7151
          %v7226 = vmul.f32 %v6993, %v7153
          %v7227 = vmul.f32 %v6995, %v7155
          %v7228 = vmul.f32 %v6997, %v7157
          %v7229 = vmul.f32 %v6999, %v7159
          %v7230 = vmul.f32 %v7001, %v7161
          %v7231 = vmul.f32 %v7003, %v7163
          %v7232 = vmul.f32 %v7005, %v7165
          %v7233 = vmul.f32 %v7007, %v7167
          %v7234 = vmul.f32 %v7009, %v7169
          %v7235 = vmul.f32 %v7011, %v7171
          %7268 = vrot.lane.b32.xlu0 %v7012, 32
          %v7269 = vpop.permute.xlu0 %7268
          %7270 = vrot.lane.b32.xlu0 %v7013, 32
          %v7271 = vpop.permute.xlu0 %7270
          %7272 = vrot.lane.b32.xlu0 %v7014, 32
          %v7273 = vpop.permute.xlu0 %7272
          %7274 = vrot.lane.b32.xlu0 %v7015, 32
          %v7275 = vpop.permute.xlu0 %7274
          %7276 = vrot.lane.b32.xlu0 %v7016, 32
          %v7277 = vpop.permute.xlu0 %7276
          %7278 = vrot.lane.b32.xlu0 %v7017, 32
          %v7279 = vpop.permute.xlu0 %7278
          %7280 = vrot.lane.b32.xlu0 %v7018, 32
          %v7281 = vpop.permute.xlu0 %7280
          %7282 = vrot.lane.b32.xlu0 %v7019, 32
          %v7283 = vpop.permute.xlu0 %7282
          %7284 = vrot.lane.b32.xlu0 %v7020, 32
          %v7285 = vpop.permute.xlu0 %7284
          %7286 = vrot.lane.b32.xlu0 %v7021, 32
          %v7287 = vpop.permute.xlu0 %7286
          %7288 = vrot.lane.b32.xlu0 %v7022, 32
          %v7289 = vpop.permute.xlu0 %7288
          %7290 = vrot.lane.b32.xlu0 %v7023, 32
          %v7291 = vpop.permute.xlu0 %7290
          %7292 = vrot.lane.b32.xlu0 %v7024, 32
          %v7293 = vpop.permute.xlu0 %7292
          %7294 = vrot.lane.b32.xlu0 %v7025, 32
          %v7295 = vpop.permute.xlu0 %7294
          %7296 = vrot.lane.b32.xlu0 %v7026, 32
          %v7297 = vpop.permute.xlu0 %7296
          %7298 = vrot.lane.b32.xlu0 %v7027, 32
          %v7299 = vpop.permute.xlu0 %7298
          %7300 = vrot.lane.b32.xlu0 %v7028, 32
          %v7301 = vpop.permute.xlu0 %7300
          %7302 = vrot.lane.b32.xlu0 %v7029, 32
          %v7303 = vpop.permute.xlu0 %7302
          %7304 = vrot.lane.b32.xlu0 %v7030, 32
          %v7305 = vpop.permute.xlu0 %7304
          %7306 = vrot.lane.b32.xlu0 %v7031, 32
          %v7307 = vpop.permute.xlu0 %7306
          %7308 = vrot.lane.b32.xlu0 %v7032, 32
          %v7309 = vpop.permute.xlu0 %7308
          %7310 = vrot.lane.b32.xlu0 %v7033, 32
          %v7311 = vpop.permute.xlu0 %7310
          %7312 = vrot.lane.b32.xlu0 %v7034, 32
          %v7313 = vpop.permute.xlu0 %7312
          %7314 = vrot.lane.b32.xlu0 %v7035, 32
          %v7315 = vpop.permute.xlu0 %7314
          %7316 = vrot.lane.b32.xlu0 %v7036, 32
          %v7317 = vpop.permute.xlu0 %7316
          %7318 = vrot.lane.b32.xlu0 %v7037, 32
          %v7319 = vpop.permute.xlu0 %7318
          %7320 = vrot.lane.b32.xlu0 %v7038, 32
          %v7321 = vpop.permute.xlu0 %7320
          %7322 = vrot.lane.b32.xlu0 %v7039, 32
          %v7323 = vpop.permute.xlu0 %7322
          %7324 = vrot.lane.b32.xlu0 %v7040, 32
          %v7325 = vpop.permute.xlu0 %7324
          %7326 = vrot.lane.b32.xlu0 %v7041, 32
          %v7327 = vpop.permute.xlu0 %7326
          %7328 = vrot.lane.b32.xlu0 %v7042, 32
          %v7329 = vpop.permute.xlu0 %7328
          %7330 = vrot.lane.b32.xlu0 %v7043, 32
          %v7331 = vpop.permute.xlu0 %7330
          %v7364 = vmul.f32 %v6949, %v7269
          %v7365 = vmul.f32 %v6951, %v7271
          %v7366 = vmul.f32 %v6953, %v7273
          %v7367 = vmul.f32 %v6955, %v7275
          %v7368 = vmul.f32 %v6957, %v7277
          %v7369 = vmul.f32 %v6959, %v7279
          %v7370 = vmul.f32 %v6961, %v7281
          %v7371 = vmul.f32 %v6963, %v7283
          %v7372 = vmul.f32 %v6965, %v7285
          %v7373 = vmul.f32 %v6967, %v7287
          %v7374 = vmul.f32 %v6969, %v7289
          %v7375 = vmul.f32 %v6971, %v7291
          %v7376 = vmul.f32 %v6973, %v7293
          %v7377 = vmul.f32 %v6975, %v7295
          %v7378 = vmul.f32 %v6977, %v7297
          %v7379 = vmul.f32 %v6979, %v7299
          %v7380 = vmul.f32 %v6981, %v7301
          %v7381 = vmul.f32 %v6983, %v7303
          %v7382 = vmul.f32 %v6985, %v7305
          %v7383 = vmul.f32 %v6987, %v7307
          %v7384 = vmul.f32 %v6989, %v7309
          %v7385 = vmul.f32 %v6991, %v7311
          %v7386 = vmul.f32 %v6993, %v7313
          %v7387 = vmul.f32 %v6995, %v7315
          %v7388 = vmul.f32 %v6997, %v7317
          %v7389 = vmul.f32 %v6999, %v7319
          %v7390 = vmul.f32 %v7001, %v7321
          %v7391 = vmul.f32 %v7003, %v7323
          %v7392 = vmul.f32 %v7005, %v7325
          %v7393 = vmul.f32 %v7007, %v7327
          %v7394 = vmul.f32 %v7009, %v7329
          %v7395 = vmul.f32 %v7011, %v7331
          %7428 = vrot.lane.b32.xlu0 %v7364, 32
          %v7429 = vpop.permute.xlu0 %7428
          %7430 = vrot.lane.b32.xlu0 %v7365, 32
          %v7431 = vpop.permute.xlu0 %7430
          %7432 = vrot.lane.b32.xlu0 %v7366, 32
          %v7433 = vpop.permute.xlu0 %7432
          %7434 = vrot.lane.b32.xlu0 %v7367, 32
          %v7435 = vpop.permute.xlu0 %7434
          %7436 = vrot.lane.b32.xlu0 %v7368, 32
          %v7437 = vpop.permute.xlu0 %7436
          %7438 = vrot.lane.b32.xlu0 %v7369, 32
          %v7439 = vpop.permute.xlu0 %7438
          %7440 = vrot.lane.b32.xlu0 %v7370, 32
          %v7441 = vpop.permute.xlu0 %7440
          %7442 = vrot.lane.b32.xlu0 %v7371, 32
          %v7443 = vpop.permute.xlu0 %7442
          %7444 = vrot.lane.b32.xlu0 %v7372, 32
          %v7445 = vpop.permute.xlu0 %7444
          %7446 = vrot.lane.b32.xlu0 %v7373, 32
          %v7447 = vpop.permute.xlu0 %7446
          %7448 = vrot.lane.b32.xlu0 %v7374, 32
          %v7449 = vpop.permute.xlu0 %7448
          %7450 = vrot.lane.b32.xlu0 %v7375, 32
          %v7451 = vpop.permute.xlu0 %7450
          %7452 = vrot.lane.b32.xlu0 %v7376, 32
          %v7453 = vpop.permute.xlu0 %7452
          %7454 = vrot.lane.b32.xlu0 %v7377, 32
          %v7455 = vpop.permute.xlu0 %7454
          %7456 = vrot.lane.b32.xlu0 %v7378, 32
          %v7457 = vpop.permute.xlu0 %7456
          %7458 = vrot.lane.b32.xlu0 %v7379, 32
          %v7459 = vpop.permute.xlu0 %7458
          %7460 = vrot.lane.b32.xlu0 %v7380, 32
          %v7461 = vpop.permute.xlu0 %7460
          %7462 = vrot.lane.b32.xlu0 %v7381, 32
          %v7463 = vpop.permute.xlu0 %7462
          %7464 = vrot.lane.b32.xlu0 %v7382, 32
          %v7465 = vpop.permute.xlu0 %7464
          %7466 = vrot.lane.b32.xlu0 %v7383, 32
          %v7467 = vpop.permute.xlu0 %7466
          %7468 = vrot.lane.b32.xlu0 %v7384, 32
          %v7469 = vpop.permute.xlu0 %7468
          %7470 = vrot.lane.b32.xlu0 %v7385, 32
          %v7471 = vpop.permute.xlu0 %7470
          %7472 = vrot.lane.b32.xlu0 %v7386, 32
          %v7473 = vpop.permute.xlu0 %7472
          %7474 = vrot.lane.b32.xlu0 %v7387, 32
          %v7475 = vpop.permute.xlu0 %7474
          %7476 = vrot.lane.b32.xlu0 %v7388, 32
          %v7477 = vpop.permute.xlu0 %7476
          %7478 = vrot.lane.b32.xlu0 %v7389, 32
          %v7479 = vpop.permute.xlu0 %7478
          %7480 = vrot.lane.b32.xlu0 %v7390, 32
          %v7481 = vpop.permute.xlu0 %7480
          %7482 = vrot.lane.b32.xlu0 %v7391, 32
          %v7483 = vpop.permute.xlu0 %7482
          %7484 = vrot.lane.b32.xlu0 %v7392, 32
          %v7485 = vpop.permute.xlu0 %7484
          %7486 = vrot.lane.b32.xlu0 %v7393, 32
          %v7487 = vpop.permute.xlu0 %7486
          %7488 = vrot.lane.b32.xlu0 %v7394, 32
          %v7489 = vpop.permute.xlu0 %7488
          %7490 = vrot.lane.b32.xlu0 %v7395, 32
          %v7491 = vpop.permute.xlu0 %7490
          %v7524 = vadd.f32 %v7204, %v7429
          %v7525 = vadd.f32 %v7205, %v7431
          %v7526 = vadd.f32 %v7206, %v7433
          %v7527 = vadd.f32 %v7207, %v7435
          %v7528 = vadd.f32 %v7208, %v7437
          %v7529 = vadd.f32 %v7209, %v7439
          %v7530 = vadd.f32 %v7210, %v7441
          %v7531 = vadd.f32 %v7211, %v7443
          %v7532 = vadd.f32 %v7212, %v7445
          %v7533 = vadd.f32 %v7213, %v7447
          %v7534 = vadd.f32 %v7214, %v7449
          %v7535 = vadd.f32 %v7215, %v7451
          %v7536 = vadd.f32 %v7216, %v7453
          %v7537 = vadd.f32 %v7217, %v7455
          %v7538 = vadd.f32 %v7218, %v7457
          %v7539 = vadd.f32 %v7219, %v7459
          %v7540 = vadd.f32 %v7220, %v7461
          %v7541 = vadd.f32 %v7221, %v7463
          %v7542 = vadd.f32 %v7222, %v7465
          %v7543 = vadd.f32 %v7223, %v7467
          %v7544 = vadd.f32 %v7224, %v7469
          %v7545 = vadd.f32 %v7225, %v7471
          %v7546 = vadd.f32 %v7226, %v7473
          %v7547 = vadd.f32 %v7227, %v7475
          %v7548 = vadd.f32 %v7228, %v7477
          %v7549 = vadd.f32 %v7229, %v7479
          %v7550 = vadd.f32 %v7230, %v7481
          %v7551 = vadd.f32 %v7231, %v7483
          %v7552 = vadd.f32 %v7232, %v7485
          %v7553 = vadd.f32 %v7233, %v7487
          %v7554 = vadd.f32 %v7234, %v7489
          %v7555 = vadd.f32 %v7235, %v7491
          %v7556 = vtanh.pop %v7524
          %v7557 = vtanh.pop %v7525
          %v7558 = vtanh.pop %v7526
          %v7559 = vtanh.pop %v7527
          %v7560 = vtanh.pop %v7528
          %v7561 = vtanh.pop %v7529
          %v7562 = vtanh.pop %v7530
          %v7563 = vtanh.pop %v7531
          %v7564 = vtanh.pop %v7532
          %v7565 = vtanh.pop %v7533
          %v7566 = vtanh.pop %v7534
          %v7567 = vtanh.pop %v7535
          %v7568 = vtanh.pop %v7536
          %v7569 = vtanh.pop %v7537
          %v7570 = vtanh.pop %v7538
          %v7571 = vtanh.pop %v7539
          %v7572 = vtanh.pop %v7540
          %v7573 = vtanh.pop %v7541
          %v7574 = vtanh.pop %v7542
          %v7575 = vtanh.pop %v7543
          %v7576 = vtanh.pop %v7544
          %v7577 = vtanh.pop %v7545
          %v7578 = vtanh.pop %v7546
          %v7579 = vtanh.pop %v7547
          %v7580 = vtanh.pop %v7548
          %v7581 = vtanh.pop %v7549
          %v7582 = vtanh.pop %v7550
          %v7583 = vtanh.pop %v7551
          %v7584 = vtanh.pop %v7552
          %v7585 = vtanh.pop %v7553
          %v7586 = vtanh.pop %v7554
          %v7587 = vtanh.pop %v7555
          %7620 = vrot.lane.b32.xlu0 %v7556, 32
          %v7621 = vpop.permute.xlu0 %7620
          %7622 = vrot.lane.b32.xlu0 %v7557, 32
          %v7623 = vpop.permute.xlu0 %7622
          %7624 = vrot.lane.b32.xlu0 %v7558, 32
          %v7625 = vpop.permute.xlu0 %7624
          %7626 = vrot.lane.b32.xlu0 %v7559, 32
          %v7627 = vpop.permute.xlu0 %7626
          %7628 = vrot.lane.b32.xlu0 %v7560, 32
          %v7629 = vpop.permute.xlu0 %7628
          %7630 = vrot.lane.b32.xlu0 %v7561, 32
          %v7631 = vpop.permute.xlu0 %7630
          %7632 = vrot.lane.b32.xlu0 %v7562, 32
          %v7633 = vpop.permute.xlu0 %7632
          %7634 = vrot.lane.b32.xlu0 %v7563, 32
          %v7635 = vpop.permute.xlu0 %7634
          %7636 = vrot.lane.b32.xlu0 %v7564, 32
          %v7637 = vpop.permute.xlu0 %7636
          %7638 = vrot.lane.b32.xlu0 %v7565, 32
          %v7639 = vpop.permute.xlu0 %7638
          %7640 = vrot.lane.b32.xlu0 %v7566, 32
          %v7641 = vpop.permute.xlu0 %7640
          %7642 = vrot.lane.b32.xlu0 %v7567, 32
          %v7643 = vpop.permute.xlu0 %7642
          %7644 = vrot.lane.b32.xlu0 %v7568, 32
          %v7645 = vpop.permute.xlu0 %7644
          %7646 = vrot.lane.b32.xlu0 %v7569, 32
          %v7647 = vpop.permute.xlu0 %7646
          %7648 = vrot.lane.b32.xlu0 %v7570, 32
          %v7649 = vpop.permute.xlu0 %7648
          %7650 = vrot.lane.b32.xlu0 %v7571, 32
          %v7651 = vpop.permute.xlu0 %7650
          %7652 = vrot.lane.b32.xlu0 %v7572, 32
          %v7653 = vpop.permute.xlu0 %7652
          %7654 = vrot.lane.b32.xlu0 %v7573, 32
          %v7655 = vpop.permute.xlu0 %7654
          %7656 = vrot.lane.b32.xlu0 %v7574, 32
          %v7657 = vpop.permute.xlu0 %7656
          %7658 = vrot.lane.b32.xlu0 %v7575, 32
          %v7659 = vpop.permute.xlu0 %7658
          %7660 = vrot.lane.b32.xlu0 %v7576, 32
          %v7661 = vpop.permute.xlu0 %7660
          %7662 = vrot.lane.b32.xlu0 %v7577, 32
          %v7663 = vpop.permute.xlu0 %7662
          %7664 = vrot.lane.b32.xlu0 %v7578, 32
          %v7665 = vpop.permute.xlu0 %7664
          %7666 = vrot.lane.b32.xlu0 %v7579, 32
          %v7667 = vpop.permute.xlu0 %7666
          %7668 = vrot.lane.b32.xlu0 %v7580, 32
          %v7669 = vpop.permute.xlu0 %7668
          %7670 = vrot.lane.b32.xlu0 %v7581, 32
          %v7671 = vpop.permute.xlu0 %7670
          %7672 = vrot.lane.b32.xlu0 %v7582, 32
          %v7673 = vpop.permute.xlu0 %7672
          %7674 = vrot.lane.b32.xlu0 %v7583, 32
          %v7675 = vpop.permute.xlu0 %7674
          %7676 = vrot.lane.b32.xlu0 %v7584, 32
          %v7677 = vpop.permute.xlu0 %7676
          %7678 = vrot.lane.b32.xlu0 %v7585, 32
          %v7679 = vpop.permute.xlu0 %7678
          %7680 = vrot.lane.b32.xlu0 %v7586, 32
          %v7681 = vpop.permute.xlu0 %7680
          %7682 = vrot.lane.b32.xlu0 %v7587, 32
          %v7683 = vpop.permute.xlu0 %7682
          %v7716 = vmul.f32 %v6949, %v7621
          %v7717 = vmul.f32 %v6951, %v7623
          %v7718 = vmul.f32 %v6953, %v7625
          %v7719 = vmul.f32 %v6955, %v7627
          %v7720 = vmul.f32 %v6957, %v7629
          %v7721 = vmul.f32 %v6959, %v7631
          %v7722 = vmul.f32 %v6961, %v7633
          %v7723 = vmul.f32 %v6963, %v7635
          %v7724 = vmul.f32 %v6965, %v7637
          %v7725 = vmul.f32 %v6967, %v7639
          %v7726 = vmul.f32 %v6969, %v7641
          %v7727 = vmul.f32 %v6971, %v7643
          %v7728 = vmul.f32 %v6973, %v7645
          %v7729 = vmul.f32 %v6975, %v7647
          %v7730 = vmul.f32 %v6977, %v7649
          %v7731 = vmul.f32 %v6979, %v7651
          %v7732 = vmul.f32 %v6981, %v7653
          %v7733 = vmul.f32 %v6983, %v7655
          %v7734 = vmul.f32 %v6985, %v7657
          %v7735 = vmul.f32 %v6987, %v7659
          %v7736 = vmul.f32 %v6989, %v7661
          %v7737 = vmul.f32 %v6991, %v7663
          %v7738 = vmul.f32 %v6993, %v7665
          %v7739 = vmul.f32 %v6995, %v7667
          %v7740 = vmul.f32 %v6997, %v7669
          %v7741 = vmul.f32 %v6999, %v7671
          %v7742 = vmul.f32 %v7001, %v7673
          %v7743 = vmul.f32 %v7003, %v7675
          %v7744 = vmul.f32 %v7005, %v7677
          %v7745 = vmul.f32 %v7007, %v7679
          %v7746 = vmul.f32 %v7009, %v7681
          %v7747 = vmul.f32 %v7011, %v7683
          %7780 = vrot.lane.b32.xlu0 %v7524, 96
          %v7781 = vpop.permute.xlu0 %7780
          %7782 = vrot.lane.b32.xlu0 %v7525, 96
          %v7783 = vpop.permute.xlu0 %7782
          %7784 = vrot.lane.b32.xlu0 %v7526, 96
          %v7785 = vpop.permute.xlu0 %7784
          %7786 = vrot.lane.b32.xlu0 %v7527, 96
          %v7787 = vpop.permute.xlu0 %7786
          %7788 = vrot.lane.b32.xlu0 %v7528, 96
          %v7789 = vpop.permute.xlu0 %7788
          %7790 = vrot.lane.b32.xlu0 %v7529, 96
          %v7791 = vpop.permute.xlu0 %7790
          %7792 = vrot.lane.b32.xlu0 %v7530, 96
          %v7793 = vpop.permute.xlu0 %7792
          %7794 = vrot.lane.b32.xlu0 %v7531, 96
          %v7795 = vpop.permute.xlu0 %7794
          %7796 = vrot.lane.b32.xlu0 %v7532, 96
          %v7797 = vpop.permute.xlu0 %7796
          %7798 = vrot.lane.b32.xlu0 %v7533, 96
          %v7799 = vpop.permute.xlu0 %7798
          %7800 = vrot.lane.b32.xlu0 %v7534, 96
          %v7801 = vpop.permute.xlu0 %7800
          %7802 = vrot.lane.b32.xlu0 %v7535, 96
          %v7803 = vpop.permute.xlu0 %7802
          %7804 = vrot.lane.b32.xlu0 %v7536, 96
          %v7805 = vpop.permute.xlu0 %7804
          %7806 = vrot.lane.b32.xlu0 %v7537, 96
          %v7807 = vpop.permute.xlu0 %7806
          %7808 = vrot.lane.b32.xlu0 %v7538, 96
          %v7809 = vpop.permute.xlu0 %7808
          %7810 = vrot.lane.b32.xlu0 %v7539, 96
          %v7811 = vpop.permute.xlu0 %7810
          %7812 = vrot.lane.b32.xlu0 %v7540, 96
          %v7813 = vpop.permute.xlu0 %7812
          %7814 = vrot.lane.b32.xlu0 %v7541, 96
          %v7815 = vpop.permute.xlu0 %7814
          %7816 = vrot.lane.b32.xlu0 %v7542, 96
          %v7817 = vpop.permute.xlu0 %7816
          %7818 = vrot.lane.b32.xlu0 %v7543, 96
          %v7819 = vpop.permute.xlu0 %7818
          %7820 = vrot.lane.b32.xlu0 %v7544, 96
          %v7821 = vpop.permute.xlu0 %7820
          %7822 = vrot.lane.b32.xlu0 %v7545, 96
          %v7823 = vpop.permute.xlu0 %7822
          %7824 = vrot.lane.b32.xlu0 %v7546, 96
          %v7825 = vpop.permute.xlu0 %7824
          %7826 = vrot.lane.b32.xlu0 %v7547, 96
          %v7827 = vpop.permute.xlu0 %7826
          %7828 = vrot.lane.b32.xlu0 %v7548, 96
          %v7829 = vpop.permute.xlu0 %7828
          %7830 = vrot.lane.b32.xlu0 %v7549, 96
          %v7831 = vpop.permute.xlu0 %7830
          %7832 = vrot.lane.b32.xlu0 %v7550, 96
          %v7833 = vpop.permute.xlu0 %7832
          %7834 = vrot.lane.b32.xlu0 %v7551, 96
          %v7835 = vpop.permute.xlu0 %7834
          %7836 = vrot.lane.b32.xlu0 %v7552, 96
          %v7837 = vpop.permute.xlu0 %7836
          %7838 = vrot.lane.b32.xlu0 %v7553, 96
          %v7839 = vpop.permute.xlu0 %7838
          %7840 = vrot.lane.b32.xlu0 %v7554, 96
          %v7841 = vpop.permute.xlu0 %7840
          %7842 = vrot.lane.b32.xlu0 %v7555, 96
          %v7843 = vpop.permute.xlu0 %7842
          %7876 = vst.msk [vmem:[#allocation9] sm:$0xff] %vm481, %v7781
          %7877 = vst.msk [vmem:[#allocation9 + $0x8] sm:$0xff] %vm481, %v7783
          %7878 = vst.msk [vmem:[#allocation9 + $0x10] sm:$0xff] %vm481, %v7785
          %7879 = vst.msk [vmem:[#allocation9 + $0x18] sm:$0xff] %vm481, %v7787
          %7880 = vst.msk [vmem:[#allocation9 + $0x20] sm:$0xff] %vm481, %v7789
          %7881 = vst.msk [vmem:[#allocation9 + $0x28] sm:$0xff] %vm481, %v7791
          %7882 = vst.msk [vmem:[#allocation9 + $0x30] sm:$0xff] %vm481, %v7793
          %7883 = vst.msk [vmem:[#allocation9 + $0x38] sm:$0xff] %vm481, %v7795
          %7884 = vst.msk [vmem:[#allocation9 + $0x40] sm:$0xff] %vm481, %v7797
          %7885 = vst.msk [vmem:[#allocation9 + $0x48] sm:$0xff] %vm481, %v7799
          %7886 = vst.msk [vmem:[#allocation9 + $0x50] sm:$0xff] %vm481, %v7801
          %7887 = vst.msk [vmem:[#allocation9 + $0x58] sm:$0xff] %vm481, %v7803
          %7888 = vst.msk [vmem:[#allocation9 + $0x60] sm:$0xff] %vm481, %v7805
          %7889 = vst.msk [vmem:[#allocation9 + $0x68] sm:$0xff] %vm481, %v7807
          %7890 = vst.msk [vmem:[#allocation9 + $0x70] sm:$0xff] %vm481, %v7809
          %7891 = vst.msk [vmem:[#allocation9 + $0x78] sm:$0xff] %vm481, %v7811
          %7892 = vst.msk [vmem:[#allocation9 + $0x80] sm:$0xff] %vm481, %v7813
          %7893 = vst.msk [vmem:[#allocation9 + $0x88] sm:$0xff] %vm481, %v7815
          %7894 = vst.msk [vmem:[#allocation9 + $0x90] sm:$0xff] %vm481, %v7817
          %7895 = vst.msk [vmem:[#allocation9 + $0x98] sm:$0xff] %vm481, %v7819
          %7896 = vst.msk [vmem:[#allocation9 + $0xa0] sm:$0xff] %vm481, %v7821
          %7897 = vst.msk [vmem:[#allocation9 + $0xa8] sm:$0xff] %vm481, %v7823
          %7898 = vst.msk [vmem:[#allocation9 + $0xb0] sm:$0xff] %vm481, %v7825
          %7899 = vst.msk [vmem:[#allocation9 + $0xb8] sm:$0xff] %vm481, %v7827
          %7900 = vst.msk [vmem:[#allocation9 + $0xc0] sm:$0xff] %vm481, %v7829
          %7901 = vst.msk [vmem:[#allocation9 + $0xc8] sm:$0xff] %vm481, %v7831
          %7902 = vst.msk [vmem:[#allocation9 + $0xd0] sm:$0xff] %vm481, %v7833
          %7903 = vst.msk [vmem:[#allocation9 + $0xd8] sm:$0xff] %vm481, %v7835
          %7904 = vst.msk [vmem:[#allocation9 + $0xe0] sm:$0xff] %vm481, %v7837
          %7905 = vst.msk [vmem:[#allocation9 + $0xe8] sm:$0xff] %vm481, %v7839
          %7906 = vst.msk [vmem:[#allocation9 + $0xf0] sm:$0xff] %vm481, %v7841
          %7907 = vst.msk [vmem:[#allocation9 + $0xf8] sm:$0xff] %vm481, %v7843
          %7940 = vrot.lane.b32.xlu0 %v7716, 64
          %v7941 = vpop.permute.xlu0 %7940
          %7942 = vrot.lane.b32.xlu0 %v7717, 64
          %v7943 = vpop.permute.xlu0 %7942
          %7944 = vrot.lane.b32.xlu0 %v7718, 64
          %v7945 = vpop.permute.xlu0 %7944
          %7946 = vrot.lane.b32.xlu0 %v7719, 64
          %v7947 = vpop.permute.xlu0 %7946
          %7948 = vrot.lane.b32.xlu0 %v7720, 64
          %v7949 = vpop.permute.xlu0 %7948
          %7950 = vrot.lane.b32.xlu0 %v7721, 64
          %v7951 = vpop.permute.xlu0 %7950
          %7952 = vrot.lane.b32.xlu0 %v7722, 64
          %v7953 = vpop.permute.xlu0 %7952
          %7954 = vrot.lane.b32.xlu0 %v7723, 64
          %v7955 = vpop.permute.xlu0 %7954
          %7956 = vrot.lane.b32.xlu0 %v7724, 64
          %v7957 = vpop.permute.xlu0 %7956
          %7958 = vrot.lane.b32.xlu0 %v7725, 64
          %v7959 = vpop.permute.xlu0 %7958
          %7960 = vrot.lane.b32.xlu0 %v7726, 64
          %v7961 = vpop.permute.xlu0 %7960
          %7962 = vrot.lane.b32.xlu0 %v7727, 64
          %v7963 = vpop.permute.xlu0 %7962
          %7964 = vrot.lane.b32.xlu0 %v7728, 64
          %v7965 = vpop.permute.xlu0 %7964
          %7966 = vrot.lane.b32.xlu0 %v7729, 64
          %v7967 = vpop.permute.xlu0 %7966
          %7968 = vrot.lane.b32.xlu0 %v7730, 64
          %v7969 = vpop.permute.xlu0 %7968
          %7970 = vrot.lane.b32.xlu0 %v7731, 64
          %v7971 = vpop.permute.xlu0 %7970
          %7972 = vrot.lane.b32.xlu0 %v7732, 64
          %v7973 = vpop.permute.xlu0 %7972
          %7974 = vrot.lane.b32.xlu0 %v7733, 64
          %v7975 = vpop.permute.xlu0 %7974
          %7976 = vrot.lane.b32.xlu0 %v7734, 64
          %v7977 = vpop.permute.xlu0 %7976
          %7978 = vrot.lane.b32.xlu0 %v7735, 64
          %v7979 = vpop.permute.xlu0 %7978
          %7980 = vrot.lane.b32.xlu0 %v7736, 64
          %v7981 = vpop.permute.xlu0 %7980
          %7982 = vrot.lane.b32.xlu0 %v7737, 64
          %v7983 = vpop.permute.xlu0 %7982
          %7984 = vrot.lane.b32.xlu0 %v7738, 64
          %v7985 = vpop.permute.xlu0 %7984
          %7986 = vrot.lane.b32.xlu0 %v7739, 64
          %v7987 = vpop.permute.xlu0 %7986
          %7988 = vrot.lane.b32.xlu0 %v7740, 64
          %v7989 = vpop.permute.xlu0 %7988
          %7990 = vrot.lane.b32.xlu0 %v7741, 64
          %v7991 = vpop.permute.xlu0 %7990
          %7992 = vrot.lane.b32.xlu0 %v7742, 64
          %v7993 = vpop.permute.xlu0 %7992
          %7994 = vrot.lane.b32.xlu0 %v7743, 64
          %v7995 = vpop.permute.xlu0 %7994
          %7996 = vrot.lane.b32.xlu0 %v7744, 64
          %v7997 = vpop.permute.xlu0 %7996
          %7998 = vrot.lane.b32.xlu0 %v7745, 64
          %v7999 = vpop.permute.xlu0 %7998
          %8000 = vrot.lane.b32.xlu0 %v7746, 64
          %v8001 = vpop.permute.xlu0 %8000
          %8002 = vrot.lane.b32.xlu0 %v7747, 64
          %v8003 = vpop.permute.xlu0 %8002
          %8036 = vst.msk [vmem:[#allocation8] sm:$0xff] %vm481, %v7941
          %8037 = vst.msk [vmem:[#allocation8 + $0x8] sm:$0xff] %vm481, %v7943
          %8038 = vst.msk [vmem:[#allocation8 + $0x10] sm:$0xff] %vm481, %v7945
          %8039 = vst.msk [vmem:[#allocation8 + $0x18] sm:$0xff] %vm481, %v7947
          %8040 = vst.msk [vmem:[#allocation8 + $0x20] sm:$0xff] %vm481, %v7949
          %8041 = vst.msk [vmem:[#allocation8 + $0x28] sm:$0xff] %vm481, %v7951
          %8042 = vst.msk [vmem:[#allocation8 + $0x30] sm:$0xff] %vm481, %v7953
          %8043 = vst.msk [vmem:[#allocation8 + $0x38] sm:$0xff] %vm481, %v7955
          %8044 = vst.msk [vmem:[#allocation8 + $0x40] sm:$0xff] %vm481, %v7957
          %8045 = vst.msk [vmem:[#allocation8 + $0x48] sm:$0xff] %vm481, %v7959
          %8046 = vst.msk [vmem:[#allocation8 + $0x50] sm:$0xff] %vm481, %v7961
          %8047 = vst.msk [vmem:[#allocation8 + $0x58] sm:$0xff] %vm481, %v7963
          %8048 = vst.msk [vmem:[#allocation8 + $0x60] sm:$0xff] %vm481, %v7965
          %8049 = vst.msk [vmem:[#allocation8 + $0x68] sm:$0xff] %vm481, %v7967
          %8050 = vst.msk [vmem:[#allocation8 + $0x70] sm:$0xff] %vm481, %v7969
          %8051 = vst.msk [vmem:[#allocation8 + $0x78] sm:$0xff] %vm481, %v7971
          %8052 = vst.msk [vmem:[#allocation8 + $0x80] sm:$0xff] %vm481, %v7973
          %8053 = vst.msk [vmem:[#allocation8 + $0x88] sm:$0xff] %vm481, %v7975
          %8054 = vst.msk [vmem:[#allocation8 + $0x90] sm:$0xff] %vm481, %v7977
          %8055 = vst.msk [vmem:[#allocation8 + $0x98] sm:$0xff] %vm481, %v7979
          %8056 = vst.msk [vmem:[#allocation8 + $0xa0] sm:$0xff] %vm481, %v7981
          %8057 = vst.msk [vmem:[#allocation8 + $0xa8] sm:$0xff] %vm481, %v7983
          %8058 = vst.msk [vmem:[#allocation8 + $0xb0] sm:$0xff] %vm481, %v7985
          %8059 = vst.msk [vmem:[#allocation8 + $0xb8] sm:$0xff] %vm481, %v7987
          %8060 = vst.msk [vmem:[#allocation8 + $0xc0] sm:$0xff] %vm481, %v7989
          %8061 = vst.msk [vmem:[#allocation8 + $0xc8] sm:$0xff] %vm481, %v7991
          %8062 = vst.msk [vmem:[#allocation8 + $0xd0] sm:$0xff] %vm481, %v7993
          %8063 = vst.msk [vmem:[#allocation8 + $0xd8] sm:$0xff] %vm481, %v7995
          %8064 = vst.msk [vmem:[#allocation8 + $0xe0] sm:$0xff] %vm481, %v7997
          %8065 = vst.msk [vmem:[#allocation8 + $0xe8] sm:$0xff] %vm481, %v7999
          %8066 = vst.msk [vmem:[#allocation8 + $0xf0] sm:$0xff] %vm481, %v8001
          %8067 = vst.msk [vmem:[#allocation8 + $0xf8] sm:$0xff] %vm481, %v8003
          %vm8068 = vcmask 785920
          %v8069 = vsel %vm8068, %v7716, 0.0
          %v8070 = vsel %vm8068, %v7717, 0.0
          %v8071 = vadd.f32 %v8069, %v8070
          %v8072 = vsel %vm8068, %v7718, 0.0
          %v8073 = vadd.f32 %v8071, %v8072
          %v8074 = vsel %vm8068, %v7719, 0.0
          %v8075 = vadd.f32 %v8073, %v8074
          %v8076 = vsel %vm8068, %v7720, 0.0
          %v8077 = vadd.f32 %v8075, %v8076
          %v8078 = vsel %vm8068, %v7721, 0.0
          %v8079 = vadd.f32 %v8077, %v8078
          %v8080 = vsel %vm8068, %v7722, 0.0
          %v8081 = vadd.f32 %v8079, %v8080
          %v8082 = vsel %vm8068, %v7723, 0.0
          %v8083 = vadd.f32 %v8081, %v8082
          %v8084 = vsel %vm8068, %v7724, 0.0
          %v8085 = vadd.f32 %v8083, %v8084
          %v8086 = vsel %vm8068, %v7725, 0.0
          %v8087 = vadd.f32 %v8085, %v8086
          %v8088 = vsel %vm8068, %v7726, 0.0
          %v8089 = vadd.f32 %v8087, %v8088
          %v8090 = vsel %vm8068, %v7727, 0.0
          %v8091 = vadd.f32 %v8089, %v8090
          %v8092 = vsel %vm8068, %v7728, 0.0
          %v8093 = vadd.f32 %v8091, %v8092
          %v8094 = vsel %vm8068, %v7729, 0.0
          %v8095 = vadd.f32 %v8093, %v8094
          %v8096 = vsel %vm8068, %v7730, 0.0
          %v8097 = vadd.f32 %v8095, %v8096
          %v8098 = vsel %vm8068, %v7731, 0.0
          %v8099 = vadd.f32 %v8097, %v8098
          %v8100 = vsel %vm8068, %v7732, 0.0
          %v8101 = vadd.f32 %v8099, %v8100
          %v8102 = vsel %vm8068, %v7733, 0.0
          %v8103 = vadd.f32 %v8101, %v8102
          %v8104 = vsel %vm8068, %v7734, 0.0
          %v8105 = vadd.f32 %v8103, %v8104
          %v8106 = vsel %vm8068, %v7735, 0.0
          %v8107 = vadd.f32 %v8105, %v8106
          %v8108 = vsel %vm8068, %v7736, 0.0
          %v8109 = vadd.f32 %v8107, %v8108
          %v8110 = vsel %vm8068, %v7737, 0.0
          %v8111 = vadd.f32 %v8109, %v8110
          %v8112 = vsel %vm8068, %v7738, 0.0
          %v8113 = vadd.f32 %v8111, %v8112
          %v8114 = vsel %vm8068, %v7739, 0.0
          %v8115 = vadd.f32 %v8113, %v8114
          %v8116 = vsel %vm8068, %v7740, 0.0
          %v8117 = vadd.f32 %v8115, %v8116
          %v8118 = vsel %vm8068, %v7741, 0.0
          %v8119 = vadd.f32 %v8117, %v8118
          %v8120 = vsel %vm8068, %v7742, 0.0
          %v8121 = vadd.f32 %v8119, %v8120
          %v8122 = vsel %vm8068, %v7743, 0.0
          %v8123 = vadd.f32 %v8121, %v8122
          %v8124 = vsel %vm8068, %v7744, 0.0
          %v8125 = vadd.f32 %v8123, %v8124
          %v8126 = vsel %vm8068, %v7745, 0.0
          %v8127 = vadd.f32 %v8125, %v8126
          %v8128 = vsel %vm8068, %v7746, 0.0
          %v8129 = vadd.f32 %v8127, %v8128
          %v8130 = vsel %vm8068, %v7747, 0.0
          %v8131 = vadd.f32 %v8129, %v8130
          %v8132 = vrot.slane %v8131, 4
          %v8133 = vadd.f32 %v8131, %v8132
          %v8134 = vrot.slane %v8133, 2
          %v8135 = vadd.f32 %v8133, %v8134
          %v8136 = vrot.slane %v8135, 1
          %v8137 = vadd.f32 %v8135, %v8136
          %v8138 = vmul.f32 %v8137, 0.00390625
          %8140 = vrot.lane.b32.xlu0 %v8138, 64
          %v8141 = vpop.permute.xlu0 %8140
          %s8143 = scalar_lea.vmem [#allocation10], %s611
          %vm8144 = vcmask 253952
          %8145 = vst.msk [vmem:[%s8143] sm:$0x1] %vm8144, %v8141
        $region61: #{convlstm_head_forward.1} parent=55 // loop_footer
          %s615 = sadd.s32 1, %s611
        $region62: #{convlstm_head_forward.1} parent=55 // loop_footer_branch
          %610 = sbr.rel target = $region58
        $region63: #{convlstm_head_forward.1} parent=55 // loop_exit
          _
        %v8146 = vld [vmem:[#allocation10] sm:$0xff]
        %v8147 = vld [vmem:[%s5] sm:$0xff]
        %v8148 = vld [vmem:[%s5 + $0x8] sm:$0xff]
        %v8149 = vld [vmem:[%s5 + $0x10] sm:$0xff]
        %v8150 = vld [vmem:[%s5 + $0x18] sm:$0xff]
        %v8151 = vld [vmem:[%s6] sm:$0x1]
        %v8153 = vlaneseq
        %v8154 = vshrl.u32 %v8153, 7
        %v8155 = vsub.s32 0, %v8154
        %v8156 = vrot.slane %v8151, %v8155
        %v8159 = vsel %vm481, %v8146, 0
        %8161 = vmatprep.subr.mxu0 0.0
        %8162 = vmatpush1.msra.mxu0 0.0
        %8163 = vmatprep.subr.mxu0 0.0
        %8164 = vmatpush1.msra.mxu0 0.0
        %8165 = vmatprep.subr.mxu0 0.0
        %8166 = vmatpush1.msra.mxu0 0.0
        %8167 = vmatprep.subr.mxu0 0.0
        %8168 = vmatpush1.msra.mxu0 0.0
        %8169 = vmatprep.subr.mxu0 0.0
        %8170 = vmatpush1.msra.mxu0 0.0
        %8171 = vmatprep.subr.mxu0 0.0
        %8172 = vmatpush1.msra.mxu0 0.0
        %8173 = vmatprep.subr.mxu0 0.0
        %8174 = vmatpush1.msra.mxu0 0.0
        %8175 = vmatprep.subr.mxu0 0.0
        %8176 = vmatpush1.msra.mxu0 0.0
        %8177 = vmatprep.subr.mxu0 0.0
        %8178 = vmatpush1.msra.mxu0 0.0
        %8179 = vmatprep.subr.mxu0 0.0
        %8180 = vmatpush1.msra.mxu0 0.0
        %8181 = vmatprep.subr.mxu0 0.0
        %8182 = vmatpush1.msra.mxu0 0.0
        %8183 = vmatprep.subr.mxu0 0.0
        %8184 = vmatpush1.msra.mxu0 0.0
        %8185 = vmatprep.subr.mxu0 0.0
        %8186 = vmatpush1.msra.mxu0 %v8150
        %8187 = vmatprep.subr.mxu0 0.0
        %8188 = vmatpush1.msra.mxu0 %v8149
        %8189 = vmatprep.subr.mxu0 0.0
        %8190 = vmatpush1.msra.mxu0 %v8148
        %8191 = vmatprep.subr.mxu0 0.0
        %8192 = vmatpush1.msra.mxu0 %v8147
        %8193 = vmatprep.subr.mxu0 0.0
        %8194 = vmatpush2.msra.mxu0 0.0
        %8195 = vmatprep.subr.mxu0 0.0
        %8196 = vmatpush2.msra.mxu0 0.0
        %8197 = vmatprep.subr.mxu0 0.0
        %8198 = vmatpush2.msra.mxu0 0.0
        %8199 = vmatprep.subr.mxu0 0.0
        %8200 = vmatpush2.msra.mxu0 0.0
        %8201 = vmatprep.subr.mxu0 0.0
        %8202 = vmatpush2.msra.mxu0 0.0
        %8203 = vmatprep.subr.mxu0 0.0
        %8204 = vmatpush2.msra.mxu0 0.0
        %8205 = vmatprep.subr.mxu0 0.0
        %8206 = vmatpush2.msra.mxu0 0.0
        %8207 = vmatprep.subr.mxu0 0.0
        %8208 = vmatpush2.msra.mxu0 0.0
        %8209 = vmatprep.subr.mxu0 0.0
        %8210 = vmatpush2.msra.mxu0 0.0
        %8211 = vmatprep.subr.mxu0 0.0
        %8212 = vmatpush2.msra.mxu0 0.0
        %8213 = vmatprep.subr.mxu0 0.0
        %8214 = vmatpush2.msra.mxu0 0.0
        %8215 = vmatprep.subr.mxu0 0.0
        %8216 = vmatpush2.msra.mxu0 0.0
        %8217 = vmatprep.subr.mxu0 0.0
        %8218 = vmatpush2.msra.mxu0 0.0
        %8219 = vmatprep.subr.mxu0 0.0
        %8220 = vmatpush2.msra.mxu0 0.0
        %8221 = vmatprep.subr.mxu0 0.0
        %8222 = vmatpush2.msra.mxu0 0.0
        %8223 = vmatprep.subr.mxu0 0.0
        %8224 = vmatpush2.msra.mxu0 0.0
        %8225 = vmatprep.mubr.f32.mxu0 0.0
        %8226 = vmatmul.mubr.f32.gmra.mxu0 %v8159
        %v8227 = vpop.f32.mrf.mxu0
        %v8228 = vadd.f32 %v8156, %v8227
        %v8229 = vpop.f32.mrf.mxu0
        %8230 = vdwg.mxu0
        %v8231 = vmax.f32 %v8228, 0.0
        %v8232 = vld [vmem:[%s7] sm:$0xf]
        %v8233 = vld [vmem:[%s8] sm:$0x1]
        %v8235 = vlaneseq
        %v8236 = vshrl.u32 %v8235, 7
        %v8237 = vsub.s32 0, %v8236
        %v8238 = vrot.slane %v8233, %v8237
        %vm8240 = vcmask 31744
        %v8242 = vsel %vm8240, %v8231, 0
        %vm8244 = vcmask 1043456
        %v8246 = vsel %vm8244, %v8232, 0
        %8248 = vmatprep.subr.mxu0 0.0
        %8249 = vmatpush1.msra.mxu0 0.0
        %8250 = vmatprep.subr.mxu0 0.0
        %8251 = vmatpush1.msra.mxu0 0.0
        %8252 = vmatprep.subr.mxu0 0.0
        %8253 = vmatpush1.msra.mxu0 0.0
        %8254 = vmatprep.subr.mxu0 0.0
        %8255 = vmatpush1.msra.mxu0 0.0
        %8256 = vmatprep.subr.mxu0 0.0
        %8257 = vmatpush1.msra.mxu0 0.0
        %8258 = vmatprep.subr.mxu0 0.0
        %8259 = vmatpush1.msra.mxu0 0.0
        %8260 = vmatprep.subr.mxu0 0.0
        %8261 = vmatpush1.msra.mxu0 0.0
        %8262 = vmatprep.subr.mxu0 0.0
        %8263 = vmatpush1.msra.mxu0 0.0
        %8264 = vmatprep.subr.mxu0 0.0
        %8265 = vmatpush1.msra.mxu0 0.0
        %8266 = vmatprep.subr.mxu0 0.0
        %8267 = vmatpush1.msra.mxu0 0.0
        %8268 = vmatprep.subr.mxu0 0.0
        %8269 = vmatpush1.msra.mxu0 0.0
        %8270 = vmatprep.subr.mxu0 0.0
        %8271 = vmatpush1.msra.mxu0 0.0
        %8272 = vmatprep.subr.mxu0 0.0
        %8273 = vmatpush1.msra.mxu0 0.0
        %8274 = vmatprep.subr.mxu0 0.0
        %8275 = vmatpush1.msra.mxu0 0.0
        %8276 = vmatprep.subr.mxu0 0.0
        %8277 = vmatpush1.msra.mxu0 0.0
        %8278 = vmatprep.subr.mxu0 0.0
        %8279 = vmatpush1.msra.mxu0 %v8246
        %8280 = vmatprep.subr.mxu0 0.0
        %8281 = vmatpush2.msra.mxu0 0.0
        %8282 = vmatprep.subr.mxu0 0.0
        %8283 = vmatpush2.msra.mxu0 0.0
        %8284 = vmatprep.subr.mxu0 0.0
        %8285 = vmatpush2.msra.mxu0 0.0
        %8286 = vmatprep.subr.mxu0 0.0
        %8287 = vmatpush2.msra.mxu0 0.0
        %8288 = vmatprep.subr.mxu0 0.0
        %8289 = vmatpush2.msra.mxu0 0.0
        %8290 = vmatprep.subr.mxu0 0.0
        %8291 = vmatpush2.msra.mxu0 0.0
        %8292 = vmatprep.subr.mxu0 0.0
        %8293 = vmatpush2.msra.mxu0 0.0
        %8294 = vmatprep.subr.mxu0 0.0
        %8295 = vmatpush2.msra.mxu0 0.0
        %8296 = vmatprep.subr.mxu0 0.0
        %8297 = vmatpush2.msra.mxu0 0.0
        %8298 = vmatprep.subr.mxu0 0.0
        %8299 = vmatpush2.msra.mxu0 0.0
        %8300 = vmatprep.subr.mxu0 0.0
        %8301 = vmatpush2.msra.mxu0 0.0
        %8302 = vmatprep.subr.mxu0 0.0
        %8303 = vmatpush2.msra.mxu0 0.0
        %8304 = vmatprep.subr.mxu0 0.0
        %8305 = vmatpush2.msra.mxu0 0.0
        %8306 = vmatprep.subr.mxu0 0.0
        %8307 = vmatpush2.msra.mxu0 0.0
        %8308 = vmatprep.subr.mxu0 0.0
        %8309 = vmatpush2.msra.mxu0 0.0
        %8310 = vmatprep.subr.mxu0 0.0
        %8311 = vmatpush2.msra.mxu0 0.0
        %8312 = vmatprep.mubr.f32.mxu0 0.0
        %8313 = vmatmul.mubr.f32.gmra.mxu0 %v8242
        %v8314 = vpop.f32.mrf.mxu0
        %v8315 = vadd.f32 %v8238, %v8314
        %v8316 = vpop.f32.mrf.mxu0
        %8317 = vdwg.mxu0
        %8318 = vst.msk [vmem:[%s359] sm:$0xff] %vm8240, %v8231
        %vm8319 = vcmask 15360
        %8320 = vst.msk [vmem:[%s368] sm:$0xff] %vm8319, %v8315
        %p8321 = scmp.lt.s32.totalorder %s25, 1
        %s8322 = scalar_select %p8321, %s25, 1
        %s8323 = smul.addr %s8322, 8
        %s8324 = scalar_lea.vmem %s9, %s8323
        %s8325 = sand.u32 %s253, 1
        %s8326 = scalar_lea.sflag [#allocation12], %s8325
        %s8327 = sand.u32 %s253, 1
        %s8328 = smul.addr %s8327, 8
        %s8329 = scalar_lea.vmem [#allocation11], %s8328
        // Predicated region
        $region64: #{convlstm_head_forward.1} parent=55 // pred_check
          %p8330 = pneg %p237
        $region65: #{convlstm_head_forward.1} parent=55 // pred_check_branch
          %8332 = sbr.rel (%p8330) target = $region67
        $region66: #{convlstm_head_forward.1} parent=55 // pred_region
          _
        $region67: #{convlstm_head_forward.1} parent=55 // pred_fallthru
          _
        // Predicated region
        $region68: #{convlstm_head_forward.1} parent=55 // pred_check
          %p8333 = pneg %p263
        $region69: #{convlstm_head_forward.1} parent=55 // pred_check_branch
          %8335 = sbr.rel (%p8333) target = $region71
        $region70: #{convlstm_head_forward.1} parent=55 // pred_region
          %s8337 = ssub.s32 128, 128
          %8338 = vsyncadd %s8326, %s8337
          %s8339 = smul.addr %s25, 128
          %s8340 = scalar_lea.hbm %s10, %s8339
          %s8342 = sshll.u32 %s8329, 4
          %s8343 = int_to_ptr.vmem [resolvable:$true] %s8342
          %8345 = dma.vmem_to_hbm [thread:$0]  %s8343, 128, %s8340, %s8326
        $region71: #{convlstm_head_forward.1} parent=55 // pred_fallthru
          _
      $region56: #{convlstm_head_forward.1} parent=5 // pred_fallthru
        _
      %p8346 = scmp.le.s32.totalorder 2, %s20
      // Predicated region
      $region72: #{convlstm_head_forward.1} parent=5 // pred_check
        %p8347 = pneg %p8346
      $region73: #{convlstm_head_forward.1} parent=5 // pred_check_branch
        %8349 = sbr.rel (%p8347) target = $region75
      $region74: #{convlstm_head_forward.1} parent=5 // pred_region
        %s8350 = ssub.s32 %s20, 2
        // Predicated region
        $region76: #{convlstm_head_forward.1} parent=74 // pred_check
          %p8351 = pneg %p243
        $region77: #{convlstm_head_forward.1} parent=74 // pred_check_branch
          %8353 = sbr.rel (%p8351) target = $region79
        $region78: #{convlstm_head_forward.1} parent=74 // pred_region
          %p8354 = scmp.lt.s32.totalorder %s26, 1
          %s8355 = scalar_select %p8354, %s26, 1
          %s8356 = smul.addr %s8355, 8
          %s8357 = scalar_lea.vmem %s9, %s8356
        $region79: #{convlstm_head_forward.1} parent=74 // pred_fallthru
          _
        // Predicated region
        $region80: #{convlstm_head_forward.1} parent=74 // pred_check
          %p8358 = pneg %p269
        $region81: #{convlstm_head_forward.1} parent=74 // pred_check_branch
          %8360 = sbr.rel (%p8358) target = $region83
        $region82: #{convlstm_head_forward.1} parent=74 // pred_region
          %s8361 = sand.u32 %s254, 1
          %s8362 = scalar_lea.sflag [#allocation12], %s8361
          %s8363 = sand.u32 %s254, 1
          %s8364 = smul.addr %s8363, 8
          %s8365 = scalar_lea.vmem [#allocation11], %s8364
          %8366 = dma.done %s8362, 128
        $region83: #{convlstm_head_forward.1} parent=74 // pred_fallthru
          _
      $region75: #{convlstm_head_forward.1} parent=5 // pred_fallthru
        _
    $region6: #{convlstm_head_forward.1} parent=1 // loop_footer
      %s24 = sadd.s32 1, %s20
    $region7: #{convlstm_head_forward.1} parent=1 // loop_footer_branch
      %19 = sbr.rel target = $region3
    $region8: #{convlstm_head_forward.1} parent=1 // loop_exit
      _
    %8367 = vsyncpa [#allocation12], 1
    %s8368 = scalar_lea.sflag [#allocation12], 1
    %8369 = vsyncpa %s8368, 1

</llo_original>
